<compile_context>
chip_gen: v6e
topology: v6e:2x2x1
jax: 0.10.0
libtpu: 0.0.40
codegen_flags: <defaults>
</compile_context>

<pallas_src>
import functools

import jax
import jax.numpy as jnp
from jax import lax
from jax.experimental import pallas as pl
from jax.experimental.pallas import tpu as pltpu

LN_EPS = 1e-5                       # default eps for F.layer_norm and nn.LayerNorm
_PREC = lax.Precision.HIGHEST       # full-f32 matmul passes everywhere


def _mm_nt(a, b):
    """a @ b.T (contract last dim of both), f32 accumulation on the MXU."""
    return lax.dot_general(a, b, (((1,), (1,)), ((), ())),
                           preferred_element_type=jnp.float32,
                           precision=_PREC)


def _mm(a, b):
    """a @ b, f32 accumulation on the MXU."""
    return lax.dot_general(a, b, (((1,), (0,)), ((), ())),
                           preferred_element_type=jnp.float32,
                           precision=_PREC)


# ----------------------------------------------------------------------------
# Fused kernel: conv1(1x1)+relu -> conv2(1x1) -> LN(over L) -> encoder layer.
# x block: (1, L, Cin)   out block: (1, L, E)
# ----------------------------------------------------------------------------
def _fused_block_kernel(x_ref, w_f1_ref, p32_ref, p64_ref, o_ref, *, num_heads):
    E = p32_ref.shape[1]            # n_emb
    Fw = p64_ref.shape[1]           # n_fw
    H = num_heads
    Dh = E // H
    scale = 1.0 / jnp.sqrt(jnp.float32(Dh))

    x = x_ref[0]                    # (L, Cin)
    L = x.shape[0]

    # ---- packed parameter views (static row slices) -------------------------
    # p32 rows: w_qkv[0:3E) | wo[3E:4E) | wf1[4E:4E+Fw) | 10 bias/LN rows
    r = 0
    w_qkv = p32_ref[r:r + 3 * E, :]; r += 3 * E     # (3E, E)  [wq; wk; wv]
    wo    = p32_ref[r:r + E, :];     r += E         # (E, E)
    wf1   = p32_ref[r:r + Fw, :];    r += Fw        # (Fw, E)
    b_f2  = p32_ref[r:r + 1, :];     r += 1
    bq    = p32_ref[r:r + 1, :];     r += 1
    bk    = p32_ref[r:r + 1, :];     r += 1
    bv    = p32_ref[r:r + 1, :];     r += 1
    bo    = p32_ref[r:r + 1, :];     r += 1
    g1    = p32_ref[r:r + 1, :];     r += 1
    be1   = p32_ref[r:r + 1, :];     r += 1
    bf2   = p32_ref[r:r + 1, :];     r += 1
    g2    = p32_ref[r:r + 1, :];     r += 1
    be2   = p32_ref[r:r + 1, :];     r += 1
    # p64 rows: w_f2[0:E) | wf2[E:2E) | b_f1 | bf1
    w_f2 = p64_ref[0:E, :]                          # (E, Fw)
    wf2  = p64_ref[E:2 * E, :]                      # (E, Fw)
    b_f1 = p64_ref[2 * E:2 * E + 1, :]              # (1, Fw)
    bf1  = p64_ref[2 * E + 1:2 * E + 2, :]          # (1, Fw)

    # ---- conv1d(k=1) x2 + relu, computed L-major ----------------------------
    h1 = jnp.maximum(_mm_nt(x, w_f1_ref[...]) + b_f1, 0.0)       # (L, Fw)
    h2 = _mm_nt(h1, w_f2) + b_f2                                  # (L, E)

    # F.layer_norm over the original last dim (L): per embedding channel,
    # i.e. normalize over axis 0 in this L-major layout.  No affine params.
    mean = jnp.mean(h2, axis=0, keepdims=True)
    var = jnp.mean((h2 - mean) ** 2, axis=0, keepdims=True)
    h = (h2 - mean) * lax.rsqrt(var + LN_EPS)                     # (L, E)

    # ---- multi-head self-attention (eval mode) -------------------------------
    qkv = _mm_nt(h, w_qkv)                                        # (L, 3E)
    q = qkv[:, 0:E] + bq
    k = qkv[:, E:2 * E] + bk
    v = qkv[:, 2 * E:3 * E] + bv

    col = lax.broadcasted_iota(jnp.int32, (1, E), 1)
    attn = jnp.zeros((L, E), dtype=jnp.float32)
    for hd in range(H):  # static unroll over heads
        m = ((col >= hd * Dh) & (col < (hd + 1) * Dh)).astype(jnp.float32)
        # Masking q restricts the contraction to this head's columns (k needs
        # no mask); masking v keeps head outputs in disjoint columns so the
        # sum over heads reconstructs the concatenated multi-head output.
        s = _mm_nt(q * m, k) * scale                              # (L, L)
        s = s - jnp.max(s, axis=-1, keepdims=True)
        p = jnp.exp(s)
        p = p / jnp.sum(p, axis=-1, keepdims=True)                # exact softmax
        attn = attn + _mm(p, v * m)

    attn = _mm_nt(attn, wo) + bo                                  # output proj

    # ---- add & norm 1 ---------------------------------------------------------
    y = h + attn
    mean = jnp.mean(y, axis=-1, keepdims=True)
    var = jnp.mean((y - mean) ** 2, axis=-1, keepdims=True)
    y = (y - mean) * lax.rsqrt(var + LN_EPS) * g1 + be1

    # ---- feed-forward (linear1 -> relu -> linear2) ----------------------------
    f = jnp.maximum(_mm_nt(y, wf1) + bf1, 0.0)                    # (L, Fw)
    f = _mm_nt(f, wf2) + bf2                                      # (L, E)

    # ---- add & norm 2 ----------------------------------------------------------
    z = y + f
    mean = jnp.mean(z, axis=-1, keepdims=True)
    var = jnp.mean((z - mean) ** 2, axis=-1, keepdims=True)
    o_ref[0] = (z - mean) * lax.rsqrt(var + LN_EPS) * g2 + be2


# ----------------------------------------------------------------------------
# Wrapper: full KoiKoiEncoderBlock1 forward (single pallas_call).
# ----------------------------------------------------------------------------
def koikoi_encoder_block1(x_ncl, packed, num_heads):
    w_f1, p32, p64 = packed
    N, Cin, L = x_ncl.shape
    E = p32.shape[1]

    # Tiny glue permute so the kernel consumes L-major activations directly.
    x_nlc = jnp.transpose(x_ncl, (0, 2, 1))                       # (N, L, Cin)

    def full_spec(shape):
        return pl.BlockSpec(shape, lambda n: (0,) * len(shape))

    out_nle = pl.pallas_call(
        functools.partial(_fused_block_kernel, num_heads=num_heads),
        out_shape=jax.ShapeDtypeStruct((N, L, E), jnp.float32),
        grid=(N,),
        in_specs=[
            pl.BlockSpec((1, L, Cin), lambda n: (n, 0, 0)),
            full_spec(w_f1.shape),
            full_spec(p32.shape),
            full_spec(p64.shape),
        ],
        out_specs=pl.BlockSpec((1, L, E), lambda n: (n, 0, 0)),
        compiler_params=pltpu.CompilerParams(dimension_semantics=("parallel",)),
    )(x_nlc, w_f1, p32, p64)

    # Module returns (L, N, E) (the permute(2,0,1) convention).
    return jnp.transpose(out_nle, (1, 0, 2))


# ----------------------------------------------------------------------------
# Parameter packing (done once, outside the forward pass).
# ----------------------------------------------------------------------------
def pack_params(params):
    p32 = jnp.concatenate([
        params["wq"], params["wk"], params["wv"],     # rows [0, 3E)
        params["wo"],                                 # [3E, 4E)
        params["wf1"],                                # [4E, 4E+Fw)
        params["b_f2"],
        params["bq"], params["bk"], params["bv"],
        params["bo"],
        params["g1"], params["be1"],
        params["bf2"],
        params["g2"], params["be2"],
    ], axis=0).astype(jnp.float32)                    # (4E + Fw + 10, E)
    p64 = jnp.concatenate([
        params["w_f2"],                               # rows [0, E)
        params["wf2"],                                # [E, 2E)
        params["b_f1"],
        params["bf1"],
    ], axis=0).astype(jnp.float32)                    # (2E + 2, Fw)
    return params["w_f1"], p32, p64


# ----------------------------------------------------------------------------
# Pure-JAX reference (same math, full-f32 matmul precision) for validation
# ----------------------------------------------------------------------------
def reference(x_ncl, params, num_heads):
    mm = functools.partial(jnp.matmul, precision=_PREC)
    ein = functools.partial(jnp.einsum, precision=_PREC)

    w1, b1 = params["w_f1"], params["b_f1"]           # (Fw,Cin), (1,Fw)
    w2, b2 = params["w_f2"], params["b_f2"]           # (E,Fw),   (1,E)
    h = jnp.maximum(ein("oc,ncl->nol", w1, x_ncl) + b1.reshape(1, -1, 1), 0.0)
    h = ein("of,nfl->nol", w2, h) + b2.reshape(1, -1, 1)
    mean = h.mean(-1, keepdims=True)
    var = ((h - mean) ** 2).mean(-1, keepdims=True)
    h = (h - mean) / jnp.sqrt(var + LN_EPS)

    x = jnp.transpose(h, (0, 2, 1))                   # (N, L, E)
    N, L, E = x.shape
    H, Dh = num_heads, E // num_heads

    q = mm(x, params["wq"].T) + params["bq"]
    k = mm(x, params["wk"].T) + params["bk"]
    v = mm(x, params["wv"].T) + params["bv"]
    qh = q.reshape(N, L, H, Dh).transpose(0, 2, 1, 3)
    kh = k.reshape(N, L, H, Dh).transpose(0, 2, 1, 3)
    vh = v.reshape(N, L, H, Dh).transpose(0, 2, 1, 3)
    s = ein("nhld,nhmd->nhlm", qh, kh) / jnp.sqrt(jnp.float32(Dh))
    p = jax.nn.softmax(s, axis=-1)
    o = ein("nhlm,nhmd->nhld", p, vh).transpose(0, 2, 1, 3).reshape(N, L, E)
    attn = mm(o, params["wo"].T) + params["bo"]

    def ln(t, g, b):
        m = t.mean(-1, keepdims=True)
        va = ((t - m) ** 2).mean(-1, keepdims=True)
        return (t - m) / jnp.sqrt(va + LN_EPS) * g + b

    y = ln(x + attn, params["g1"], params["be1"])
    f = mm(jnp.maximum(mm(y, params["wf1"].T) + params["bf1"], 0.0),
           params["wf2"].T) + params["bf2"]
    z = ln(y + f, params["g2"], params["be2"])
    return jnp.transpose(z, (1, 0, 2))                # (L, N, E)


# ----------------------------------------------------------------------------
# Deterministic parameter construction (shapes from the module's __init__)
# ----------------------------------------------------------------------------
def make_params(key, n_input, n_emb, n_fw):
    ks = jax.random.split(key, 12)

    def w(k, shape, fan_in):
        return (jax.random.normal(k, shape, jnp.float32) / jnp.sqrt(fan_in)).astype(jnp.float32)

    in_proj_w = w(ks[4], (3 * n_emb, n_emb), n_emb)   # MHA in_proj_weight
    in_proj_b = 0.01 * jax.random.normal(ks[5], (3 * n_emb,), jnp.float32)

    return {
        # Conv1d(nInput, nFw, 1): weight (nFw, nInput, 1) -> (nFw, nInput)
        "w_f1": w(ks[0], (n_fw, n_input), n_input),
        "b_f1": 0.01 * jax.random.normal(ks[1], (1, n_fw), jnp.float32),
        # Conv1d(nFw, nEmb, 1)
        "w_f2": w(ks[2], (n_emb, n_fw), n_fw),
        "b_f2": 0.01 * jax.random.normal(ks[3], (1, n_emb), jnp.float32),
        # MultiheadAttention
        "wq": in_proj_w[:n_emb],
        "wk": in_proj_w[n_emb:2 * n_emb],
        "wv": in_proj_w[2 * n_emb:],
        "bq": in_proj_b[:n_emb].reshape(1, n_emb),
        "bk": in_proj_b[n_emb:2 * n_emb].reshape(1, n_emb),
        "bv": in_proj_b[2 * n_emb:].reshape(1, n_emb),
        "wo": w(ks[6], (n_emb, n_emb), n_emb),
        "bo": 0.01 * jax.random.normal(ks[7], (1, n_emb), jnp.float32),
        # norm1 / norm2 (PyTorch default init: weight=1, bias=0)
        "g1": jnp.ones((1, n_emb), jnp.float32),
        "be1": jnp.zeros((1, n_emb), jnp.float32),
        "g2": jnp.ones((1, n_emb), jnp.float32),
        "be2": jnp.zeros((1, n_emb), jnp.float32),
        # feed-forward: linear1 (nFw, nEmb), linear2 (nEmb, nFw)
        "wf1": w(ks[8], (n_fw, n_emb), n_emb),
        "bf1": 0.01 * jax.random.normal(ks[9], (1, n_fw), jnp.float32),
        "wf2": w(ks[10], (n_emb, n_fw), n_fw),
        "bf2": 0.01 * jax.random.normal(ks[11], (1, n_emb), jnp.float32),
    }


if __name__ == "__main__":
    # Small shapes consistent with the module: nInput=4, nEmb=32, nFw=64,
    # nAttnHead=4, batch N=2, sequence length L=16.  Input is NCL like Conv1d.
    N, n_input, L = 2, 4, 16
    n_emb, n_fw, n_head = 32, 64, 4

    key = jax.random.PRNGKey(0)
    kx, kp = jax.random.split(key)
    x = jax.random.normal(kx, (N, n_input, L), jnp.float32)
    params = make_params(kp, n_input, n_emb, n_fw)
    packed = pack_params(params)   # weight packing done once, outside forward

    out = koikoi_encoder_block1(x, packed, n_head)
    out = jax.block_until_ready(out)

    ref = jax.block_until_ready(reference(x, params, n_head))
    assert out.shape == (L, N, n_emb), out.shape
    # Kernel and reference both use full-f32 matmul precision and an exact
    # softmax reciprocal, so the expected max disagreement is ~1e-5; the 5e-3
    # bound only absorbs any residual backend-specific MXU pass differences.
    err = float(jnp.max(jnp.abs(out - ref)))
    assert jnp.allclose(out, ref, rtol=5e-3, atol=5e-3), err

    print("KERNEL_OK")
</pallas_src>

<mosaic_0001>
module attributes {stable_mosaic.version = 11 : i64} {
  func.func @_fused_block_kernel(%arg0: i32, %arg1: memref<1x16x4xf32, #tpu.memory_space<vmem>>, %arg2: memref<64x4xf32, #tpu.memory_space<vmem>>, %arg3: memref<202x32xf32, #tpu.memory_space<vmem>>, %arg4: memref<66x64xf32, #tpu.memory_space<vmem>>, %arg5: memref<1x16x32xf32, #tpu.memory_space<vmem>>) attributes {dimension_semantics = [#tpu.dimension_semantics<parallel>], iteration_bounds = array<i64: 2>, scalar_prefetch = 0 : i64, scratch_operands = 0 : i64, tpu.core_type = #tpu.core_type<tc>, window_params = [{transform_indices = @transform_0, window_bounds = array<i64: 1, 16, 4>}, {pipeline_mode = #tpu.pipeline_mode<synchronous>, transform_indices = @transform_1, window_bounds = array<i64: 64, 4>}, {pipeline_mode = #tpu.pipeline_mode<synchronous>, transform_indices = @transform_2, window_bounds = array<i64: 202, 32>}, {pipeline_mode = #tpu.pipeline_mode<synchronous>, transform_indices = @transform_3, window_bounds = array<i64: 66, 64>}, {transform_indices = @transform_4, window_bounds = array<i64: 1, 16, 32>}]} {
    %cst = arith.constant 8.000000e+00 : f32
    %0 = math.sqrt %cst : f32
    %cst_0 = arith.constant 1.000000e+00 : f32
    %1 = arith.divf %cst_0, %0 : f32
    %c0 = arith.constant 0 : index
    %c0_1 = arith.constant 0 : index
    %c0_2 = arith.constant 0 : index
    %2 = vector.load %arg1[%c0, %c0_1, %c0_2] : memref<1x16x4xf32, #tpu.memory_space<vmem>>, vector<1x16x4xf32>
    %3 = vector.shape_cast %2 : vector<1x16x4xf32> to vector<16x4xf32>
    %c0_3 = arith.constant 0 : index
    %c0_4 = arith.constant 0 : index
    %4 = vector.load %arg3[%c0_3, %c0_4] : memref<202x32xf32, #tpu.memory_space<vmem>>, vector<96x32xf32>
    %c96 = arith.constant 96 : index
    %c0_5 = arith.constant 0 : index
    %5 = vector.load %arg3[%c96, %c0_5] : memref<202x32xf32, #tpu.memory_space<vmem>>, vector<32x32xf32>
    %c128 = arith.constant 128 : index
    %c0_6 = arith.constant 0 : index
    %6 = vector.load %arg3[%c128, %c0_6] : memref<202x32xf32, #tpu.memory_space<vmem>>, vector<64x32xf32>
    %c192 = arith.constant 192 : index
    %c0_7 = arith.constant 0 : index
    %7 = vector.load %arg3[%c192, %c0_7] : memref<202x32xf32, #tpu.memory_space<vmem>>, vector<1x32xf32>
    %c193 = arith.constant 193 : index
    %c0_8 = arith.constant 0 : index
    %8 = vector.load %arg3[%c193, %c0_8] : memref<202x32xf32, #tpu.memory_space<vmem>>, vector<1x32xf32>
    %c194 = arith.constant 194 : index
    %c0_9 = arith.constant 0 : index
    %9 = vector.load %arg3[%c194, %c0_9] : memref<202x32xf32, #tpu.memory_space<vmem>>, vector<1x32xf32>
    %c195 = arith.constant 195 : index
    %c0_10 = arith.constant 0 : index
    %10 = vector.load %arg3[%c195, %c0_10] : memref<202x32xf32, #tpu.memory_space<vmem>>, vector<1x32xf32>
    %c196 = arith.constant 196 : index
    %c0_11 = arith.constant 0 : index
    %11 = vector.load %arg3[%c196, %c0_11] : memref<202x32xf32, #tpu.memory_space<vmem>>, vector<1x32xf32>
    %c197 = arith.constant 197 : index
    %c0_12 = arith.constant 0 : index
    %12 = vector.load %arg3[%c197, %c0_12] : memref<202x32xf32, #tpu.memory_space<vmem>>, vector<1x32xf32>
    %c198 = arith.constant 198 : index
    %c0_13 = arith.constant 0 : index
    %13 = vector.load %arg3[%c198, %c0_13] : memref<202x32xf32, #tpu.memory_space<vmem>>, vector<1x32xf32>
    %c199 = arith.constant 199 : index
    %c0_14 = arith.constant 0 : index
    %14 = vector.load %arg3[%c199, %c0_14] : memref<202x32xf32, #tpu.memory_space<vmem>>, vector<1x32xf32>
    %c200 = arith.constant 200 : index
    %c0_15 = arith.constant 0 : index
    %15 = vector.load %arg3[%c200, %c0_15] : memref<202x32xf32, #tpu.memory_space<vmem>>, vector<1x32xf32>
    %c201 = arith.constant 201 : index
    %c0_16 = arith.constant 0 : index
    %16 = vector.load %arg3[%c201, %c0_16] : memref<202x32xf32, #tpu.memory_space<vmem>>, vector<1x32xf32>
    %c0_17 = arith.constant 0 : index
    %c0_18 = arith.constant 0 : index
    %17 = vector.load %arg4[%c0_17, %c0_18] : memref<66x64xf32, #tpu.memory_space<vmem>>, vector<32x64xf32>
    %c32 = arith.constant 32 : index
    %c0_19 = arith.constant 0 : index
    %18 = vector.load %arg4[%c32, %c0_19] : memref<66x64xf32, #tpu.memory_space<vmem>>, vector<32x64xf32>
    %c64 = arith.constant 64 : index
    %c0_20 = arith.constant 0 : index
    %19 = vector.load %arg4[%c64, %c0_20] : memref<66x64xf32, #tpu.memory_space<vmem>>, vector<1x64xf32>
    %c65 = arith.constant 65 : index
    %c0_21 = arith.constant 0 : index
    %20 = vector.load %arg4[%c65, %c0_21] : memref<66x64xf32, #tpu.memory_space<vmem>>, vector<1x64xf32>
    %c0_22 = arith.constant 0 : index
    %c0_23 = arith.constant 0 : index
    %21 = vector.load %arg2[%c0_22, %c0_23] : memref<64x4xf32, #tpu.memory_space<vmem>>, vector<64x4xf32>
    %cst_24 = arith.constant dense<0.000000e+00> : vector<16x64xf32>
    %22 = tpu.matmul %3, %21, %cst_24 {dimension_numbers = #tpu.dot_dimension_numbers<[1], [1], [0], [0], [0, 0, 1, 0], [], []>, precision = #tpu.contract_precision<fp32>} : vector<16x4xf32>, vector<64x4xf32>, vector<16x64xf32> -> vector<16x64xf32>
    %23 = vector.broadcast %19 : vector<1x64xf32> to vector<16x64xf32>
    %24 = arith.addf %22, %23 : vector<16x64xf32>
    %cst_25 = arith.constant 0.000000e+00 : f32
    %25 = vector.broadcast %cst_25 : f32 to vector<16x64xf32>
    %26 = arith.maximumf %24, %25 : vector<16x64xf32>
    %cst_26 = arith.constant dense<0.000000e+00> : vector<16x32xf32>
    %27 = tpu.matmul %26, %17, %cst_26 {dimension_numbers = #tpu.dot_dimension_numbers<[1], [1], [0], [0], [0, 0, 1, 0], [], []>, precision = #tpu.contract_precision<fp32>} : vector<16x64xf32>, vector<32x64xf32>, vector<16x32xf32> -> vector<16x32xf32>
    %28 = vector.broadcast %7 : vector<1x32xf32> to vector<16x32xf32>
    %29 = arith.addf %27, %28 : vector<16x32xf32>
    %cst_27 = arith.constant dense<0.000000e+00> : vector<32xf32>
    %30 = vector.multi_reduction <add>, %29, %cst_27 [0] : vector<16x32xf32> to vector<32xf32>
    %31 = vector.shape_cast %30 : vector<32xf32> to vector<1x32xf32>
    %cst_28 = arith.constant 1.600000e+01 : f32
    %32 = vector.broadcast %cst_28 : f32 to vector<1x32xf32>
    %33 = arith.divf %31, %32 : vector<1x32xf32>
    %34 = vector.broadcast %33 : vector<1x32xf32> to vector<16x32xf32>
    %35 = arith.subf %29, %34 : vector<16x32xf32>
    %36 = arith.mulf %35, %35 : vector<16x32xf32>
    %cst_29 = arith.constant dense<0.000000e+00> : vector<32xf32>
    %37 = vector.multi_reduction <add>, %36, %cst_29 [0] : vector<16x32xf32> to vector<32xf32>
    %38 = vector.shape_cast %37 : vector<32xf32> to vector<1x32xf32>
    %cst_30 = arith.constant 1.600000e+01 : f32
    %39 = vector.broadcast %cst_30 : f32 to vector<1x32xf32>
    %40 = arith.divf %38, %39 : vector<1x32xf32>
    %41 = vector.broadcast %33 : vector<1x32xf32> to vector<16x32xf32>
    %42 = arith.subf %29, %41 : vector<16x32xf32>
    %cst_31 = arith.constant 9.99999974E-6 : f32
    %43 = vector.broadcast %cst_31 : f32 to vector<1x32xf32>
    %44 = arith.addf %40, %43 : vector<1x32xf32>
    %45 = math.rsqrt %44 : vector<1x32xf32>
    %46 = vector.broadcast %45 : vector<1x32xf32> to vector<16x32xf32>
    %47 = arith.mulf %42, %46 : vector<16x32xf32>
    %cst_32 = arith.constant dense<0.000000e+00> : vector<16x96xf32>
    %48 = tpu.matmul %47, %4, %cst_32 {dimension_numbers = #tpu.dot_dimension_numbers<[1], [1], [0], [0], [0, 0, 1, 0], [], []>, precision = #tpu.contract_precision<fp32>} : vector<16x32xf32>, vector<96x32xf32>, vector<16x96xf32> -> vector<16x96xf32>
    %49 = vector.extract_strided_slice %48 {offsets = [0, 0], sizes = [16, 32], strides = [1, 1]} : vector<16x96xf32> to vector<16x32xf32>
    %50 = vector.broadcast %8 : vector<1x32xf32> to vector<16x32xf32>
    %51 = arith.addf %49, %50 : vector<16x32xf32>
    %52 = vector.extract_strided_slice %48 {offsets = [0, 32], sizes = [16, 32], strides = [1, 1]} : vector<16x96xf32> to vector<16x32xf32>
    %53 = vector.broadcast %9 : vector<1x32xf32> to vector<16x32xf32>
    %54 = arith.addf %52, %53 : vector<16x32xf32>
    %55 = vector.extract_strided_slice %48 {offsets = [0, 64], sizes = [16, 32], strides = [1, 1]} : vector<16x96xf32> to vector<16x32xf32>
    %56 = vector.broadcast %10 : vector<1x32xf32> to vector<16x32xf32>
    %57 = arith.addf %55, %56 : vector<16x32xf32>
    %58 = tpu.iota {dimensions = array<i32: 1>} : vector<1x32xi32>
    %cst_33 = arith.constant 0.000000e+00 : f32
    %59 = vector.broadcast %cst_33 : f32 to vector<16x32xf32>
    %c0_i32 = arith.constant 0 : i32
    %60 = vector.broadcast %c0_i32 : i32 to vector<1x32xi32>
    %61 = arith.cmpi sge, %58, %60 : vector<1x32xi32>
    %c8_i32 = arith.constant 8 : i32
    %62 = vector.broadcast %c8_i32 : i32 to vector<1x32xi32>
    %63 = arith.cmpi slt, %58, %62 : vector<1x32xi32>
    %64 = arith.andi %61, %63 : vector<1x32xi1>
    %65 = arith.extui %64 : vector<1x32xi1> to vector<1x32xi32>
    %66 = arith.sitofp %65 : vector<1x32xi32> to vector<1x32xf32>
    %67 = vector.broadcast %66 : vector<1x32xf32> to vector<16x32xf32>
    %68 = arith.mulf %51, %67 : vector<16x32xf32>
    %cst_34 = arith.constant dense<0.000000e+00> : vector<16x16xf32>
    %69 = tpu.matmul %68, %54, %cst_34 {dimension_numbers = #tpu.dot_dimension_numbers<[1], [1], [0], [0], [0, 0, 1, 0], [], []>, precision = #tpu.contract_precision<fp32>} : vector<16x32xf32>, vector<16x32xf32>, vector<16x16xf32> -> vector<16x16xf32>
    %70 = vector.broadcast %1 : f32 to vector<16x16xf32>
    %71 = arith.mulf %69, %70 : vector<16x16xf32>
    %cst_35 = arith.constant dense<0xFF800000> : vector<16xf32>
    %72 = vector.multi_reduction <maximumf>, %71, %cst_35 [1] : vector<16x16xf32> to vector<16xf32>
    %73 = vector.shape_cast %72 : vector<16xf32> to vector<16x1xf32>
    %74 = vector.broadcast %73 : vector<16x1xf32> to vector<16x16xf32>
    %75 = arith.subf %71, %74 : vector<16x16xf32>
    %76 = math.exp %75 : vector<16x16xf32>
    %cst_36 = arith.constant dense<0.000000e+00> : vector<16xf32>
    %77 = vector.multi_reduction <add>, %76, %cst_36 [1] : vector<16x16xf32> to vector<16xf32>
    %78 = vector.shape_cast %77 : vector<16xf32> to vector<16x1xf32>
    %79 = vector.broadcast %78 : vector<16x1xf32> to vector<16x16xf32>
    %80 = arith.divf %76, %79 : vector<16x16xf32>
    %81 = vector.broadcast %66 : vector<1x32xf32> to vector<16x32xf32>
    %82 = arith.mulf %57, %81 : vector<16x32xf32>
    %cst_37 = arith.constant dense<0.000000e+00> : vector<16x32xf32>
    %83 = tpu.matmul %80, %82, %cst_37 {dimension_numbers = #tpu.dot_dimension_numbers<[1], [0], [0], [1], [0, 0, 1, 1], [], []>, precision = #tpu.contract_precision<fp32>} : vector<16x16xf32>, vector<16x32xf32>, vector<16x32xf32> -> vector<16x32xf32>
    %84 = arith.addf %59, %83 : vector<16x32xf32>
    %c8_i32_38 = arith.constant 8 : i32
    %85 = vector.broadcast %c8_i32_38 : i32 to vector<1x32xi32>
    %86 = arith.cmpi sge, %58, %85 : vector<1x32xi32>
    %c16_i32 = arith.constant 16 : i32
    %87 = vector.broadcast %c16_i32 : i32 to vector<1x32xi32>
    %88 = arith.cmpi slt, %58, %87 : vector<1x32xi32>
    %89 = arith.andi %86, %88 : vector<1x32xi1>
    %90 = arith.extui %89 : vector<1x32xi1> to vector<1x32xi32>
    %91 = arith.sitofp %90 : vector<1x32xi32> to vector<1x32xf32>
    %92 = vector.broadcast %91 : vector<1x32xf32> to vector<16x32xf32>
    %93 = arith.mulf %51, %92 : vector<16x32xf32>
    %cst_39 = arith.constant dense<0.000000e+00> : vector<16x16xf32>
    %94 = tpu.matmul %93, %54, %cst_39 {dimension_numbers = #tpu.dot_dimension_numbers<[1], [1], [0], [0], [0, 0, 1, 0], [], []>, precision = #tpu.contract_precision<fp32>} : vector<16x32xf32>, vector<16x32xf32>, vector<16x16xf32> -> vector<16x16xf32>
    %95 = vector.broadcast %1 : f32 to vector<16x16xf32>
    %96 = arith.mulf %94, %95 : vector<16x16xf32>
    %cst_40 = arith.constant dense<0xFF800000> : vector<16xf32>
    %97 = vector.multi_reduction <maximumf>, %96, %cst_40 [1] : vector<16x16xf32> to vector<16xf32>
    %98 = vector.shape_cast %97 : vector<16xf32> to vector<16x1xf32>
    %99 = vector.broadcast %98 : vector<16x1xf32> to vector<16x16xf32>
    %100 = arith.subf %96, %99 : vector<16x16xf32>
    %101 = math.exp %100 : vector<16x16xf32>
    %cst_41 = arith.constant dense<0.000000e+00> : vector<16xf32>
    %102 = vector.multi_reduction <add>, %101, %cst_41 [1] : vector<16x16xf32> to vector<16xf32>
    %103 = vector.shape_cast %102 : vector<16xf32> to vector<16x1xf32>
    %104 = vector.broadcast %103 : vector<16x1xf32> to vector<16x16xf32>
    %105 = arith.divf %101, %104 : vector<16x16xf32>
    %106 = vector.broadcast %91 : vector<1x32xf32> to vector<16x32xf32>
    %107 = arith.mulf %57, %106 : vector<16x32xf32>
    %cst_42 = arith.constant dense<0.000000e+00> : vector<16x32xf32>
    %108 = tpu.matmul %105, %107, %cst_42 {dimension_numbers = #tpu.dot_dimension_numbers<[1], [0], [0], [1], [0, 0, 1, 1], [], []>, precision = #tpu.contract_precision<fp32>} : vector<16x16xf32>, vector<16x32xf32>, vector<16x32xf32> -> vector<16x32xf32>
    %109 = arith.addf %84, %108 : vector<16x32xf32>
    %c16_i32_43 = arith.constant 16 : i32
    %110 = vector.broadcast %c16_i32_43 : i32 to vector<1x32xi32>
    %111 = arith.cmpi sge, %58, %110 : vector<1x32xi32>
    %c24_i32 = arith.constant 24 : i32
    %112 = vector.broadcast %c24_i32 : i32 to vector<1x32xi32>
    %113 = arith.cmpi slt, %58, %112 : vector<1x32xi32>
    %114 = arith.andi %111, %113 : vector<1x32xi1>
    %115 = arith.extui %114 : vector<1x32xi1> to vector<1x32xi32>
    %116 = arith.sitofp %115 : vector<1x32xi32> to vector<1x32xf32>
    %117 = vector.broadcast %116 : vector<1x32xf32> to vector<16x32xf32>
    %118 = arith.mulf %51, %117 : vector<16x32xf32>
    %cst_44 = arith.constant dense<0.000000e+00> : vector<16x16xf32>
    %119 = tpu.matmul %118, %54, %cst_44 {dimension_numbers = #tpu.dot_dimension_numbers<[1], [1], [0], [0], [0, 0, 1, 0], [], []>, precision = #tpu.contract_precision<fp32>} : vector<16x32xf32>, vector<16x32xf32>, vector<16x16xf32> -> vector<16x16xf32>
    %120 = vector.broadcast %1 : f32 to vector<16x16xf32>
    %121 = arith.mulf %119, %120 : vector<16x16xf32>
    %cst_45 = arith.constant dense<0xFF800000> : vector<16xf32>
    %122 = vector.multi_reduction <maximumf>, %121, %cst_45 [1] : vector<16x16xf32> to vector<16xf32>
    %123 = vector.shape_cast %122 : vector<16xf32> to vector<16x1xf32>
    %124 = vector.broadcast %123 : vector<16x1xf32> to vector<16x16xf32>
    %125 = arith.subf %121, %124 : vector<16x16xf32>
    %126 = math.exp %125 : vector<16x16xf32>
    %cst_46 = arith.constant dense<0.000000e+00> : vector<16xf32>
    %127 = vector.multi_reduction <add>, %126, %cst_46 [1] : vector<16x16xf32> to vector<16xf32>
    %128 = vector.shape_cast %127 : vector<16xf32> to vector<16x1xf32>
    %129 = vector.broadcast %128 : vector<16x1xf32> to vector<16x16xf32>
    %130 = arith.divf %126, %129 : vector<16x16xf32>
    %131 = vector.broadcast %116 : vector<1x32xf32> to vector<16x32xf32>
    %132 = arith.mulf %57, %131 : vector<16x32xf32>
    %cst_47 = arith.constant dense<0.000000e+00> : vector<16x32xf32>
    %133 = tpu.matmul %130, %132, %cst_47 {dimension_numbers = #tpu.dot_dimension_numbers<[1], [0], [0], [1], [0, 0, 1, 1], [], []>, precision = #tpu.contract_precision<fp32>} : vector<16x16xf32>, vector<16x32xf32>, vector<16x32xf32> -> vector<16x32xf32>
    %134 = arith.addf %109, %133 : vector<16x32xf32>
    %c24_i32_48 = arith.constant 24 : i32
    %135 = vector.broadcast %c24_i32_48 : i32 to vector<1x32xi32>
    %136 = arith.cmpi sge, %58, %135 : vector<1x32xi32>
    %c32_i32 = arith.constant 32 : i32
    %137 = vector.broadcast %c32_i32 : i32 to vector<1x32xi32>
    %138 = arith.cmpi slt, %58, %137 : vector<1x32xi32>
    %139 = arith.andi %136, %138 : vector<1x32xi1>
    %140 = arith.extui %139 : vector<1x32xi1> to vector<1x32xi32>
    %141 = arith.sitofp %140 : vector<1x32xi32> to vector<1x32xf32>
    %142 = vector.broadcast %141 : vector<1x32xf32> to vector<16x32xf32>
    %143 = arith.mulf %51, %142 : vector<16x32xf32>
    %cst_49 = arith.constant dense<0.000000e+00> : vector<16x16xf32>
    %144 = tpu.matmul %143, %54, %cst_49 {dimension_numbers = #tpu.dot_dimension_numbers<[1], [1], [0], [0], [0, 0, 1, 0], [], []>, precision = #tpu.contract_precision<fp32>} : vector<16x32xf32>, vector<16x32xf32>, vector<16x16xf32> -> vector<16x16xf32>
    %145 = vector.broadcast %1 : f32 to vector<16x16xf32>
    %146 = arith.mulf %144, %145 : vector<16x16xf32>
    %cst_50 = arith.constant dense<0xFF800000> : vector<16xf32>
    %147 = vector.multi_reduction <maximumf>, %146, %cst_50 [1] : vector<16x16xf32> to vector<16xf32>
    %148 = vector.shape_cast %147 : vector<16xf32> to vector<16x1xf32>
    %149 = vector.broadcast %148 : vector<16x1xf32> to vector<16x16xf32>
    %150 = arith.subf %146, %149 : vector<16x16xf32>
    %151 = math.exp %150 : vector<16x16xf32>
    %cst_51 = arith.constant dense<0.000000e+00> : vector<16xf32>
    %152 = vector.multi_reduction <add>, %151, %cst_51 [1] : vector<16x16xf32> to vector<16xf32>
    %153 = vector.shape_cast %152 : vector<16xf32> to vector<16x1xf32>
    %154 = vector.broadcast %153 : vector<16x1xf32> to vector<16x16xf32>
    %155 = arith.divf %151, %154 : vector<16x16xf32>
    %156 = vector.broadcast %141 : vector<1x32xf32> to vector<16x32xf32>
    %157 = arith.mulf %57, %156 : vector<16x32xf32>
    %cst_52 = arith.constant dense<0.000000e+00> : vector<16x32xf32>
    %158 = tpu.matmul %155, %157, %cst_52 {dimension_numbers = #tpu.dot_dimension_numbers<[1], [0], [0], [1], [0, 0, 1, 1], [], []>, precision = #tpu.contract_precision<fp32>} : vector<16x16xf32>, vector<16x32xf32>, vector<16x32xf32> -> vector<16x32xf32>
    %159 = arith.addf %134, %158 : vector<16x32xf32>
    %cst_53 = arith.constant dense<0.000000e+00> : vector<16x32xf32>
    %160 = tpu.matmul %159, %5, %cst_53 {dimension_numbers = #tpu.dot_dimension_numbers<[1], [1], [0], [0], [0, 0, 1, 0], [], []>, precision = #tpu.contract_precision<fp32>} : vector<16x32xf32>, vector<32x32xf32>, vector<16x32xf32> -> vector<16x32xf32>
    %161 = vector.broadcast %11 : vector<1x32xf32> to vector<16x32xf32>
    %162 = arith.addf %160, %161 : vector<16x32xf32>
    %163 = arith.addf %47, %162 : vector<16x32xf32>
    %cst_54 = arith.constant dense<0.000000e+00> : vector<16xf32>
    %164 = vector.multi_reduction <add>, %163, %cst_54 [1] : vector<16x32xf32> to vector<16xf32>
    %165 = vector.shape_cast %164 : vector<16xf32> to vector<16x1xf32>
    %cst_55 = arith.constant 3.200000e+01 : f32
    %166 = vector.broadcast %cst_55 : f32 to vector<16x1xf32>
    %167 = arith.divf %165, %166 : vector<16x1xf32>
    %168 = vector.broadcast %167 : vector<16x1xf32> to vector<16x32xf32>
    %169 = arith.subf %163, %168 : vector<16x32xf32>
    %170 = arith.mulf %169, %169 : vector<16x32xf32>
    %cst_56 = arith.constant dense<0.000000e+00> : vector<16xf32>
    %171 = vector.multi_reduction <add>, %170, %cst_56 [1] : vector<16x32xf32> to vector<16xf32>
    %172 = vector.shape_cast %171 : vector<16xf32> to vector<16x1xf32>
    %cst_57 = arith.constant 3.200000e+01 : f32
    %173 = vector.broadcast %cst_57 : f32 to vector<16x1xf32>
    %174 = arith.divf %172, %173 : vector<16x1xf32>
    %175 = vector.broadcast %167 : vector<16x1xf32> to vector<16x32xf32>
    %176 = arith.subf %163, %175 : vector<16x32xf32>
    %cst_58 = arith.constant 9.99999974E-6 : f32
    %177 = vector.broadcast %cst_58 : f32 to vector<16x1xf32>
    %178 = arith.addf %174, %177 : vector<16x1xf32>
    %179 = math.rsqrt %178 : vector<16x1xf32>
    %180 = vector.broadcast %179 : vector<16x1xf32> to vector<16x32xf32>
    %181 = arith.mulf %176, %180 : vector<16x32xf32>
    %182 = vector.broadcast %12 : vector<1x32xf32> to vector<16x32xf32>
    %183 = arith.mulf %181, %182 : vector<16x32xf32>
    %184 = vector.broadcast %13 : vector<1x32xf32> to vector<16x32xf32>
    %185 = arith.addf %183, %184 : vector<16x32xf32>
    %cst_59 = arith.constant dense<0.000000e+00> : vector<16x64xf32>
    %186 = tpu.matmul %185, %6, %cst_59 {dimension_numbers = #tpu.dot_dimension_numbers<[1], [1], [0], [0], [0, 0, 1, 0], [], []>, precision = #tpu.contract_precision<fp32>} : vector<16x32xf32>, vector<64x32xf32>, vector<16x64xf32> -> vector<16x64xf32>
    %187 = vector.broadcast %20 : vector<1x64xf32> to vector<16x64xf32>
    %188 = arith.addf %186, %187 : vector<16x64xf32>
    %cst_60 = arith.constant 0.000000e+00 : f32
    %189 = vector.broadcast %cst_60 : f32 to vector<16x64xf32>
    %190 = arith.maximumf %188, %189 : vector<16x64xf32>
    %cst_61 = arith.constant dense<0.000000e+00> : vector<16x32xf32>
    %191 = tpu.matmul %190, %18, %cst_61 {dimension_numbers = #tpu.dot_dimension_numbers<[1], [1], [0], [0], [0, 0, 1, 0], [], []>, precision = #tpu.contract_precision<fp32>} : vector<16x64xf32>, vector<32x64xf32>, vector<16x32xf32> -> vector<16x32xf32>
    %192 = vector.broadcast %14 : vector<1x32xf32> to vector<16x32xf32>
    %193 = arith.addf %191, %192 : vector<16x32xf32>
    %194 = arith.addf %185, %193 : vector<16x32xf32>
    %cst_62 = arith.constant dense<0.000000e+00> : vector<16xf32>
    %195 = vector.multi_reduction <add>, %194, %cst_62 [1] : vector<16x32xf32> to vector<16xf32>
    %196 = vector.shape_cast %195 : vector<16xf32> to vector<16x1xf32>
    %cst_63 = arith.constant 3.200000e+01 : f32
    %197 = vector.broadcast %cst_63 : f32 to vector<16x1xf32>
    %198 = arith.divf %196, %197 : vector<16x1xf32>
    %199 = vector.broadcast %198 : vector<16x1xf32> to vector<16x32xf32>
    %200 = arith.subf %194, %199 : vector<16x32xf32>
    %201 = arith.mulf %200, %200 : vector<16x32xf32>
    %cst_64 = arith.constant dense<0.000000e+00> : vector<16xf32>
    %202 = vector.multi_reduction <add>, %201, %cst_64 [1] : vector<16x32xf32> to vector<16xf32>
    %203 = vector.shape_cast %202 : vector<16xf32> to vector<16x1xf32>
    %cst_65 = arith.constant 3.200000e+01 : f32
    %204 = vector.broadcast %cst_65 : f32 to vector<16x1xf32>
    %205 = arith.divf %203, %204 : vector<16x1xf32>
    %206 = vector.broadcast %198 : vector<16x1xf32> to vector<16x32xf32>
    %207 = arith.subf %194, %206 : vector<16x32xf32>
    %cst_66 = arith.constant 9.99999974E-6 : f32
    %208 = vector.broadcast %cst_66 : f32 to vector<16x1xf32>
    %209 = arith.addf %205, %208 : vector<16x1xf32>
    %210 = math.rsqrt %209 : vector<16x1xf32>
    %211 = vector.broadcast %210 : vector<16x1xf32> to vector<16x32xf32>
    %212 = arith.mulf %207, %211 : vector<16x32xf32>
    %213 = vector.broadcast %15 : vector<1x32xf32> to vector<16x32xf32>
    %214 = arith.mulf %212, %213 : vector<16x32xf32>
    %215 = vector.broadcast %16 : vector<1x32xf32> to vector<16x32xf32>
    %216 = arith.addf %214, %215 : vector<16x32xf32>
    %c0_67 = arith.constant 0 : index
    %c0_68 = arith.constant 0 : index
    %c0_69 = arith.constant 0 : index
    %217 = vector.load %arg5[%c0_67, %c0_68, %c0_69] : memref<1x16x32xf32, #tpu.memory_space<vmem>>, vector<1x16x32xf32>
    %218 = vector.shape_cast %217 : vector<1x16x32xf32> to vector<16x32xf32>
    %219 = vector.shape_cast %216 : vector<16x32xf32> to vector<1x16x32xf32>
    tpu.vector_store %arg5[%c0_67, %c0_68, %c0_69], %219 {strides = array<i32>} : memref<1x16x32xf32, #tpu.memory_space<vmem>>, vector<1x16x32xf32>,
    return
  }
  func.func @transform_0(%arg0: i32) -> (i32, i32, i32) {
    %c0_i32 = arith.constant 0 : i32
    %c0_i32_0 = arith.constant 0 : i32
    %c0_i32_1 = arith.constant 0 : i32
    return %arg0, %c0_i32, %c0_i32_0 : i32, i32, i32
  }
  func.func @transform_1(%arg0: i32) -> (i32, i32) {
    %c0_i32 = arith.constant 0 : i32
    %c0_i32_0 = arith.constant 0 : i32
    %c0_i32_1 = arith.constant 0 : i32
    return %c0_i32, %c0_i32_0 : i32, i32
  }
  func.func @transform_2(%arg0: i32) -> (i32, i32) {
    %c0_i32 = arith.constant 0 : i32
    %c0_i32_0 = arith.constant 0 : i32
    %c0_i32_1 = arith.constant 0 : i32
    return %c0_i32, %c0_i32_0 : i32, i32
  }
  func.func @transform_3(%arg0: i32) -> (i32, i32) {
    %c0_i32 = arith.constant 0 : i32
    %c0_i32_0 = arith.constant 0 : i32
    %c0_i32_1 = arith.constant 0 : i32
    return %c0_i32, %c0_i32_0 : i32, i32
  }
  func.func @transform_4(%arg0: i32) -> (i32, i32, i32) {
    %c0_i32 = arith.constant 0 : i32
    %c0_i32_0 = arith.constant 0 : i32
    %c0_i32_1 = arith.constant 0 : i32
    return %arg0, %c0_i32, %c0_i32_0 : i32, i32, i32
  }
}

</mosaic_0001>

<llo_original>
// kernel: tpu_custom_call.1
$region0: #{tpu_custom_call.1}
  #allocation0 [shape = 'u32[]', space=smem, size = 0x4, offset = 0x4, fixed_abs, tag = 'smem constant byte address 0x4 - core index']
  #allocation1 [shape = 'u32[144,128]{1,0:T(1,128)}', space=vmem, size = 0x12000, scoped, tag = 'internal scratch']
  %s0 = inlined_call_operand.vmem [shape: f32[2,16,4], index: 0, kind: input, shape index: {}]
  %s1 = inlined_call_operand.vmem [shape: f32[64,4], index: 1, kind: input, shape index: {}]
  %s2 = inlined_call_operand.vmem [shape: f32[202,32], index: 2, kind: input, shape index: {}]
  %s3 = inlined_call_operand.vmem [shape: f32[66,64], index: 3, kind: input, shape index: {}]
  %s4 = inlined_call_operand.hbm [shape: f32[2,16,32], index: 4, kind: output, shape index: {}]
  %s5 = sld [smem:[#allocation0]]
  $region49: #{tpu_custom_call.1} parent=0
    _
  %s7 = ssub.s32 1, %s5
  %s8 = scalar_select 0, %s7, %s5
  $region1: #{tpu_custom_call.1} parent=0
    #allocation2 [shape = 'u8[16384]{0}', space=vmem, size = 0x4000, scoped, tag = 'output window, operand 0']
    #allocation3 [shape = 's32[2]{0}', space=sflag, size = 0x8, scoped, tag = 'scoped memory for tpu_custom_call.1']
    %9 = vsyncpa [#allocation3], 0
    %s10 = scalar_lea.sflag [#allocation3], 1
    %11 = vsyncpa %s10, 0
    loop: start=0, step=1, limit=4
    $region2: #{tpu_custom_call.1} parent=1 // loop_pre_header
      _
    $region3: #{tpu_custom_call.1} parent=1 // loop_header
      %s13 = sphi 0, %s17
      %p14 = scmp.ge.s32.totalorder %s13, 4
      %s23 = sphi 0, %s25
      %s26 = sphi 0, %s23
      %s27 = sphi 0, %s26
      %s43 = sphi 0, %s27
      %s47 = sphi 0, %s47
      %s49 = sphi 0, %s47
      %s50 = sphi 0, %s49
      %s64 = sphi 0, %s50
      %s68 = sphi 0, %s68
      %s70 = sphi 0, %s68
      %s71 = sphi 0, %s70
      %s85 = sphi 0, %s71
      %s89 = sphi 0, %s89
      %s91 = sphi 0, %s89
      %s92 = sphi 0, %s91
      %s106 = sphi 0, %s92
      %s112 = sphi 0, %s114
      %s115 = sphi 0, %s112
      %s116 = sphi 0, %s115
      %s132 = sphi 0, %s116
    $region4: #{tpu_custom_call.1} parent=1 // loop_header_branch
      %16 = sbr.rel (%p14) target = $region8
    $region5: #{tpu_custom_call.1} parent=1 // loop_body
      %s18 = ssub.s32 %s13, 1
      %s19 = ssub.s32 %s13, 2
      %s20 = sadd.s32 %s13, 1
      %s21 = ssub.s32 %s13, %s20
      %p22 = scmp.eq.s32.totalorder %s21, 0
      %s24 = sadd.s32 %s23, 1
      %s25 = scalar_select %p22, %s23, %s24
      %p28 = pneg %p22
      %p29 = scmp.eq.s32.totalorder %s13, 1
      %p30 = por %p28, %p29
      %p31 = scmp.ne.s32.totalorder %s23, %s26
      %p32 = scmp.eq.s32.totalorder %s13, 0
      %p33 = por %p31, %p32
      %p34 = scmp.ne.s32.totalorder %s23, %s26
      %p35 = scmp.eq.s32.totalorder %s18, 1
      %p36 = por %p34, %p35
      %p37 = scmp.ne.s32.totalorder %s26, %s27
      %p38 = scmp.eq.s32.totalorder %s18, 0
      %p39 = por %p37, %p38
      %p40 = scmp.ne.s32.totalorder %s26, %s27
      %p41 = scmp.eq.s32.totalorder %s19, 1
      %p42 = por %p40, %p41
      %p44 = scmp.ne.s32.totalorder %s27, %s43
      %p45 = scmp.eq.s32.totalorder %s19, 0
      %p46 = por %p44, %p45
      %s48 = sadd.s32 %s47, 1
      %p51 = scmp.eq.s32.totalorder %s13, 1
      %p52 = scmp.ne.s32.totalorder %s47, %s49
      %p53 = scmp.eq.s32.totalorder %s13, 0
      %p54 = por %p52, %p53
      %p55 = scmp.ne.s32.totalorder %s47, %s49
      %p56 = scmp.eq.s32.totalorder %s18, 1
      %p57 = por %p55, %p56
      %p58 = scmp.ne.s32.totalorder %s49, %s50
      %p59 = scmp.eq.s32.totalorder %s18, 0
      %p60 = por %p58, %p59
      %p61 = scmp.ne.s32.totalorder %s49, %s50
      %p62 = scmp.eq.s32.totalorder %s19, 1
      %p63 = por %p61, %p62
      %p65 = scmp.ne.s32.totalorder %s50, %s64
      %p66 = scmp.eq.s32.totalorder %s19, 0
      %p67 = por %p65, %p66
      %s69 = sadd.s32 %s68, 1
      %p72 = scmp.eq.s32.totalorder %s13, 1
      %p73 = scmp.ne.s32.totalorder %s68, %s70
      %p74 = scmp.eq.s32.totalorder %s13, 0
      %p75 = por %p73, %p74
      %p76 = scmp.ne.s32.totalorder %s68, %s70
      %p77 = scmp.eq.s32.totalorder %s18, 1
      %p78 = por %p76, %p77
      %p79 = scmp.ne.s32.totalorder %s70, %s71
      %p80 = scmp.eq.s32.totalorder %s18, 0
      %p81 = por %p79, %p80
      %p82 = scmp.ne.s32.totalorder %s70, %s71
      %p83 = scmp.eq.s32.totalorder %s19, 1
      %p84 = por %p82, %p83
      %p86 = scmp.ne.s32.totalorder %s71, %s85
      %p87 = scmp.eq.s32.totalorder %s19, 0
      %p88 = por %p86, %p87
      %s90 = sadd.s32 %s89, 1
      %p93 = scmp.eq.s32.totalorder %s13, 1
      %p94 = scmp.ne.s32.totalorder %s89, %s91
      %p95 = scmp.eq.s32.totalorder %s13, 0
      %p96 = por %p94, %p95
      %p97 = scmp.ne.s32.totalorder %s89, %s91
      %p98 = scmp.eq.s32.totalorder %s18, 1
      %p99 = por %p97, %p98
      %p100 = scmp.ne.s32.totalorder %s91, %s92
      %p101 = scmp.eq.s32.totalorder %s18, 0
      %p102 = por %p100, %p101
      %p103 = scmp.ne.s32.totalorder %s91, %s92
      %p104 = scmp.eq.s32.totalorder %s19, 1
      %p105 = por %p103, %p104
      %p107 = scmp.ne.s32.totalorder %s92, %s106
      %p108 = scmp.eq.s32.totalorder %s19, 0
      %p109 = por %p107, %p108
      %s110 = ssub.s32 %s13, %s20
      %p111 = scmp.eq.s32.totalorder %s110, 0
      %s113 = sadd.s32 %s112, 1
      %s114 = scalar_select %p111, %s112, %s113
      %p117 = pneg %p111
      %p118 = scmp.eq.s32.totalorder %s13, 1
      %p119 = por %p117, %p118
      %p120 = scmp.ne.s32.totalorder %s112, %s115
      %p121 = scmp.eq.s32.totalorder %s13, 0
      %p122 = por %p120, %p121
      %p123 = scmp.ne.s32.totalorder %s112, %s115
      %p124 = scmp.eq.s32.totalorder %s18, 1
      %p125 = por %p123, %p124
      %p126 = scmp.ne.s32.totalorder %s115, %s116
      %p127 = scmp.eq.s32.totalorder %s18, 0
      %p128 = por %p126, %p127
      %p129 = scmp.ne.s32.totalorder %s115, %s116
      %p130 = scmp.eq.s32.totalorder %s19, 1
      %p131 = por %p129, %p130
      %p133 = scmp.ne.s32.totalorder %s116, %s132
      %p134 = scmp.eq.s32.totalorder %s19, 0
      %p135 = por %p133, %p134
      %p136 = scmp.le.s32.totalorder 1, %s13
      %p137 = scmp.lt.s32.totalorder %s13, 3
      %p138 = pnand %p136, %p137
      %p139 = pneg %p138
      // Predicated region
      $region9: #{tpu_custom_call.1} parent=5 // pred_check
        _
      $region10: #{tpu_custom_call.1} parent=5 // pred_check_branch
        %141 = sbr.rel (%p138) target = $region12
      $region11: #{tpu_custom_call.1} parent=5 // pred_region
        %s142 = ssub.s32 %s13, 1
        // Predicated region
        $region13: #{tpu_custom_call.1} parent=11 // pred_check
          %p143 = pneg %p60
        $region14: #{tpu_custom_call.1} parent=11 // pred_check_branch
          %145 = sbr.rel (%p143) target = $region16
        $region15: #{tpu_custom_call.1} parent=11 // pred_region
          _
        $region16: #{tpu_custom_call.1} parent=11 // pred_fallthru
          _
        // Predicated region
        $region17: #{tpu_custom_call.1} parent=11 // pred_check
          %p146 = pneg %p81
        $region18: #{tpu_custom_call.1} parent=11 // pred_check_branch
          %148 = sbr.rel (%p146) target = $region20
        $region19: #{tpu_custom_call.1} parent=11 // pred_region
          _
        $region20: #{tpu_custom_call.1} parent=11 // pred_fallthru
          _
        // Predicated region
        $region21: #{tpu_custom_call.1} parent=11 // pred_check
          %p149 = pneg %p102
        $region22: #{tpu_custom_call.1} parent=11 // pred_check_branch
          %151 = sbr.rel (%p149) target = $region24
        $region23: #{tpu_custom_call.1} parent=11 // pred_region
          _
        $region24: #{tpu_custom_call.1} parent=11 // pred_fallthru
          _
      $region12: #{tpu_custom_call.1} parent=5 // pred_fallthru
        _
      %p152 = scmp.lt.s32.totalorder %s13, 2
      // Predicated region
      $region25: #{tpu_custom_call.1} parent=5 // pred_check
        %p153 = pneg %p152
      $region26: #{tpu_custom_call.1} parent=5 // pred_check_branch
        %155 = sbr.rel (%p153) target = $region28
      $region27: #{tpu_custom_call.1} parent=5 // pred_region
        // Predicated region
        $region29: #{tpu_custom_call.1} parent=27 // pred_check
          %p156 = pneg %p33
        $region30: #{tpu_custom_call.1} parent=27 // pred_check_branch
          %158 = sbr.rel (%p156) target = $region32
        $region31: #{tpu_custom_call.1} parent=27 // pred_region
          %p159 = scmp.lt.s32.totalorder %s13, 1
          %s160 = scalar_select %p159, %s13, 1
          %s161 = smul.addr %s160, 2
          %s162 = smul.addr %s161, 8
          %s163 = scalar_lea.vmem %s0, %s162
        $region32: #{tpu_custom_call.1} parent=27 // pred_fallthru
          _
      $region28: #{tpu_custom_call.1} parent=5 // pred_fallthru
        _
      %p164 = scmp.le.s32.totalorder 1, %s13
      %p165 = scmp.lt.s32.totalorder %s13, 3
      %p166 = pnand %p164, %p165
      %p167 = pneg %p166
      // Predicated region
      $region33: #{tpu_custom_call.1} parent=5 // pred_check
        _
      $region34: #{tpu_custom_call.1} parent=5 // pred_check_branch
        %169 = sbr.rel (%p166) target = $region36
      $region35: #{tpu_custom_call.1} parent=5 // pred_region
        %s170 = ssub.s32 %s13, 1
        %p171 = scmp.lt.s32.totalorder %s18, 1
        %s172 = scalar_select %p171, %s18, 1
        %s173 = smul.addr %s172, 2
        %s174 = smul.addr %s173, 8
        %s175 = scalar_lea.vmem %s0, %s174
        %p176 = pneg %p39
        %p177 = pneg %p36
        %p178 = pneg %p60
        %p179 = pneg %p57
        %p180 = pneg %p81
        %p181 = pneg %p78
        %p182 = pneg %p102
        %p183 = pneg %p99
        %p184 = pneg %p128
        %p185 = pneg %p125
        %s186 = sand.u32 %s115, 1
        %s187 = scalar_lea.sflag [#allocation3], %s186
        %s188 = sand.u32 %s115, 1
        %s189 = smul.addr %s188, 16
        %s190 = scalar_lea.vmem [#allocation2], %s189
        %p191 = scmp.lt.s32.totalorder %s18, 1
        %s192 = scalar_select %p191, %s18, 1
        %s193 = smul.addr %s192, 2
        %s194 = smul.addr %s193, 8
        %s195 = scalar_lea.vmem %s0, %s194
        %v196 = vld [vmem:[%s195] sm:$0xff]
        %v197 = vld [vmem:[%s195 + $0x8] sm:$0xff]
        %v198 = vld [vmem:[%s2] sm:$0xff]
        %v199 = vld [vmem:[%s2 + $0x8] sm:$0xff]
        %v200 = vld [vmem:[%s2 + $0x10] sm:$0xff]
        %v201 = vld [vmem:[%s2 + $0x18] sm:$0xff]
        %v202 = vld [vmem:[%s2 + $0x20] sm:$0xff]
        %v203 = vld [vmem:[%s2 + $0x28] sm:$0xff]
        %v204 = vld [vmem:[%s2 + $0x30] sm:$0xff]
        %v205 = vld [vmem:[%s2 + $0x38] sm:$0xff]
        %v206 = vld [vmem:[%s2 + $0x40] sm:$0xff]
        %v207 = vld [vmem:[%s2 + $0x48] sm:$0xff]
        %v208 = vld [vmem:[%s2 + $0x50] sm:$0xff]
        %v209 = vld [vmem:[%s2 + $0x58] sm:$0xff]
        %v210 = vld [vmem:[%s2 + $0x60] sm:$0xff]
        %v211 = vld [vmem:[%s2 + $0x68] sm:$0xff]
        %v212 = vld [vmem:[%s2 + $0x70] sm:$0xff]
        %v213 = vld [vmem:[%s2 + $0x78] sm:$0xff]
        %v214 = vld [vmem:[%s2 + $0x80] sm:$0xff]
        %v215 = vld [vmem:[%s2 + $0x88] sm:$0xff]
        %v216 = vld [vmem:[%s2 + $0x90] sm:$0xff]
        %v217 = vld [vmem:[%s2 + $0x98] sm:$0xff]
        %v218 = vld [vmem:[%s2 + $0xa0] sm:$0xff]
        %v219 = vld [vmem:[%s2 + $0xa8] sm:$0xff]
        %v220 = vld [vmem:[%s2 + $0xb0] sm:$0xff]
        %v221 = vld [vmem:[%s2 + $0xb8] sm:$0xff]
        %v222 = vld [vmem:[%s2 + $0xc0] sm:$0x1]
        %v223 = vld [vmem:[%s2 + $0xc1] sm:$0x1]
        %v224 = vld [vmem:[%s2 + $0xc2] sm:$0x1]
        %v225 = vld [vmem:[%s2 + $0xc3] sm:$0x1]
        %v226 = vld [vmem:[%s2 + $0xc4] sm:$0x1]
        %v227 = vld [vmem:[%s2 + $0xc5] sm:$0x1]
        %v228 = vld [vmem:[%s2 + $0xc6] sm:$0x1]
        %v229 = vld [vmem:[%s2 + $0xc7] sm:$0x1]
        %v230 = vld [vmem:[%s2 + $0xc8] sm:$0x1]
        %v231 = vld [vmem:[%s2 + $0xc9] sm:$0x1]
        %v232 = vld [vmem:[%s3] sm:$0xff]
        %v233 = vld [vmem:[%s3 + $0x8] sm:$0xff]
        %v234 = vld [vmem:[%s3 + $0x10] sm:$0xff]
        %v235 = vld [vmem:[%s3 + $0x18] sm:$0xff]
        %v236 = vld [vmem:[%s3 + $0x20] sm:$0xff]
        %v237 = vld [vmem:[%s3 + $0x28] sm:$0xff]
        %v238 = vld [vmem:[%s3 + $0x30] sm:$0xff]
        %v239 = vld [vmem:[%s3 + $0x38] sm:$0xff]
        %v240 = vld [vmem:[%s3 + $0x40] sm:$0x1]
        %v241 = vld [vmem:[%s3 + $0x41] sm:$0x1]
        %v242 = vld [vmem:[%s1] sm:$0xff]
        %v243 = vld [vmem:[%s1 + $0x8] sm:$0xff]
        %v244 = vld [vmem:[%s1 + $0x10] sm:$0xff]
        %v245 = vld [vmem:[%s1 + $0x18] sm:$0xff]
        %v246 = vld [vmem:[%s1 + $0x20] sm:$0xff]
        %v247 = vld [vmem:[%s1 + $0x28] sm:$0xff]
        %v248 = vld [vmem:[%s1 + $0x30] sm:$0xff]
        %v249 = vld [vmem:[%s1 + $0x38] sm:$0xff]
        %v250 = vlaneseq
        %v251 = vshrl.u32 %v250, 7
        %v252 = vsub.s32 0, %v251
        %v253 = vrot.slane %v240, %v252
        %vm254 = vcmask 31744
        %v256 = vsel %vm254, %v196, 0
        %v259 = vsel %vm254, %v197, 0
        %v262 = vsel %vm254, %v242, 0
        %v265 = vsel %vm254, %v243, 0
        %v268 = vsel %vm254, %v244, 0
        %v271 = vsel %vm254, %v245, 0
        %v274 = vsel %vm254, %v246, 0
        %v277 = vsel %vm254, %v247, 0
        %v280 = vsel %vm254, %v248, 0
        %v283 = vsel %vm254, %v249, 0
        %285 = vmatprep.subr.mxu0 0.0
        %286 = vmatpush1.xpose.msra.mxu0 0.0
        %287 = vmatprep.subr.mxu0 0.0
        %288 = vmatpush1.xpose.msra.mxu0 0.0
        %289 = vmatprep.subr.mxu0 0.0
        %290 = vmatpush1.xpose.msra.mxu0 0.0
        %291 = vmatprep.subr.mxu0 0.0
        %292 = vmatpush1.xpose.msra.mxu0 0.0
        %293 = vmatprep.subr.mxu0 0.0
        %294 = vmatpush1.xpose.msra.mxu0 0.0
        %295 = vmatprep.subr.mxu0 0.0
        %296 = vmatpush1.xpose.msra.mxu0 0.0
        %297 = vmatprep.subr.mxu0 0.0
        %298 = vmatpush1.xpose.msra.mxu0 0.0
        %299 = vmatprep.subr.mxu0 0.0
        %300 = vmatpush1.xpose.msra.mxu0 0.0
        %301 = vmatprep.subr.mxu0 0.0
        %v302 = vand.u32 %v283, 4294901760
        %303 = vmatpush1.xpose.msra.mxu0 %v302
        %304 = vmatprep.subr.mxu0 0.0
        %v305 = vand.u32 %v280, 4294901760
        %306 = vmatpush1.xpose.msra.mxu0 %v305
        %307 = vmatprep.subr.mxu0 0.0
        %v308 = vand.u32 %v277, 4294901760
        %309 = vmatpush1.xpose.msra.mxu0 %v308
        %310 = vmatprep.subr.mxu0 0.0
        %v311 = vand.u32 %v274, 4294901760
        %312 = vmatpush1.xpose.msra.mxu0 %v311
        %313 = vmatprep.subr.mxu0 0.0
        %v314 = vand.u32 %v271, 4294901760
        %315 = vmatpush1.xpose.msra.mxu0 %v314
        %316 = vmatprep.subr.mxu0 0.0
        %v317 = vand.u32 %v268, 4294901760
        %318 = vmatpush1.xpose.msra.mxu0 %v317
        %319 = vmatprep.subr.mxu0 0.0
        %v320 = vand.u32 %v265, 4294901760
        %321 = vmatpush1.xpose.msra.mxu0 %v320
        %322 = vmatprep.subr.mxu0 0.0
        %v323 = vand.u32 %v262, 4294901760
        %324 = vmatpush1.xpose.msra.mxu0 %v323
        %325 = vmatprep.subr.mxu0 0.0
        %326 = vmatpush2.xpose.msra.mxu0 0.0
        %327 = vmatprep.subr.mxu0 0.0
        %328 = vmatpush2.xpose.msra.mxu0 0.0
        %329 = vmatprep.subr.mxu0 0.0
        %330 = vmatpush2.xpose.msra.mxu0 0.0
        %331 = vmatprep.subr.mxu0 0.0
        %332 = vmatpush2.xpose.msra.mxu0 0.0
        %333 = vmatprep.subr.mxu0 0.0
        %334 = vmatpush2.xpose.msra.mxu0 0.0
        %335 = vmatprep.subr.mxu0 0.0
        %336 = vmatpush2.xpose.msra.mxu0 0.0
        %337 = vmatprep.subr.mxu0 0.0
        %338 = vmatpush2.xpose.msra.mxu0 0.0
        %339 = vmatprep.subr.mxu0 0.0
        %340 = vmatpush2.xpose.msra.mxu0 0.0
        %341 = vmatprep.subr.mxu0 0.0
        %342 = vmatpush2.xpose.msra.mxu0 0.0
        %343 = vmatprep.subr.mxu0 0.0
        %344 = vmatpush2.xpose.msra.mxu0 0.0
        %345 = vmatprep.subr.mxu0 0.0
        %346 = vmatpush2.xpose.msra.mxu0 0.0
        %347 = vmatprep.subr.mxu0 0.0
        %348 = vmatpush2.xpose.msra.mxu0 0.0
        %349 = vmatprep.subr.mxu0 0.0
        %350 = vmatpush2.xpose.msra.mxu0 0.0
        %351 = vmatprep.subr.mxu0 0.0
        %352 = vmatpush2.xpose.msra.mxu0 0.0
        %353 = vmatprep.subr.mxu0 0.0
        %354 = vmatpush2.xpose.msra.mxu0 0.0
        %355 = vmatprep.subr.mxu0 0.0
        %356 = vmatpush2.xpose.msra.mxu0 0.0
        %357 = vmatprep.mubr.f32.mxu0 0.0
        %v358 = vand.u32 %v256, 4294901760
        %v359 = vsub.f32 %v256, %v358
        %v360 = vand.u32 %v359, 4294901760
        %v361 = vsub.f32 %v359, %v360
        %v362 = vand.u32 %v361, 4294901760
        %363 = vmatmul.mubr.f32.gmra.mxu0 %v362
        %v364 = vpop.f32.mrf.mxu0
        %v365 = vadd.f32 %v253, %v364
        %v366 = vpop.f32.mrf.mxu0
        %367 = vmatprep.mubr.f32.mxu0 0.0
        %v368 = vand.u32 %v259, 4294901760
        %v369 = vsub.f32 %v259, %v368
        %v370 = vand.u32 %v369, 4294901760
        %v371 = vsub.f32 %v369, %v370
        %v372 = vand.u32 %v371, 4294901760
        %373 = vmatmul.mubr.f32.gmra.mxu0 %v372
        %v374 = vpop.f32.mrf.mxu0
        %v375 = vadd.f32 %v253, %v374
        %v376 = vpop.f32.mrf.mxu0
        %377 = vdwg.mxu0
        %378 = vmatprep.subr.mxu0 0.0
        %379 = vmatpush1.xpose.msra.mxu0 0.0
        %380 = vmatprep.subr.mxu0 0.0
        %381 = vmatpush1.xpose.msra.mxu0 0.0
        %382 = vmatprep.subr.mxu0 0.0
        %383 = vmatpush1.xpose.msra.mxu0 0.0
        %384 = vmatprep.subr.mxu0 0.0
        %385 = vmatpush1.xpose.msra.mxu0 0.0
        %386 = vmatprep.subr.mxu0 0.0
        %387 = vmatpush1.xpose.msra.mxu0 0.0
        %388 = vmatprep.subr.mxu0 0.0
        %389 = vmatpush1.xpose.msra.mxu0 0.0
        %390 = vmatprep.subr.mxu0 0.0
        %391 = vmatpush1.xpose.msra.mxu0 0.0
        %392 = vmatprep.subr.mxu0 0.0
        %393 = vmatpush1.xpose.msra.mxu0 0.0
        %394 = vmatprep.subr.mxu0 0.0
        %v395 = vand.u32 %v283, 4294901760
        %v396 = vsub.f32 %v283, %v395
        %v397 = vand.u32 %v396, 4294901760
        %v398 = vsub.f32 %v396, %v397
        %v399 = vand.u32 %v398, 4294901760
        %400 = vmatpush1.xpose.msra.mxu0 %v399
        %401 = vmatprep.subr.mxu0 0.0
        %v402 = vand.u32 %v280, 4294901760
        %v403 = vsub.f32 %v280, %v402
        %v404 = vand.u32 %v403, 4294901760
        %v405 = vsub.f32 %v403, %v404
        %v406 = vand.u32 %v405, 4294901760
        %407 = vmatpush1.xpose.msra.mxu0 %v406
        %408 = vmatprep.subr.mxu0 0.0
        %v409 = vand.u32 %v277, 4294901760
        %v410 = vsub.f32 %v277, %v409
        %v411 = vand.u32 %v410, 4294901760
        %v412 = vsub.f32 %v410, %v411
        %v413 = vand.u32 %v412, 4294901760
        %414 = vmatpush1.xpose.msra.mxu0 %v413
        %415 = vmatprep.subr.mxu0 0.0
        %v416 = vand.u32 %v274, 4294901760
        %v417 = vsub.f32 %v274, %v416
        %v418 = vand.u32 %v417, 4294901760
        %v419 = vsub.f32 %v417, %v418
        %v420 = vand.u32 %v419, 4294901760
        %421 = vmatpush1.xpose.msra.mxu0 %v420
        %422 = vmatprep.subr.mxu0 0.0
        %v423 = vand.u32 %v271, 4294901760
        %v424 = vsub.f32 %v271, %v423
        %v425 = vand.u32 %v424, 4294901760
        %v426 = vsub.f32 %v424, %v425
        %v427 = vand.u32 %v426, 4294901760
        %428 = vmatpush1.xpose.msra.mxu0 %v427
        %429 = vmatprep.subr.mxu0 0.0
        %v430 = vand.u32 %v268, 4294901760
        %v431 = vsub.f32 %v268, %v430
        %v432 = vand.u32 %v431, 4294901760
        %v433 = vsub.f32 %v431, %v432
        %v434 = vand.u32 %v433, 4294901760
        %435 = vmatpush1.xpose.msra.mxu0 %v434
        %436 = vmatprep.subr.mxu0 0.0
        %v437 = vand.u32 %v265, 4294901760
        %v438 = vsub.f32 %v265, %v437
        %v439 = vand.u32 %v438, 4294901760
        %v440 = vsub.f32 %v438, %v439
        %v441 = vand.u32 %v440, 4294901760
        %442 = vmatpush1.xpose.msra.mxu0 %v441
        %443 = vmatprep.subr.mxu0 0.0
        %v444 = vand.u32 %v262, 4294901760
        %v445 = vsub.f32 %v262, %v444
        %v446 = vand.u32 %v445, 4294901760
        %v447 = vsub.f32 %v445, %v446
        %v448 = vand.u32 %v447, 4294901760
        %449 = vmatpush1.xpose.msra.mxu0 %v448
        %450 = vmatprep.subr.mxu0 0.0
        %451 = vmatpush2.xpose.msra.mxu0 0.0
        %452 = vmatprep.subr.mxu0 0.0
        %453 = vmatpush2.xpose.msra.mxu0 0.0
        %454 = vmatprep.subr.mxu0 0.0
        %455 = vmatpush2.xpose.msra.mxu0 0.0
        %456 = vmatprep.subr.mxu0 0.0
        %457 = vmatpush2.xpose.msra.mxu0 0.0
        %458 = vmatprep.subr.mxu0 0.0
        %459 = vmatpush2.xpose.msra.mxu0 0.0
        %460 = vmatprep.subr.mxu0 0.0
        %461 = vmatpush2.xpose.msra.mxu0 0.0
        %462 = vmatprep.subr.mxu0 0.0
        %463 = vmatpush2.xpose.msra.mxu0 0.0
        %464 = vmatprep.subr.mxu0 0.0
        %465 = vmatpush2.xpose.msra.mxu0 0.0
        %466 = vmatprep.subr.mxu0 0.0
        %467 = vmatpush2.xpose.msra.mxu0 0.0
        %468 = vmatprep.subr.mxu0 0.0
        %469 = vmatpush2.xpose.msra.mxu0 0.0
        %470 = vmatprep.subr.mxu0 0.0
        %471 = vmatpush2.xpose.msra.mxu0 0.0
        %472 = vmatprep.subr.mxu0 0.0
        %473 = vmatpush2.xpose.msra.mxu0 0.0
        %474 = vmatprep.subr.mxu0 0.0
        %475 = vmatpush2.xpose.msra.mxu0 0.0
        %476 = vmatprep.subr.mxu0 0.0
        %477 = vmatpush2.xpose.msra.mxu0 0.0
        %478 = vmatprep.subr.mxu0 0.0
        %479 = vmatpush2.xpose.msra.mxu0 0.0
        %480 = vmatprep.subr.mxu0 0.0
        %481 = vmatpush2.xpose.msra.mxu0 0.0
        %482 = vmatprep.mubr.f32.mxu0 0.0
        %v483 = vand.u32 %v256, 4294901760
        %484 = vmatmul.mubr.f32.gmra.mxu0 %v483
        %v485 = vpop.f32.mrf.mxu0
        %v486 = vadd.f32 %v365, %v485
        %v487 = vpop.f32.mrf.mxu0
        %488 = vmatprep.mubr.f32.mxu0 0.0
        %v489 = vand.u32 %v259, 4294901760
        %490 = vmatmul.mubr.f32.gmra.mxu0 %v489
        %v491 = vpop.f32.mrf.mxu0
        %v492 = vadd.f32 %v375, %v491
        %v493 = vpop.f32.mrf.mxu0
        %494 = vdwg.mxu0
        %495 = vmatprep.subr.mxu0 0.0
        %496 = vmatpush1.xpose.msra.mxu0 0.0
        %497 = vmatprep.subr.mxu0 0.0
        %498 = vmatpush1.xpose.msra.mxu0 0.0
        %499 = vmatprep.subr.mxu0 0.0
        %500 = vmatpush1.xpose.msra.mxu0 0.0
        %501 = vmatprep.subr.mxu0 0.0
        %502 = vmatpush1.xpose.msra.mxu0 0.0
        %503 = vmatprep.subr.mxu0 0.0
        %504 = vmatpush1.xpose.msra.mxu0 0.0
        %505 = vmatprep.subr.mxu0 0.0
        %506 = vmatpush1.xpose.msra.mxu0 0.0
        %507 = vmatprep.subr.mxu0 0.0
        %508 = vmatpush1.xpose.msra.mxu0 0.0
        %509 = vmatprep.subr.mxu0 0.0
        %510 = vmatpush1.xpose.msra.mxu0 0.0
        %511 = vmatprep.subr.mxu0 0.0
        %v512 = vand.u32 %v283, 4294901760
        %v513 = vsub.f32 %v283, %v512
        %514 = vmatpush1.xpose.msra.mxu0 %v513
        %515 = vmatprep.subr.mxu0 0.0
        %v516 = vand.u32 %v280, 4294901760
        %v517 = vsub.f32 %v280, %v516
        %518 = vmatpush1.xpose.msra.mxu0 %v517
        %519 = vmatprep.subr.mxu0 0.0
        %v520 = vand.u32 %v277, 4294901760
        %v521 = vsub.f32 %v277, %v520
        %522 = vmatpush1.xpose.msra.mxu0 %v521
        %523 = vmatprep.subr.mxu0 0.0
        %v524 = vand.u32 %v274, 4294901760
        %v525 = vsub.f32 %v274, %v524
        %526 = vmatpush1.xpose.msra.mxu0 %v525
        %527 = vmatprep.subr.mxu0 0.0
        %v528 = vand.u32 %v271, 4294901760
        %v529 = vsub.f32 %v271, %v528
        %530 = vmatpush1.xpose.msra.mxu0 %v529
        %531 = vmatprep.subr.mxu0 0.0
        %v532 = vand.u32 %v268, 4294901760
        %v533 = vsub.f32 %v268, %v532
        %534 = vmatpush1.xpose.msra.mxu0 %v533
        %535 = vmatprep.subr.mxu0 0.0
        %v536 = vand.u32 %v265, 4294901760
        %v537 = vsub.f32 %v265, %v536
        %538 = vmatpush1.xpose.msra.mxu0 %v537
        %539 = vmatprep.subr.mxu0 0.0
        %v540 = vand.u32 %v262, 4294901760
        %v541 = vsub.f32 %v262, %v540
        %542 = vmatpush1.xpose.msra.mxu0 %v541
        %543 = vmatprep.subr.mxu0 0.0
        %544 = vmatpush2.xpose.msra.mxu0 0.0
        %545 = vmatprep.subr.mxu0 0.0
        %546 = vmatpush2.xpose.msra.mxu0 0.0
        %547 = vmatprep.subr.mxu0 0.0
        %548 = vmatpush2.xpose.msra.mxu0 0.0
        %549 = vmatprep.subr.mxu0 0.0
        %550 = vmatpush2.xpose.msra.mxu0 0.0
        %551 = vmatprep.subr.mxu0 0.0
        %552 = vmatpush2.xpose.msra.mxu0 0.0
        %553 = vmatprep.subr.mxu0 0.0
        %554 = vmatpush2.xpose.msra.mxu0 0.0
        %555 = vmatprep.subr.mxu0 0.0
        %556 = vmatpush2.xpose.msra.mxu0 0.0
        %557 = vmatprep.subr.mxu0 0.0
        %558 = vmatpush2.xpose.msra.mxu0 0.0
        %559 = vmatprep.subr.mxu0 0.0
        %560 = vmatpush2.xpose.msra.mxu0 0.0
        %561 = vmatprep.subr.mxu0 0.0
        %562 = vmatpush2.xpose.msra.mxu0 0.0
        %563 = vmatprep.subr.mxu0 0.0
        %564 = vmatpush2.xpose.msra.mxu0 0.0
        %565 = vmatprep.subr.mxu0 0.0
        %566 = vmatpush2.xpose.msra.mxu0 0.0
        %567 = vmatprep.subr.mxu0 0.0
        %568 = vmatpush2.xpose.msra.mxu0 0.0
        %569 = vmatprep.subr.mxu0 0.0
        %570 = vmatpush2.xpose.msra.mxu0 0.0
        %571 = vmatprep.subr.mxu0 0.0
        %572 = vmatpush2.xpose.msra.mxu0 0.0
        %573 = vmatprep.subr.mxu0 0.0
        %574 = vmatpush2.xpose.msra.mxu0 0.0
        %575 = vmatprep.mubr.f32.mxu0 0.0
        %v576 = vand.u32 %v256, 4294901760
        %v577 = vsub.f32 %v256, %v576
        %578 = vmatmul.mubr.f32.gmra.mxu0 %v577
        %v579 = vpop.f32.mrf.mxu0
        %v580 = vadd.f32 %v486, %v579
        %v581 = vpop.f32.mrf.mxu0
        %582 = vmatprep.mubr.f32.mxu0 0.0
        %v583 = vand.u32 %v259, 4294901760
        %v584 = vsub.f32 %v259, %v583
        %585 = vmatmul.mubr.f32.gmra.mxu0 %v584
        %v586 = vpop.f32.mrf.mxu0
        %v587 = vadd.f32 %v492, %v586
        %v588 = vpop.f32.mrf.mxu0
        %589 = vdwg.mxu0
        %590 = vmatprep.subr.mxu0 0.0
        %591 = vmatpush1.xpose.msra.mxu0 0.0
        %592 = vmatprep.subr.mxu0 0.0
        %593 = vmatpush1.xpose.msra.mxu0 0.0
        %594 = vmatprep.subr.mxu0 0.0
        %595 = vmatpush1.xpose.msra.mxu0 0.0
        %596 = vmatprep.subr.mxu0 0.0
        %597 = vmatpush1.xpose.msra.mxu0 0.0
        %598 = vmatprep.subr.mxu0 0.0
        %599 = vmatpush1.xpose.msra.mxu0 0.0
        %600 = vmatprep.subr.mxu0 0.0
        %601 = vmatpush1.xpose.msra.mxu0 0.0
        %602 = vmatprep.subr.mxu0 0.0
        %603 = vmatpush1.xpose.msra.mxu0 0.0
        %604 = vmatprep.subr.mxu0 0.0
        %605 = vmatpush1.xpose.msra.mxu0 0.0
        %606 = vmatprep.subr.mxu0 0.0
        %v607 = vand.u32 %v283, 4294901760
        %608 = vmatpush1.xpose.msra.mxu0 %v607
        %609 = vmatprep.subr.mxu0 0.0
        %v610 = vand.u32 %v280, 4294901760
        %611 = vmatpush1.xpose.msra.mxu0 %v610
        %612 = vmatprep.subr.mxu0 0.0
        %v613 = vand.u32 %v277, 4294901760
        %614 = vmatpush1.xpose.msra.mxu0 %v613
        %615 = vmatprep.subr.mxu0 0.0
        %v616 = vand.u32 %v274, 4294901760
        %617 = vmatpush1.xpose.msra.mxu0 %v616
        %618 = vmatprep.subr.mxu0 0.0
        %v619 = vand.u32 %v271, 4294901760
        %620 = vmatpush1.xpose.msra.mxu0 %v619
        %621 = vmatprep.subr.mxu0 0.0
        %v622 = vand.u32 %v268, 4294901760
        %623 = vmatpush1.xpose.msra.mxu0 %v622
        %624 = vmatprep.subr.mxu0 0.0
        %v625 = vand.u32 %v265, 4294901760
        %626 = vmatpush1.xpose.msra.mxu0 %v625
        %627 = vmatprep.subr.mxu0 0.0
        %v628 = vand.u32 %v262, 4294901760
        %629 = vmatpush1.xpose.msra.mxu0 %v628
        %630 = vmatprep.subr.mxu0 0.0
        %631 = vmatpush2.xpose.msra.mxu0 0.0
        %632 = vmatprep.subr.mxu0 0.0
        %633 = vmatpush2.xpose.msra.mxu0 0.0
        %634 = vmatprep.subr.mxu0 0.0
        %635 = vmatpush2.xpose.msra.mxu0 0.0
        %636 = vmatprep.subr.mxu0 0.0
        %637 = vmatpush2.xpose.msra.mxu0 0.0
        %638 = vmatprep.subr.mxu0 0.0
        %639 = vmatpush2.xpose.msra.mxu0 0.0
        %640 = vmatprep.subr.mxu0 0.0
        %641 = vmatpush2.xpose.msra.mxu0 0.0
        %642 = vmatprep.subr.mxu0 0.0
        %643 = vmatpush2.xpose.msra.mxu0 0.0
        %644 = vmatprep.subr.mxu0 0.0
        %645 = vmatpush2.xpose.msra.mxu0 0.0
        %646 = vmatprep.subr.mxu0 0.0
        %647 = vmatpush2.xpose.msra.mxu0 0.0
        %648 = vmatprep.subr.mxu0 0.0
        %649 = vmatpush2.xpose.msra.mxu0 0.0
        %650 = vmatprep.subr.mxu0 0.0
        %651 = vmatpush2.xpose.msra.mxu0 0.0
        %652 = vmatprep.subr.mxu0 0.0
        %653 = vmatpush2.xpose.msra.mxu0 0.0
        %654 = vmatprep.subr.mxu0 0.0
        %655 = vmatpush2.xpose.msra.mxu0 0.0
        %656 = vmatprep.subr.mxu0 0.0
        %657 = vmatpush2.xpose.msra.mxu0 0.0
        %658 = vmatprep.subr.mxu0 0.0
        %659 = vmatpush2.xpose.msra.mxu0 0.0
        %660 = vmatprep.subr.mxu0 0.0
        %661 = vmatpush2.xpose.msra.mxu0 0.0
        %662 = vmatprep.mubr.f32.mxu0 0.0
        %v663 = vand.u32 %v256, 4294901760
        %v664 = vsub.f32 %v256, %v663
        %v665 = vand.u32 %v664, 4294901760
        %666 = vmatmul.mubr.f32.gmra.mxu0 %v665
        %v667 = vpop.f32.mrf.mxu0
        %v668 = vadd.f32 %v580, %v667
        %v669 = vpop.f32.mrf.mxu0
        %670 = vmatprep.mubr.f32.mxu0 0.0
        %v671 = vand.u32 %v259, 4294901760
        %v672 = vsub.f32 %v259, %v671
        %v673 = vand.u32 %v672, 4294901760
        %674 = vmatmul.mubr.f32.gmra.mxu0 %v673
        %v675 = vpop.f32.mrf.mxu0
        %v676 = vadd.f32 %v587, %v675
        %v677 = vpop.f32.mrf.mxu0
        %678 = vdwg.mxu0
        %679 = vmatprep.subr.mxu0 0.0
        %680 = vmatpush1.xpose.msra.mxu0 0.0
        %681 = vmatprep.subr.mxu0 0.0
        %682 = vmatpush1.xpose.msra.mxu0 0.0
        %683 = vmatprep.subr.mxu0 0.0
        %684 = vmatpush1.xpose.msra.mxu0 0.0
        %685 = vmatprep.subr.mxu0 0.0
        %686 = vmatpush1.xpose.msra.mxu0 0.0
        %687 = vmatprep.subr.mxu0 0.0
        %688 = vmatpush1.xpose.msra.mxu0 0.0
        %689 = vmatprep.subr.mxu0 0.0
        %690 = vmatpush1.xpose.msra.mxu0 0.0
        %691 = vmatprep.subr.mxu0 0.0
        %692 = vmatpush1.xpose.msra.mxu0 0.0
        %693 = vmatprep.subr.mxu0 0.0
        %694 = vmatpush1.xpose.msra.mxu0 0.0
        %695 = vmatprep.subr.mxu0 0.0
        %v696 = vand.u32 %v283, 4294901760
        %v697 = vsub.f32 %v283, %v696
        %v698 = vand.u32 %v697, 4294901760
        %699 = vmatpush1.xpose.msra.mxu0 %v698
        %700 = vmatprep.subr.mxu0 0.0
        %v701 = vand.u32 %v280, 4294901760
        %v702 = vsub.f32 %v280, %v701
        %v703 = vand.u32 %v702, 4294901760
        %704 = vmatpush1.xpose.msra.mxu0 %v703
        %705 = vmatprep.subr.mxu0 0.0
        %v706 = vand.u32 %v277, 4294901760
        %v707 = vsub.f32 %v277, %v706
        %v708 = vand.u32 %v707, 4294901760
        %709 = vmatpush1.xpose.msra.mxu0 %v708
        %710 = vmatprep.subr.mxu0 0.0
        %v711 = vand.u32 %v274, 4294901760
        %v712 = vsub.f32 %v274, %v711
        %v713 = vand.u32 %v712, 4294901760
        %714 = vmatpush1.xpose.msra.mxu0 %v713
        %715 = vmatprep.subr.mxu0 0.0
        %v716 = vand.u32 %v271, 4294901760
        %v717 = vsub.f32 %v271, %v716
        %v718 = vand.u32 %v717, 4294901760
        %719 = vmatpush1.xpose.msra.mxu0 %v718
        %720 = vmatprep.subr.mxu0 0.0
        %v721 = vand.u32 %v268, 4294901760
        %v722 = vsub.f32 %v268, %v721
        %v723 = vand.u32 %v722, 4294901760
        %724 = vmatpush1.xpose.msra.mxu0 %v723
        %725 = vmatprep.subr.mxu0 0.0
        %v726 = vand.u32 %v265, 4294901760
        %v727 = vsub.f32 %v265, %v726
        %v728 = vand.u32 %v727, 4294901760
        %729 = vmatpush1.xpose.msra.mxu0 %v728
        %730 = vmatprep.subr.mxu0 0.0
        %v731 = vand.u32 %v262, 4294901760
        %v732 = vsub.f32 %v262, %v731
        %v733 = vand.u32 %v732, 4294901760
        %734 = vmatpush1.xpose.msra.mxu0 %v733
        %735 = vmatprep.subr.mxu0 0.0
        %736 = vmatpush2.xpose.msra.mxu0 0.0
        %737 = vmatprep.subr.mxu0 0.0
        %738 = vmatpush2.xpose.msra.mxu0 0.0
        %739 = vmatprep.subr.mxu0 0.0
        %740 = vmatpush2.xpose.msra.mxu0 0.0
        %741 = vmatprep.subr.mxu0 0.0
        %742 = vmatpush2.xpose.msra.mxu0 0.0
        %743 = vmatprep.subr.mxu0 0.0
        %744 = vmatpush2.xpose.msra.mxu0 0.0
        %745 = vmatprep.subr.mxu0 0.0
        %746 = vmatpush2.xpose.msra.mxu0 0.0
        %747 = vmatprep.subr.mxu0 0.0
        %748 = vmatpush2.xpose.msra.mxu0 0.0
        %749 = vmatprep.subr.mxu0 0.0
        %750 = vmatpush2.xpose.msra.mxu0 0.0
        %751 = vmatprep.subr.mxu0 0.0
        %752 = vmatpush2.xpose.msra.mxu0 0.0
        %753 = vmatprep.subr.mxu0 0.0
        %754 = vmatpush2.xpose.msra.mxu0 0.0
        %755 = vmatprep.subr.mxu0 0.0
        %756 = vmatpush2.xpose.msra.mxu0 0.0
        %757 = vmatprep.subr.mxu0 0.0
        %758 = vmatpush2.xpose.msra.mxu0 0.0
        %759 = vmatprep.subr.mxu0 0.0
        %760 = vmatpush2.xpose.msra.mxu0 0.0
        %761 = vmatprep.subr.mxu0 0.0
        %762 = vmatpush2.xpose.msra.mxu0 0.0
        %763 = vmatprep.subr.mxu0 0.0
        %764 = vmatpush2.xpose.msra.mxu0 0.0
        %765 = vmatprep.subr.mxu0 0.0
        %766 = vmatpush2.xpose.msra.mxu0 0.0
        %767 = vmatprep.mubr.f32.mxu0 0.0
        %v768 = vand.u32 %v256, 4294901760
        %769 = vmatmul.mubr.f32.gmra.mxu0 %v768
        %v770 = vpop.f32.mrf.mxu0
        %v771 = vadd.f32 %v668, %v770
        %v772 = vpop.f32.mrf.mxu0
        %773 = vmatprep.mubr.f32.mxu0 0.0
        %v774 = vand.u32 %v259, 4294901760
        %775 = vmatmul.mubr.f32.gmra.mxu0 %v774
        %v776 = vpop.f32.mrf.mxu0
        %v777 = vadd.f32 %v676, %v776
        %v778 = vpop.f32.mrf.mxu0
        %779 = vdwg.mxu0
        %780 = vmatprep.subr.mxu0 0.0
        %781 = vmatpush1.xpose.msra.mxu0 0.0
        %782 = vmatprep.subr.mxu0 0.0
        %783 = vmatpush1.xpose.msra.mxu0 0.0
        %784 = vmatprep.subr.mxu0 0.0
        %785 = vmatpush1.xpose.msra.mxu0 0.0
        %786 = vmatprep.subr.mxu0 0.0
        %787 = vmatpush1.xpose.msra.mxu0 0.0
        %788 = vmatprep.subr.mxu0 0.0
        %789 = vmatpush1.xpose.msra.mxu0 0.0
        %790 = vmatprep.subr.mxu0 0.0
        %791 = vmatpush1.xpose.msra.mxu0 0.0
        %792 = vmatprep.subr.mxu0 0.0
        %793 = vmatpush1.xpose.msra.mxu0 0.0
        %794 = vmatprep.subr.mxu0 0.0
        %795 = vmatpush1.xpose.msra.mxu0 0.0
        %796 = vmatprep.subr.mxu0 0.0
        %v797 = vand.u32 %v283, 4294901760
        %798 = vmatpush1.xpose.msra.mxu0 %v797
        %799 = vmatprep.subr.mxu0 0.0
        %v800 = vand.u32 %v280, 4294901760
        %801 = vmatpush1.xpose.msra.mxu0 %v800
        %802 = vmatprep.subr.mxu0 0.0
        %v803 = vand.u32 %v277, 4294901760
        %804 = vmatpush1.xpose.msra.mxu0 %v803
        %805 = vmatprep.subr.mxu0 0.0
        %v806 = vand.u32 %v274, 4294901760
        %807 = vmatpush1.xpose.msra.mxu0 %v806
        %808 = vmatprep.subr.mxu0 0.0
        %v809 = vand.u32 %v271, 4294901760
        %810 = vmatpush1.xpose.msra.mxu0 %v809
        %811 = vmatprep.subr.mxu0 0.0
        %v812 = vand.u32 %v268, 4294901760
        %813 = vmatpush1.xpose.msra.mxu0 %v812
        %814 = vmatprep.subr.mxu0 0.0
        %v815 = vand.u32 %v265, 4294901760
        %816 = vmatpush1.xpose.msra.mxu0 %v815
        %817 = vmatprep.subr.mxu0 0.0
        %v818 = vand.u32 %v262, 4294901760
        %819 = vmatpush1.xpose.msra.mxu0 %v818
        %820 = vmatprep.subr.mxu0 0.0
        %821 = vmatpush2.xpose.msra.mxu0 0.0
        %822 = vmatprep.subr.mxu0 0.0
        %823 = vmatpush2.xpose.msra.mxu0 0.0
        %824 = vmatprep.subr.mxu0 0.0
        %825 = vmatpush2.xpose.msra.mxu0 0.0
        %826 = vmatprep.subr.mxu0 0.0
        %827 = vmatpush2.xpose.msra.mxu0 0.0
        %828 = vmatprep.subr.mxu0 0.0
        %829 = vmatpush2.xpose.msra.mxu0 0.0
        %830 = vmatprep.subr.mxu0 0.0
        %831 = vmatpush2.xpose.msra.mxu0 0.0
        %832 = vmatprep.subr.mxu0 0.0
        %833 = vmatpush2.xpose.msra.mxu0 0.0
        %834 = vmatprep.subr.mxu0 0.0
        %835 = vmatpush2.xpose.msra.mxu0 0.0
        %836 = vmatprep.subr.mxu0 0.0
        %837 = vmatpush2.xpose.msra.mxu0 0.0
        %838 = vmatprep.subr.mxu0 0.0
        %839 = vmatpush2.xpose.msra.mxu0 0.0
        %840 = vmatprep.subr.mxu0 0.0
        %841 = vmatpush2.xpose.msra.mxu0 0.0
        %842 = vmatprep.subr.mxu0 0.0
        %843 = vmatpush2.xpose.msra.mxu0 0.0
        %844 = vmatprep.subr.mxu0 0.0
        %845 = vmatpush2.xpose.msra.mxu0 0.0
        %846 = vmatprep.subr.mxu0 0.0
        %847 = vmatpush2.xpose.msra.mxu0 0.0
        %848 = vmatprep.subr.mxu0 0.0
        %849 = vmatpush2.xpose.msra.mxu0 0.0
        %850 = vmatprep.subr.mxu0 0.0
        %851 = vmatpush2.xpose.msra.mxu0 0.0
        %852 = vmatprep.mubr.f32.mxu0 0.0
        %v853 = vand.u32 %v256, 4294901760
        %854 = vmatmul.mubr.f32.gmra.mxu0 %v853
        %v855 = vpop.f32.mrf.mxu0
        %v856 = vadd.f32 %v771, %v855
        %v857 = vpop.f32.mrf.mxu0
        %858 = vmatprep.mubr.f32.mxu0 0.0
        %v859 = vand.u32 %v259, 4294901760
        %860 = vmatmul.mubr.f32.gmra.mxu0 %v859
        %v861 = vpop.f32.mrf.mxu0
        %v862 = vadd.f32 %v777, %v861
        %v863 = vpop.f32.mrf.mxu0
        %864 = vdwg.mxu0
        %v865 = vmax.f32 %v856, 0.0
        %v866 = vmax.f32 %v862, 0.0
        %v867 = vlaneseq
        %v868 = vshrl.u32 %v867, 7
        %v869 = vsub.s32 0, %v868
        %v870 = vrot.slane %v222, %v869
        %vm871 = vcmask 523264
        %v873 = vsel %vm871, %v865, 0
        %v876 = vsel %vm871, %v866, 0
        %v879 = vsel %vm871, %v232, 0
        %v882 = vsel %vm871, %v233, 0
        %v885 = vsel %vm871, %v234, 0
        %v888 = vsel %vm871, %v235, 0
        %890 = vmatprep.subr.mxu0 0.0
        %891 = vmatpush1.xpose.msra.mxu0 0.0
        %892 = vmatprep.subr.mxu0 0.0
        %893 = vmatpush1.xpose.msra.mxu0 0.0
        %894 = vmatprep.subr.mxu0 0.0
        %895 = vmatpush1.xpose.msra.mxu0 0.0
        %896 = vmatprep.subr.mxu0 0.0
        %897 = vmatpush1.xpose.msra.mxu0 0.0
        %898 = vmatprep.subr.mxu0 0.0
        %899 = vmatpush1.xpose.msra.mxu0 0.0
        %900 = vmatprep.subr.mxu0 0.0
        %901 = vmatpush1.xpose.msra.mxu0 0.0
        %902 = vmatprep.subr.mxu0 0.0
        %903 = vmatpush1.xpose.msra.mxu0 0.0
        %904 = vmatprep.subr.mxu0 0.0
        %905 = vmatpush1.xpose.msra.mxu0 0.0
        %906 = vmatprep.subr.mxu0 0.0
        %907 = vmatpush1.xpose.msra.mxu0 0.0
        %908 = vmatprep.subr.mxu0 0.0
        %909 = vmatpush1.xpose.msra.mxu0 0.0
        %910 = vmatprep.subr.mxu0 0.0
        %911 = vmatpush1.xpose.msra.mxu0 0.0
        %912 = vmatprep.subr.mxu0 0.0
        %913 = vmatpush1.xpose.msra.mxu0 0.0
        %914 = vmatprep.subr.mxu0 0.0
        %v915 = vand.u32 %v888, 4294901760
        %916 = vmatpush1.xpose.msra.mxu0 %v915
        %917 = vmatprep.subr.mxu0 0.0
        %v918 = vand.u32 %v885, 4294901760
        %919 = vmatpush1.xpose.msra.mxu0 %v918
        %920 = vmatprep.subr.mxu0 0.0
        %v921 = vand.u32 %v882, 4294901760
        %922 = vmatpush1.xpose.msra.mxu0 %v921
        %923 = vmatprep.subr.mxu0 0.0
        %v924 = vand.u32 %v879, 4294901760
        %925 = vmatpush1.xpose.msra.mxu0 %v924
        %926 = vmatprep.subr.mxu0 0.0
        %927 = vmatpush2.xpose.msra.mxu0 0.0
        %928 = vmatprep.subr.mxu0 0.0
        %929 = vmatpush2.xpose.msra.mxu0 0.0
        %930 = vmatprep.subr.mxu0 0.0
        %931 = vmatpush2.xpose.msra.mxu0 0.0
        %932 = vmatprep.subr.mxu0 0.0
        %933 = vmatpush2.xpose.msra.mxu0 0.0
        %934 = vmatprep.subr.mxu0 0.0
        %935 = vmatpush2.xpose.msra.mxu0 0.0
        %936 = vmatprep.subr.mxu0 0.0
        %937 = vmatpush2.xpose.msra.mxu0 0.0
        %938 = vmatprep.subr.mxu0 0.0
        %939 = vmatpush2.xpose.msra.mxu0 0.0
        %940 = vmatprep.subr.mxu0 0.0
        %941 = vmatpush2.xpose.msra.mxu0 0.0
        %942 = vmatprep.subr.mxu0 0.0
        %943 = vmatpush2.xpose.msra.mxu0 0.0
        %944 = vmatprep.subr.mxu0 0.0
        %945 = vmatpush2.xpose.msra.mxu0 0.0
        %946 = vmatprep.subr.mxu0 0.0
        %947 = vmatpush2.xpose.msra.mxu0 0.0
        %948 = vmatprep.subr.mxu0 0.0
        %949 = vmatpush2.xpose.msra.mxu0 0.0
        %950 = vmatprep.subr.mxu0 0.0
        %951 = vmatpush2.xpose.msra.mxu0 0.0
        %952 = vmatprep.subr.mxu0 0.0
        %953 = vmatpush2.xpose.msra.mxu0 0.0
        %954 = vmatprep.subr.mxu0 0.0
        %955 = vmatpush2.xpose.msra.mxu0 0.0
        %956 = vmatprep.subr.mxu0 0.0
        %957 = vmatpush2.xpose.msra.mxu0 0.0
        %958 = vmatprep.mubr.f32.mxu0 0.0
        %v959 = vand.u32 %v873, 4294901760
        %v960 = vsub.f32 %v873, %v959
        %v961 = vand.u32 %v960, 4294901760
        %v962 = vsub.f32 %v960, %v961
        %v963 = vand.u32 %v962, 4294901760
        %964 = vmatmul.mubr.f32.gmra.mxu0 %v963
        %v965 = vpop.f32.mrf.mxu0
        %v966 = vadd.f32 %v870, %v965
        %v967 = vpop.f32.mrf.mxu0
        %968 = vmatprep.mubr.f32.mxu0 0.0
        %v969 = vand.u32 %v876, 4294901760
        %v970 = vsub.f32 %v876, %v969
        %v971 = vand.u32 %v970, 4294901760
        %v972 = vsub.f32 %v970, %v971
        %v973 = vand.u32 %v972, 4294901760
        %974 = vmatmul.mubr.f32.gmra.mxu0 %v973
        %v975 = vpop.f32.mrf.mxu0
        %v976 = vadd.f32 %v870, %v975
        %v977 = vpop.f32.mrf.mxu0
        %978 = vdwg.mxu0
        %979 = vmatprep.subr.mxu0 0.0
        %980 = vmatpush1.xpose.msra.mxu0 0.0
        %981 = vmatprep.subr.mxu0 0.0
        %982 = vmatpush1.xpose.msra.mxu0 0.0
        %983 = vmatprep.subr.mxu0 0.0
        %984 = vmatpush1.xpose.msra.mxu0 0.0
        %985 = vmatprep.subr.mxu0 0.0
        %986 = vmatpush1.xpose.msra.mxu0 0.0
        %987 = vmatprep.subr.mxu0 0.0
        %988 = vmatpush1.xpose.msra.mxu0 0.0
        %989 = vmatprep.subr.mxu0 0.0
        %990 = vmatpush1.xpose.msra.mxu0 0.0
        %991 = vmatprep.subr.mxu0 0.0
        %992 = vmatpush1.xpose.msra.mxu0 0.0
        %993 = vmatprep.subr.mxu0 0.0
        %994 = vmatpush1.xpose.msra.mxu0 0.0
        %995 = vmatprep.subr.mxu0 0.0
        %996 = vmatpush1.xpose.msra.mxu0 0.0
        %997 = vmatprep.subr.mxu0 0.0
        %998 = vmatpush1.xpose.msra.mxu0 0.0
        %999 = vmatprep.subr.mxu0 0.0
        %1000 = vmatpush1.xpose.msra.mxu0 0.0
        %1001 = vmatprep.subr.mxu0 0.0
        %1002 = vmatpush1.xpose.msra.mxu0 0.0
        %1003 = vmatprep.subr.mxu0 0.0
        %v1004 = vand.u32 %v888, 4294901760
        %v1005 = vsub.f32 %v888, %v1004
        %v1006 = vand.u32 %v1005, 4294901760
        %v1007 = vsub.f32 %v1005, %v1006
        %v1008 = vand.u32 %v1007, 4294901760
        %1009 = vmatpush1.xpose.msra.mxu0 %v1008
        %1010 = vmatprep.subr.mxu0 0.0
        %v1011 = vand.u32 %v885, 4294901760
        %v1012 = vsub.f32 %v885, %v1011
        %v1013 = vand.u32 %v1012, 4294901760
        %v1014 = vsub.f32 %v1012, %v1013
        %v1015 = vand.u32 %v1014, 4294901760
        %1016 = vmatpush1.xpose.msra.mxu0 %v1015
        %1017 = vmatprep.subr.mxu0 0.0
        %v1018 = vand.u32 %v882, 4294901760
        %v1019 = vsub.f32 %v882, %v1018
        %v1020 = vand.u32 %v1019, 4294901760
        %v1021 = vsub.f32 %v1019, %v1020
        %v1022 = vand.u32 %v1021, 4294901760
        %1023 = vmatpush1.xpose.msra.mxu0 %v1022
        %1024 = vmatprep.subr.mxu0 0.0
        %v1025 = vand.u32 %v879, 4294901760
        %v1026 = vsub.f32 %v879, %v1025
        %v1027 = vand.u32 %v1026, 4294901760
        %v1028 = vsub.f32 %v1026, %v1027
        %v1029 = vand.u32 %v1028, 4294901760
        %1030 = vmatpush1.xpose.msra.mxu0 %v1029
        %1031 = vmatprep.subr.mxu0 0.0
        %1032 = vmatpush2.xpose.msra.mxu0 0.0
        %1033 = vmatprep.subr.mxu0 0.0
        %1034 = vmatpush2.xpose.msra.mxu0 0.0
        %1035 = vmatprep.subr.mxu0 0.0
        %1036 = vmatpush2.xpose.msra.mxu0 0.0
        %1037 = vmatprep.subr.mxu0 0.0
        %1038 = vmatpush2.xpose.msra.mxu0 0.0
        %1039 = vmatprep.subr.mxu0 0.0
        %1040 = vmatpush2.xpose.msra.mxu0 0.0
        %1041 = vmatprep.subr.mxu0 0.0
        %1042 = vmatpush2.xpose.msra.mxu0 0.0
        %1043 = vmatprep.subr.mxu0 0.0
        %1044 = vmatpush2.xpose.msra.mxu0 0.0
        %1045 = vmatprep.subr.mxu0 0.0
        %1046 = vmatpush2.xpose.msra.mxu0 0.0
        %1047 = vmatprep.subr.mxu0 0.0
        %1048 = vmatpush2.xpose.msra.mxu0 0.0
        %1049 = vmatprep.subr.mxu0 0.0
        %1050 = vmatpush2.xpose.msra.mxu0 0.0
        %1051 = vmatprep.subr.mxu0 0.0
        %1052 = vmatpush2.xpose.msra.mxu0 0.0
        %1053 = vmatprep.subr.mxu0 0.0
        %1054 = vmatpush2.xpose.msra.mxu0 0.0
        %1055 = vmatprep.subr.mxu0 0.0
        %1056 = vmatpush2.xpose.msra.mxu0 0.0
        %1057 = vmatprep.subr.mxu0 0.0
        %1058 = vmatpush2.xpose.msra.mxu0 0.0
        %1059 = vmatprep.subr.mxu0 0.0
        %1060 = vmatpush2.xpose.msra.mxu0 0.0
        %1061 = vmatprep.subr.mxu0 0.0
        %1062 = vmatpush2.xpose.msra.mxu0 0.0
        %1063 = vmatprep.mubr.f32.mxu0 0.0
        %v1064 = vand.u32 %v873, 4294901760
        %1065 = vmatmul.mubr.f32.gmra.mxu0 %v1064
        %v1066 = vpop.f32.mrf.mxu0
        %v1067 = vadd.f32 %v966, %v1066
        %v1068 = vpop.f32.mrf.mxu0
        %1069 = vmatprep.mubr.f32.mxu0 0.0
        %v1070 = vand.u32 %v876, 4294901760
        %1071 = vmatmul.mubr.f32.gmra.mxu0 %v1070
        %v1072 = vpop.f32.mrf.mxu0
        %v1073 = vadd.f32 %v976, %v1072
        %v1074 = vpop.f32.mrf.mxu0
        %1075 = vdwg.mxu0
        %1076 = vmatprep.subr.mxu0 0.0
        %1077 = vmatpush1.xpose.msra.mxu0 0.0
        %1078 = vmatprep.subr.mxu0 0.0
        %1079 = vmatpush1.xpose.msra.mxu0 0.0
        %1080 = vmatprep.subr.mxu0 0.0
        %1081 = vmatpush1.xpose.msra.mxu0 0.0
        %1082 = vmatprep.subr.mxu0 0.0
        %1083 = vmatpush1.xpose.msra.mxu0 0.0
        %1084 = vmatprep.subr.mxu0 0.0
        %1085 = vmatpush1.xpose.msra.mxu0 0.0
        %1086 = vmatprep.subr.mxu0 0.0
        %1087 = vmatpush1.xpose.msra.mxu0 0.0
        %1088 = vmatprep.subr.mxu0 0.0
        %1089 = vmatpush1.xpose.msra.mxu0 0.0
        %1090 = vmatprep.subr.mxu0 0.0
        %1091 = vmatpush1.xpose.msra.mxu0 0.0
        %1092 = vmatprep.subr.mxu0 0.0
        %1093 = vmatpush1.xpose.msra.mxu0 0.0
        %1094 = vmatprep.subr.mxu0 0.0
        %1095 = vmatpush1.xpose.msra.mxu0 0.0
        %1096 = vmatprep.subr.mxu0 0.0
        %1097 = vmatpush1.xpose.msra.mxu0 0.0
        %1098 = vmatprep.subr.mxu0 0.0
        %1099 = vmatpush1.xpose.msra.mxu0 0.0
        %1100 = vmatprep.subr.mxu0 0.0
        %v1101 = vand.u32 %v888, 4294901760
        %v1102 = vsub.f32 %v888, %v1101
        %1103 = vmatpush1.xpose.msra.mxu0 %v1102
        %1104 = vmatprep.subr.mxu0 0.0
        %v1105 = vand.u32 %v885, 4294901760
        %v1106 = vsub.f32 %v885, %v1105
        %1107 = vmatpush1.xpose.msra.mxu0 %v1106
        %1108 = vmatprep.subr.mxu0 0.0
        %v1109 = vand.u32 %v882, 4294901760
        %v1110 = vsub.f32 %v882, %v1109
        %1111 = vmatpush1.xpose.msra.mxu0 %v1110
        %1112 = vmatprep.subr.mxu0 0.0
        %v1113 = vand.u32 %v879, 4294901760
        %v1114 = vsub.f32 %v879, %v1113
        %1115 = vmatpush1.xpose.msra.mxu0 %v1114
        %1116 = vmatprep.subr.mxu0 0.0
        %1117 = vmatpush2.xpose.msra.mxu0 0.0
        %1118 = vmatprep.subr.mxu0 0.0
        %1119 = vmatpush2.xpose.msra.mxu0 0.0
        %1120 = vmatprep.subr.mxu0 0.0
        %1121 = vmatpush2.xpose.msra.mxu0 0.0
        %1122 = vmatprep.subr.mxu0 0.0
        %1123 = vmatpush2.xpose.msra.mxu0 0.0
        %1124 = vmatprep.subr.mxu0 0.0
        %1125 = vmatpush2.xpose.msra.mxu0 0.0
        %1126 = vmatprep.subr.mxu0 0.0
        %1127 = vmatpush2.xpose.msra.mxu0 0.0
        %1128 = vmatprep.subr.mxu0 0.0
        %1129 = vmatpush2.xpose.msra.mxu0 0.0
        %1130 = vmatprep.subr.mxu0 0.0
        %1131 = vmatpush2.xpose.msra.mxu0 0.0
        %1132 = vmatprep.subr.mxu0 0.0
        %1133 = vmatpush2.xpose.msra.mxu0 0.0
        %1134 = vmatprep.subr.mxu0 0.0
        %1135 = vmatpush2.xpose.msra.mxu0 0.0
        %1136 = vmatprep.subr.mxu0 0.0
        %1137 = vmatpush2.xpose.msra.mxu0 0.0
        %1138 = vmatprep.subr.mxu0 0.0
        %1139 = vmatpush2.xpose.msra.mxu0 0.0
        %1140 = vmatprep.subr.mxu0 0.0
        %1141 = vmatpush2.xpose.msra.mxu0 0.0
        %1142 = vmatprep.subr.mxu0 0.0
        %1143 = vmatpush2.xpose.msra.mxu0 0.0
        %1144 = vmatprep.subr.mxu0 0.0
        %1145 = vmatpush2.xpose.msra.mxu0 0.0
        %1146 = vmatprep.subr.mxu0 0.0
        %1147 = vmatpush2.xpose.msra.mxu0 0.0
        %1148 = vmatprep.mubr.f32.mxu0 0.0
        %v1149 = vand.u32 %v873, 4294901760
        %v1150 = vsub.f32 %v873, %v1149
        %1151 = vmatmul.mubr.f32.gmra.mxu0 %v1150
        %v1152 = vpop.f32.mrf.mxu0
        %v1153 = vadd.f32 %v1067, %v1152
        %v1154 = vpop.f32.mrf.mxu0
        %1155 = vmatprep.mubr.f32.mxu0 0.0
        %v1156 = vand.u32 %v876, 4294901760
        %v1157 = vsub.f32 %v876, %v1156
        %1158 = vmatmul.mubr.f32.gmra.mxu0 %v1157
        %v1159 = vpop.f32.mrf.mxu0
        %v1160 = vadd.f32 %v1073, %v1159
        %v1161 = vpop.f32.mrf.mxu0
        %1162 = vdwg.mxu0
        %1163 = vmatprep.subr.mxu0 0.0
        %1164 = vmatpush1.xpose.msra.mxu0 0.0
        %1165 = vmatprep.subr.mxu0 0.0
        %1166 = vmatpush1.xpose.msra.mxu0 0.0
        %1167 = vmatprep.subr.mxu0 0.0
        %1168 = vmatpush1.xpose.msra.mxu0 0.0
        %1169 = vmatprep.subr.mxu0 0.0
        %1170 = vmatpush1.xpose.msra.mxu0 0.0
        %1171 = vmatprep.subr.mxu0 0.0
        %1172 = vmatpush1.xpose.msra.mxu0 0.0
        %1173 = vmatprep.subr.mxu0 0.0
        %1174 = vmatpush1.xpose.msra.mxu0 0.0
        %1175 = vmatprep.subr.mxu0 0.0
        %1176 = vmatpush1.xpose.msra.mxu0 0.0
        %1177 = vmatprep.subr.mxu0 0.0
        %1178 = vmatpush1.xpose.msra.mxu0 0.0
        %1179 = vmatprep.subr.mxu0 0.0
        %1180 = vmatpush1.xpose.msra.mxu0 0.0
        %1181 = vmatprep.subr.mxu0 0.0
        %1182 = vmatpush1.xpose.msra.mxu0 0.0
        %1183 = vmatprep.subr.mxu0 0.0
        %1184 = vmatpush1.xpose.msra.mxu0 0.0
        %1185 = vmatprep.subr.mxu0 0.0
        %1186 = vmatpush1.xpose.msra.mxu0 0.0
        %1187 = vmatprep.subr.mxu0 0.0
        %v1188 = vand.u32 %v888, 4294901760
        %1189 = vmatpush1.xpose.msra.mxu0 %v1188
        %1190 = vmatprep.subr.mxu0 0.0
        %v1191 = vand.u32 %v885, 4294901760
        %1192 = vmatpush1.xpose.msra.mxu0 %v1191
        %1193 = vmatprep.subr.mxu0 0.0
        %v1194 = vand.u32 %v882, 4294901760
        %1195 = vmatpush1.xpose.msra.mxu0 %v1194
        %1196 = vmatprep.subr.mxu0 0.0
        %v1197 = vand.u32 %v879, 4294901760
        %1198 = vmatpush1.xpose.msra.mxu0 %v1197
        %1199 = vmatprep.subr.mxu0 0.0
        %1200 = vmatpush2.xpose.msra.mxu0 0.0
        %1201 = vmatprep.subr.mxu0 0.0
        %1202 = vmatpush2.xpose.msra.mxu0 0.0
        %1203 = vmatprep.subr.mxu0 0.0
        %1204 = vmatpush2.xpose.msra.mxu0 0.0
        %1205 = vmatprep.subr.mxu0 0.0
        %1206 = vmatpush2.xpose.msra.mxu0 0.0
        %1207 = vmatprep.subr.mxu0 0.0
        %1208 = vmatpush2.xpose.msra.mxu0 0.0
        %1209 = vmatprep.subr.mxu0 0.0
        %1210 = vmatpush2.xpose.msra.mxu0 0.0
        %1211 = vmatprep.subr.mxu0 0.0
        %1212 = vmatpush2.xpose.msra.mxu0 0.0
        %1213 = vmatprep.subr.mxu0 0.0
        %1214 = vmatpush2.xpose.msra.mxu0 0.0
        %1215 = vmatprep.subr.mxu0 0.0
        %1216 = vmatpush2.xpose.msra.mxu0 0.0
        %1217 = vmatprep.subr.mxu0 0.0
        %1218 = vmatpush2.xpose.msra.mxu0 0.0
        %1219 = vmatprep.subr.mxu0 0.0
        %1220 = vmatpush2.xpose.msra.mxu0 0.0
        %1221 = vmatprep.subr.mxu0 0.0
        %1222 = vmatpush2.xpose.msra.mxu0 0.0
        %1223 = vmatprep.subr.mxu0 0.0
        %1224 = vmatpush2.xpose.msra.mxu0 0.0
        %1225 = vmatprep.subr.mxu0 0.0
        %1226 = vmatpush2.xpose.msra.mxu0 0.0
        %1227 = vmatprep.subr.mxu0 0.0
        %1228 = vmatpush2.xpose.msra.mxu0 0.0
        %1229 = vmatprep.subr.mxu0 0.0
        %1230 = vmatpush2.xpose.msra.mxu0 0.0
        %1231 = vmatprep.mubr.f32.mxu0 0.0
        %v1232 = vand.u32 %v873, 4294901760
        %v1233 = vsub.f32 %v873, %v1232
        %v1234 = vand.u32 %v1233, 4294901760
        %1235 = vmatmul.mubr.f32.gmra.mxu0 %v1234
        %v1236 = vpop.f32.mrf.mxu0
        %v1237 = vadd.f32 %v1153, %v1236
        %v1238 = vpop.f32.mrf.mxu0
        %1239 = vmatprep.mubr.f32.mxu0 0.0
        %v1240 = vand.u32 %v876, 4294901760
        %v1241 = vsub.f32 %v876, %v1240
        %v1242 = vand.u32 %v1241, 4294901760
        %1243 = vmatmul.mubr.f32.gmra.mxu0 %v1242
        %v1244 = vpop.f32.mrf.mxu0
        %v1245 = vadd.f32 %v1160, %v1244
        %v1246 = vpop.f32.mrf.mxu0
        %1247 = vdwg.mxu0
        %1248 = vmatprep.subr.mxu0 0.0
        %1249 = vmatpush1.xpose.msra.mxu0 0.0
        %1250 = vmatprep.subr.mxu0 0.0
        %1251 = vmatpush1.xpose.msra.mxu0 0.0
        %1252 = vmatprep.subr.mxu0 0.0
        %1253 = vmatpush1.xpose.msra.mxu0 0.0
        %1254 = vmatprep.subr.mxu0 0.0
        %1255 = vmatpush1.xpose.msra.mxu0 0.0
        %1256 = vmatprep.subr.mxu0 0.0
        %1257 = vmatpush1.xpose.msra.mxu0 0.0
        %1258 = vmatprep.subr.mxu0 0.0
        %1259 = vmatpush1.xpose.msra.mxu0 0.0
        %1260 = vmatprep.subr.mxu0 0.0
        %1261 = vmatpush1.xpose.msra.mxu0 0.0
        %1262 = vmatprep.subr.mxu0 0.0
        %1263 = vmatpush1.xpose.msra.mxu0 0.0
        %1264 = vmatprep.subr.mxu0 0.0
        %1265 = vmatpush1.xpose.msra.mxu0 0.0
        %1266 = vmatprep.subr.mxu0 0.0
        %1267 = vmatpush1.xpose.msra.mxu0 0.0
        %1268 = vmatprep.subr.mxu0 0.0
        %1269 = vmatpush1.xpose.msra.mxu0 0.0
        %1270 = vmatprep.subr.mxu0 0.0
        %1271 = vmatpush1.xpose.msra.mxu0 0.0
        %1272 = vmatprep.subr.mxu0 0.0
        %v1273 = vand.u32 %v888, 4294901760
        %v1274 = vsub.f32 %v888, %v1273
        %v1275 = vand.u32 %v1274, 4294901760
        %1276 = vmatpush1.xpose.msra.mxu0 %v1275
        %1277 = vmatprep.subr.mxu0 0.0
        %v1278 = vand.u32 %v885, 4294901760
        %v1279 = vsub.f32 %v885, %v1278
        %v1280 = vand.u32 %v1279, 4294901760
        %1281 = vmatpush1.xpose.msra.mxu0 %v1280
        %1282 = vmatprep.subr.mxu0 0.0
        %v1283 = vand.u32 %v882, 4294901760
        %v1284 = vsub.f32 %v882, %v1283
        %v1285 = vand.u32 %v1284, 4294901760
        %1286 = vmatpush1.xpose.msra.mxu0 %v1285
        %1287 = vmatprep.subr.mxu0 0.0
        %v1288 = vand.u32 %v879, 4294901760
        %v1289 = vsub.f32 %v879, %v1288
        %v1290 = vand.u32 %v1289, 4294901760
        %1291 = vmatpush1.xpose.msra.mxu0 %v1290
        %1292 = vmatprep.subr.mxu0 0.0
        %1293 = vmatpush2.xpose.msra.mxu0 0.0
        %1294 = vmatprep.subr.mxu0 0.0
        %1295 = vmatpush2.xpose.msra.mxu0 0.0
        %1296 = vmatprep.subr.mxu0 0.0
        %1297 = vmatpush2.xpose.msra.mxu0 0.0
        %1298 = vmatprep.subr.mxu0 0.0
        %1299 = vmatpush2.xpose.msra.mxu0 0.0
        %1300 = vmatprep.subr.mxu0 0.0
        %1301 = vmatpush2.xpose.msra.mxu0 0.0
        %1302 = vmatprep.subr.mxu0 0.0
        %1303 = vmatpush2.xpose.msra.mxu0 0.0
        %1304 = vmatprep.subr.mxu0 0.0
        %1305 = vmatpush2.xpose.msra.mxu0 0.0
        %1306 = vmatprep.subr.mxu0 0.0
        %1307 = vmatpush2.xpose.msra.mxu0 0.0
        %1308 = vmatprep.subr.mxu0 0.0
        %1309 = vmatpush2.xpose.msra.mxu0 0.0
        %1310 = vmatprep.subr.mxu0 0.0
        %1311 = vmatpush2.xpose.msra.mxu0 0.0
        %1312 = vmatprep.subr.mxu0 0.0
        %1313 = vmatpush2.xpose.msra.mxu0 0.0
        %1314 = vmatprep.subr.mxu0 0.0
        %1315 = vmatpush2.xpose.msra.mxu0 0.0
        %1316 = vmatprep.subr.mxu0 0.0
        %1317 = vmatpush2.xpose.msra.mxu0 0.0
        %1318 = vmatprep.subr.mxu0 0.0
        %1319 = vmatpush2.xpose.msra.mxu0 0.0
        %1320 = vmatprep.subr.mxu0 0.0
        %1321 = vmatpush2.xpose.msra.mxu0 0.0
        %1322 = vmatprep.subr.mxu0 0.0
        %1323 = vmatpush2.xpose.msra.mxu0 0.0
        %1324 = vmatprep.mubr.f32.mxu0 0.0
        %v1325 = vand.u32 %v873, 4294901760
        %1326 = vmatmul.mubr.f32.gmra.mxu0 %v1325
        %v1327 = vpop.f32.mrf.mxu0
        %v1328 = vadd.f32 %v1237, %v1327
        %v1329 = vpop.f32.mrf.mxu0
        %1330 = vmatprep.mubr.f32.mxu0 0.0
        %v1331 = vand.u32 %v876, 4294901760
        %1332 = vmatmul.mubr.f32.gmra.mxu0 %v1331
        %v1333 = vpop.f32.mrf.mxu0
        %v1334 = vadd.f32 %v1245, %v1333
        %v1335 = vpop.f32.mrf.mxu0
        %1336 = vdwg.mxu0
        %1337 = vmatprep.subr.mxu0 0.0
        %1338 = vmatpush1.xpose.msra.mxu0 0.0
        %1339 = vmatprep.subr.mxu0 0.0
        %1340 = vmatpush1.xpose.msra.mxu0 0.0
        %1341 = vmatprep.subr.mxu0 0.0
        %1342 = vmatpush1.xpose.msra.mxu0 0.0
        %1343 = vmatprep.subr.mxu0 0.0
        %1344 = vmatpush1.xpose.msra.mxu0 0.0
        %1345 = vmatprep.subr.mxu0 0.0
        %1346 = vmatpush1.xpose.msra.mxu0 0.0
        %1347 = vmatprep.subr.mxu0 0.0
        %1348 = vmatpush1.xpose.msra.mxu0 0.0
        %1349 = vmatprep.subr.mxu0 0.0
        %1350 = vmatpush1.xpose.msra.mxu0 0.0
        %1351 = vmatprep.subr.mxu0 0.0
        %1352 = vmatpush1.xpose.msra.mxu0 0.0
        %1353 = vmatprep.subr.mxu0 0.0
        %1354 = vmatpush1.xpose.msra.mxu0 0.0
        %1355 = vmatprep.subr.mxu0 0.0
        %1356 = vmatpush1.xpose.msra.mxu0 0.0
        %1357 = vmatprep.subr.mxu0 0.0
        %1358 = vmatpush1.xpose.msra.mxu0 0.0
        %1359 = vmatprep.subr.mxu0 0.0
        %1360 = vmatpush1.xpose.msra.mxu0 0.0
        %1361 = vmatprep.subr.mxu0 0.0
        %v1362 = vand.u32 %v888, 4294901760
        %1363 = vmatpush1.xpose.msra.mxu0 %v1362
        %1364 = vmatprep.subr.mxu0 0.0
        %v1365 = vand.u32 %v885, 4294901760
        %1366 = vmatpush1.xpose.msra.mxu0 %v1365
        %1367 = vmatprep.subr.mxu0 0.0
        %v1368 = vand.u32 %v882, 4294901760
        %1369 = vmatpush1.xpose.msra.mxu0 %v1368
        %1370 = vmatprep.subr.mxu0 0.0
        %v1371 = vand.u32 %v879, 4294901760
        %1372 = vmatpush1.xpose.msra.mxu0 %v1371
        %1373 = vmatprep.subr.mxu0 0.0
        %1374 = vmatpush2.xpose.msra.mxu0 0.0
        %1375 = vmatprep.subr.mxu0 0.0
        %1376 = vmatpush2.xpose.msra.mxu0 0.0
        %1377 = vmatprep.subr.mxu0 0.0
        %1378 = vmatpush2.xpose.msra.mxu0 0.0
        %1379 = vmatprep.subr.mxu0 0.0
        %1380 = vmatpush2.xpose.msra.mxu0 0.0
        %1381 = vmatprep.subr.mxu0 0.0
        %1382 = vmatpush2.xpose.msra.mxu0 0.0
        %1383 = vmatprep.subr.mxu0 0.0
        %1384 = vmatpush2.xpose.msra.mxu0 0.0
        %1385 = vmatprep.subr.mxu0 0.0
        %1386 = vmatpush2.xpose.msra.mxu0 0.0
        %1387 = vmatprep.subr.mxu0 0.0
        %1388 = vmatpush2.xpose.msra.mxu0 0.0
        %1389 = vmatprep.subr.mxu0 0.0
        %1390 = vmatpush2.xpose.msra.mxu0 0.0
        %1391 = vmatprep.subr.mxu0 0.0
        %1392 = vmatpush2.xpose.msra.mxu0 0.0
        %1393 = vmatprep.subr.mxu0 0.0
        %1394 = vmatpush2.xpose.msra.mxu0 0.0
        %1395 = vmatprep.subr.mxu0 0.0
        %1396 = vmatpush2.xpose.msra.mxu0 0.0
        %1397 = vmatprep.subr.mxu0 0.0
        %1398 = vmatpush2.xpose.msra.mxu0 0.0
        %1399 = vmatprep.subr.mxu0 0.0
        %1400 = vmatpush2.xpose.msra.mxu0 0.0
        %1401 = vmatprep.subr.mxu0 0.0
        %1402 = vmatpush2.xpose.msra.mxu0 0.0
        %1403 = vmatprep.subr.mxu0 0.0
        %1404 = vmatpush2.xpose.msra.mxu0 0.0
        %1405 = vmatprep.mubr.f32.mxu0 0.0
        %v1406 = vand.u32 %v873, 4294901760
        %1407 = vmatmul.mubr.f32.gmra.mxu0 %v1406
        %v1408 = vpop.f32.mrf.mxu0
        %v1409 = vadd.f32 %v1328, %v1408
        %v1410 = vpop.f32.mrf.mxu0
        %1411 = vmatprep.mubr.f32.mxu0 0.0
        %v1412 = vand.u32 %v876, 4294901760
        %1413 = vmatmul.mubr.f32.gmra.mxu0 %v1412
        %v1414 = vpop.f32.mrf.mxu0
        %v1415 = vadd.f32 %v1334, %v1414
        %v1416 = vpop.f32.mrf.mxu0
        %1417 = vdwg.mxu0
        %vm1418 = vcmask 261120
        %v1419 = vsel %vm1418, %v1409, 0.0
        %v1420 = vsel %vm1418, %v1415, 0.0
        %v1421 = vadd.f32 %v1419, %v1420
        %v1422 = vrot.slane %v1421, 4
        %v1423 = vadd.f32 %v1421, %v1422
        %v1424 = vrot.slane %v1423, 2
        %v1425 = vadd.f32 %v1423, %v1424
        %v1426 = vrot.slane %v1425, 1
        %v1427 = vadd.f32 %v1425, %v1426
        %v1428 = vrcp.pop 16.0
        %v1429 = vmul.f32 %v1427, %v1428
        %v1430 = vsub.f32 %v1409, %v1429
        %v1431 = vsub.f32 %v1415, %v1429
        %v1432 = vmul.f32 %v1430, %v1430
        %v1433 = vmul.f32 %v1431, %v1431
        %v1434 = vsel %vm1418, %v1432, 0.0
        %v1435 = vsel %vm1418, %v1433, 0.0
        %v1436 = vadd.f32 %v1434, %v1435
        %v1437 = vrot.slane %v1436, 4
        %v1438 = vadd.f32 %v1436, %v1437
        %v1439 = vrot.slane %v1438, 2
        %v1440 = vadd.f32 %v1438, %v1439
        %v1441 = vrot.slane %v1440, 1
        %v1442 = vadd.f32 %v1440, %v1441
        %v1443 = vmul.f32 %v1442, %v1428
        %v1444 = vadd.f32 %v1443, 1e-05
        %v1445 = vrsqrt.pop %v1444
        %v1446 = vmul.f32 %v1430, %v1445
        %v1447 = vmul.f32 %v1431, %v1445
        %v1449 = vsel %vm1418, %v1446, 0
        %v1452 = vsel %vm1418, %v1447, 0
        %v1455 = vsel %vm1418, %v198, 0
        %v1458 = vsel %vm1418, %v199, 0
        %v1461 = vsel %vm1418, %v200, 0
        %v1464 = vsel %vm1418, %v201, 0
        %v1467 = vsel %vm1418, %v202, 0
        %v1470 = vsel %vm1418, %v203, 0
        %v1473 = vsel %vm1418, %v204, 0
        %v1476 = vsel %vm1418, %v205, 0
        %v1479 = vsel %vm1418, %v206, 0
        %v1482 = vsel %vm1418, %v207, 0
        %v1485 = vsel %vm1418, %v208, 0
        %v1488 = vsel %vm1418, %v209, 0
        %1490 = vmatprep.subr.mxu0 0.0
        %1491 = vmatpush1.xpose.msra.mxu0 0.0
        %1492 = vmatprep.subr.mxu0 0.0
        %1493 = vmatpush1.xpose.msra.mxu0 0.0
        %1494 = vmatprep.subr.mxu0 0.0
        %1495 = vmatpush1.xpose.msra.mxu0 0.0
        %1496 = vmatprep.subr.mxu0 0.0
        %1497 = vmatpush1.xpose.msra.mxu0 0.0
        %1498 = vmatprep.subr.mxu0 0.0
        %v1499 = vand.u32 %v1488, 4294901760
        %1500 = vmatpush1.xpose.msra.mxu0 %v1499
        %1501 = vmatprep.subr.mxu0 0.0
        %v1502 = vand.u32 %v1485, 4294901760
        %1503 = vmatpush1.xpose.msra.mxu0 %v1502
        %1504 = vmatprep.subr.mxu0 0.0
        %v1505 = vand.u32 %v1482, 4294901760
        %1506 = vmatpush1.xpose.msra.mxu0 %v1505
        %1507 = vmatprep.subr.mxu0 0.0
        %v1508 = vand.u32 %v1479, 4294901760
        %1509 = vmatpush1.xpose.msra.mxu0 %v1508
        %1510 = vmatprep.subr.mxu0 0.0
        %v1511 = vand.u32 %v1476, 4294901760
        %1512 = vmatpush1.xpose.msra.mxu0 %v1511
        %1513 = vmatprep.subr.mxu0 0.0
        %v1514 = vand.u32 %v1473, 4294901760
        %1515 = vmatpush1.xpose.msra.mxu0 %v1514
        %1516 = vmatprep.subr.mxu0 0.0
        %v1517 = vand.u32 %v1470, 4294901760
        %1518 = vmatpush1.xpose.msra.mxu0 %v1517
        %1519 = vmatprep.subr.mxu0 0.0
        %v1520 = vand.u32 %v1467, 4294901760
        %1521 = vmatpush1.xpose.msra.mxu0 %v1520
        %1522 = vmatprep.subr.mxu0 0.0
        %v1523 = vand.u32 %v1464, 4294901760
        %1524 = vmatpush1.xpose.msra.mxu0 %v1523
        %1525 = vmatprep.subr.mxu0 0.0
        %v1526 = vand.u32 %v1461, 4294901760
        %1527 = vmatpush1.xpose.msra.mxu0 %v1526
        %1528 = vmatprep.subr.mxu0 0.0
        %v1529 = vand.u32 %v1458, 4294901760
        %1530 = vmatpush1.xpose.msra.mxu0 %v1529
        %1531 = vmatprep.subr.mxu0 0.0
        %v1532 = vand.u32 %v1455, 4294901760
        %1533 = vmatpush1.xpose.msra.mxu0 %v1532
        %1534 = vmatprep.subr.mxu0 0.0
        %1535 = vmatpush2.xpose.msra.mxu0 0.0
        %1536 = vmatprep.subr.mxu0 0.0
        %1537 = vmatpush2.xpose.msra.mxu0 0.0
        %1538 = vmatprep.subr.mxu0 0.0
        %1539 = vmatpush2.xpose.msra.mxu0 0.0
        %1540 = vmatprep.subr.mxu0 0.0
        %1541 = vmatpush2.xpose.msra.mxu0 0.0
        %1542 = vmatprep.subr.mxu0 0.0
        %1543 = vmatpush2.xpose.msra.mxu0 0.0
        %1544 = vmatprep.subr.mxu0 0.0
        %1545 = vmatpush2.xpose.msra.mxu0 0.0
        %1546 = vmatprep.subr.mxu0 0.0
        %1547 = vmatpush2.xpose.msra.mxu0 0.0
        %1548 = vmatprep.subr.mxu0 0.0
        %1549 = vmatpush2.xpose.msra.mxu0 0.0
        %1550 = vmatprep.subr.mxu0 0.0
        %1551 = vmatpush2.xpose.msra.mxu0 0.0
        %1552 = vmatprep.subr.mxu0 0.0
        %1553 = vmatpush2.xpose.msra.mxu0 0.0
        %1554 = vmatprep.subr.mxu0 0.0
        %1555 = vmatpush2.xpose.msra.mxu0 0.0
        %1556 = vmatprep.subr.mxu0 0.0
        %1557 = vmatpush2.xpose.msra.mxu0 0.0
        %1558 = vmatprep.subr.mxu0 0.0
        %1559 = vmatpush2.xpose.msra.mxu0 0.0
        %1560 = vmatprep.subr.mxu0 0.0
        %1561 = vmatpush2.xpose.msra.mxu0 0.0
        %1562 = vmatprep.subr.mxu0 0.0
        %1563 = vmatpush2.xpose.msra.mxu0 0.0
        %1564 = vmatprep.subr.mxu0 0.0
        %1565 = vmatpush2.xpose.msra.mxu0 0.0
        %1566 = vmatprep.mubr.f32.mxu0 0.0
        %v1567 = vand.u32 %v1449, 4294901760
        %v1568 = vsub.f32 %v1449, %v1567
        %v1569 = vand.u32 %v1568, 4294901760
        %v1570 = vsub.f32 %v1568, %v1569
        %v1571 = vand.u32 %v1570, 4294901760
        %1572 = vmatmul.mubr.f32.gmra.mxu0 %v1571
        %v1573 = vpop.f32.mrf.mxu0
        %v1574 = vadd.f32 0.0, %v1573
        %v1575 = vpop.f32.mrf.mxu0
        %1576 = vmatprep.mubr.f32.mxu0 0.0
        %v1577 = vand.u32 %v1452, 4294901760
        %v1578 = vsub.f32 %v1452, %v1577
        %v1579 = vand.u32 %v1578, 4294901760
        %v1580 = vsub.f32 %v1578, %v1579
        %v1581 = vand.u32 %v1580, 4294901760
        %1582 = vmatmul.mubr.f32.gmra.mxu0 %v1581
        %v1583 = vpop.f32.mrf.mxu0
        %v1584 = vadd.f32 0.0, %v1583
        %v1585 = vpop.f32.mrf.mxu0
        %1586 = vdwg.mxu0
        %1587 = vmatprep.subr.mxu0 0.0
        %1588 = vmatpush1.xpose.msra.mxu0 0.0
        %1589 = vmatprep.subr.mxu0 0.0
        %1590 = vmatpush1.xpose.msra.mxu0 0.0
        %1591 = vmatprep.subr.mxu0 0.0
        %1592 = vmatpush1.xpose.msra.mxu0 0.0
        %1593 = vmatprep.subr.mxu0 0.0
        %1594 = vmatpush1.xpose.msra.mxu0 0.0
        %1595 = vmatprep.subr.mxu0 0.0
        %v1596 = vand.u32 %v1488, 4294901760
        %v1597 = vsub.f32 %v1488, %v1596
        %v1598 = vand.u32 %v1597, 4294901760
        %v1599 = vsub.f32 %v1597, %v1598
        %v1600 = vand.u32 %v1599, 4294901760
        %1601 = vmatpush1.xpose.msra.mxu0 %v1600
        %1602 = vmatprep.subr.mxu0 0.0
        %v1603 = vand.u32 %v1485, 4294901760
        %v1604 = vsub.f32 %v1485, %v1603
        %v1605 = vand.u32 %v1604, 4294901760
        %v1606 = vsub.f32 %v1604, %v1605
        %v1607 = vand.u32 %v1606, 4294901760
        %1608 = vmatpush1.xpose.msra.mxu0 %v1607
        %1609 = vmatprep.subr.mxu0 0.0
        %v1610 = vand.u32 %v1482, 4294901760
        %v1611 = vsub.f32 %v1482, %v1610
        %v1612 = vand.u32 %v1611, 4294901760
        %v1613 = vsub.f32 %v1611, %v1612
        %v1614 = vand.u32 %v1613, 4294901760
        %1615 = vmatpush1.xpose.msra.mxu0 %v1614
        %1616 = vmatprep.subr.mxu0 0.0
        %v1617 = vand.u32 %v1479, 4294901760
        %v1618 = vsub.f32 %v1479, %v1617
        %v1619 = vand.u32 %v1618, 4294901760
        %v1620 = vsub.f32 %v1618, %v1619
        %v1621 = vand.u32 %v1620, 4294901760
        %1622 = vmatpush1.xpose.msra.mxu0 %v1621
        %1623 = vmatprep.subr.mxu0 0.0
        %v1624 = vand.u32 %v1476, 4294901760
        %v1625 = vsub.f32 %v1476, %v1624
        %v1626 = vand.u32 %v1625, 4294901760
        %v1627 = vsub.f32 %v1625, %v1626
        %v1628 = vand.u32 %v1627, 4294901760
        %1629 = vmatpush1.xpose.msra.mxu0 %v1628
        %1630 = vmatprep.subr.mxu0 0.0
        %v1631 = vand.u32 %v1473, 4294901760
        %v1632 = vsub.f32 %v1473, %v1631
        %v1633 = vand.u32 %v1632, 4294901760
        %v1634 = vsub.f32 %v1632, %v1633
        %v1635 = vand.u32 %v1634, 4294901760
        %1636 = vmatpush1.xpose.msra.mxu0 %v1635
        %1637 = vmatprep.subr.mxu0 0.0
        %v1638 = vand.u32 %v1470, 4294901760
        %v1639 = vsub.f32 %v1470, %v1638
        %v1640 = vand.u32 %v1639, 4294901760
        %v1641 = vsub.f32 %v1639, %v1640
        %v1642 = vand.u32 %v1641, 4294901760
        %1643 = vmatpush1.xpose.msra.mxu0 %v1642
        %1644 = vmatprep.subr.mxu0 0.0
        %v1645 = vand.u32 %v1467, 4294901760
        %v1646 = vsub.f32 %v1467, %v1645
        %v1647 = vand.u32 %v1646, 4294901760
        %v1648 = vsub.f32 %v1646, %v1647
        %v1649 = vand.u32 %v1648, 4294901760
        %1650 = vmatpush1.xpose.msra.mxu0 %v1649
        %1651 = vmatprep.subr.mxu0 0.0
        %v1652 = vand.u32 %v1464, 4294901760
        %v1653 = vsub.f32 %v1464, %v1652
        %v1654 = vand.u32 %v1653, 4294901760
        %v1655 = vsub.f32 %v1653, %v1654
        %v1656 = vand.u32 %v1655, 4294901760
        %1657 = vmatpush1.xpose.msra.mxu0 %v1656
        %1658 = vmatprep.subr.mxu0 0.0
        %v1659 = vand.u32 %v1461, 4294901760
        %v1660 = vsub.f32 %v1461, %v1659
        %v1661 = vand.u32 %v1660, 4294901760
        %v1662 = vsub.f32 %v1660, %v1661
        %v1663 = vand.u32 %v1662, 4294901760
        %1664 = vmatpush1.xpose.msra.mxu0 %v1663
        %1665 = vmatprep.subr.mxu0 0.0
        %v1666 = vand.u32 %v1458, 4294901760
        %v1667 = vsub.f32 %v1458, %v1666
        %v1668 = vand.u32 %v1667, 4294901760
        %v1669 = vsub.f32 %v1667, %v1668
        %v1670 = vand.u32 %v1669, 4294901760
        %1671 = vmatpush1.xpose.msra.mxu0 %v1670
        %1672 = vmatprep.subr.mxu0 0.0
        %v1673 = vand.u32 %v1455, 4294901760
        %v1674 = vsub.f32 %v1455, %v1673
        %v1675 = vand.u32 %v1674, 4294901760
        %v1676 = vsub.f32 %v1674, %v1675
        %v1677 = vand.u32 %v1676, 4294901760
        %1678 = vmatpush1.xpose.msra.mxu0 %v1677
        %1679 = vmatprep.subr.mxu0 0.0
        %1680 = vmatpush2.xpose.msra.mxu0 0.0
        %1681 = vmatprep.subr.mxu0 0.0
        %1682 = vmatpush2.xpose.msra.mxu0 0.0
        %1683 = vmatprep.subr.mxu0 0.0
        %1684 = vmatpush2.xpose.msra.mxu0 0.0
        %1685 = vmatprep.subr.mxu0 0.0
        %1686 = vmatpush2.xpose.msra.mxu0 0.0
        %1687 = vmatprep.subr.mxu0 0.0
        %1688 = vmatpush2.xpose.msra.mxu0 0.0
        %1689 = vmatprep.subr.mxu0 0.0
        %1690 = vmatpush2.xpose.msra.mxu0 0.0
        %1691 = vmatprep.subr.mxu0 0.0
        %1692 = vmatpush2.xpose.msra.mxu0 0.0
        %1693 = vmatprep.subr.mxu0 0.0
        %1694 = vmatpush2.xpose.msra.mxu0 0.0
        %1695 = vmatprep.subr.mxu0 0.0
        %1696 = vmatpush2.xpose.msra.mxu0 0.0
        %1697 = vmatprep.subr.mxu0 0.0
        %1698 = vmatpush2.xpose.msra.mxu0 0.0
        %1699 = vmatprep.subr.mxu0 0.0
        %1700 = vmatpush2.xpose.msra.mxu0 0.0
        %1701 = vmatprep.subr.mxu0 0.0
        %1702 = vmatpush2.xpose.msra.mxu0 0.0
        %1703 = vmatprep.subr.mxu0 0.0
        %1704 = vmatpush2.xpose.msra.mxu0 0.0
        %1705 = vmatprep.subr.mxu0 0.0
        %1706 = vmatpush2.xpose.msra.mxu0 0.0
        %1707 = vmatprep.subr.mxu0 0.0
        %1708 = vmatpush2.xpose.msra.mxu0 0.0
        %1709 = vmatprep.subr.mxu0 0.0
        %1710 = vmatpush2.xpose.msra.mxu0 0.0
        %1711 = vmatprep.mubr.f32.mxu0 0.0
        %v1712 = vand.u32 %v1449, 4294901760
        %1713 = vmatmul.mubr.f32.gmra.mxu0 %v1712
        %v1714 = vpop.f32.mrf.mxu0
        %v1715 = vadd.f32 %v1574, %v1714
        %v1716 = vpop.f32.mrf.mxu0
        %1717 = vmatprep.mubr.f32.mxu0 0.0
        %v1718 = vand.u32 %v1452, 4294901760
        %1719 = vmatmul.mubr.f32.gmra.mxu0 %v1718
        %v1720 = vpop.f32.mrf.mxu0
        %v1721 = vadd.f32 %v1584, %v1720
        %v1722 = vpop.f32.mrf.mxu0
        %1723 = vdwg.mxu0
        %1724 = vmatprep.subr.mxu0 0.0
        %1725 = vmatpush1.xpose.msra.mxu0 0.0
        %1726 = vmatprep.subr.mxu0 0.0
        %1727 = vmatpush1.xpose.msra.mxu0 0.0
        %1728 = vmatprep.subr.mxu0 0.0
        %1729 = vmatpush1.xpose.msra.mxu0 0.0
        %1730 = vmatprep.subr.mxu0 0.0
        %1731 = vmatpush1.xpose.msra.mxu0 0.0
        %1732 = vmatprep.subr.mxu0 0.0
        %v1733 = vand.u32 %v1488, 4294901760
        %v1734 = vsub.f32 %v1488, %v1733
        %1735 = vmatpush1.xpose.msra.mxu0 %v1734
        %1736 = vmatprep.subr.mxu0 0.0
        %v1737 = vand.u32 %v1485, 4294901760
        %v1738 = vsub.f32 %v1485, %v1737
        %1739 = vmatpush1.xpose.msra.mxu0 %v1738
        %1740 = vmatprep.subr.mxu0 0.0
        %v1741 = vand.u32 %v1482, 4294901760
        %v1742 = vsub.f32 %v1482, %v1741
        %1743 = vmatpush1.xpose.msra.mxu0 %v1742
        %1744 = vmatprep.subr.mxu0 0.0
        %v1745 = vand.u32 %v1479, 4294901760
        %v1746 = vsub.f32 %v1479, %v1745
        %1747 = vmatpush1.xpose.msra.mxu0 %v1746
        %1748 = vmatprep.subr.mxu0 0.0
        %v1749 = vand.u32 %v1476, 4294901760
        %v1750 = vsub.f32 %v1476, %v1749
        %1751 = vmatpush1.xpose.msra.mxu0 %v1750
        %1752 = vmatprep.subr.mxu0 0.0
        %v1753 = vand.u32 %v1473, 4294901760
        %v1754 = vsub.f32 %v1473, %v1753
        %1755 = vmatpush1.xpose.msra.mxu0 %v1754
        %1756 = vmatprep.subr.mxu0 0.0
        %v1757 = vand.u32 %v1470, 4294901760
        %v1758 = vsub.f32 %v1470, %v1757
        %1759 = vmatpush1.xpose.msra.mxu0 %v1758
        %1760 = vmatprep.subr.mxu0 0.0
        %v1761 = vand.u32 %v1467, 4294901760
        %v1762 = vsub.f32 %v1467, %v1761
        %1763 = vmatpush1.xpose.msra.mxu0 %v1762
        %1764 = vmatprep.subr.mxu0 0.0
        %v1765 = vand.u32 %v1464, 4294901760
        %v1766 = vsub.f32 %v1464, %v1765
        %1767 = vmatpush1.xpose.msra.mxu0 %v1766
        %1768 = vmatprep.subr.mxu0 0.0
        %v1769 = vand.u32 %v1461, 4294901760
        %v1770 = vsub.f32 %v1461, %v1769
        %1771 = vmatpush1.xpose.msra.mxu0 %v1770
        %1772 = vmatprep.subr.mxu0 0.0
        %v1773 = vand.u32 %v1458, 4294901760
        %v1774 = vsub.f32 %v1458, %v1773
        %1775 = vmatpush1.xpose.msra.mxu0 %v1774
        %1776 = vmatprep.subr.mxu0 0.0
        %v1777 = vand.u32 %v1455, 4294901760
        %v1778 = vsub.f32 %v1455, %v1777
        %1779 = vmatpush1.xpose.msra.mxu0 %v1778
        %1780 = vmatprep.subr.mxu0 0.0
        %1781 = vmatpush2.xpose.msra.mxu0 0.0
        %1782 = vmatprep.subr.mxu0 0.0
        %1783 = vmatpush2.xpose.msra.mxu0 0.0
        %1784 = vmatprep.subr.mxu0 0.0
        %1785 = vmatpush2.xpose.msra.mxu0 0.0
        %1786 = vmatprep.subr.mxu0 0.0
        %1787 = vmatpush2.xpose.msra.mxu0 0.0
        %1788 = vmatprep.subr.mxu0 0.0
        %1789 = vmatpush2.xpose.msra.mxu0 0.0
        %1790 = vmatprep.subr.mxu0 0.0
        %1791 = vmatpush2.xpose.msra.mxu0 0.0
        %1792 = vmatprep.subr.mxu0 0.0
        %1793 = vmatpush2.xpose.msra.mxu0 0.0
        %1794 = vmatprep.subr.mxu0 0.0
        %1795 = vmatpush2.xpose.msra.mxu0 0.0
        %1796 = vmatprep.subr.mxu0 0.0
        %1797 = vmatpush2.xpose.msra.mxu0 0.0
        %1798 = vmatprep.subr.mxu0 0.0
        %1799 = vmatpush2.xpose.msra.mxu0 0.0
        %1800 = vmatprep.subr.mxu0 0.0
        %1801 = vmatpush2.xpose.msra.mxu0 0.0
        %1802 = vmatprep.subr.mxu0 0.0
        %1803 = vmatpush2.xpose.msra.mxu0 0.0
        %1804 = vmatprep.subr.mxu0 0.0
        %1805 = vmatpush2.xpose.msra.mxu0 0.0
        %1806 = vmatprep.subr.mxu0 0.0
        %1807 = vmatpush2.xpose.msra.mxu0 0.0
        %1808 = vmatprep.subr.mxu0 0.0
        %1809 = vmatpush2.xpose.msra.mxu0 0.0
        %1810 = vmatprep.subr.mxu0 0.0
        %1811 = vmatpush2.xpose.msra.mxu0 0.0
        %1812 = vmatprep.mubr.f32.mxu0 0.0
        %v1813 = vand.u32 %v1449, 4294901760
        %v1814 = vsub.f32 %v1449, %v1813
        %1815 = vmatmul.mubr.f32.gmra.mxu0 %v1814
        %v1816 = vpop.f32.mrf.mxu0
        %v1817 = vadd.f32 %v1715, %v1816
        %v1818 = vpop.f32.mrf.mxu0
        %1819 = vmatprep.mubr.f32.mxu0 0.0
        %v1820 = vand.u32 %v1452, 4294901760
        %v1821 = vsub.f32 %v1452, %v1820
        %1822 = vmatmul.mubr.f32.gmra.mxu0 %v1821
        %v1823 = vpop.f32.mrf.mxu0
        %v1824 = vadd.f32 %v1721, %v1823
        %v1825 = vpop.f32.mrf.mxu0
        %1826 = vdwg.mxu0
        %1827 = vmatprep.subr.mxu0 0.0
        %1828 = vmatpush1.xpose.msra.mxu0 0.0
        %1829 = vmatprep.subr.mxu0 0.0
        %1830 = vmatpush1.xpose.msra.mxu0 0.0
        %1831 = vmatprep.subr.mxu0 0.0
        %1832 = vmatpush1.xpose.msra.mxu0 0.0
        %1833 = vmatprep.subr.mxu0 0.0
        %1834 = vmatpush1.xpose.msra.mxu0 0.0
        %1835 = vmatprep.subr.mxu0 0.0
        %v1836 = vand.u32 %v1488, 4294901760
        %1837 = vmatpush1.xpose.msra.mxu0 %v1836
        %1838 = vmatprep.subr.mxu0 0.0
        %v1839 = vand.u32 %v1485, 4294901760
        %1840 = vmatpush1.xpose.msra.mxu0 %v1839
        %1841 = vmatprep.subr.mxu0 0.0
        %v1842 = vand.u32 %v1482, 4294901760
        %1843 = vmatpush1.xpose.msra.mxu0 %v1842
        %1844 = vmatprep.subr.mxu0 0.0
        %v1845 = vand.u32 %v1479, 4294901760
        %1846 = vmatpush1.xpose.msra.mxu0 %v1845
        %1847 = vmatprep.subr.mxu0 0.0
        %v1848 = vand.u32 %v1476, 4294901760
        %1849 = vmatpush1.xpose.msra.mxu0 %v1848
        %1850 = vmatprep.subr.mxu0 0.0
        %v1851 = vand.u32 %v1473, 4294901760
        %1852 = vmatpush1.xpose.msra.mxu0 %v1851
        %1853 = vmatprep.subr.mxu0 0.0
        %v1854 = vand.u32 %v1470, 4294901760
        %1855 = vmatpush1.xpose.msra.mxu0 %v1854
        %1856 = vmatprep.subr.mxu0 0.0
        %v1857 = vand.u32 %v1467, 4294901760
        %1858 = vmatpush1.xpose.msra.mxu0 %v1857
        %1859 = vmatprep.subr.mxu0 0.0
        %v1860 = vand.u32 %v1464, 4294901760
        %1861 = vmatpush1.xpose.msra.mxu0 %v1860
        %1862 = vmatprep.subr.mxu0 0.0
        %v1863 = vand.u32 %v1461, 4294901760
        %1864 = vmatpush1.xpose.msra.mxu0 %v1863
        %1865 = vmatprep.subr.mxu0 0.0
        %v1866 = vand.u32 %v1458, 4294901760
        %1867 = vmatpush1.xpose.msra.mxu0 %v1866
        %1868 = vmatprep.subr.mxu0 0.0
        %v1869 = vand.u32 %v1455, 4294901760
        %1870 = vmatpush1.xpose.msra.mxu0 %v1869
        %1871 = vmatprep.subr.mxu0 0.0
        %1872 = vmatpush2.xpose.msra.mxu0 0.0
        %1873 = vmatprep.subr.mxu0 0.0
        %1874 = vmatpush2.xpose.msra.mxu0 0.0
        %1875 = vmatprep.subr.mxu0 0.0
        %1876 = vmatpush2.xpose.msra.mxu0 0.0
        %1877 = vmatprep.subr.mxu0 0.0
        %1878 = vmatpush2.xpose.msra.mxu0 0.0
        %1879 = vmatprep.subr.mxu0 0.0
        %1880 = vmatpush2.xpose.msra.mxu0 0.0
        %1881 = vmatprep.subr.mxu0 0.0
        %1882 = vmatpush2.xpose.msra.mxu0 0.0
        %1883 = vmatprep.subr.mxu0 0.0
        %1884 = vmatpush2.xpose.msra.mxu0 0.0
        %1885 = vmatprep.subr.mxu0 0.0
        %1886 = vmatpush2.xpose.msra.mxu0 0.0
        %1887 = vmatprep.subr.mxu0 0.0
        %1888 = vmatpush2.xpose.msra.mxu0 0.0
        %1889 = vmatprep.subr.mxu0 0.0
        %1890 = vmatpush2.xpose.msra.mxu0 0.0
        %1891 = vmatprep.subr.mxu0 0.0
        %1892 = vmatpush2.xpose.msra.mxu0 0.0
        %1893 = vmatprep.subr.mxu0 0.0
        %1894 = vmatpush2.xpose.msra.mxu0 0.0
        %1895 = vmatprep.subr.mxu0 0.0
        %1896 = vmatpush2.xpose.msra.mxu0 0.0
        %1897 = vmatprep.subr.mxu0 0.0
        %1898 = vmatpush2.xpose.msra.mxu0 0.0
        %1899 = vmatprep.subr.mxu0 0.0
        %1900 = vmatpush2.xpose.msra.mxu0 0.0
        %1901 = vmatprep.subr.mxu0 0.0
        %1902 = vmatpush2.xpose.msra.mxu0 0.0
        %1903 = vmatprep.mubr.f32.mxu0 0.0
        %v1904 = vand.u32 %v1449, 4294901760
        %v1905 = vsub.f32 %v1449, %v1904
        %v1906 = vand.u32 %v1905, 4294901760
        %1907 = vmatmul.mubr.f32.gmra.mxu0 %v1906
        %v1908 = vpop.f32.mrf.mxu0
        %v1909 = vadd.f32 %v1817, %v1908
        %v1910 = vpop.f32.mrf.mxu0
        %1911 = vmatprep.mubr.f32.mxu0 0.0
        %v1912 = vand.u32 %v1452, 4294901760
        %v1913 = vsub.f32 %v1452, %v1912
        %v1914 = vand.u32 %v1913, 4294901760
        %1915 = vmatmul.mubr.f32.gmra.mxu0 %v1914
        %v1916 = vpop.f32.mrf.mxu0
        %v1917 = vadd.f32 %v1824, %v1916
        %v1918 = vpop.f32.mrf.mxu0
        %1919 = vdwg.mxu0
        %1920 = vmatprep.subr.mxu0 0.0
        %1921 = vmatpush1.xpose.msra.mxu0 0.0
        %1922 = vmatprep.subr.mxu0 0.0
        %1923 = vmatpush1.xpose.msra.mxu0 0.0
        %1924 = vmatprep.subr.mxu0 0.0
        %1925 = vmatpush1.xpose.msra.mxu0 0.0
        %1926 = vmatprep.subr.mxu0 0.0
        %1927 = vmatpush1.xpose.msra.mxu0 0.0
        %1928 = vmatprep.subr.mxu0 0.0
        %v1929 = vand.u32 %v1488, 4294901760
        %v1930 = vsub.f32 %v1488, %v1929
        %v1931 = vand.u32 %v1930, 4294901760
        %1932 = vmatpush1.xpose.msra.mxu0 %v1931
        %1933 = vmatprep.subr.mxu0 0.0
        %v1934 = vand.u32 %v1485, 4294901760
        %v1935 = vsub.f32 %v1485, %v1934
        %v1936 = vand.u32 %v1935, 4294901760
        %1937 = vmatpush1.xpose.msra.mxu0 %v1936
        %1938 = vmatprep.subr.mxu0 0.0
        %v1939 = vand.u32 %v1482, 4294901760
        %v1940 = vsub.f32 %v1482, %v1939
        %v1941 = vand.u32 %v1940, 4294901760
        %1942 = vmatpush1.xpose.msra.mxu0 %v1941
        %1943 = vmatprep.subr.mxu0 0.0
        %v1944 = vand.u32 %v1479, 4294901760
        %v1945 = vsub.f32 %v1479, %v1944
        %v1946 = vand.u32 %v1945, 4294901760
        %1947 = vmatpush1.xpose.msra.mxu0 %v1946
        %1948 = vmatprep.subr.mxu0 0.0
        %v1949 = vand.u32 %v1476, 4294901760
        %v1950 = vsub.f32 %v1476, %v1949
        %v1951 = vand.u32 %v1950, 4294901760
        %1952 = vmatpush1.xpose.msra.mxu0 %v1951
        %1953 = vmatprep.subr.mxu0 0.0
        %v1954 = vand.u32 %v1473, 4294901760
        %v1955 = vsub.f32 %v1473, %v1954
        %v1956 = vand.u32 %v1955, 4294901760
        %1957 = vmatpush1.xpose.msra.mxu0 %v1956
        %1958 = vmatprep.subr.mxu0 0.0
        %v1959 = vand.u32 %v1470, 4294901760
        %v1960 = vsub.f32 %v1470, %v1959
        %v1961 = vand.u32 %v1960, 4294901760
        %1962 = vmatpush1.xpose.msra.mxu0 %v1961
        %1963 = vmatprep.subr.mxu0 0.0
        %v1964 = vand.u32 %v1467, 4294901760
        %v1965 = vsub.f32 %v1467, %v1964
        %v1966 = vand.u32 %v1965, 4294901760
        %1967 = vmatpush1.xpose.msra.mxu0 %v1966
        %1968 = vmatprep.subr.mxu0 0.0
        %v1969 = vand.u32 %v1464, 4294901760
        %v1970 = vsub.f32 %v1464, %v1969
        %v1971 = vand.u32 %v1970, 4294901760
        %1972 = vmatpush1.xpose.msra.mxu0 %v1971
        %1973 = vmatprep.subr.mxu0 0.0
        %v1974 = vand.u32 %v1461, 4294901760
        %v1975 = vsub.f32 %v1461, %v1974
        %v1976 = vand.u32 %v1975, 4294901760
        %1977 = vmatpush1.xpose.msra.mxu0 %v1976
        %1978 = vmatprep.subr.mxu0 0.0
        %v1979 = vand.u32 %v1458, 4294901760
        %v1980 = vsub.f32 %v1458, %v1979
        %v1981 = vand.u32 %v1980, 4294901760
        %1982 = vmatpush1.xpose.msra.mxu0 %v1981
        %1983 = vmatprep.subr.mxu0 0.0
        %v1984 = vand.u32 %v1455, 4294901760
        %v1985 = vsub.f32 %v1455, %v1984
        %v1986 = vand.u32 %v1985, 4294901760
        %1987 = vmatpush1.xpose.msra.mxu0 %v1986
        %1988 = vmatprep.subr.mxu0 0.0
        %1989 = vmatpush2.xpose.msra.mxu0 0.0
        %1990 = vmatprep.subr.mxu0 0.0
        %1991 = vmatpush2.xpose.msra.mxu0 0.0
        %1992 = vmatprep.subr.mxu0 0.0
        %1993 = vmatpush2.xpose.msra.mxu0 0.0
        %1994 = vmatprep.subr.mxu0 0.0
        %1995 = vmatpush2.xpose.msra.mxu0 0.0
        %1996 = vmatprep.subr.mxu0 0.0
        %1997 = vmatpush2.xpose.msra.mxu0 0.0
        %1998 = vmatprep.subr.mxu0 0.0
        %1999 = vmatpush2.xpose.msra.mxu0 0.0
        %2000 = vmatprep.subr.mxu0 0.0
        %2001 = vmatpush2.xpose.msra.mxu0 0.0
        %2002 = vmatprep.subr.mxu0 0.0
        %2003 = vmatpush2.xpose.msra.mxu0 0.0
        %2004 = vmatprep.subr.mxu0 0.0
        %2005 = vmatpush2.xpose.msra.mxu0 0.0
        %2006 = vmatprep.subr.mxu0 0.0
        %2007 = vmatpush2.xpose.msra.mxu0 0.0
        %2008 = vmatprep.subr.mxu0 0.0
        %2009 = vmatpush2.xpose.msra.mxu0 0.0
        %2010 = vmatprep.subr.mxu0 0.0
        %2011 = vmatpush2.xpose.msra.mxu0 0.0
        %2012 = vmatprep.subr.mxu0 0.0
        %2013 = vmatpush2.xpose.msra.mxu0 0.0
        %2014 = vmatprep.subr.mxu0 0.0
        %2015 = vmatpush2.xpose.msra.mxu0 0.0
        %2016 = vmatprep.subr.mxu0 0.0
        %2017 = vmatpush2.xpose.msra.mxu0 0.0
        %2018 = vmatprep.subr.mxu0 0.0
        %2019 = vmatpush2.xpose.msra.mxu0 0.0
        %2020 = vmatprep.mubr.f32.mxu0 0.0
        %v2021 = vand.u32 %v1449, 4294901760
        %2022 = vmatmul.mubr.f32.gmra.mxu0 %v2021
        %v2023 = vpop.f32.mrf.mxu0
        %v2024 = vadd.f32 %v1909, %v2023
        %v2025 = vpop.f32.mrf.mxu0
        %2026 = vmatprep.mubr.f32.mxu0 0.0
        %v2027 = vand.u32 %v1452, 4294901760
        %2028 = vmatmul.mubr.f32.gmra.mxu0 %v2027
        %v2029 = vpop.f32.mrf.mxu0
        %v2030 = vadd.f32 %v1917, %v2029
        %v2031 = vpop.f32.mrf.mxu0
        %2032 = vdwg.mxu0
        %2033 = vmatprep.subr.mxu0 0.0
        %2034 = vmatpush1.xpose.msra.mxu0 0.0
        %2035 = vmatprep.subr.mxu0 0.0
        %2036 = vmatpush1.xpose.msra.mxu0 0.0
        %2037 = vmatprep.subr.mxu0 0.0
        %2038 = vmatpush1.xpose.msra.mxu0 0.0
        %2039 = vmatprep.subr.mxu0 0.0
        %2040 = vmatpush1.xpose.msra.mxu0 0.0
        %2041 = vmatprep.subr.mxu0 0.0
        %v2042 = vand.u32 %v1488, 4294901760
        %2043 = vmatpush1.xpose.msra.mxu0 %v2042
        %2044 = vmatprep.subr.mxu0 0.0
        %v2045 = vand.u32 %v1485, 4294901760
        %2046 = vmatpush1.xpose.msra.mxu0 %v2045
        %2047 = vmatprep.subr.mxu0 0.0
        %v2048 = vand.u32 %v1482, 4294901760
        %2049 = vmatpush1.xpose.msra.mxu0 %v2048
        %2050 = vmatprep.subr.mxu0 0.0
        %v2051 = vand.u32 %v1479, 4294901760
        %2052 = vmatpush1.xpose.msra.mxu0 %v2051
        %2053 = vmatprep.subr.mxu0 0.0
        %v2054 = vand.u32 %v1476, 4294901760
        %2055 = vmatpush1.xpose.msra.mxu0 %v2054
        %2056 = vmatprep.subr.mxu0 0.0
        %v2057 = vand.u32 %v1473, 4294901760
        %2058 = vmatpush1.xpose.msra.mxu0 %v2057
        %2059 = vmatprep.subr.mxu0 0.0
        %v2060 = vand.u32 %v1470, 4294901760
        %2061 = vmatpush1.xpose.msra.mxu0 %v2060
        %2062 = vmatprep.subr.mxu0 0.0
        %v2063 = vand.u32 %v1467, 4294901760
        %2064 = vmatpush1.xpose.msra.mxu0 %v2063
        %2065 = vmatprep.subr.mxu0 0.0
        %v2066 = vand.u32 %v1464, 4294901760
        %2067 = vmatpush1.xpose.msra.mxu0 %v2066
        %2068 = vmatprep.subr.mxu0 0.0
        %v2069 = vand.u32 %v1461, 4294901760
        %2070 = vmatpush1.xpose.msra.mxu0 %v2069
        %2071 = vmatprep.subr.mxu0 0.0
        %v2072 = vand.u32 %v1458, 4294901760
        %2073 = vmatpush1.xpose.msra.mxu0 %v2072
        %2074 = vmatprep.subr.mxu0 0.0
        %v2075 = vand.u32 %v1455, 4294901760
        %2076 = vmatpush1.xpose.msra.mxu0 %v2075
        %2077 = vmatprep.subr.mxu0 0.0
        %2078 = vmatpush2.xpose.msra.mxu0 0.0
        %2079 = vmatprep.subr.mxu0 0.0
        %2080 = vmatpush2.xpose.msra.mxu0 0.0
        %2081 = vmatprep.subr.mxu0 0.0
        %2082 = vmatpush2.xpose.msra.mxu0 0.0
        %2083 = vmatprep.subr.mxu0 0.0
        %2084 = vmatpush2.xpose.msra.mxu0 0.0
        %2085 = vmatprep.subr.mxu0 0.0
        %2086 = vmatpush2.xpose.msra.mxu0 0.0
        %2087 = vmatprep.subr.mxu0 0.0
        %2088 = vmatpush2.xpose.msra.mxu0 0.0
        %2089 = vmatprep.subr.mxu0 0.0
        %2090 = vmatpush2.xpose.msra.mxu0 0.0
        %2091 = vmatprep.subr.mxu0 0.0
        %2092 = vmatpush2.xpose.msra.mxu0 0.0
        %2093 = vmatprep.subr.mxu0 0.0
        %2094 = vmatpush2.xpose.msra.mxu0 0.0
        %2095 = vmatprep.subr.mxu0 0.0
        %2096 = vmatpush2.xpose.msra.mxu0 0.0
        %2097 = vmatprep.subr.mxu0 0.0
        %2098 = vmatpush2.xpose.msra.mxu0 0.0
        %2099 = vmatprep.subr.mxu0 0.0
        %2100 = vmatpush2.xpose.msra.mxu0 0.0
        %2101 = vmatprep.subr.mxu0 0.0
        %2102 = vmatpush2.xpose.msra.mxu0 0.0
        %2103 = vmatprep.subr.mxu0 0.0
        %2104 = vmatpush2.xpose.msra.mxu0 0.0
        %2105 = vmatprep.subr.mxu0 0.0
        %2106 = vmatpush2.xpose.msra.mxu0 0.0
        %2107 = vmatprep.subr.mxu0 0.0
        %2108 = vmatpush2.xpose.msra.mxu0 0.0
        %2109 = vmatprep.mubr.f32.mxu0 0.0
        %v2110 = vand.u32 %v1449, 4294901760
        %2111 = vmatmul.mubr.f32.gmra.mxu0 %v2110
        %v2112 = vpop.f32.mrf.mxu0
        %v2113 = vadd.f32 %v2024, %v2112
        %v2114 = vpop.f32.mrf.mxu0
        %2115 = vmatprep.mubr.f32.mxu0 0.0
        %v2116 = vand.u32 %v1452, 4294901760
        %2117 = vmatmul.mubr.f32.gmra.mxu0 %v2116
        %v2118 = vpop.f32.mrf.mxu0
        %v2119 = vadd.f32 %v2030, %v2118
        %v2120 = vpop.f32.mrf.mxu0
        %2121 = vdwg.mxu0
        %v2122 = vlaneseq
        %v2123 = vshrl.u32 %v2122, 7
        %v2124 = vsub.s32 0, %v2123
        %v2125 = vrot.slane %v223, %v2124
        %v2126 = vadd.f32 %v2113, %v2125
        %v2127 = vadd.f32 %v2119, %v2125
        %v2128 = vlaneseq
        %v2129 = vshrl.u32 %v2128, 7
        %v2130 = vsub.s32 0, %v2129
        %v2131 = vrot.slane %v224, %v2130
        %2133 = vrot.lane.b32.xlu0 %v2131, 32
        %v2134 = vpop.permute.xlu0 %2133
        %v2136 = vadd.f32 %v2113, %v2134
        %v2137 = vadd.f32 %v2119, %v2134
        %v2138 = vlaneseq
        %v2139 = vshrl.u32 %v2138, 7
        %v2140 = vsub.s32 0, %v2139
        %v2141 = vrot.slane %v225, %v2140
        %2143 = vrot.lane.b32.xlu0 %v2141, 64
        %v2144 = vpop.permute.xlu0 %2143
        %v2146 = vadd.f32 %v2113, %v2144
        %v2147 = vadd.f32 %v2119, %v2144
        %v2148 = vlaneseq
        %v2149 = vand.u32 %v2148, 127
        %vm2150 = vcmp.ge.s32.totalorder %v2149, 0
        %vm2151 = vcmp.lt.s32.totalorder %v2149, 8
        %vm2152 = vmand %vm2150, %vm2151
        %v2153 = vsel %vm2152, 1, 0
        %v2154 = vcvt.s32.f32 %v2153
        %v2155 = vmul.f32 %v2126, %v2154
        %v2156 = vmul.f32 %v2127, %v2154
        %2159 = vrot.lane.b32.xlu0 %v2136, 96
        %v2160 = vpop.permute.xlu0 %2159
        %2161 = vrot.lane.b32.xlu0 %v2137, 96
        %v2162 = vpop.permute.xlu0 %2161
        %v2164 = vsel %vm1418, %v2155, 0
        %v2167 = vsel %vm1418, %v2156, 0
        %v2169 = vsel %vm1418, %v2160, 0
        %v2171 = vsel %vm1418, %v2162, 0
        %2173 = vmatprep.subr.mxu0 0.0
        %2174 = vmatpush1.xpose.msra.mxu0 0.0
        %2175 = vmatprep.subr.mxu0 0.0
        %2176 = vmatpush1.xpose.msra.mxu0 0.0
        %2177 = vmatprep.subr.mxu0 0.0
        %2178 = vmatpush1.xpose.msra.mxu0 0.0
        %2179 = vmatprep.subr.mxu0 0.0
        %2180 = vmatpush1.xpose.msra.mxu0 0.0
        %2181 = vmatprep.subr.mxu0 0.0
        %2182 = vmatpush1.xpose.msra.mxu0 0.0
        %2183 = vmatprep.subr.mxu0 0.0
        %2184 = vmatpush1.xpose.msra.mxu0 0.0
        %2185 = vmatprep.subr.mxu0 0.0
        %2186 = vmatpush1.xpose.msra.mxu0 0.0
        %2187 = vmatprep.subr.mxu0 0.0
        %2188 = vmatpush1.xpose.msra.mxu0 0.0
        %2189 = vmatprep.subr.mxu0 0.0
        %2190 = vmatpush1.xpose.msra.mxu0 0.0
        %2191 = vmatprep.subr.mxu0 0.0
        %2192 = vmatpush1.xpose.msra.mxu0 0.0
        %2193 = vmatprep.subr.mxu0 0.0
        %2194 = vmatpush1.xpose.msra.mxu0 0.0
        %2195 = vmatprep.subr.mxu0 0.0
        %2196 = vmatpush1.xpose.msra.mxu0 0.0
        %2197 = vmatprep.subr.mxu0 0.0
        %2198 = vmatpush1.xpose.msra.mxu0 0.0
        %2199 = vmatprep.subr.mxu0 0.0
        %2200 = vmatpush1.xpose.msra.mxu0 0.0
        %2201 = vmatprep.subr.mxu0 0.0
        %v2202 = vand.u32 %v2171, 4294901760
        %2203 = vmatpush1.xpose.msra.mxu0 %v2202
        %2204 = vmatprep.subr.mxu0 0.0
        %v2205 = vand.u32 %v2169, 4294901760
        %2206 = vmatpush1.xpose.msra.mxu0 %v2205
        %2207 = vmatprep.subr.mxu0 0.0
        %2208 = vmatpush2.xpose.msra.mxu0 0.0
        %2209 = vmatprep.subr.mxu0 0.0
        %2210 = vmatpush2.xpose.msra.mxu0 0.0
        %2211 = vmatprep.subr.mxu0 0.0
        %2212 = vmatpush2.xpose.msra.mxu0 0.0
        %2213 = vmatprep.subr.mxu0 0.0
        %2214 = vmatpush2.xpose.msra.mxu0 0.0
        %2215 = vmatprep.subr.mxu0 0.0
        %2216 = vmatpush2.xpose.msra.mxu0 0.0
        %2217 = vmatprep.subr.mxu0 0.0
        %2218 = vmatpush2.xpose.msra.mxu0 0.0
        %2219 = vmatprep.subr.mxu0 0.0
        %2220 = vmatpush2.xpose.msra.mxu0 0.0
        %2221 = vmatprep.subr.mxu0 0.0
        %2222 = vmatpush2.xpose.msra.mxu0 0.0
        %2223 = vmatprep.subr.mxu0 0.0
        %2224 = vmatpush2.xpose.msra.mxu0 0.0
        %2225 = vmatprep.subr.mxu0 0.0
        %2226 = vmatpush2.xpose.msra.mxu0 0.0
        %2227 = vmatprep.subr.mxu0 0.0
        %2228 = vmatpush2.xpose.msra.mxu0 0.0
        %2229 = vmatprep.subr.mxu0 0.0
        %2230 = vmatpush2.xpose.msra.mxu0 0.0
        %2231 = vmatprep.subr.mxu0 0.0
        %2232 = vmatpush2.xpose.msra.mxu0 0.0
        %2233 = vmatprep.subr.mxu0 0.0
        %2234 = vmatpush2.xpose.msra.mxu0 0.0
        %2235 = vmatprep.subr.mxu0 0.0
        %2236 = vmatpush2.xpose.msra.mxu0 0.0
        %2237 = vmatprep.subr.mxu0 0.0
        %2238 = vmatpush2.xpose.msra.mxu0 0.0
        %2239 = vmatprep.mubr.f32.mxu0 0.0
        %v2240 = vand.u32 %v2164, 4294901760
        %v2241 = vsub.f32 %v2164, %v2240
        %v2242 = vand.u32 %v2241, 4294901760
        %v2243 = vsub.f32 %v2241, %v2242
        %v2244 = vand.u32 %v2243, 4294901760
        %2245 = vmatmul.mubr.f32.gmra.mxu0 %v2244
        %v2246 = vpop.f32.mrf.mxu0
        %v2247 = vadd.f32 0.0, %v2246
        %v2248 = vpop.f32.mrf.mxu0
        %2249 = vmatprep.mubr.f32.mxu0 0.0
        %v2250 = vand.u32 %v2167, 4294901760
        %v2251 = vsub.f32 %v2167, %v2250
        %v2252 = vand.u32 %v2251, 4294901760
        %v2253 = vsub.f32 %v2251, %v2252
        %v2254 = vand.u32 %v2253, 4294901760
        %2255 = vmatmul.mubr.f32.gmra.mxu0 %v2254
        %v2256 = vpop.f32.mrf.mxu0
        %v2257 = vadd.f32 0.0, %v2256
        %v2258 = vpop.f32.mrf.mxu0
        %2259 = vdwg.mxu0
        %2260 = vmatprep.subr.mxu0 0.0
        %2261 = vmatpush1.xpose.msra.mxu0 0.0
        %2262 = vmatprep.subr.mxu0 0.0
        %2263 = vmatpush1.xpose.msra.mxu0 0.0
        %2264 = vmatprep.subr.mxu0 0.0
        %2265 = vmatpush1.xpose.msra.mxu0 0.0
        %2266 = vmatprep.subr.mxu0 0.0
        %2267 = vmatpush1.xpose.msra.mxu0 0.0
        %2268 = vmatprep.subr.mxu0 0.0
        %2269 = vmatpush1.xpose.msra.mxu0 0.0
        %2270 = vmatprep.subr.mxu0 0.0
        %2271 = vmatpush1.xpose.msra.mxu0 0.0
        %2272 = vmatprep.subr.mxu0 0.0
        %2273 = vmatpush1.xpose.msra.mxu0 0.0
        %2274 = vmatprep.subr.mxu0 0.0
        %2275 = vmatpush1.xpose.msra.mxu0 0.0
        %2276 = vmatprep.subr.mxu0 0.0
        %2277 = vmatpush1.xpose.msra.mxu0 0.0
        %2278 = vmatprep.subr.mxu0 0.0
        %2279 = vmatpush1.xpose.msra.mxu0 0.0
        %2280 = vmatprep.subr.mxu0 0.0
        %2281 = vmatpush1.xpose.msra.mxu0 0.0
        %2282 = vmatprep.subr.mxu0 0.0
        %2283 = vmatpush1.xpose.msra.mxu0 0.0
        %2284 = vmatprep.subr.mxu0 0.0
        %2285 = vmatpush1.xpose.msra.mxu0 0.0
        %2286 = vmatprep.subr.mxu0 0.0
        %2287 = vmatpush1.xpose.msra.mxu0 0.0
        %2288 = vmatprep.subr.mxu0 0.0
        %v2289 = vand.u32 %v2171, 4294901760
        %v2290 = vsub.f32 %v2171, %v2289
        %v2291 = vand.u32 %v2290, 4294901760
        %v2292 = vsub.f32 %v2290, %v2291
        %v2293 = vand.u32 %v2292, 4294901760
        %2294 = vmatpush1.xpose.msra.mxu0 %v2293
        %2295 = vmatprep.subr.mxu0 0.0
        %v2296 = vand.u32 %v2169, 4294901760
        %v2297 = vsub.f32 %v2169, %v2296
        %v2298 = vand.u32 %v2297, 4294901760
        %v2299 = vsub.f32 %v2297, %v2298
        %v2300 = vand.u32 %v2299, 4294901760
        %2301 = vmatpush1.xpose.msra.mxu0 %v2300
        %2302 = vmatprep.subr.mxu0 0.0
        %2303 = vmatpush2.xpose.msra.mxu0 0.0
        %2304 = vmatprep.subr.mxu0 0.0
        %2305 = vmatpush2.xpose.msra.mxu0 0.0
        %2306 = vmatprep.subr.mxu0 0.0
        %2307 = vmatpush2.xpose.msra.mxu0 0.0
        %2308 = vmatprep.subr.mxu0 0.0
        %2309 = vmatpush2.xpose.msra.mxu0 0.0
        %2310 = vmatprep.subr.mxu0 0.0
        %2311 = vmatpush2.xpose.msra.mxu0 0.0
        %2312 = vmatprep.subr.mxu0 0.0
        %2313 = vmatpush2.xpose.msra.mxu0 0.0
        %2314 = vmatprep.subr.mxu0 0.0
        %2315 = vmatpush2.xpose.msra.mxu0 0.0
        %2316 = vmatprep.subr.mxu0 0.0
        %2317 = vmatpush2.xpose.msra.mxu0 0.0
        %2318 = vmatprep.subr.mxu0 0.0
        %2319 = vmatpush2.xpose.msra.mxu0 0.0
        %2320 = vmatprep.subr.mxu0 0.0
        %2321 = vmatpush2.xpose.msra.mxu0 0.0
        %2322 = vmatprep.subr.mxu0 0.0
        %2323 = vmatpush2.xpose.msra.mxu0 0.0
        %2324 = vmatprep.subr.mxu0 0.0
        %2325 = vmatpush2.xpose.msra.mxu0 0.0
        %2326 = vmatprep.subr.mxu0 0.0
        %2327 = vmatpush2.xpose.msra.mxu0 0.0
        %2328 = vmatprep.subr.mxu0 0.0
        %2329 = vmatpush2.xpose.msra.mxu0 0.0
        %2330 = vmatprep.subr.mxu0 0.0
        %2331 = vmatpush2.xpose.msra.mxu0 0.0
        %2332 = vmatprep.subr.mxu0 0.0
        %2333 = vmatpush2.xpose.msra.mxu0 0.0
        %2334 = vmatprep.mubr.f32.mxu0 0.0
        %v2335 = vand.u32 %v2164, 4294901760
        %2336 = vmatmul.mubr.f32.gmra.mxu0 %v2335
        %v2337 = vpop.f32.mrf.mxu0
        %v2338 = vadd.f32 %v2247, %v2337
        %v2339 = vpop.f32.mrf.mxu0
        %2340 = vmatprep.mubr.f32.mxu0 0.0
        %v2341 = vand.u32 %v2167, 4294901760
        %2342 = vmatmul.mubr.f32.gmra.mxu0 %v2341
        %v2343 = vpop.f32.mrf.mxu0
        %v2344 = vadd.f32 %v2257, %v2343
        %v2345 = vpop.f32.mrf.mxu0
        %2346 = vdwg.mxu0
        %2347 = vmatprep.subr.mxu0 0.0
        %2348 = vmatpush1.xpose.msra.mxu0 0.0
        %2349 = vmatprep.subr.mxu0 0.0
        %2350 = vmatpush1.xpose.msra.mxu0 0.0
        %2351 = vmatprep.subr.mxu0 0.0
        %2352 = vmatpush1.xpose.msra.mxu0 0.0
        %2353 = vmatprep.subr.mxu0 0.0
        %2354 = vmatpush1.xpose.msra.mxu0 0.0
        %2355 = vmatprep.subr.mxu0 0.0
        %2356 = vmatpush1.xpose.msra.mxu0 0.0
        %2357 = vmatprep.subr.mxu0 0.0
        %2358 = vmatpush1.xpose.msra.mxu0 0.0
        %2359 = vmatprep.subr.mxu0 0.0
        %2360 = vmatpush1.xpose.msra.mxu0 0.0
        %2361 = vmatprep.subr.mxu0 0.0
        %2362 = vmatpush1.xpose.msra.mxu0 0.0
        %2363 = vmatprep.subr.mxu0 0.0
        %2364 = vmatpush1.xpose.msra.mxu0 0.0
        %2365 = vmatprep.subr.mxu0 0.0
        %2366 = vmatpush1.xpose.msra.mxu0 0.0
        %2367 = vmatprep.subr.mxu0 0.0
        %2368 = vmatpush1.xpose.msra.mxu0 0.0
        %2369 = vmatprep.subr.mxu0 0.0
        %2370 = vmatpush1.xpose.msra.mxu0 0.0
        %2371 = vmatprep.subr.mxu0 0.0
        %2372 = vmatpush1.xpose.msra.mxu0 0.0
        %2373 = vmatprep.subr.mxu0 0.0
        %2374 = vmatpush1.xpose.msra.mxu0 0.0
        %2375 = vmatprep.subr.mxu0 0.0
        %v2376 = vand.u32 %v2171, 4294901760
        %v2377 = vsub.f32 %v2171, %v2376
        %2378 = vmatpush1.xpose.msra.mxu0 %v2377
        %2379 = vmatprep.subr.mxu0 0.0
        %v2380 = vand.u32 %v2169, 4294901760
        %v2381 = vsub.f32 %v2169, %v2380
        %2382 = vmatpush1.xpose.msra.mxu0 %v2381
        %2383 = vmatprep.subr.mxu0 0.0
        %2384 = vmatpush2.xpose.msra.mxu0 0.0
        %2385 = vmatprep.subr.mxu0 0.0
        %2386 = vmatpush2.xpose.msra.mxu0 0.0
        %2387 = vmatprep.subr.mxu0 0.0
        %2388 = vmatpush2.xpose.msra.mxu0 0.0
        %2389 = vmatprep.subr.mxu0 0.0
        %2390 = vmatpush2.xpose.msra.mxu0 0.0
        %2391 = vmatprep.subr.mxu0 0.0
        %2392 = vmatpush2.xpose.msra.mxu0 0.0
        %2393 = vmatprep.subr.mxu0 0.0
        %2394 = vmatpush2.xpose.msra.mxu0 0.0
        %2395 = vmatprep.subr.mxu0 0.0
        %2396 = vmatpush2.xpose.msra.mxu0 0.0
        %2397 = vmatprep.subr.mxu0 0.0
        %2398 = vmatpush2.xpose.msra.mxu0 0.0
        %2399 = vmatprep.subr.mxu0 0.0
        %2400 = vmatpush2.xpose.msra.mxu0 0.0
        %2401 = vmatprep.subr.mxu0 0.0
        %2402 = vmatpush2.xpose.msra.mxu0 0.0
        %2403 = vmatprep.subr.mxu0 0.0
        %2404 = vmatpush2.xpose.msra.mxu0 0.0
        %2405 = vmatprep.subr.mxu0 0.0
        %2406 = vmatpush2.xpose.msra.mxu0 0.0
        %2407 = vmatprep.subr.mxu0 0.0
        %2408 = vmatpush2.xpose.msra.mxu0 0.0
        %2409 = vmatprep.subr.mxu0 0.0
        %2410 = vmatpush2.xpose.msra.mxu0 0.0
        %2411 = vmatprep.subr.mxu0 0.0
        %2412 = vmatpush2.xpose.msra.mxu0 0.0
        %2413 = vmatprep.subr.mxu0 0.0
        %2414 = vmatpush2.xpose.msra.mxu0 0.0
        %2415 = vmatprep.mubr.f32.mxu0 0.0
        %v2416 = vand.u32 %v2164, 4294901760
        %v2417 = vsub.f32 %v2164, %v2416
        %2418 = vmatmul.mubr.f32.gmra.mxu0 %v2417
        %v2419 = vpop.f32.mrf.mxu0
        %v2420 = vadd.f32 %v2338, %v2419
        %v2421 = vpop.f32.mrf.mxu0
        %2422 = vmatprep.mubr.f32.mxu0 0.0
        %v2423 = vand.u32 %v2167, 4294901760
        %v2424 = vsub.f32 %v2167, %v2423
        %2425 = vmatmul.mubr.f32.gmra.mxu0 %v2424
        %v2426 = vpop.f32.mrf.mxu0
        %v2427 = vadd.f32 %v2344, %v2426
        %v2428 = vpop.f32.mrf.mxu0
        %2429 = vdwg.mxu0
        %2430 = vmatprep.subr.mxu0 0.0
        %2431 = vmatpush1.xpose.msra.mxu0 0.0
        %2432 = vmatprep.subr.mxu0 0.0
        %2433 = vmatpush1.xpose.msra.mxu0 0.0
        %2434 = vmatprep.subr.mxu0 0.0
        %2435 = vmatpush1.xpose.msra.mxu0 0.0
        %2436 = vmatprep.subr.mxu0 0.0
        %2437 = vmatpush1.xpose.msra.mxu0 0.0
        %2438 = vmatprep.subr.mxu0 0.0
        %2439 = vmatpush1.xpose.msra.mxu0 0.0
        %2440 = vmatprep.subr.mxu0 0.0
        %2441 = vmatpush1.xpose.msra.mxu0 0.0
        %2442 = vmatprep.subr.mxu0 0.0
        %2443 = vmatpush1.xpose.msra.mxu0 0.0
        %2444 = vmatprep.subr.mxu0 0.0
        %2445 = vmatpush1.xpose.msra.mxu0 0.0
        %2446 = vmatprep.subr.mxu0 0.0
        %2447 = vmatpush1.xpose.msra.mxu0 0.0
        %2448 = vmatprep.subr.mxu0 0.0
        %2449 = vmatpush1.xpose.msra.mxu0 0.0
        %2450 = vmatprep.subr.mxu0 0.0
        %2451 = vmatpush1.xpose.msra.mxu0 0.0
        %2452 = vmatprep.subr.mxu0 0.0
        %2453 = vmatpush1.xpose.msra.mxu0 0.0
        %2454 = vmatprep.subr.mxu0 0.0
        %2455 = vmatpush1.xpose.msra.mxu0 0.0
        %2456 = vmatprep.subr.mxu0 0.0
        %2457 = vmatpush1.xpose.msra.mxu0 0.0
        %2458 = vmatprep.subr.mxu0 0.0
        %v2459 = vand.u32 %v2171, 4294901760
        %2460 = vmatpush1.xpose.msra.mxu0 %v2459
        %2461 = vmatprep.subr.mxu0 0.0
        %v2462 = vand.u32 %v2169, 4294901760
        %2463 = vmatpush1.xpose.msra.mxu0 %v2462
        %2464 = vmatprep.subr.mxu0 0.0
        %2465 = vmatpush2.xpose.msra.mxu0 0.0
        %2466 = vmatprep.subr.mxu0 0.0
        %2467 = vmatpush2.xpose.msra.mxu0 0.0
        %2468 = vmatprep.subr.mxu0 0.0
        %2469 = vmatpush2.xpose.msra.mxu0 0.0
        %2470 = vmatprep.subr.mxu0 0.0
        %2471 = vmatpush2.xpose.msra.mxu0 0.0
        %2472 = vmatprep.subr.mxu0 0.0
        %2473 = vmatpush2.xpose.msra.mxu0 0.0
        %2474 = vmatprep.subr.mxu0 0.0
        %2475 = vmatpush2.xpose.msra.mxu0 0.0
        %2476 = vmatprep.subr.mxu0 0.0
        %2477 = vmatpush2.xpose.msra.mxu0 0.0
        %2478 = vmatprep.subr.mxu0 0.0
        %2479 = vmatpush2.xpose.msra.mxu0 0.0
        %2480 = vmatprep.subr.mxu0 0.0
        %2481 = vmatpush2.xpose.msra.mxu0 0.0
        %2482 = vmatprep.subr.mxu0 0.0
        %2483 = vmatpush2.xpose.msra.mxu0 0.0
        %2484 = vmatprep.subr.mxu0 0.0
        %2485 = vmatpush2.xpose.msra.mxu0 0.0
        %2486 = vmatprep.subr.mxu0 0.0
        %2487 = vmatpush2.xpose.msra.mxu0 0.0
        %2488 = vmatprep.subr.mxu0 0.0
        %2489 = vmatpush2.xpose.msra.mxu0 0.0
        %2490 = vmatprep.subr.mxu0 0.0
        %2491 = vmatpush2.xpose.msra.mxu0 0.0
        %2492 = vmatprep.subr.mxu0 0.0
        %2493 = vmatpush2.xpose.msra.mxu0 0.0
        %2494 = vmatprep.subr.mxu0 0.0
        %2495 = vmatpush2.xpose.msra.mxu0 0.0
        %2496 = vmatprep.mubr.f32.mxu0 0.0
        %v2497 = vand.u32 %v2164, 4294901760
        %v2498 = vsub.f32 %v2164, %v2497
        %v2499 = vand.u32 %v2498, 4294901760
        %2500 = vmatmul.mubr.f32.gmra.mxu0 %v2499
        %v2501 = vpop.f32.mrf.mxu0
        %v2502 = vadd.f32 %v2420, %v2501
        %v2503 = vpop.f32.mrf.mxu0
        %2504 = vmatprep.mubr.f32.mxu0 0.0
        %v2505 = vand.u32 %v2167, 4294901760
        %v2506 = vsub.f32 %v2167, %v2505
        %v2507 = vand.u32 %v2506, 4294901760
        %2508 = vmatmul.mubr.f32.gmra.mxu0 %v2507
        %v2509 = vpop.f32.mrf.mxu0
        %v2510 = vadd.f32 %v2427, %v2509
        %v2511 = vpop.f32.mrf.mxu0
        %2512 = vdwg.mxu0
        %2513 = vmatprep.subr.mxu0 0.0
        %2514 = vmatpush1.xpose.msra.mxu0 0.0
        %2515 = vmatprep.subr.mxu0 0.0
        %2516 = vmatpush1.xpose.msra.mxu0 0.0
        %2517 = vmatprep.subr.mxu0 0.0
        %2518 = vmatpush1.xpose.msra.mxu0 0.0
        %2519 = vmatprep.subr.mxu0 0.0
        %2520 = vmatpush1.xpose.msra.mxu0 0.0
        %2521 = vmatprep.subr.mxu0 0.0
        %2522 = vmatpush1.xpose.msra.mxu0 0.0
        %2523 = vmatprep.subr.mxu0 0.0
        %2524 = vmatpush1.xpose.msra.mxu0 0.0
        %2525 = vmatprep.subr.mxu0 0.0
        %2526 = vmatpush1.xpose.msra.mxu0 0.0
        %2527 = vmatprep.subr.mxu0 0.0
        %2528 = vmatpush1.xpose.msra.mxu0 0.0
        %2529 = vmatprep.subr.mxu0 0.0
        %2530 = vmatpush1.xpose.msra.mxu0 0.0
        %2531 = vmatprep.subr.mxu0 0.0
        %2532 = vmatpush1.xpose.msra.mxu0 0.0
        %2533 = vmatprep.subr.mxu0 0.0
        %2534 = vmatpush1.xpose.msra.mxu0 0.0
        %2535 = vmatprep.subr.mxu0 0.0
        %2536 = vmatpush1.xpose.msra.mxu0 0.0
        %2537 = vmatprep.subr.mxu0 0.0
        %2538 = vmatpush1.xpose.msra.mxu0 0.0
        %2539 = vmatprep.subr.mxu0 0.0
        %2540 = vmatpush1.xpose.msra.mxu0 0.0
        %2541 = vmatprep.subr.mxu0 0.0
        %v2542 = vand.u32 %v2171, 4294901760
        %v2543 = vsub.f32 %v2171, %v2542
        %v2544 = vand.u32 %v2543, 4294901760
        %2545 = vmatpush1.xpose.msra.mxu0 %v2544
        %2546 = vmatprep.subr.mxu0 0.0
        %v2547 = vand.u32 %v2169, 4294901760
        %v2548 = vsub.f32 %v2169, %v2547
        %v2549 = vand.u32 %v2548, 4294901760
        %2550 = vmatpush1.xpose.msra.mxu0 %v2549
        %2551 = vmatprep.subr.mxu0 0.0
        %2552 = vmatpush2.xpose.msra.mxu0 0.0
        %2553 = vmatprep.subr.mxu0 0.0
        %2554 = vmatpush2.xpose.msra.mxu0 0.0
        %2555 = vmatprep.subr.mxu0 0.0
        %2556 = vmatpush2.xpose.msra.mxu0 0.0
        %2557 = vmatprep.subr.mxu0 0.0
        %2558 = vmatpush2.xpose.msra.mxu0 0.0
        %2559 = vmatprep.subr.mxu0 0.0
        %2560 = vmatpush2.xpose.msra.mxu0 0.0
        %2561 = vmatprep.subr.mxu0 0.0
        %2562 = vmatpush2.xpose.msra.mxu0 0.0
        %2563 = vmatprep.subr.mxu0 0.0
        %2564 = vmatpush2.xpose.msra.mxu0 0.0
        %2565 = vmatprep.subr.mxu0 0.0
        %2566 = vmatpush2.xpose.msra.mxu0 0.0
        %2567 = vmatprep.subr.mxu0 0.0
        %2568 = vmatpush2.xpose.msra.mxu0 0.0
        %2569 = vmatprep.subr.mxu0 0.0
        %2570 = vmatpush2.xpose.msra.mxu0 0.0
        %2571 = vmatprep.subr.mxu0 0.0
        %2572 = vmatpush2.xpose.msra.mxu0 0.0
        %2573 = vmatprep.subr.mxu0 0.0
        %2574 = vmatpush2.xpose.msra.mxu0 0.0
        %2575 = vmatprep.subr.mxu0 0.0
        %2576 = vmatpush2.xpose.msra.mxu0 0.0
        %2577 = vmatprep.subr.mxu0 0.0
        %2578 = vmatpush2.xpose.msra.mxu0 0.0
        %2579 = vmatprep.subr.mxu0 0.0
        %2580 = vmatpush2.xpose.msra.mxu0 0.0
        %2581 = vmatprep.subr.mxu0 0.0
        %2582 = vmatpush2.xpose.msra.mxu0 0.0
        %2583 = vmatprep.mubr.f32.mxu0 0.0
        %v2584 = vand.u32 %v2164, 4294901760
        %2585 = vmatmul.mubr.f32.gmra.mxu0 %v2584
        %v2586 = vpop.f32.mrf.mxu0
        %v2587 = vadd.f32 %v2502, %v2586
        %v2588 = vpop.f32.mrf.mxu0
        %2589 = vmatprep.mubr.f32.mxu0 0.0
        %v2590 = vand.u32 %v2167, 4294901760
        %2591 = vmatmul.mubr.f32.gmra.mxu0 %v2590
        %v2592 = vpop.f32.mrf.mxu0
        %v2593 = vadd.f32 %v2510, %v2592
        %v2594 = vpop.f32.mrf.mxu0
        %2595 = vdwg.mxu0
        %2596 = vmatprep.subr.mxu0 0.0
        %2597 = vmatpush1.xpose.msra.mxu0 0.0
        %2598 = vmatprep.subr.mxu0 0.0
        %2599 = vmatpush1.xpose.msra.mxu0 0.0
        %2600 = vmatprep.subr.mxu0 0.0
        %2601 = vmatpush1.xpose.msra.mxu0 0.0
        %2602 = vmatprep.subr.mxu0 0.0
        %2603 = vmatpush1.xpose.msra.mxu0 0.0
        %2604 = vmatprep.subr.mxu0 0.0
        %2605 = vmatpush1.xpose.msra.mxu0 0.0
        %2606 = vmatprep.subr.mxu0 0.0
        %2607 = vmatpush1.xpose.msra.mxu0 0.0
        %2608 = vmatprep.subr.mxu0 0.0
        %2609 = vmatpush1.xpose.msra.mxu0 0.0
        %2610 = vmatprep.subr.mxu0 0.0
        %2611 = vmatpush1.xpose.msra.mxu0 0.0
        %2612 = vmatprep.subr.mxu0 0.0
        %2613 = vmatpush1.xpose.msra.mxu0 0.0
        %2614 = vmatprep.subr.mxu0 0.0
        %2615 = vmatpush1.xpose.msra.mxu0 0.0
        %2616 = vmatprep.subr.mxu0 0.0
        %2617 = vmatpush1.xpose.msra.mxu0 0.0
        %2618 = vmatprep.subr.mxu0 0.0
        %2619 = vmatpush1.xpose.msra.mxu0 0.0
        %2620 = vmatprep.subr.mxu0 0.0
        %2621 = vmatpush1.xpose.msra.mxu0 0.0
        %2622 = vmatprep.subr.mxu0 0.0
        %2623 = vmatpush1.xpose.msra.mxu0 0.0
        %2624 = vmatprep.subr.mxu0 0.0
        %v2625 = vand.u32 %v2171, 4294901760
        %2626 = vmatpush1.xpose.msra.mxu0 %v2625
        %2627 = vmatprep.subr.mxu0 0.0
        %v2628 = vand.u32 %v2169, 4294901760
        %2629 = vmatpush1.xpose.msra.mxu0 %v2628
        %2630 = vmatprep.subr.mxu0 0.0
        %2631 = vmatpush2.xpose.msra.mxu0 0.0
        %2632 = vmatprep.subr.mxu0 0.0
        %2633 = vmatpush2.xpose.msra.mxu0 0.0
        %2634 = vmatprep.subr.mxu0 0.0
        %2635 = vmatpush2.xpose.msra.mxu0 0.0
        %2636 = vmatprep.subr.mxu0 0.0
        %2637 = vmatpush2.xpose.msra.mxu0 0.0
        %2638 = vmatprep.subr.mxu0 0.0
        %2639 = vmatpush2.xpose.msra.mxu0 0.0
        %2640 = vmatprep.subr.mxu0 0.0
        %2641 = vmatpush2.xpose.msra.mxu0 0.0
        %2642 = vmatprep.subr.mxu0 0.0
        %2643 = vmatpush2.xpose.msra.mxu0 0.0
        %2644 = vmatprep.subr.mxu0 0.0
        %2645 = vmatpush2.xpose.msra.mxu0 0.0
        %2646 = vmatprep.subr.mxu0 0.0
        %2647 = vmatpush2.xpose.msra.mxu0 0.0
        %2648 = vmatprep.subr.mxu0 0.0
        %2649 = vmatpush2.xpose.msra.mxu0 0.0
        %2650 = vmatprep.subr.mxu0 0.0
        %2651 = vmatpush2.xpose.msra.mxu0 0.0
        %2652 = vmatprep.subr.mxu0 0.0
        %2653 = vmatpush2.xpose.msra.mxu0 0.0
        %2654 = vmatprep.subr.mxu0 0.0
        %2655 = vmatpush2.xpose.msra.mxu0 0.0
        %2656 = vmatprep.subr.mxu0 0.0
        %2657 = vmatpush2.xpose.msra.mxu0 0.0
        %2658 = vmatprep.subr.mxu0 0.0
        %2659 = vmatpush2.xpose.msra.mxu0 0.0
        %2660 = vmatprep.subr.mxu0 0.0
        %2661 = vmatpush2.xpose.msra.mxu0 0.0
        %2662 = vmatprep.mubr.f32.mxu0 0.0
        %v2663 = vand.u32 %v2164, 4294901760
        %2664 = vmatmul.mubr.f32.gmra.mxu0 %v2663
        %v2665 = vpop.f32.mrf.mxu0
        %v2666 = vadd.f32 %v2587, %v2665
        %v2667 = vpop.f32.mrf.mxu0
        %2668 = vmatprep.mubr.f32.mxu0 0.0
        %v2669 = vand.u32 %v2167, 4294901760
        %2670 = vmatmul.mubr.f32.gmra.mxu0 %v2669
        %v2671 = vpop.f32.mrf.mxu0
        %v2672 = vadd.f32 %v2593, %v2671
        %v2673 = vpop.f32.mrf.mxu0
        %2674 = vdwg.mxu0
        %v2675 = vmul.f32 %v2666, 0.35355338
        %v2676 = vmul.f32 %v2672, 0.35355338
        %vm2677 = vcmask 130048
        %v2678 = vsel %vm2677, %v2675, -inf
        %2679 = vmax.xlane.f32.xlu0 %v2678
        %v2680 = vpop.xlane.xlu0 %2679
        %v2681 = vsel %vm2677, %v2676, -inf
        %2682 = vmax.xlane.f32.xlu0 %v2681
        %v2683 = vpop.xlane.xlu0 %2682
        %v2684 = vsub.f32 %v2675, %v2680
        %v2685 = vsub.f32 %v2676, %v2683
        %v2686 = vmul.f32 %v2684, 1.442695
        %v2687 = vpow.pop %v2686
        %v2688 = vmul.f32 %v2685, 1.442695
        %v2689 = vpow.pop %v2688
        %v2690 = vsel %vm2677, %v2687, 0.0
        %2691 = vadd.xlane.f32.xlu0 %v2690
        %v2692 = vpop.xlane.xlu0 %2691
        %v2693 = vsel %vm2677, %v2689, 0.0
        %2694 = vadd.xlane.f32.xlu0 %v2693
        %v2695 = vpop.xlane.xlu0 %2694
        %v2696 = vrcp.pop %v2692
        %v2697 = vmul.f32 %v2687, %v2696
        %v2698 = vrcp.pop %v2695
        %v2699 = vmul.f32 %v2689, %v2698
        %2701 = vrot.lane.b32.xlu0 %v2154, 64
        %v2702 = vpop.permute.xlu0 %2701
        %v2704 = vmul.f32 %v2146, %v2702
        %v2705 = vmul.f32 %v2147, %v2702
        %vm2706 = vcmp.ge.s32.totalorder %v2149, 8
        %vm2707 = vcmp.lt.s32.totalorder %v2149, 16
        %vm2708 = vmand %vm2706, %vm2707
        %v2709 = vsel %vm2708, 1, 0
        %v2710 = vcvt.s32.f32 %v2709
        %v2711 = vmul.f32 %v2126, %v2710
        %v2712 = vmul.f32 %v2127, %v2710
        %v2714 = vsel %vm1418, %v2711, 0
        %v2717 = vsel %vm1418, %v2712, 0
        %2719 = vmatprep.subr.mxu0 0.0
        %2720 = vmatpush1.xpose.msra.mxu0 0.0
        %2721 = vmatprep.subr.mxu0 0.0
        %2722 = vmatpush1.xpose.msra.mxu0 0.0
        %2723 = vmatprep.subr.mxu0 0.0
        %2724 = vmatpush1.xpose.msra.mxu0 0.0
        %2725 = vmatprep.subr.mxu0 0.0
        %2726 = vmatpush1.xpose.msra.mxu0 0.0
        %2727 = vmatprep.subr.mxu0 0.0
        %2728 = vmatpush1.xpose.msra.mxu0 0.0
        %2729 = vmatprep.subr.mxu0 0.0
        %2730 = vmatpush1.xpose.msra.mxu0 0.0
        %2731 = vmatprep.subr.mxu0 0.0
        %2732 = vmatpush1.xpose.msra.mxu0 0.0
        %2733 = vmatprep.subr.mxu0 0.0
        %2734 = vmatpush1.xpose.msra.mxu0 0.0
        %2735 = vmatprep.subr.mxu0 0.0
        %2736 = vmatpush1.xpose.msra.mxu0 0.0
        %2737 = vmatprep.subr.mxu0 0.0
        %2738 = vmatpush1.xpose.msra.mxu0 0.0
        %2739 = vmatprep.subr.mxu0 0.0
        %2740 = vmatpush1.xpose.msra.mxu0 0.0
        %2741 = vmatprep.subr.mxu0 0.0
        %2742 = vmatpush1.xpose.msra.mxu0 0.0
        %2743 = vmatprep.subr.mxu0 0.0
        %2744 = vmatpush1.xpose.msra.mxu0 0.0
        %2745 = vmatprep.subr.mxu0 0.0
        %2746 = vmatpush1.xpose.msra.mxu0 0.0
        %2747 = vmatprep.subr.mxu0 0.0
        %v2748 = vand.u32 %v2171, 4294901760
        %2749 = vmatpush1.xpose.msra.mxu0 %v2748
        %2750 = vmatprep.subr.mxu0 0.0
        %v2751 = vand.u32 %v2169, 4294901760
        %2752 = vmatpush1.xpose.msra.mxu0 %v2751
        %2753 = vmatprep.subr.mxu0 0.0
        %2754 = vmatpush2.xpose.msra.mxu0 0.0
        %2755 = vmatprep.subr.mxu0 0.0
        %2756 = vmatpush2.xpose.msra.mxu0 0.0
        %2757 = vmatprep.subr.mxu0 0.0
        %2758 = vmatpush2.xpose.msra.mxu0 0.0
        %2759 = vmatprep.subr.mxu0 0.0
        %2760 = vmatpush2.xpose.msra.mxu0 0.0
        %2761 = vmatprep.subr.mxu0 0.0
        %2762 = vmatpush2.xpose.msra.mxu0 0.0
        %2763 = vmatprep.subr.mxu0 0.0
        %2764 = vmatpush2.xpose.msra.mxu0 0.0
        %2765 = vmatprep.subr.mxu0 0.0
        %2766 = vmatpush2.xpose.msra.mxu0 0.0
        %2767 = vmatprep.subr.mxu0 0.0
        %2768 = vmatpush2.xpose.msra.mxu0 0.0
        %2769 = vmatprep.subr.mxu0 0.0
        %2770 = vmatpush2.xpose.msra.mxu0 0.0
        %2771 = vmatprep.subr.mxu0 0.0
        %2772 = vmatpush2.xpose.msra.mxu0 0.0
        %2773 = vmatprep.subr.mxu0 0.0
        %2774 = vmatpush2.xpose.msra.mxu0 0.0
        %2775 = vmatprep.subr.mxu0 0.0
        %2776 = vmatpush2.xpose.msra.mxu0 0.0
        %2777 = vmatprep.subr.mxu0 0.0
        %2778 = vmatpush2.xpose.msra.mxu0 0.0
        %2779 = vmatprep.subr.mxu0 0.0
        %2780 = vmatpush2.xpose.msra.mxu0 0.0
        %2781 = vmatprep.subr.mxu0 0.0
        %2782 = vmatpush2.xpose.msra.mxu0 0.0
        %2783 = vmatprep.subr.mxu0 0.0
        %2784 = vmatpush2.xpose.msra.mxu0 0.0
        %2785 = vmatprep.mubr.f32.mxu0 0.0
        %v2786 = vand.u32 %v2714, 4294901760
        %v2787 = vsub.f32 %v2714, %v2786
        %v2788 = vand.u32 %v2787, 4294901760
        %v2789 = vsub.f32 %v2787, %v2788
        %v2790 = vand.u32 %v2789, 4294901760
        %2791 = vmatmul.mubr.f32.gmra.mxu0 %v2790
        %v2792 = vpop.f32.mrf.mxu0
        %v2793 = vadd.f32 0.0, %v2792
        %v2794 = vpop.f32.mrf.mxu0
        %2795 = vmatprep.mubr.f32.mxu0 0.0
        %v2796 = vand.u32 %v2717, 4294901760
        %v2797 = vsub.f32 %v2717, %v2796
        %v2798 = vand.u32 %v2797, 4294901760
        %v2799 = vsub.f32 %v2797, %v2798
        %v2800 = vand.u32 %v2799, 4294901760
        %2801 = vmatmul.mubr.f32.gmra.mxu0 %v2800
        %v2802 = vpop.f32.mrf.mxu0
        %v2803 = vadd.f32 0.0, %v2802
        %v2804 = vpop.f32.mrf.mxu0
        %2805 = vdwg.mxu0
        %2806 = vmatprep.subr.mxu0 0.0
        %2807 = vmatpush1.xpose.msra.mxu0 0.0
        %2808 = vmatprep.subr.mxu0 0.0
        %2809 = vmatpush1.xpose.msra.mxu0 0.0
        %2810 = vmatprep.subr.mxu0 0.0
        %2811 = vmatpush1.xpose.msra.mxu0 0.0
        %2812 = vmatprep.subr.mxu0 0.0
        %2813 = vmatpush1.xpose.msra.mxu0 0.0
        %2814 = vmatprep.subr.mxu0 0.0
        %2815 = vmatpush1.xpose.msra.mxu0 0.0
        %2816 = vmatprep.subr.mxu0 0.0
        %2817 = vmatpush1.xpose.msra.mxu0 0.0
        %2818 = vmatprep.subr.mxu0 0.0
        %2819 = vmatpush1.xpose.msra.mxu0 0.0
        %2820 = vmatprep.subr.mxu0 0.0
        %2821 = vmatpush1.xpose.msra.mxu0 0.0
        %2822 = vmatprep.subr.mxu0 0.0
        %2823 = vmatpush1.xpose.msra.mxu0 0.0
        %2824 = vmatprep.subr.mxu0 0.0
        %2825 = vmatpush1.xpose.msra.mxu0 0.0
        %2826 = vmatprep.subr.mxu0 0.0
        %2827 = vmatpush1.xpose.msra.mxu0 0.0
        %2828 = vmatprep.subr.mxu0 0.0
        %2829 = vmatpush1.xpose.msra.mxu0 0.0
        %2830 = vmatprep.subr.mxu0 0.0
        %2831 = vmatpush1.xpose.msra.mxu0 0.0
        %2832 = vmatprep.subr.mxu0 0.0
        %2833 = vmatpush1.xpose.msra.mxu0 0.0
        %2834 = vmatprep.subr.mxu0 0.0
        %v2835 = vand.u32 %v2171, 4294901760
        %v2836 = vsub.f32 %v2171, %v2835
        %v2837 = vand.u32 %v2836, 4294901760
        %v2838 = vsub.f32 %v2836, %v2837
        %v2839 = vand.u32 %v2838, 4294901760
        %2840 = vmatpush1.xpose.msra.mxu0 %v2839
        %2841 = vmatprep.subr.mxu0 0.0
        %v2842 = vand.u32 %v2169, 4294901760
        %v2843 = vsub.f32 %v2169, %v2842
        %v2844 = vand.u32 %v2843, 4294901760
        %v2845 = vsub.f32 %v2843, %v2844
        %v2846 = vand.u32 %v2845, 4294901760
        %2847 = vmatpush1.xpose.msra.mxu0 %v2846
        %2848 = vmatprep.subr.mxu0 0.0
        %2849 = vmatpush2.xpose.msra.mxu0 0.0
        %2850 = vmatprep.subr.mxu0 0.0
        %2851 = vmatpush2.xpose.msra.mxu0 0.0
        %2852 = vmatprep.subr.mxu0 0.0
        %2853 = vmatpush2.xpose.msra.mxu0 0.0
        %2854 = vmatprep.subr.mxu0 0.0
        %2855 = vmatpush2.xpose.msra.mxu0 0.0
        %2856 = vmatprep.subr.mxu0 0.0
        %2857 = vmatpush2.xpose.msra.mxu0 0.0
        %2858 = vmatprep.subr.mxu0 0.0
        %2859 = vmatpush2.xpose.msra.mxu0 0.0
        %2860 = vmatprep.subr.mxu0 0.0
        %2861 = vmatpush2.xpose.msra.mxu0 0.0
        %2862 = vmatprep.subr.mxu0 0.0
        %2863 = vmatpush2.xpose.msra.mxu0 0.0
        %2864 = vmatprep.subr.mxu0 0.0
        %2865 = vmatpush2.xpose.msra.mxu0 0.0
        %2866 = vmatprep.subr.mxu0 0.0
        %2867 = vmatpush2.xpose.msra.mxu0 0.0
        %2868 = vmatprep.subr.mxu0 0.0
        %2869 = vmatpush2.xpose.msra.mxu0 0.0
        %2870 = vmatprep.subr.mxu0 0.0
        %2871 = vmatpush2.xpose.msra.mxu0 0.0
        %2872 = vmatprep.subr.mxu0 0.0
        %2873 = vmatpush2.xpose.msra.mxu0 0.0
        %2874 = vmatprep.subr.mxu0 0.0
        %2875 = vmatpush2.xpose.msra.mxu0 0.0
        %2876 = vmatprep.subr.mxu0 0.0
        %2877 = vmatpush2.xpose.msra.mxu0 0.0
        %2878 = vmatprep.subr.mxu0 0.0
        %2879 = vmatpush2.xpose.msra.mxu0 0.0
        %2880 = vmatprep.mubr.f32.mxu0 0.0
        %v2881 = vand.u32 %v2714, 4294901760
        %2882 = vmatmul.mubr.f32.gmra.mxu0 %v2881
        %v2883 = vpop.f32.mrf.mxu0
        %v2884 = vadd.f32 %v2793, %v2883
        %v2885 = vpop.f32.mrf.mxu0
        %2886 = vmatprep.mubr.f32.mxu0 0.0
        %v2887 = vand.u32 %v2717, 4294901760
        %2888 = vmatmul.mubr.f32.gmra.mxu0 %v2887
        %v2889 = vpop.f32.mrf.mxu0
        %v2890 = vadd.f32 %v2803, %v2889
        %v2891 = vpop.f32.mrf.mxu0
        %2892 = vdwg.mxu0
        %2893 = vmatprep.subr.mxu0 0.0
        %2894 = vmatpush1.xpose.msra.mxu0 0.0
        %2895 = vmatprep.subr.mxu0 0.0
        %2896 = vmatpush1.xpose.msra.mxu0 0.0
        %2897 = vmatprep.subr.mxu0 0.0
        %2898 = vmatpush1.xpose.msra.mxu0 0.0
        %2899 = vmatprep.subr.mxu0 0.0
        %2900 = vmatpush1.xpose.msra.mxu0 0.0
        %2901 = vmatprep.subr.mxu0 0.0
        %2902 = vmatpush1.xpose.msra.mxu0 0.0
        %2903 = vmatprep.subr.mxu0 0.0
        %2904 = vmatpush1.xpose.msra.mxu0 0.0
        %2905 = vmatprep.subr.mxu0 0.0
        %2906 = vmatpush1.xpose.msra.mxu0 0.0
        %2907 = vmatprep.subr.mxu0 0.0
        %2908 = vmatpush1.xpose.msra.mxu0 0.0
        %2909 = vmatprep.subr.mxu0 0.0
        %2910 = vmatpush1.xpose.msra.mxu0 0.0
        %2911 = vmatprep.subr.mxu0 0.0
        %2912 = vmatpush1.xpose.msra.mxu0 0.0
        %2913 = vmatprep.subr.mxu0 0.0
        %2914 = vmatpush1.xpose.msra.mxu0 0.0
        %2915 = vmatprep.subr.mxu0 0.0
        %2916 = vmatpush1.xpose.msra.mxu0 0.0
        %2917 = vmatprep.subr.mxu0 0.0
        %2918 = vmatpush1.xpose.msra.mxu0 0.0
        %2919 = vmatprep.subr.mxu0 0.0
        %2920 = vmatpush1.xpose.msra.mxu0 0.0
        %2921 = vmatprep.subr.mxu0 0.0
        %v2922 = vand.u32 %v2171, 4294901760
        %v2923 = vsub.f32 %v2171, %v2922
        %2924 = vmatpush1.xpose.msra.mxu0 %v2923
        %2925 = vmatprep.subr.mxu0 0.0
        %v2926 = vand.u32 %v2169, 4294901760
        %v2927 = vsub.f32 %v2169, %v2926
        %2928 = vmatpush1.xpose.msra.mxu0 %v2927
        %2929 = vmatprep.subr.mxu0 0.0
        %2930 = vmatpush2.xpose.msra.mxu0 0.0
        %2931 = vmatprep.subr.mxu0 0.0
        %2932 = vmatpush2.xpose.msra.mxu0 0.0
        %2933 = vmatprep.subr.mxu0 0.0
        %2934 = vmatpush2.xpose.msra.mxu0 0.0
        %2935 = vmatprep.subr.mxu0 0.0
        %2936 = vmatpush2.xpose.msra.mxu0 0.0
        %2937 = vmatprep.subr.mxu0 0.0
        %2938 = vmatpush2.xpose.msra.mxu0 0.0
        %2939 = vmatprep.subr.mxu0 0.0
        %2940 = vmatpush2.xpose.msra.mxu0 0.0
        %2941 = vmatprep.subr.mxu0 0.0
        %2942 = vmatpush2.xpose.msra.mxu0 0.0
        %2943 = vmatprep.subr.mxu0 0.0
        %2944 = vmatpush2.xpose.msra.mxu0 0.0
        %2945 = vmatprep.subr.mxu0 0.0
        %2946 = vmatpush2.xpose.msra.mxu0 0.0
        %2947 = vmatprep.subr.mxu0 0.0
        %2948 = vmatpush2.xpose.msra.mxu0 0.0
        %2949 = vmatprep.subr.mxu0 0.0
        %2950 = vmatpush2.xpose.msra.mxu0 0.0
        %2951 = vmatprep.subr.mxu0 0.0
        %2952 = vmatpush2.xpose.msra.mxu0 0.0
        %2953 = vmatprep.subr.mxu0 0.0
        %2954 = vmatpush2.xpose.msra.mxu0 0.0
        %2955 = vmatprep.subr.mxu0 0.0
        %2956 = vmatpush2.xpose.msra.mxu0 0.0
        %2957 = vmatprep.subr.mxu0 0.0
        %2958 = vmatpush2.xpose.msra.mxu0 0.0
        %2959 = vmatprep.subr.mxu0 0.0
        %2960 = vmatpush2.xpose.msra.mxu0 0.0
        %2961 = vmatprep.mubr.f32.mxu0 0.0
        %v2962 = vand.u32 %v2714, 4294901760
        %v2963 = vsub.f32 %v2714, %v2962
        %2964 = vmatmul.mubr.f32.gmra.mxu0 %v2963
        %v2965 = vpop.f32.mrf.mxu0
        %v2966 = vadd.f32 %v2884, %v2965
        %v2967 = vpop.f32.mrf.mxu0
        %2968 = vmatprep.mubr.f32.mxu0 0.0
        %v2969 = vand.u32 %v2717, 4294901760
        %v2970 = vsub.f32 %v2717, %v2969
        %2971 = vmatmul.mubr.f32.gmra.mxu0 %v2970
        %v2972 = vpop.f32.mrf.mxu0
        %v2973 = vadd.f32 %v2890, %v2972
        %v2974 = vpop.f32.mrf.mxu0
        %2975 = vdwg.mxu0
        %2976 = vmatprep.subr.mxu0 0.0
        %2977 = vmatpush1.xpose.msra.mxu0 0.0
        %2978 = vmatprep.subr.mxu0 0.0
        %2979 = vmatpush1.xpose.msra.mxu0 0.0
        %2980 = vmatprep.subr.mxu0 0.0
        %2981 = vmatpush1.xpose.msra.mxu0 0.0
        %2982 = vmatprep.subr.mxu0 0.0
        %2983 = vmatpush1.xpose.msra.mxu0 0.0
        %2984 = vmatprep.subr.mxu0 0.0
        %2985 = vmatpush1.xpose.msra.mxu0 0.0
        %2986 = vmatprep.subr.mxu0 0.0
        %2987 = vmatpush1.xpose.msra.mxu0 0.0
        %2988 = vmatprep.subr.mxu0 0.0
        %2989 = vmatpush1.xpose.msra.mxu0 0.0
        %2990 = vmatprep.subr.mxu0 0.0
        %2991 = vmatpush1.xpose.msra.mxu0 0.0
        %2992 = vmatprep.subr.mxu0 0.0
        %2993 = vmatpush1.xpose.msra.mxu0 0.0
        %2994 = vmatprep.subr.mxu0 0.0
        %2995 = vmatpush1.xpose.msra.mxu0 0.0
        %2996 = vmatprep.subr.mxu0 0.0
        %2997 = vmatpush1.xpose.msra.mxu0 0.0
        %2998 = vmatprep.subr.mxu0 0.0
        %2999 = vmatpush1.xpose.msra.mxu0 0.0
        %3000 = vmatprep.subr.mxu0 0.0
        %3001 = vmatpush1.xpose.msra.mxu0 0.0
        %3002 = vmatprep.subr.mxu0 0.0
        %3003 = vmatpush1.xpose.msra.mxu0 0.0
        %3004 = vmatprep.subr.mxu0 0.0
        %v3005 = vand.u32 %v2171, 4294901760
        %3006 = vmatpush1.xpose.msra.mxu0 %v3005
        %3007 = vmatprep.subr.mxu0 0.0
        %v3008 = vand.u32 %v2169, 4294901760
        %3009 = vmatpush1.xpose.msra.mxu0 %v3008
        %3010 = vmatprep.subr.mxu0 0.0
        %3011 = vmatpush2.xpose.msra.mxu0 0.0
        %3012 = vmatprep.subr.mxu0 0.0
        %3013 = vmatpush2.xpose.msra.mxu0 0.0
        %3014 = vmatprep.subr.mxu0 0.0
        %3015 = vmatpush2.xpose.msra.mxu0 0.0
        %3016 = vmatprep.subr.mxu0 0.0
        %3017 = vmatpush2.xpose.msra.mxu0 0.0
        %3018 = vmatprep.subr.mxu0 0.0
        %3019 = vmatpush2.xpose.msra.mxu0 0.0
        %3020 = vmatprep.subr.mxu0 0.0
        %3021 = vmatpush2.xpose.msra.mxu0 0.0
        %3022 = vmatprep.subr.mxu0 0.0
        %3023 = vmatpush2.xpose.msra.mxu0 0.0
        %3024 = vmatprep.subr.mxu0 0.0
        %3025 = vmatpush2.xpose.msra.mxu0 0.0
        %3026 = vmatprep.subr.mxu0 0.0
        %3027 = vmatpush2.xpose.msra.mxu0 0.0
        %3028 = vmatprep.subr.mxu0 0.0
        %3029 = vmatpush2.xpose.msra.mxu0 0.0
        %3030 = vmatprep.subr.mxu0 0.0
        %3031 = vmatpush2.xpose.msra.mxu0 0.0
        %3032 = vmatprep.subr.mxu0 0.0
        %3033 = vmatpush2.xpose.msra.mxu0 0.0
        %3034 = vmatprep.subr.mxu0 0.0
        %3035 = vmatpush2.xpose.msra.mxu0 0.0
        %3036 = vmatprep.subr.mxu0 0.0
        %3037 = vmatpush2.xpose.msra.mxu0 0.0
        %3038 = vmatprep.subr.mxu0 0.0
        %3039 = vmatpush2.xpose.msra.mxu0 0.0
        %3040 = vmatprep.subr.mxu0 0.0
        %3041 = vmatpush2.xpose.msra.mxu0 0.0
        %3042 = vmatprep.mubr.f32.mxu0 0.0
        %v3043 = vand.u32 %v2714, 4294901760
        %v3044 = vsub.f32 %v2714, %v3043
        %v3045 = vand.u32 %v3044, 4294901760
        %3046 = vmatmul.mubr.f32.gmra.mxu0 %v3045
        %v3047 = vpop.f32.mrf.mxu0
        %v3048 = vadd.f32 %v2966, %v3047
        %v3049 = vpop.f32.mrf.mxu0
        %3050 = vmatprep.mubr.f32.mxu0 0.0
        %v3051 = vand.u32 %v2717, 4294901760
        %v3052 = vsub.f32 %v2717, %v3051
        %v3053 = vand.u32 %v3052, 4294901760
        %3054 = vmatmul.mubr.f32.gmra.mxu0 %v3053
        %v3055 = vpop.f32.mrf.mxu0
        %v3056 = vadd.f32 %v2973, %v3055
        %v3057 = vpop.f32.mrf.mxu0
        %3058 = vdwg.mxu0
        %3059 = vmatprep.subr.mxu0 0.0
        %3060 = vmatpush1.xpose.msra.mxu0 0.0
        %3061 = vmatprep.subr.mxu0 0.0
        %3062 = vmatpush1.xpose.msra.mxu0 0.0
        %3063 = vmatprep.subr.mxu0 0.0
        %3064 = vmatpush1.xpose.msra.mxu0 0.0
        %3065 = vmatprep.subr.mxu0 0.0
        %3066 = vmatpush1.xpose.msra.mxu0 0.0
        %3067 = vmatprep.subr.mxu0 0.0
        %3068 = vmatpush1.xpose.msra.mxu0 0.0
        %3069 = vmatprep.subr.mxu0 0.0
        %3070 = vmatpush1.xpose.msra.mxu0 0.0
        %3071 = vmatprep.subr.mxu0 0.0
        %3072 = vmatpush1.xpose.msra.mxu0 0.0
        %3073 = vmatprep.subr.mxu0 0.0
        %3074 = vmatpush1.xpose.msra.mxu0 0.0
        %3075 = vmatprep.subr.mxu0 0.0
        %3076 = vmatpush1.xpose.msra.mxu0 0.0
        %3077 = vmatprep.subr.mxu0 0.0
        %3078 = vmatpush1.xpose.msra.mxu0 0.0
        %3079 = vmatprep.subr.mxu0 0.0
        %3080 = vmatpush1.xpose.msra.mxu0 0.0
        %3081 = vmatprep.subr.mxu0 0.0
        %3082 = vmatpush1.xpose.msra.mxu0 0.0
        %3083 = vmatprep.subr.mxu0 0.0
        %3084 = vmatpush1.xpose.msra.mxu0 0.0
        %3085 = vmatprep.subr.mxu0 0.0
        %3086 = vmatpush1.xpose.msra.mxu0 0.0
        %3087 = vmatprep.subr.mxu0 0.0
        %v3088 = vand.u32 %v2171, 4294901760
        %v3089 = vsub.f32 %v2171, %v3088
        %v3090 = vand.u32 %v3089, 4294901760
        %3091 = vmatpush1.xpose.msra.mxu0 %v3090
        %3092 = vmatprep.subr.mxu0 0.0
        %v3093 = vand.u32 %v2169, 4294901760
        %v3094 = vsub.f32 %v2169, %v3093
        %v3095 = vand.u32 %v3094, 4294901760
        %3096 = vmatpush1.xpose.msra.mxu0 %v3095
        %3097 = vmatprep.subr.mxu0 0.0
        %3098 = vmatpush2.xpose.msra.mxu0 0.0
        %3099 = vmatprep.subr.mxu0 0.0
        %3100 = vmatpush2.xpose.msra.mxu0 0.0
        %3101 = vmatprep.subr.mxu0 0.0
        %3102 = vmatpush2.xpose.msra.mxu0 0.0
        %3103 = vmatprep.subr.mxu0 0.0
        %3104 = vmatpush2.xpose.msra.mxu0 0.0
        %3105 = vmatprep.subr.mxu0 0.0
        %3106 = vmatpush2.xpose.msra.mxu0 0.0
        %3107 = vmatprep.subr.mxu0 0.0
        %3108 = vmatpush2.xpose.msra.mxu0 0.0
        %3109 = vmatprep.subr.mxu0 0.0
        %3110 = vmatpush2.xpose.msra.mxu0 0.0
        %3111 = vmatprep.subr.mxu0 0.0
        %3112 = vmatpush2.xpose.msra.mxu0 0.0
        %3113 = vmatprep.subr.mxu0 0.0
        %3114 = vmatpush2.xpose.msra.mxu0 0.0
        %3115 = vmatprep.subr.mxu0 0.0
        %3116 = vmatpush2.xpose.msra.mxu0 0.0
        %3117 = vmatprep.subr.mxu0 0.0
        %3118 = vmatpush2.xpose.msra.mxu0 0.0
        %3119 = vmatprep.subr.mxu0 0.0
        %3120 = vmatpush2.xpose.msra.mxu0 0.0
        %3121 = vmatprep.subr.mxu0 0.0
        %3122 = vmatpush2.xpose.msra.mxu0 0.0
        %3123 = vmatprep.subr.mxu0 0.0
        %3124 = vmatpush2.xpose.msra.mxu0 0.0
        %3125 = vmatprep.subr.mxu0 0.0
        %3126 = vmatpush2.xpose.msra.mxu0 0.0
        %3127 = vmatprep.subr.mxu0 0.0
        %3128 = vmatpush2.xpose.msra.mxu0 0.0
        %3129 = vmatprep.mubr.f32.mxu0 0.0
        %v3130 = vand.u32 %v2714, 4294901760
        %3131 = vmatmul.mubr.f32.gmra.mxu0 %v3130
        %v3132 = vpop.f32.mrf.mxu0
        %v3133 = vadd.f32 %v3048, %v3132
        %v3134 = vpop.f32.mrf.mxu0
        %3135 = vmatprep.mubr.f32.mxu0 0.0
        %v3136 = vand.u32 %v2717, 4294901760
        %3137 = vmatmul.mubr.f32.gmra.mxu0 %v3136
        %v3138 = vpop.f32.mrf.mxu0
        %v3139 = vadd.f32 %v3056, %v3138
        %v3140 = vpop.f32.mrf.mxu0
        %3141 = vdwg.mxu0
        %3142 = vmatprep.subr.mxu0 0.0
        %3143 = vmatpush1.xpose.msra.mxu0 0.0
        %3144 = vmatprep.subr.mxu0 0.0
        %3145 = vmatpush1.xpose.msra.mxu0 0.0
        %3146 = vmatprep.subr.mxu0 0.0
        %3147 = vmatpush1.xpose.msra.mxu0 0.0
        %3148 = vmatprep.subr.mxu0 0.0
        %3149 = vmatpush1.xpose.msra.mxu0 0.0
        %3150 = vmatprep.subr.mxu0 0.0
        %3151 = vmatpush1.xpose.msra.mxu0 0.0
        %3152 = vmatprep.subr.mxu0 0.0
        %3153 = vmatpush1.xpose.msra.mxu0 0.0
        %3154 = vmatprep.subr.mxu0 0.0
        %3155 = vmatpush1.xpose.msra.mxu0 0.0
        %3156 = vmatprep.subr.mxu0 0.0
        %3157 = vmatpush1.xpose.msra.mxu0 0.0
        %3158 = vmatprep.subr.mxu0 0.0
        %3159 = vmatpush1.xpose.msra.mxu0 0.0
        %3160 = vmatprep.subr.mxu0 0.0
        %3161 = vmatpush1.xpose.msra.mxu0 0.0
        %3162 = vmatprep.subr.mxu0 0.0
        %3163 = vmatpush1.xpose.msra.mxu0 0.0
        %3164 = vmatprep.subr.mxu0 0.0
        %3165 = vmatpush1.xpose.msra.mxu0 0.0
        %3166 = vmatprep.subr.mxu0 0.0
        %3167 = vmatpush1.xpose.msra.mxu0 0.0
        %3168 = vmatprep.subr.mxu0 0.0
        %3169 = vmatpush1.xpose.msra.mxu0 0.0
        %3170 = vmatprep.subr.mxu0 0.0
        %v3171 = vand.u32 %v2171, 4294901760
        %3172 = vmatpush1.xpose.msra.mxu0 %v3171
        %3173 = vmatprep.subr.mxu0 0.0
        %v3174 = vand.u32 %v2169, 4294901760
        %3175 = vmatpush1.xpose.msra.mxu0 %v3174
        %3176 = vmatprep.subr.mxu0 0.0
        %3177 = vmatpush2.xpose.msra.mxu0 0.0
        %3178 = vmatprep.subr.mxu0 0.0
        %3179 = vmatpush2.xpose.msra.mxu0 0.0
        %3180 = vmatprep.subr.mxu0 0.0
        %3181 = vmatpush2.xpose.msra.mxu0 0.0
        %3182 = vmatprep.subr.mxu0 0.0
        %3183 = vmatpush2.xpose.msra.mxu0 0.0
        %3184 = vmatprep.subr.mxu0 0.0
        %3185 = vmatpush2.xpose.msra.mxu0 0.0
        %3186 = vmatprep.subr.mxu0 0.0
        %3187 = vmatpush2.xpose.msra.mxu0 0.0
        %3188 = vmatprep.subr.mxu0 0.0
        %3189 = vmatpush2.xpose.msra.mxu0 0.0
        %3190 = vmatprep.subr.mxu0 0.0
        %3191 = vmatpush2.xpose.msra.mxu0 0.0
        %3192 = vmatprep.subr.mxu0 0.0
        %3193 = vmatpush2.xpose.msra.mxu0 0.0
        %3194 = vmatprep.subr.mxu0 0.0
        %3195 = vmatpush2.xpose.msra.mxu0 0.0
        %3196 = vmatprep.subr.mxu0 0.0
        %3197 = vmatpush2.xpose.msra.mxu0 0.0
        %3198 = vmatprep.subr.mxu0 0.0
        %3199 = vmatpush2.xpose.msra.mxu0 0.0
        %3200 = vmatprep.subr.mxu0 0.0
        %3201 = vmatpush2.xpose.msra.mxu0 0.0
        %3202 = vmatprep.subr.mxu0 0.0
        %3203 = vmatpush2.xpose.msra.mxu0 0.0
        %3204 = vmatprep.subr.mxu0 0.0
        %3205 = vmatpush2.xpose.msra.mxu0 0.0
        %3206 = vmatprep.subr.mxu0 0.0
        %3207 = vmatpush2.xpose.msra.mxu0 0.0
        %3208 = vmatprep.mubr.f32.mxu0 0.0
        %v3209 = vand.u32 %v2714, 4294901760
        %3210 = vmatmul.mubr.f32.gmra.mxu0 %v3209
        %v3211 = vpop.f32.mrf.mxu0
        %v3212 = vadd.f32 %v3133, %v3211
        %v3213 = vpop.f32.mrf.mxu0
        %3214 = vmatprep.mubr.f32.mxu0 0.0
        %v3215 = vand.u32 %v2717, 4294901760
        %3216 = vmatmul.mubr.f32.gmra.mxu0 %v3215
        %v3217 = vpop.f32.mrf.mxu0
        %v3218 = vadd.f32 %v3139, %v3217
        %v3219 = vpop.f32.mrf.mxu0
        %3220 = vdwg.mxu0
        %v3221 = vmul.f32 %v3212, 0.35355338
        %v3222 = vmul.f32 %v3218, 0.35355338
        %v3223 = vsel %vm2677, %v3221, -inf
        %3224 = vmax.xlane.f32.xlu0 %v3223
        %v3225 = vpop.xlane.xlu0 %3224
        %v3226 = vsel %vm2677, %v3222, -inf
        %3227 = vmax.xlane.f32.xlu0 %v3226
        %v3228 = vpop.xlane.xlu0 %3227
        %v3229 = vsub.f32 %v3221, %v3225
        %v3230 = vsub.f32 %v3222, %v3228
        %v3231 = vmul.f32 %v3229, 1.442695
        %v3232 = vpow.pop %v3231
        %v3233 = vmul.f32 %v3230, 1.442695
        %v3234 = vpow.pop %v3233
        %v3235 = vsel %vm2677, %v3232, 0.0
        %3236 = vadd.xlane.f32.xlu0 %v3235
        %v3237 = vpop.xlane.xlu0 %3236
        %v3238 = vsel %vm2677, %v3234, 0.0
        %3239 = vadd.xlane.f32.xlu0 %v3238
        %v3240 = vpop.xlane.xlu0 %3239
        %v3241 = vrcp.pop %v3237
        %v3242 = vmul.f32 %v3232, %v3241
        %v3243 = vrcp.pop %v3240
        %v3244 = vmul.f32 %v3234, %v3243
        %3246 = vrot.lane.b32.xlu0 %v2710, 64
        %v3247 = vpop.permute.xlu0 %3246
        %v3249 = vmul.f32 %v2146, %v3247
        %v3250 = vmul.f32 %v2147, %v3247
        %3253 = vrot.lane.b32.xlu0 %v3249, 64
        %v3254 = vpop.permute.xlu0 %3253
        %3255 = vrot.lane.b32.xlu0 %v3250, 64
        %v3256 = vpop.permute.xlu0 %3255
        %v3260 = vsel %vm2677, %v3242, 0
        %v3263 = vsel %vm2677, %v3244, 0
        %3265 = vmatprep.subr.mxu0 0.0
        %3266 = vmatpush1.msra.mxu0 0.0
        %3267 = vmatprep.subr.mxu0 0.0
        %3268 = vmatpush1.msra.mxu0 0.0
        %3269 = vmatprep.subr.mxu0 0.0
        %3270 = vmatpush1.msra.mxu0 0.0
        %3271 = vmatprep.subr.mxu0 0.0
        %3272 = vmatpush1.msra.mxu0 0.0
        %3273 = vmatprep.subr.mxu0 0.0
        %3274 = vmatpush1.msra.mxu0 0.0
        %3275 = vmatprep.subr.mxu0 0.0
        %3276 = vmatpush1.msra.mxu0 0.0
        %3277 = vmatprep.subr.mxu0 0.0
        %3278 = vmatpush1.msra.mxu0 0.0
        %3279 = vmatprep.subr.mxu0 0.0
        %3280 = vmatpush1.msra.mxu0 0.0
        %3281 = vmatprep.subr.mxu0 0.0
        %3282 = vmatpush1.msra.mxu0 0.0
        %3283 = vmatprep.subr.mxu0 0.0
        %3284 = vmatpush1.msra.mxu0 0.0
        %3285 = vmatprep.subr.mxu0 0.0
        %3286 = vmatpush1.msra.mxu0 0.0
        %3287 = vmatprep.subr.mxu0 0.0
        %3288 = vmatpush1.msra.mxu0 0.0
        %3289 = vmatprep.subr.mxu0 0.0
        %3290 = vmatpush1.msra.mxu0 0.0
        %3291 = vmatprep.subr.mxu0 0.0
        %3292 = vmatpush1.msra.mxu0 0.0
        %3293 = vmatprep.subr.mxu0 0.0
        %v3294 = vand.u32 %v3256, 4294901760
        %3295 = vmatpush1.msra.mxu0 %v3294
        %3296 = vmatprep.subr.mxu0 0.0
        %v3297 = vand.u32 %v3254, 4294901760
        %3298 = vmatpush1.msra.mxu0 %v3297
        %3299 = vmatprep.subr.mxu0 0.0
        %3300 = vmatpush2.msra.mxu0 0.0
        %3301 = vmatprep.subr.mxu0 0.0
        %3302 = vmatpush2.msra.mxu0 0.0
        %3303 = vmatprep.subr.mxu0 0.0
        %3304 = vmatpush2.msra.mxu0 0.0
        %3305 = vmatprep.subr.mxu0 0.0
        %3306 = vmatpush2.msra.mxu0 0.0
        %3307 = vmatprep.subr.mxu0 0.0
        %3308 = vmatpush2.msra.mxu0 0.0
        %3309 = vmatprep.subr.mxu0 0.0
        %3310 = vmatpush2.msra.mxu0 0.0
        %3311 = vmatprep.subr.mxu0 0.0
        %3312 = vmatpush2.msra.mxu0 0.0
        %3313 = vmatprep.subr.mxu0 0.0
        %3314 = vmatpush2.msra.mxu0 0.0
        %3315 = vmatprep.subr.mxu0 0.0
        %3316 = vmatpush2.msra.mxu0 0.0
        %3317 = vmatprep.subr.mxu0 0.0
        %3318 = vmatpush2.msra.mxu0 0.0
        %3319 = vmatprep.subr.mxu0 0.0
        %3320 = vmatpush2.msra.mxu0 0.0
        %3321 = vmatprep.subr.mxu0 0.0
        %3322 = vmatpush2.msra.mxu0 0.0
        %3323 = vmatprep.subr.mxu0 0.0
        %3324 = vmatpush2.msra.mxu0 0.0
        %3325 = vmatprep.subr.mxu0 0.0
        %3326 = vmatpush2.msra.mxu0 0.0
        %3327 = vmatprep.subr.mxu0 0.0
        %3328 = vmatpush2.msra.mxu0 0.0
        %3329 = vmatprep.subr.mxu0 0.0
        %3330 = vmatpush2.msra.mxu0 0.0
        %3331 = vmatprep.mubr.f32.mxu0 0.0
        %v3332 = vand.u32 %v3260, 4294901760
        %v3333 = vsub.f32 %v3260, %v3332
        %v3334 = vand.u32 %v3333, 4294901760
        %v3335 = vsub.f32 %v3333, %v3334
        %v3336 = vand.u32 %v3335, 4294901760
        %3337 = vmatmul.mubr.f32.gmra.mxu0 %v3336
        %v3338 = vpop.f32.mrf.mxu0
        %v3339 = vadd.f32 0.0, %v3338
        %v3340 = vpop.f32.mrf.mxu0
        %3341 = vmatprep.mubr.f32.mxu0 0.0
        %v3342 = vand.u32 %v3263, 4294901760
        %v3343 = vsub.f32 %v3263, %v3342
        %v3344 = vand.u32 %v3343, 4294901760
        %v3345 = vsub.f32 %v3343, %v3344
        %v3346 = vand.u32 %v3345, 4294901760
        %3347 = vmatmul.mubr.f32.gmra.mxu0 %v3346
        %v3348 = vpop.f32.mrf.mxu0
        %v3349 = vadd.f32 0.0, %v3348
        %v3350 = vpop.f32.mrf.mxu0
        %3351 = vdwg.mxu0
        %3352 = vmatprep.subr.mxu0 0.0
        %3353 = vmatpush1.msra.mxu0 0.0
        %3354 = vmatprep.subr.mxu0 0.0
        %3355 = vmatpush1.msra.mxu0 0.0
        %3356 = vmatprep.subr.mxu0 0.0
        %3357 = vmatpush1.msra.mxu0 0.0
        %3358 = vmatprep.subr.mxu0 0.0
        %3359 = vmatpush1.msra.mxu0 0.0
        %3360 = vmatprep.subr.mxu0 0.0
        %3361 = vmatpush1.msra.mxu0 0.0
        %3362 = vmatprep.subr.mxu0 0.0
        %3363 = vmatpush1.msra.mxu0 0.0
        %3364 = vmatprep.subr.mxu0 0.0
        %3365 = vmatpush1.msra.mxu0 0.0
        %3366 = vmatprep.subr.mxu0 0.0
        %3367 = vmatpush1.msra.mxu0 0.0
        %3368 = vmatprep.subr.mxu0 0.0
        %3369 = vmatpush1.msra.mxu0 0.0
        %3370 = vmatprep.subr.mxu0 0.0
        %3371 = vmatpush1.msra.mxu0 0.0
        %3372 = vmatprep.subr.mxu0 0.0
        %3373 = vmatpush1.msra.mxu0 0.0
        %3374 = vmatprep.subr.mxu0 0.0
        %3375 = vmatpush1.msra.mxu0 0.0
        %3376 = vmatprep.subr.mxu0 0.0
        %3377 = vmatpush1.msra.mxu0 0.0
        %3378 = vmatprep.subr.mxu0 0.0
        %3379 = vmatpush1.msra.mxu0 0.0
        %3380 = vmatprep.subr.mxu0 0.0
        %v3381 = vand.u32 %v3256, 4294901760
        %v3382 = vsub.f32 %v3256, %v3381
        %v3383 = vand.u32 %v3382, 4294901760
        %v3384 = vsub.f32 %v3382, %v3383
        %v3385 = vand.u32 %v3384, 4294901760
        %3386 = vmatpush1.msra.mxu0 %v3385
        %3387 = vmatprep.subr.mxu0 0.0
        %v3388 = vand.u32 %v3254, 4294901760
        %v3389 = vsub.f32 %v3254, %v3388
        %v3390 = vand.u32 %v3389, 4294901760
        %v3391 = vsub.f32 %v3389, %v3390
        %v3392 = vand.u32 %v3391, 4294901760
        %3393 = vmatpush1.msra.mxu0 %v3392
        %3394 = vmatprep.subr.mxu0 0.0
        %3395 = vmatpush2.msra.mxu0 0.0
        %3396 = vmatprep.subr.mxu0 0.0
        %3397 = vmatpush2.msra.mxu0 0.0
        %3398 = vmatprep.subr.mxu0 0.0
        %3399 = vmatpush2.msra.mxu0 0.0
        %3400 = vmatprep.subr.mxu0 0.0
        %3401 = vmatpush2.msra.mxu0 0.0
        %3402 = vmatprep.subr.mxu0 0.0
        %3403 = vmatpush2.msra.mxu0 0.0
        %3404 = vmatprep.subr.mxu0 0.0
        %3405 = vmatpush2.msra.mxu0 0.0
        %3406 = vmatprep.subr.mxu0 0.0
        %3407 = vmatpush2.msra.mxu0 0.0
        %3408 = vmatprep.subr.mxu0 0.0
        %3409 = vmatpush2.msra.mxu0 0.0
        %3410 = vmatprep.subr.mxu0 0.0
        %3411 = vmatpush2.msra.mxu0 0.0
        %3412 = vmatprep.subr.mxu0 0.0
        %3413 = vmatpush2.msra.mxu0 0.0
        %3414 = vmatprep.subr.mxu0 0.0
        %3415 = vmatpush2.msra.mxu0 0.0
        %3416 = vmatprep.subr.mxu0 0.0
        %3417 = vmatpush2.msra.mxu0 0.0
        %3418 = vmatprep.subr.mxu0 0.0
        %3419 = vmatpush2.msra.mxu0 0.0
        %3420 = vmatprep.subr.mxu0 0.0
        %3421 = vmatpush2.msra.mxu0 0.0
        %3422 = vmatprep.subr.mxu0 0.0
        %3423 = vmatpush2.msra.mxu0 0.0
        %3424 = vmatprep.subr.mxu0 0.0
        %3425 = vmatpush2.msra.mxu0 0.0
        %3426 = vmatprep.mubr.f32.mxu0 0.0
        %v3427 = vand.u32 %v3260, 4294901760
        %3428 = vmatmul.mubr.f32.gmra.mxu0 %v3427
        %v3429 = vpop.f32.mrf.mxu0
        %v3430 = vadd.f32 %v3339, %v3429
        %v3431 = vpop.f32.mrf.mxu0
        %3432 = vmatprep.mubr.f32.mxu0 0.0
        %v3433 = vand.u32 %v3263, 4294901760
        %3434 = vmatmul.mubr.f32.gmra.mxu0 %v3433
        %v3435 = vpop.f32.mrf.mxu0
        %v3436 = vadd.f32 %v3349, %v3435
        %v3437 = vpop.f32.mrf.mxu0
        %3438 = vdwg.mxu0
        %3439 = vmatprep.subr.mxu0 0.0
        %3440 = vmatpush1.msra.mxu0 0.0
        %3441 = vmatprep.subr.mxu0 0.0
        %3442 = vmatpush1.msra.mxu0 0.0
        %3443 = vmatprep.subr.mxu0 0.0
        %3444 = vmatpush1.msra.mxu0 0.0
        %3445 = vmatprep.subr.mxu0 0.0
        %3446 = vmatpush1.msra.mxu0 0.0
        %3447 = vmatprep.subr.mxu0 0.0
        %3448 = vmatpush1.msra.mxu0 0.0
        %3449 = vmatprep.subr.mxu0 0.0
        %3450 = vmatpush1.msra.mxu0 0.0
        %3451 = vmatprep.subr.mxu0 0.0
        %3452 = vmatpush1.msra.mxu0 0.0
        %3453 = vmatprep.subr.mxu0 0.0
        %3454 = vmatpush1.msra.mxu0 0.0
        %3455 = vmatprep.subr.mxu0 0.0
        %3456 = vmatpush1.msra.mxu0 0.0
        %3457 = vmatprep.subr.mxu0 0.0
        %3458 = vmatpush1.msra.mxu0 0.0
        %3459 = vmatprep.subr.mxu0 0.0
        %3460 = vmatpush1.msra.mxu0 0.0
        %3461 = vmatprep.subr.mxu0 0.0
        %3462 = vmatpush1.msra.mxu0 0.0
        %3463 = vmatprep.subr.mxu0 0.0
        %3464 = vmatpush1.msra.mxu0 0.0
        %3465 = vmatprep.subr.mxu0 0.0
        %3466 = vmatpush1.msra.mxu0 0.0
        %3467 = vmatprep.subr.mxu0 0.0
        %v3468 = vand.u32 %v3256, 4294901760
        %v3469 = vsub.f32 %v3256, %v3468
        %3470 = vmatpush1.msra.mxu0 %v3469
        %3471 = vmatprep.subr.mxu0 0.0
        %v3472 = vand.u32 %v3254, 4294901760
        %v3473 = vsub.f32 %v3254, %v3472
        %3474 = vmatpush1.msra.mxu0 %v3473
        %3475 = vmatprep.subr.mxu0 0.0
        %3476 = vmatpush2.msra.mxu0 0.0
        %3477 = vmatprep.subr.mxu0 0.0
        %3478 = vmatpush2.msra.mxu0 0.0
        %3479 = vmatprep.subr.mxu0 0.0
        %3480 = vmatpush2.msra.mxu0 0.0
        %3481 = vmatprep.subr.mxu0 0.0
        %3482 = vmatpush2.msra.mxu0 0.0
        %3483 = vmatprep.subr.mxu0 0.0
        %3484 = vmatpush2.msra.mxu0 0.0
        %3485 = vmatprep.subr.mxu0 0.0
        %3486 = vmatpush2.msra.mxu0 0.0
        %3487 = vmatprep.subr.mxu0 0.0
        %3488 = vmatpush2.msra.mxu0 0.0
        %3489 = vmatprep.subr.mxu0 0.0
        %3490 = vmatpush2.msra.mxu0 0.0
        %3491 = vmatprep.subr.mxu0 0.0
        %3492 = vmatpush2.msra.mxu0 0.0
        %3493 = vmatprep.subr.mxu0 0.0
        %3494 = vmatpush2.msra.mxu0 0.0
        %3495 = vmatprep.subr.mxu0 0.0
        %3496 = vmatpush2.msra.mxu0 0.0
        %3497 = vmatprep.subr.mxu0 0.0
        %3498 = vmatpush2.msra.mxu0 0.0
        %3499 = vmatprep.subr.mxu0 0.0
        %3500 = vmatpush2.msra.mxu0 0.0
        %3501 = vmatprep.subr.mxu0 0.0
        %3502 = vmatpush2.msra.mxu0 0.0
        %3503 = vmatprep.subr.mxu0 0.0
        %3504 = vmatpush2.msra.mxu0 0.0
        %3505 = vmatprep.subr.mxu0 0.0
        %3506 = vmatpush2.msra.mxu0 0.0
        %3507 = vmatprep.mubr.f32.mxu0 0.0
        %v3508 = vand.u32 %v3260, 4294901760
        %v3509 = vsub.f32 %v3260, %v3508
        %3510 = vmatmul.mubr.f32.gmra.mxu0 %v3509
        %v3511 = vpop.f32.mrf.mxu0
        %v3512 = vadd.f32 %v3430, %v3511
        %v3513 = vpop.f32.mrf.mxu0
        %3514 = vmatprep.mubr.f32.mxu0 0.0
        %v3515 = vand.u32 %v3263, 4294901760
        %v3516 = vsub.f32 %v3263, %v3515
        %3517 = vmatmul.mubr.f32.gmra.mxu0 %v3516
        %v3518 = vpop.f32.mrf.mxu0
        %v3519 = vadd.f32 %v3436, %v3518
        %v3520 = vpop.f32.mrf.mxu0
        %3521 = vdwg.mxu0
        %3522 = vmatprep.subr.mxu0 0.0
        %3523 = vmatpush1.msra.mxu0 0.0
        %3524 = vmatprep.subr.mxu0 0.0
        %3525 = vmatpush1.msra.mxu0 0.0
        %3526 = vmatprep.subr.mxu0 0.0
        %3527 = vmatpush1.msra.mxu0 0.0
        %3528 = vmatprep.subr.mxu0 0.0
        %3529 = vmatpush1.msra.mxu0 0.0
        %3530 = vmatprep.subr.mxu0 0.0
        %3531 = vmatpush1.msra.mxu0 0.0
        %3532 = vmatprep.subr.mxu0 0.0
        %3533 = vmatpush1.msra.mxu0 0.0
        %3534 = vmatprep.subr.mxu0 0.0
        %3535 = vmatpush1.msra.mxu0 0.0
        %3536 = vmatprep.subr.mxu0 0.0
        %3537 = vmatpush1.msra.mxu0 0.0
        %3538 = vmatprep.subr.mxu0 0.0
        %3539 = vmatpush1.msra.mxu0 0.0
        %3540 = vmatprep.subr.mxu0 0.0
        %3541 = vmatpush1.msra.mxu0 0.0
        %3542 = vmatprep.subr.mxu0 0.0
        %3543 = vmatpush1.msra.mxu0 0.0
        %3544 = vmatprep.subr.mxu0 0.0
        %3545 = vmatpush1.msra.mxu0 0.0
        %3546 = vmatprep.subr.mxu0 0.0
        %3547 = vmatpush1.msra.mxu0 0.0
        %3548 = vmatprep.subr.mxu0 0.0
        %3549 = vmatpush1.msra.mxu0 0.0
        %3550 = vmatprep.subr.mxu0 0.0
        %v3551 = vand.u32 %v3256, 4294901760
        %3552 = vmatpush1.msra.mxu0 %v3551
        %3553 = vmatprep.subr.mxu0 0.0
        %v3554 = vand.u32 %v3254, 4294901760
        %3555 = vmatpush1.msra.mxu0 %v3554
        %3556 = vmatprep.subr.mxu0 0.0
        %3557 = vmatpush2.msra.mxu0 0.0
        %3558 = vmatprep.subr.mxu0 0.0
        %3559 = vmatpush2.msra.mxu0 0.0
        %3560 = vmatprep.subr.mxu0 0.0
        %3561 = vmatpush2.msra.mxu0 0.0
        %3562 = vmatprep.subr.mxu0 0.0
        %3563 = vmatpush2.msra.mxu0 0.0
        %3564 = vmatprep.subr.mxu0 0.0
        %3565 = vmatpush2.msra.mxu0 0.0
        %3566 = vmatprep.subr.mxu0 0.0
        %3567 = vmatpush2.msra.mxu0 0.0
        %3568 = vmatprep.subr.mxu0 0.0
        %3569 = vmatpush2.msra.mxu0 0.0
        %3570 = vmatprep.subr.mxu0 0.0
        %3571 = vmatpush2.msra.mxu0 0.0
        %3572 = vmatprep.subr.mxu0 0.0
        %3573 = vmatpush2.msra.mxu0 0.0
        %3574 = vmatprep.subr.mxu0 0.0
        %3575 = vmatpush2.msra.mxu0 0.0
        %3576 = vmatprep.subr.mxu0 0.0
        %3577 = vmatpush2.msra.mxu0 0.0
        %3578 = vmatprep.subr.mxu0 0.0
        %3579 = vmatpush2.msra.mxu0 0.0
        %3580 = vmatprep.subr.mxu0 0.0
        %3581 = vmatpush2.msra.mxu0 0.0
        %3582 = vmatprep.subr.mxu0 0.0
        %3583 = vmatpush2.msra.mxu0 0.0
        %3584 = vmatprep.subr.mxu0 0.0
        %3585 = vmatpush2.msra.mxu0 0.0
        %3586 = vmatprep.subr.mxu0 0.0
        %3587 = vmatpush2.msra.mxu0 0.0
        %3588 = vmatprep.mubr.f32.mxu0 0.0
        %v3589 = vand.u32 %v3260, 4294901760
        %v3590 = vsub.f32 %v3260, %v3589
        %v3591 = vand.u32 %v3590, 4294901760
        %3592 = vmatmul.mubr.f32.gmra.mxu0 %v3591
        %v3593 = vpop.f32.mrf.mxu0
        %v3594 = vadd.f32 %v3512, %v3593
        %v3595 = vpop.f32.mrf.mxu0
        %3596 = vmatprep.mubr.f32.mxu0 0.0
        %v3597 = vand.u32 %v3263, 4294901760
        %v3598 = vsub.f32 %v3263, %v3597
        %v3599 = vand.u32 %v3598, 4294901760
        %3600 = vmatmul.mubr.f32.gmra.mxu0 %v3599
        %v3601 = vpop.f32.mrf.mxu0
        %v3602 = vadd.f32 %v3519, %v3601
        %v3603 = vpop.f32.mrf.mxu0
        %3604 = vdwg.mxu0
        %3605 = vmatprep.subr.mxu0 0.0
        %3606 = vmatpush1.msra.mxu0 0.0
        %3607 = vmatprep.subr.mxu0 0.0
        %3608 = vmatpush1.msra.mxu0 0.0
        %3609 = vmatprep.subr.mxu0 0.0
        %3610 = vmatpush1.msra.mxu0 0.0
        %3611 = vmatprep.subr.mxu0 0.0
        %3612 = vmatpush1.msra.mxu0 0.0
        %3613 = vmatprep.subr.mxu0 0.0
        %3614 = vmatpush1.msra.mxu0 0.0
        %3615 = vmatprep.subr.mxu0 0.0
        %3616 = vmatpush1.msra.mxu0 0.0
        %3617 = vmatprep.subr.mxu0 0.0
        %3618 = vmatpush1.msra.mxu0 0.0
        %3619 = vmatprep.subr.mxu0 0.0
        %3620 = vmatpush1.msra.mxu0 0.0
        %3621 = vmatprep.subr.mxu0 0.0
        %3622 = vmatpush1.msra.mxu0 0.0
        %3623 = vmatprep.subr.mxu0 0.0
        %3624 = vmatpush1.msra.mxu0 0.0
        %3625 = vmatprep.subr.mxu0 0.0
        %3626 = vmatpush1.msra.mxu0 0.0
        %3627 = vmatprep.subr.mxu0 0.0
        %3628 = vmatpush1.msra.mxu0 0.0
        %3629 = vmatprep.subr.mxu0 0.0
        %3630 = vmatpush1.msra.mxu0 0.0
        %3631 = vmatprep.subr.mxu0 0.0
        %3632 = vmatpush1.msra.mxu0 0.0
        %3633 = vmatprep.subr.mxu0 0.0
        %v3634 = vand.u32 %v3256, 4294901760
        %v3635 = vsub.f32 %v3256, %v3634
        %v3636 = vand.u32 %v3635, 4294901760
        %3637 = vmatpush1.msra.mxu0 %v3636
        %3638 = vmatprep.subr.mxu0 0.0
        %v3639 = vand.u32 %v3254, 4294901760
        %v3640 = vsub.f32 %v3254, %v3639
        %v3641 = vand.u32 %v3640, 4294901760
        %3642 = vmatpush1.msra.mxu0 %v3641
        %3643 = vmatprep.subr.mxu0 0.0
        %3644 = vmatpush2.msra.mxu0 0.0
        %3645 = vmatprep.subr.mxu0 0.0
        %3646 = vmatpush2.msra.mxu0 0.0
        %3647 = vmatprep.subr.mxu0 0.0
        %3648 = vmatpush2.msra.mxu0 0.0
        %3649 = vmatprep.subr.mxu0 0.0
        %3650 = vmatpush2.msra.mxu0 0.0
        %3651 = vmatprep.subr.mxu0 0.0
        %3652 = vmatpush2.msra.mxu0 0.0
        %3653 = vmatprep.subr.mxu0 0.0
        %3654 = vmatpush2.msra.mxu0 0.0
        %3655 = vmatprep.subr.mxu0 0.0
        %3656 = vmatpush2.msra.mxu0 0.0
        %3657 = vmatprep.subr.mxu0 0.0
        %3658 = vmatpush2.msra.mxu0 0.0
        %3659 = vmatprep.subr.mxu0 0.0
        %3660 = vmatpush2.msra.mxu0 0.0
        %3661 = vmatprep.subr.mxu0 0.0
        %3662 = vmatpush2.msra.mxu0 0.0
        %3663 = vmatprep.subr.mxu0 0.0
        %3664 = vmatpush2.msra.mxu0 0.0
        %3665 = vmatprep.subr.mxu0 0.0
        %3666 = vmatpush2.msra.mxu0 0.0
        %3667 = vmatprep.subr.mxu0 0.0
        %3668 = vmatpush2.msra.mxu0 0.0
        %3669 = vmatprep.subr.mxu0 0.0
        %3670 = vmatpush2.msra.mxu0 0.0
        %3671 = vmatprep.subr.mxu0 0.0
        %3672 = vmatpush2.msra.mxu0 0.0
        %3673 = vmatprep.subr.mxu0 0.0
        %3674 = vmatpush2.msra.mxu0 0.0
        %3675 = vmatprep.mubr.f32.mxu0 0.0
        %v3676 = vand.u32 %v3260, 4294901760
        %3677 = vmatmul.mubr.f32.gmra.mxu0 %v3676
        %v3678 = vpop.f32.mrf.mxu0
        %v3679 = vadd.f32 %v3594, %v3678
        %v3680 = vpop.f32.mrf.mxu0
        %3681 = vmatprep.mubr.f32.mxu0 0.0
        %v3682 = vand.u32 %v3263, 4294901760
        %3683 = vmatmul.mubr.f32.gmra.mxu0 %v3682
        %v3684 = vpop.f32.mrf.mxu0
        %v3685 = vadd.f32 %v3602, %v3684
        %v3686 = vpop.f32.mrf.mxu0
        %3687 = vdwg.mxu0
        %3688 = vmatprep.subr.mxu0 0.0
        %3689 = vmatpush1.msra.mxu0 0.0
        %3690 = vmatprep.subr.mxu0 0.0
        %3691 = vmatpush1.msra.mxu0 0.0
        %3692 = vmatprep.subr.mxu0 0.0
        %3693 = vmatpush1.msra.mxu0 0.0
        %3694 = vmatprep.subr.mxu0 0.0
        %3695 = vmatpush1.msra.mxu0 0.0
        %3696 = vmatprep.subr.mxu0 0.0
        %3697 = vmatpush1.msra.mxu0 0.0
        %3698 = vmatprep.subr.mxu0 0.0
        %3699 = vmatpush1.msra.mxu0 0.0
        %3700 = vmatprep.subr.mxu0 0.0
        %3701 = vmatpush1.msra.mxu0 0.0
        %3702 = vmatprep.subr.mxu0 0.0
        %3703 = vmatpush1.msra.mxu0 0.0
        %3704 = vmatprep.subr.mxu0 0.0
        %3705 = vmatpush1.msra.mxu0 0.0
        %3706 = vmatprep.subr.mxu0 0.0
        %3707 = vmatpush1.msra.mxu0 0.0
        %3708 = vmatprep.subr.mxu0 0.0
        %3709 = vmatpush1.msra.mxu0 0.0
        %3710 = vmatprep.subr.mxu0 0.0
        %3711 = vmatpush1.msra.mxu0 0.0
        %3712 = vmatprep.subr.mxu0 0.0
        %3713 = vmatpush1.msra.mxu0 0.0
        %3714 = vmatprep.subr.mxu0 0.0
        %3715 = vmatpush1.msra.mxu0 0.0
        %3716 = vmatprep.subr.mxu0 0.0
        %v3717 = vand.u32 %v3256, 4294901760
        %3718 = vmatpush1.msra.mxu0 %v3717
        %3719 = vmatprep.subr.mxu0 0.0
        %v3720 = vand.u32 %v3254, 4294901760
        %3721 = vmatpush1.msra.mxu0 %v3720
        %3722 = vmatprep.subr.mxu0 0.0
        %3723 = vmatpush2.msra.mxu0 0.0
        %3724 = vmatprep.subr.mxu0 0.0
        %3725 = vmatpush2.msra.mxu0 0.0
        %3726 = vmatprep.subr.mxu0 0.0
        %3727 = vmatpush2.msra.mxu0 0.0
        %3728 = vmatprep.subr.mxu0 0.0
        %3729 = vmatpush2.msra.mxu0 0.0
        %3730 = vmatprep.subr.mxu0 0.0
        %3731 = vmatpush2.msra.mxu0 0.0
        %3732 = vmatprep.subr.mxu0 0.0
        %3733 = vmatpush2.msra.mxu0 0.0
        %3734 = vmatprep.subr.mxu0 0.0
        %3735 = vmatpush2.msra.mxu0 0.0
        %3736 = vmatprep.subr.mxu0 0.0
        %3737 = vmatpush2.msra.mxu0 0.0
        %3738 = vmatprep.subr.mxu0 0.0
        %3739 = vmatpush2.msra.mxu0 0.0
        %3740 = vmatprep.subr.mxu0 0.0
        %3741 = vmatpush2.msra.mxu0 0.0
        %3742 = vmatprep.subr.mxu0 0.0
        %3743 = vmatpush2.msra.mxu0 0.0
        %3744 = vmatprep.subr.mxu0 0.0
        %3745 = vmatpush2.msra.mxu0 0.0
        %3746 = vmatprep.subr.mxu0 0.0
        %3747 = vmatpush2.msra.mxu0 0.0
        %3748 = vmatprep.subr.mxu0 0.0
        %3749 = vmatpush2.msra.mxu0 0.0
        %3750 = vmatprep.subr.mxu0 0.0
        %3751 = vmatpush2.msra.mxu0 0.0
        %3752 = vmatprep.subr.mxu0 0.0
        %3753 = vmatpush2.msra.mxu0 0.0
        %3754 = vmatprep.mubr.f32.mxu0 0.0
        %v3755 = vand.u32 %v3260, 4294901760
        %3756 = vmatmul.mubr.f32.gmra.mxu0 %v3755
        %v3757 = vpop.f32.mrf.mxu0
        %v3758 = vadd.f32 %v3679, %v3757
        %v3759 = vpop.f32.mrf.mxu0
        %3760 = vmatprep.mubr.f32.mxu0 0.0
        %v3761 = vand.u32 %v3263, 4294901760
        %3762 = vmatmul.mubr.f32.gmra.mxu0 %v3761
        %v3763 = vpop.f32.mrf.mxu0
        %v3764 = vadd.f32 %v3685, %v3763
        %v3765 = vpop.f32.mrf.mxu0
        %3766 = vdwg.mxu0
        %3769 = vrot.lane.b32.xlu0 %v2704, 64
        %v3770 = vpop.permute.xlu0 %3769
        %3771 = vrot.lane.b32.xlu0 %v2705, 64
        %v3772 = vpop.permute.xlu0 %3771
        %v3776 = vsel %vm2677, %v2697, 0
        %v3779 = vsel %vm2677, %v2699, 0
        %3781 = vmatprep.subr.mxu0 0.0
        %3782 = vmatpush1.msra.mxu0 0.0
        %3783 = vmatprep.subr.mxu0 0.0
        %3784 = vmatpush1.msra.mxu0 0.0
        %3785 = vmatprep.subr.mxu0 0.0
        %3786 = vmatpush1.msra.mxu0 0.0
        %3787 = vmatprep.subr.mxu0 0.0
        %3788 = vmatpush1.msra.mxu0 0.0
        %3789 = vmatprep.subr.mxu0 0.0
        %3790 = vmatpush1.msra.mxu0 0.0
        %3791 = vmatprep.subr.mxu0 0.0
        %3792 = vmatpush1.msra.mxu0 0.0
        %3793 = vmatprep.subr.mxu0 0.0
        %3794 = vmatpush1.msra.mxu0 0.0
        %3795 = vmatprep.subr.mxu0 0.0
        %3796 = vmatpush1.msra.mxu0 0.0
        %3797 = vmatprep.subr.mxu0 0.0
        %3798 = vmatpush1.msra.mxu0 0.0
        %3799 = vmatprep.subr.mxu0 0.0
        %3800 = vmatpush1.msra.mxu0 0.0
        %3801 = vmatprep.subr.mxu0 0.0
        %3802 = vmatpush1.msra.mxu0 0.0
        %3803 = vmatprep.subr.mxu0 0.0
        %3804 = vmatpush1.msra.mxu0 0.0
        %3805 = vmatprep.subr.mxu0 0.0
        %3806 = vmatpush1.msra.mxu0 0.0
        %3807 = vmatprep.subr.mxu0 0.0
        %3808 = vmatpush1.msra.mxu0 0.0
        %3809 = vmatprep.subr.mxu0 0.0
        %v3810 = vand.u32 %v3772, 4294901760
        %3811 = vmatpush1.msra.mxu0 %v3810
        %3812 = vmatprep.subr.mxu0 0.0
        %v3813 = vand.u32 %v3770, 4294901760
        %3814 = vmatpush1.msra.mxu0 %v3813
        %3815 = vmatprep.subr.mxu0 0.0
        %3816 = vmatpush2.msra.mxu0 0.0
        %3817 = vmatprep.subr.mxu0 0.0
        %3818 = vmatpush2.msra.mxu0 0.0
        %3819 = vmatprep.subr.mxu0 0.0
        %3820 = vmatpush2.msra.mxu0 0.0
        %3821 = vmatprep.subr.mxu0 0.0
        %3822 = vmatpush2.msra.mxu0 0.0
        %3823 = vmatprep.subr.mxu0 0.0
        %3824 = vmatpush2.msra.mxu0 0.0
        %3825 = vmatprep.subr.mxu0 0.0
        %3826 = vmatpush2.msra.mxu0 0.0
        %3827 = vmatprep.subr.mxu0 0.0
        %3828 = vmatpush2.msra.mxu0 0.0
        %3829 = vmatprep.subr.mxu0 0.0
        %3830 = vmatpush2.msra.mxu0 0.0
        %3831 = vmatprep.subr.mxu0 0.0
        %3832 = vmatpush2.msra.mxu0 0.0
        %3833 = vmatprep.subr.mxu0 0.0
        %3834 = vmatpush2.msra.mxu0 0.0
        %3835 = vmatprep.subr.mxu0 0.0
        %3836 = vmatpush2.msra.mxu0 0.0
        %3837 = vmatprep.subr.mxu0 0.0
        %3838 = vmatpush2.msra.mxu0 0.0
        %3839 = vmatprep.subr.mxu0 0.0
        %3840 = vmatpush2.msra.mxu0 0.0
        %3841 = vmatprep.subr.mxu0 0.0
        %3842 = vmatpush2.msra.mxu0 0.0
        %3843 = vmatprep.subr.mxu0 0.0
        %3844 = vmatpush2.msra.mxu0 0.0
        %3845 = vmatprep.subr.mxu0 0.0
        %3846 = vmatpush2.msra.mxu0 0.0
        %3847 = vmatprep.mubr.f32.mxu0 0.0
        %v3848 = vand.u32 %v3776, 4294901760
        %v3849 = vsub.f32 %v3776, %v3848
        %v3850 = vand.u32 %v3849, 4294901760
        %v3851 = vsub.f32 %v3849, %v3850
        %v3852 = vand.u32 %v3851, 4294901760
        %3853 = vmatmul.mubr.f32.gmra.mxu0 %v3852
        %v3854 = vpop.f32.mrf.mxu0
        %v3855 = vadd.f32 %v3758, %v3854
        %v3856 = vpop.f32.mrf.mxu0
        %3857 = vmatprep.mubr.f32.mxu0 0.0
        %v3858 = vand.u32 %v3779, 4294901760
        %v3859 = vsub.f32 %v3779, %v3858
        %v3860 = vand.u32 %v3859, 4294901760
        %v3861 = vsub.f32 %v3859, %v3860
        %v3862 = vand.u32 %v3861, 4294901760
        %3863 = vmatmul.mubr.f32.gmra.mxu0 %v3862
        %v3864 = vpop.f32.mrf.mxu0
        %v3865 = vadd.f32 %v3764, %v3864
        %v3866 = vpop.f32.mrf.mxu0
        %3867 = vdwg.mxu0
        %3868 = vmatprep.subr.mxu0 0.0
        %3869 = vmatpush1.msra.mxu0 0.0
        %3870 = vmatprep.subr.mxu0 0.0
        %3871 = vmatpush1.msra.mxu0 0.0
        %3872 = vmatprep.subr.mxu0 0.0
        %3873 = vmatpush1.msra.mxu0 0.0
        %3874 = vmatprep.subr.mxu0 0.0
        %3875 = vmatpush1.msra.mxu0 0.0
        %3876 = vmatprep.subr.mxu0 0.0
        %3877 = vmatpush1.msra.mxu0 0.0
        %3878 = vmatprep.subr.mxu0 0.0
        %3879 = vmatpush1.msra.mxu0 0.0
        %3880 = vmatprep.subr.mxu0 0.0
        %3881 = vmatpush1.msra.mxu0 0.0
        %3882 = vmatprep.subr.mxu0 0.0
        %3883 = vmatpush1.msra.mxu0 0.0
        %3884 = vmatprep.subr.mxu0 0.0
        %3885 = vmatpush1.msra.mxu0 0.0
        %3886 = vmatprep.subr.mxu0 0.0
        %3887 = vmatpush1.msra.mxu0 0.0
        %3888 = vmatprep.subr.mxu0 0.0
        %3889 = vmatpush1.msra.mxu0 0.0
        %3890 = vmatprep.subr.mxu0 0.0
        %3891 = vmatpush1.msra.mxu0 0.0
        %3892 = vmatprep.subr.mxu0 0.0
        %3893 = vmatpush1.msra.mxu0 0.0
        %3894 = vmatprep.subr.mxu0 0.0
        %3895 = vmatpush1.msra.mxu0 0.0
        %3896 = vmatprep.subr.mxu0 0.0
        %v3897 = vand.u32 %v3772, 4294901760
        %v3898 = vsub.f32 %v3772, %v3897
        %v3899 = vand.u32 %v3898, 4294901760
        %v3900 = vsub.f32 %v3898, %v3899
        %v3901 = vand.u32 %v3900, 4294901760
        %3902 = vmatpush1.msra.mxu0 %v3901
        %3903 = vmatprep.subr.mxu0 0.0
        %v3904 = vand.u32 %v3770, 4294901760
        %v3905 = vsub.f32 %v3770, %v3904
        %v3906 = vand.u32 %v3905, 4294901760
        %v3907 = vsub.f32 %v3905, %v3906
        %v3908 = vand.u32 %v3907, 4294901760
        %3909 = vmatpush1.msra.mxu0 %v3908
        %3910 = vmatprep.subr.mxu0 0.0
        %3911 = vmatpush2.msra.mxu0 0.0
        %3912 = vmatprep.subr.mxu0 0.0
        %3913 = vmatpush2.msra.mxu0 0.0
        %3914 = vmatprep.subr.mxu0 0.0
        %3915 = vmatpush2.msra.mxu0 0.0
        %3916 = vmatprep.subr.mxu0 0.0
        %3917 = vmatpush2.msra.mxu0 0.0
        %3918 = vmatprep.subr.mxu0 0.0
        %3919 = vmatpush2.msra.mxu0 0.0
        %3920 = vmatprep.subr.mxu0 0.0
        %3921 = vmatpush2.msra.mxu0 0.0
        %3922 = vmatprep.subr.mxu0 0.0
        %3923 = vmatpush2.msra.mxu0 0.0
        %3924 = vmatprep.subr.mxu0 0.0
        %3925 = vmatpush2.msra.mxu0 0.0
        %3926 = vmatprep.subr.mxu0 0.0
        %3927 = vmatpush2.msra.mxu0 0.0
        %3928 = vmatprep.subr.mxu0 0.0
        %3929 = vmatpush2.msra.mxu0 0.0
        %3930 = vmatprep.subr.mxu0 0.0
        %3931 = vmatpush2.msra.mxu0 0.0
        %3932 = vmatprep.subr.mxu0 0.0
        %3933 = vmatpush2.msra.mxu0 0.0
        %3934 = vmatprep.subr.mxu0 0.0
        %3935 = vmatpush2.msra.mxu0 0.0
        %3936 = vmatprep.subr.mxu0 0.0
        %3937 = vmatpush2.msra.mxu0 0.0
        %3938 = vmatprep.subr.mxu0 0.0
        %3939 = vmatpush2.msra.mxu0 0.0
        %3940 = vmatprep.subr.mxu0 0.0
        %3941 = vmatpush2.msra.mxu0 0.0
        %3942 = vmatprep.mubr.f32.mxu0 0.0
        %v3943 = vand.u32 %v3776, 4294901760
        %3944 = vmatmul.mubr.f32.gmra.mxu0 %v3943
        %v3945 = vpop.f32.mrf.mxu0
        %v3946 = vadd.f32 %v3855, %v3945
        %v3947 = vpop.f32.mrf.mxu0
        %3948 = vmatprep.mubr.f32.mxu0 0.0
        %v3949 = vand.u32 %v3779, 4294901760
        %3950 = vmatmul.mubr.f32.gmra.mxu0 %v3949
        %v3951 = vpop.f32.mrf.mxu0
        %v3952 = vadd.f32 %v3865, %v3951
        %v3953 = vpop.f32.mrf.mxu0
        %3954 = vdwg.mxu0
        %3955 = vmatprep.subr.mxu0 0.0
        %3956 = vmatpush1.msra.mxu0 0.0
        %3957 = vmatprep.subr.mxu0 0.0
        %3958 = vmatpush1.msra.mxu0 0.0
        %3959 = vmatprep.subr.mxu0 0.0
        %3960 = vmatpush1.msra.mxu0 0.0
        %3961 = vmatprep.subr.mxu0 0.0
        %3962 = vmatpush1.msra.mxu0 0.0
        %3963 = vmatprep.subr.mxu0 0.0
        %3964 = vmatpush1.msra.mxu0 0.0
        %3965 = vmatprep.subr.mxu0 0.0
        %3966 = vmatpush1.msra.mxu0 0.0
        %3967 = vmatprep.subr.mxu0 0.0
        %3968 = vmatpush1.msra.mxu0 0.0
        %3969 = vmatprep.subr.mxu0 0.0
        %3970 = vmatpush1.msra.mxu0 0.0
        %3971 = vmatprep.subr.mxu0 0.0
        %3972 = vmatpush1.msra.mxu0 0.0
        %3973 = vmatprep.subr.mxu0 0.0
        %3974 = vmatpush1.msra.mxu0 0.0
        %3975 = vmatprep.subr.mxu0 0.0
        %3976 = vmatpush1.msra.mxu0 0.0
        %3977 = vmatprep.subr.mxu0 0.0
        %3978 = vmatpush1.msra.mxu0 0.0
        %3979 = vmatprep.subr.mxu0 0.0
        %3980 = vmatpush1.msra.mxu0 0.0
        %3981 = vmatprep.subr.mxu0 0.0
        %3982 = vmatpush1.msra.mxu0 0.0
        %3983 = vmatprep.subr.mxu0 0.0
        %v3984 = vand.u32 %v3772, 4294901760
        %v3985 = vsub.f32 %v3772, %v3984
        %3986 = vmatpush1.msra.mxu0 %v3985
        %3987 = vmatprep.subr.mxu0 0.0
        %v3988 = vand.u32 %v3770, 4294901760
        %v3989 = vsub.f32 %v3770, %v3988
        %3990 = vmatpush1.msra.mxu0 %v3989
        %3991 = vmatprep.subr.mxu0 0.0
        %3992 = vmatpush2.msra.mxu0 0.0
        %3993 = vmatprep.subr.mxu0 0.0
        %3994 = vmatpush2.msra.mxu0 0.0
        %3995 = vmatprep.subr.mxu0 0.0
        %3996 = vmatpush2.msra.mxu0 0.0
        %3997 = vmatprep.subr.mxu0 0.0
        %3998 = vmatpush2.msra.mxu0 0.0
        %3999 = vmatprep.subr.mxu0 0.0
        %4000 = vmatpush2.msra.mxu0 0.0
        %4001 = vmatprep.subr.mxu0 0.0
        %4002 = vmatpush2.msra.mxu0 0.0
        %4003 = vmatprep.subr.mxu0 0.0
        %4004 = vmatpush2.msra.mxu0 0.0
        %4005 = vmatprep.subr.mxu0 0.0
        %4006 = vmatpush2.msra.mxu0 0.0
        %4007 = vmatprep.subr.mxu0 0.0
        %4008 = vmatpush2.msra.mxu0 0.0
        %4009 = vmatprep.subr.mxu0 0.0
        %4010 = vmatpush2.msra.mxu0 0.0
        %4011 = vmatprep.subr.mxu0 0.0
        %4012 = vmatpush2.msra.mxu0 0.0
        %4013 = vmatprep.subr.mxu0 0.0
        %4014 = vmatpush2.msra.mxu0 0.0
        %4015 = vmatprep.subr.mxu0 0.0
        %4016 = vmatpush2.msra.mxu0 0.0
        %4017 = vmatprep.subr.mxu0 0.0
        %4018 = vmatpush2.msra.mxu0 0.0
        %4019 = vmatprep.subr.mxu0 0.0
        %4020 = vmatpush2.msra.mxu0 0.0
        %4021 = vmatprep.subr.mxu0 0.0
        %4022 = vmatpush2.msra.mxu0 0.0
        %4023 = vmatprep.mubr.f32.mxu0 0.0
        %v4024 = vand.u32 %v3776, 4294901760
        %v4025 = vsub.f32 %v3776, %v4024
        %4026 = vmatmul.mubr.f32.gmra.mxu0 %v4025
        %v4027 = vpop.f32.mrf.mxu0
        %v4028 = vadd.f32 %v3946, %v4027
        %v4029 = vpop.f32.mrf.mxu0
        %4030 = vmatprep.mubr.f32.mxu0 0.0
        %v4031 = vand.u32 %v3779, 4294901760
        %v4032 = vsub.f32 %v3779, %v4031
        %4033 = vmatmul.mubr.f32.gmra.mxu0 %v4032
        %v4034 = vpop.f32.mrf.mxu0
        %v4035 = vadd.f32 %v3952, %v4034
        %v4036 = vpop.f32.mrf.mxu0
        %4037 = vdwg.mxu0
        %4038 = vmatprep.subr.mxu0 0.0
        %4039 = vmatpush1.msra.mxu0 0.0
        %4040 = vmatprep.subr.mxu0 0.0
        %4041 = vmatpush1.msra.mxu0 0.0
        %4042 = vmatprep.subr.mxu0 0.0
        %4043 = vmatpush1.msra.mxu0 0.0
        %4044 = vmatprep.subr.mxu0 0.0
        %4045 = vmatpush1.msra.mxu0 0.0
        %4046 = vmatprep.subr.mxu0 0.0
        %4047 = vmatpush1.msra.mxu0 0.0
        %4048 = vmatprep.subr.mxu0 0.0
        %4049 = vmatpush1.msra.mxu0 0.0
        %4050 = vmatprep.subr.mxu0 0.0
        %4051 = vmatpush1.msra.mxu0 0.0
        %4052 = vmatprep.subr.mxu0 0.0
        %4053 = vmatpush1.msra.mxu0 0.0
        %4054 = vmatprep.subr.mxu0 0.0
        %4055 = vmatpush1.msra.mxu0 0.0
        %4056 = vmatprep.subr.mxu0 0.0
        %4057 = vmatpush1.msra.mxu0 0.0
        %4058 = vmatprep.subr.mxu0 0.0
        %4059 = vmatpush1.msra.mxu0 0.0
        %4060 = vmatprep.subr.mxu0 0.0
        %4061 = vmatpush1.msra.mxu0 0.0
        %4062 = vmatprep.subr.mxu0 0.0
        %4063 = vmatpush1.msra.mxu0 0.0
        %4064 = vmatprep.subr.mxu0 0.0
        %4065 = vmatpush1.msra.mxu0 0.0
        %4066 = vmatprep.subr.mxu0 0.0
        %v4067 = vand.u32 %v3772, 4294901760
        %4068 = vmatpush1.msra.mxu0 %v4067
        %4069 = vmatprep.subr.mxu0 0.0
        %v4070 = vand.u32 %v3770, 4294901760
        %4071 = vmatpush1.msra.mxu0 %v4070
        %4072 = vmatprep.subr.mxu0 0.0
        %4073 = vmatpush2.msra.mxu0 0.0
        %4074 = vmatprep.subr.mxu0 0.0
        %4075 = vmatpush2.msra.mxu0 0.0
        %4076 = vmatprep.subr.mxu0 0.0
        %4077 = vmatpush2.msra.mxu0 0.0
        %4078 = vmatprep.subr.mxu0 0.0
        %4079 = vmatpush2.msra.mxu0 0.0
        %4080 = vmatprep.subr.mxu0 0.0
        %4081 = vmatpush2.msra.mxu0 0.0
        %4082 = vmatprep.subr.mxu0 0.0
        %4083 = vmatpush2.msra.mxu0 0.0
        %4084 = vmatprep.subr.mxu0 0.0
        %4085 = vmatpush2.msra.mxu0 0.0
        %4086 = vmatprep.subr.mxu0 0.0
        %4087 = vmatpush2.msra.mxu0 0.0
        %4088 = vmatprep.subr.mxu0 0.0
        %4089 = vmatpush2.msra.mxu0 0.0
        %4090 = vmatprep.subr.mxu0 0.0
        %4091 = vmatpush2.msra.mxu0 0.0
        %4092 = vmatprep.subr.mxu0 0.0
        %4093 = vmatpush2.msra.mxu0 0.0
        %4094 = vmatprep.subr.mxu0 0.0
        %4095 = vmatpush2.msra.mxu0 0.0
        %4096 = vmatprep.subr.mxu0 0.0
        %4097 = vmatpush2.msra.mxu0 0.0
        %4098 = vmatprep.subr.mxu0 0.0
        %4099 = vmatpush2.msra.mxu0 0.0
        %4100 = vmatprep.subr.mxu0 0.0
        %4101 = vmatpush2.msra.mxu0 0.0
        %4102 = vmatprep.subr.mxu0 0.0
        %4103 = vmatpush2.msra.mxu0 0.0
        %4104 = vmatprep.mubr.f32.mxu0 0.0
        %v4105 = vand.u32 %v3776, 4294901760
        %v4106 = vsub.f32 %v3776, %v4105
        %v4107 = vand.u32 %v4106, 4294901760
        %4108 = vmatmul.mubr.f32.gmra.mxu0 %v4107
        %v4109 = vpop.f32.mrf.mxu0
        %v4110 = vadd.f32 %v4028, %v4109
        %v4111 = vpop.f32.mrf.mxu0
        %4112 = vmatprep.mubr.f32.mxu0 0.0
        %v4113 = vand.u32 %v3779, 4294901760
        %v4114 = vsub.f32 %v3779, %v4113
        %v4115 = vand.u32 %v4114, 4294901760
        %4116 = vmatmul.mubr.f32.gmra.mxu0 %v4115
        %v4117 = vpop.f32.mrf.mxu0
        %v4118 = vadd.f32 %v4035, %v4117
        %v4119 = vpop.f32.mrf.mxu0
        %4120 = vdwg.mxu0
        %4121 = vmatprep.subr.mxu0 0.0
        %4122 = vmatpush1.msra.mxu0 0.0
        %4123 = vmatprep.subr.mxu0 0.0
        %4124 = vmatpush1.msra.mxu0 0.0
        %4125 = vmatprep.subr.mxu0 0.0
        %4126 = vmatpush1.msra.mxu0 0.0
        %4127 = vmatprep.subr.mxu0 0.0
        %4128 = vmatpush1.msra.mxu0 0.0
        %4129 = vmatprep.subr.mxu0 0.0
        %4130 = vmatpush1.msra.mxu0 0.0
        %4131 = vmatprep.subr.mxu0 0.0
        %4132 = vmatpush1.msra.mxu0 0.0
        %4133 = vmatprep.subr.mxu0 0.0
        %4134 = vmatpush1.msra.mxu0 0.0
        %4135 = vmatprep.subr.mxu0 0.0
        %4136 = vmatpush1.msra.mxu0 0.0
        %4137 = vmatprep.subr.mxu0 0.0
        %4138 = vmatpush1.msra.mxu0 0.0
        %4139 = vmatprep.subr.mxu0 0.0
        %4140 = vmatpush1.msra.mxu0 0.0
        %4141 = vmatprep.subr.mxu0 0.0
        %4142 = vmatpush1.msra.mxu0 0.0
        %4143 = vmatprep.subr.mxu0 0.0
        %4144 = vmatpush1.msra.mxu0 0.0
        %4145 = vmatprep.subr.mxu0 0.0
        %4146 = vmatpush1.msra.mxu0 0.0
        %4147 = vmatprep.subr.mxu0 0.0
        %4148 = vmatpush1.msra.mxu0 0.0
        %4149 = vmatprep.subr.mxu0 0.0
        %v4150 = vand.u32 %v3772, 4294901760
        %v4151 = vsub.f32 %v3772, %v4150
        %v4152 = vand.u32 %v4151, 4294901760
        %4153 = vmatpush1.msra.mxu0 %v4152
        %4154 = vmatprep.subr.mxu0 0.0
        %v4155 = vand.u32 %v3770, 4294901760
        %v4156 = vsub.f32 %v3770, %v4155
        %v4157 = vand.u32 %v4156, 4294901760
        %4158 = vmatpush1.msra.mxu0 %v4157
        %4159 = vmatprep.subr.mxu0 0.0
        %4160 = vmatpush2.msra.mxu0 0.0
        %4161 = vmatprep.subr.mxu0 0.0
        %4162 = vmatpush2.msra.mxu0 0.0
        %4163 = vmatprep.subr.mxu0 0.0
        %4164 = vmatpush2.msra.mxu0 0.0
        %4165 = vmatprep.subr.mxu0 0.0
        %4166 = vmatpush2.msra.mxu0 0.0
        %4167 = vmatprep.subr.mxu0 0.0
        %4168 = vmatpush2.msra.mxu0 0.0
        %4169 = vmatprep.subr.mxu0 0.0
        %4170 = vmatpush2.msra.mxu0 0.0
        %4171 = vmatprep.subr.mxu0 0.0
        %4172 = vmatpush2.msra.mxu0 0.0
        %4173 = vmatprep.subr.mxu0 0.0
        %4174 = vmatpush2.msra.mxu0 0.0
        %4175 = vmatprep.subr.mxu0 0.0
        %4176 = vmatpush2.msra.mxu0 0.0
        %4177 = vmatprep.subr.mxu0 0.0
        %4178 = vmatpush2.msra.mxu0 0.0
        %4179 = vmatprep.subr.mxu0 0.0
        %4180 = vmatpush2.msra.mxu0 0.0
        %4181 = vmatprep.subr.mxu0 0.0
        %4182 = vmatpush2.msra.mxu0 0.0
        %4183 = vmatprep.subr.mxu0 0.0
        %4184 = vmatpush2.msra.mxu0 0.0
        %4185 = vmatprep.subr.mxu0 0.0
        %4186 = vmatpush2.msra.mxu0 0.0
        %4187 = vmatprep.subr.mxu0 0.0
        %4188 = vmatpush2.msra.mxu0 0.0
        %4189 = vmatprep.subr.mxu0 0.0
        %4190 = vmatpush2.msra.mxu0 0.0
        %4191 = vmatprep.mubr.f32.mxu0 0.0
        %v4192 = vand.u32 %v3776, 4294901760
        %4193 = vmatmul.mubr.f32.gmra.mxu0 %v4192
        %v4194 = vpop.f32.mrf.mxu0
        %v4195 = vadd.f32 %v4110, %v4194
        %v4196 = vpop.f32.mrf.mxu0
        %4197 = vmatprep.mubr.f32.mxu0 0.0
        %v4198 = vand.u32 %v3779, 4294901760
        %4199 = vmatmul.mubr.f32.gmra.mxu0 %v4198
        %v4200 = vpop.f32.mrf.mxu0
        %v4201 = vadd.f32 %v4118, %v4200
        %v4202 = vpop.f32.mrf.mxu0
        %4203 = vdwg.mxu0
        %4204 = vmatprep.subr.mxu0 0.0
        %4205 = vmatpush1.msra.mxu0 0.0
        %4206 = vmatprep.subr.mxu0 0.0
        %4207 = vmatpush1.msra.mxu0 0.0
        %4208 = vmatprep.subr.mxu0 0.0
        %4209 = vmatpush1.msra.mxu0 0.0
        %4210 = vmatprep.subr.mxu0 0.0
        %4211 = vmatpush1.msra.mxu0 0.0
        %4212 = vmatprep.subr.mxu0 0.0
        %4213 = vmatpush1.msra.mxu0 0.0
        %4214 = vmatprep.subr.mxu0 0.0
        %4215 = vmatpush1.msra.mxu0 0.0
        %4216 = vmatprep.subr.mxu0 0.0
        %4217 = vmatpush1.msra.mxu0 0.0
        %4218 = vmatprep.subr.mxu0 0.0
        %4219 = vmatpush1.msra.mxu0 0.0
        %4220 = vmatprep.subr.mxu0 0.0
        %4221 = vmatpush1.msra.mxu0 0.0
        %4222 = vmatprep.subr.mxu0 0.0
        %4223 = vmatpush1.msra.mxu0 0.0
        %4224 = vmatprep.subr.mxu0 0.0
        %4225 = vmatpush1.msra.mxu0 0.0
        %4226 = vmatprep.subr.mxu0 0.0
        %4227 = vmatpush1.msra.mxu0 0.0
        %4228 = vmatprep.subr.mxu0 0.0
        %4229 = vmatpush1.msra.mxu0 0.0
        %4230 = vmatprep.subr.mxu0 0.0
        %4231 = vmatpush1.msra.mxu0 0.0
        %4232 = vmatprep.subr.mxu0 0.0
        %v4233 = vand.u32 %v3772, 4294901760
        %4234 = vmatpush1.msra.mxu0 %v4233
        %4235 = vmatprep.subr.mxu0 0.0
        %v4236 = vand.u32 %v3770, 4294901760
        %4237 = vmatpush1.msra.mxu0 %v4236
        %4238 = vmatprep.subr.mxu0 0.0
        %4239 = vmatpush2.msra.mxu0 0.0
        %4240 = vmatprep.subr.mxu0 0.0
        %4241 = vmatpush2.msra.mxu0 0.0
        %4242 = vmatprep.subr.mxu0 0.0
        %4243 = vmatpush2.msra.mxu0 0.0
        %4244 = vmatprep.subr.mxu0 0.0
        %4245 = vmatpush2.msra.mxu0 0.0
        %4246 = vmatprep.subr.mxu0 0.0
        %4247 = vmatpush2.msra.mxu0 0.0
        %4248 = vmatprep.subr.mxu0 0.0
        %4249 = vmatpush2.msra.mxu0 0.0
        %4250 = vmatprep.subr.mxu0 0.0
        %4251 = vmatpush2.msra.mxu0 0.0
        %4252 = vmatprep.subr.mxu0 0.0
        %4253 = vmatpush2.msra.mxu0 0.0
        %4254 = vmatprep.subr.mxu0 0.0
        %4255 = vmatpush2.msra.mxu0 0.0
        %4256 = vmatprep.subr.mxu0 0.0
        %4257 = vmatpush2.msra.mxu0 0.0
        %4258 = vmatprep.subr.mxu0 0.0
        %4259 = vmatpush2.msra.mxu0 0.0
        %4260 = vmatprep.subr.mxu0 0.0
        %4261 = vmatpush2.msra.mxu0 0.0
        %4262 = vmatprep.subr.mxu0 0.0
        %4263 = vmatpush2.msra.mxu0 0.0
        %4264 = vmatprep.subr.mxu0 0.0
        %4265 = vmatpush2.msra.mxu0 0.0
        %4266 = vmatprep.subr.mxu0 0.0
        %4267 = vmatpush2.msra.mxu0 0.0
        %4268 = vmatprep.subr.mxu0 0.0
        %4269 = vmatpush2.msra.mxu0 0.0
        %4270 = vmatprep.mubr.f32.mxu0 0.0
        %v4271 = vand.u32 %v3776, 4294901760
        %4272 = vmatmul.mubr.f32.gmra.mxu0 %v4271
        %v4273 = vpop.f32.mrf.mxu0
        %v4274 = vadd.f32 %v4195, %v4273
        %v4275 = vpop.f32.mrf.mxu0
        %4276 = vmatprep.mubr.f32.mxu0 0.0
        %v4277 = vand.u32 %v3779, 4294901760
        %4278 = vmatmul.mubr.f32.gmra.mxu0 %v4277
        %v4279 = vpop.f32.mrf.mxu0
        %v4280 = vadd.f32 %v4201, %v4279
        %v4281 = vpop.f32.mrf.mxu0
        %4282 = vdwg.mxu0
        %vm4283 = vcmp.ge.s32.totalorder %v2149, 16
        %vm4284 = vcmp.lt.s32.totalorder %v2149, 24
        %vm4285 = vmand %vm4283, %vm4284
        %v4286 = vsel %vm4285, 1, 0
        %v4287 = vcvt.s32.f32 %v4286
        %v4288 = vmul.f32 %v2126, %v4287
        %v4289 = vmul.f32 %v2127, %v4287
        %v4291 = vsel %vm1418, %v4288, 0
        %v4294 = vsel %vm1418, %v4289, 0
        %4296 = vmatprep.subr.mxu0 0.0
        %4297 = vmatpush1.xpose.msra.mxu0 0.0
        %4298 = vmatprep.subr.mxu0 0.0
        %4299 = vmatpush1.xpose.msra.mxu0 0.0
        %4300 = vmatprep.subr.mxu0 0.0
        %4301 = vmatpush1.xpose.msra.mxu0 0.0
        %4302 = vmatprep.subr.mxu0 0.0
        %4303 = vmatpush1.xpose.msra.mxu0 0.0
        %4304 = vmatprep.subr.mxu0 0.0
        %4305 = vmatpush1.xpose.msra.mxu0 0.0
        %4306 = vmatprep.subr.mxu0 0.0
        %4307 = vmatpush1.xpose.msra.mxu0 0.0
        %4308 = vmatprep.subr.mxu0 0.0
        %4309 = vmatpush1.xpose.msra.mxu0 0.0
        %4310 = vmatprep.subr.mxu0 0.0
        %4311 = vmatpush1.xpose.msra.mxu0 0.0
        %4312 = vmatprep.subr.mxu0 0.0
        %4313 = vmatpush1.xpose.msra.mxu0 0.0
        %4314 = vmatprep.subr.mxu0 0.0
        %4315 = vmatpush1.xpose.msra.mxu0 0.0
        %4316 = vmatprep.subr.mxu0 0.0
        %4317 = vmatpush1.xpose.msra.mxu0 0.0
        %4318 = vmatprep.subr.mxu0 0.0
        %4319 = vmatpush1.xpose.msra.mxu0 0.0
        %4320 = vmatprep.subr.mxu0 0.0
        %4321 = vmatpush1.xpose.msra.mxu0 0.0
        %4322 = vmatprep.subr.mxu0 0.0
        %4323 = vmatpush1.xpose.msra.mxu0 0.0
        %4324 = vmatprep.subr.mxu0 0.0
        %v4325 = vand.u32 %v2171, 4294901760
        %4326 = vmatpush1.xpose.msra.mxu0 %v4325
        %4327 = vmatprep.subr.mxu0 0.0
        %v4328 = vand.u32 %v2169, 4294901760
        %4329 = vmatpush1.xpose.msra.mxu0 %v4328
        %4330 = vmatprep.subr.mxu0 0.0
        %4331 = vmatpush2.xpose.msra.mxu0 0.0
        %4332 = vmatprep.subr.mxu0 0.0
        %4333 = vmatpush2.xpose.msra.mxu0 0.0
        %4334 = vmatprep.subr.mxu0 0.0
        %4335 = vmatpush2.xpose.msra.mxu0 0.0
        %4336 = vmatprep.subr.mxu0 0.0
        %4337 = vmatpush2.xpose.msra.mxu0 0.0
        %4338 = vmatprep.subr.mxu0 0.0
        %4339 = vmatpush2.xpose.msra.mxu0 0.0
        %4340 = vmatprep.subr.mxu0 0.0
        %4341 = vmatpush2.xpose.msra.mxu0 0.0
        %4342 = vmatprep.subr.mxu0 0.0
        %4343 = vmatpush2.xpose.msra.mxu0 0.0
        %4344 = vmatprep.subr.mxu0 0.0
        %4345 = vmatpush2.xpose.msra.mxu0 0.0
        %4346 = vmatprep.subr.mxu0 0.0
        %4347 = vmatpush2.xpose.msra.mxu0 0.0
        %4348 = vmatprep.subr.mxu0 0.0
        %4349 = vmatpush2.xpose.msra.mxu0 0.0
        %4350 = vmatprep.subr.mxu0 0.0
        %4351 = vmatpush2.xpose.msra.mxu0 0.0
        %4352 = vmatprep.subr.mxu0 0.0
        %4353 = vmatpush2.xpose.msra.mxu0 0.0
        %4354 = vmatprep.subr.mxu0 0.0
        %4355 = vmatpush2.xpose.msra.mxu0 0.0
        %4356 = vmatprep.subr.mxu0 0.0
        %4357 = vmatpush2.xpose.msra.mxu0 0.0
        %4358 = vmatprep.subr.mxu0 0.0
        %4359 = vmatpush2.xpose.msra.mxu0 0.0
        %4360 = vmatprep.subr.mxu0 0.0
        %4361 = vmatpush2.xpose.msra.mxu0 0.0
        %4362 = vmatprep.mubr.f32.mxu0 0.0
        %v4363 = vand.u32 %v4291, 4294901760
        %v4364 = vsub.f32 %v4291, %v4363
        %v4365 = vand.u32 %v4364, 4294901760
        %v4366 = vsub.f32 %v4364, %v4365
        %v4367 = vand.u32 %v4366, 4294901760
        %4368 = vmatmul.mubr.f32.gmra.mxu0 %v4367
        %v4369 = vpop.f32.mrf.mxu0
        %v4370 = vadd.f32 0.0, %v4369
        %v4371 = vpop.f32.mrf.mxu0
        %4372 = vmatprep.mubr.f32.mxu0 0.0
        %v4373 = vand.u32 %v4294, 4294901760
        %v4374 = vsub.f32 %v4294, %v4373
        %v4375 = vand.u32 %v4374, 4294901760
        %v4376 = vsub.f32 %v4374, %v4375
        %v4377 = vand.u32 %v4376, 4294901760
        %4378 = vmatmul.mubr.f32.gmra.mxu0 %v4377
        %v4379 = vpop.f32.mrf.mxu0
        %v4380 = vadd.f32 0.0, %v4379
        %v4381 = vpop.f32.mrf.mxu0
        %4382 = vdwg.mxu0
        %4383 = vmatprep.subr.mxu0 0.0
        %4384 = vmatpush1.xpose.msra.mxu0 0.0
        %4385 = vmatprep.subr.mxu0 0.0
        %4386 = vmatpush1.xpose.msra.mxu0 0.0
        %4387 = vmatprep.subr.mxu0 0.0
        %4388 = vmatpush1.xpose.msra.mxu0 0.0
        %4389 = vmatprep.subr.mxu0 0.0
        %4390 = vmatpush1.xpose.msra.mxu0 0.0
        %4391 = vmatprep.subr.mxu0 0.0
        %4392 = vmatpush1.xpose.msra.mxu0 0.0
        %4393 = vmatprep.subr.mxu0 0.0
        %4394 = vmatpush1.xpose.msra.mxu0 0.0
        %4395 = vmatprep.subr.mxu0 0.0
        %4396 = vmatpush1.xpose.msra.mxu0 0.0
        %4397 = vmatprep.subr.mxu0 0.0
        %4398 = vmatpush1.xpose.msra.mxu0 0.0
        %4399 = vmatprep.subr.mxu0 0.0
        %4400 = vmatpush1.xpose.msra.mxu0 0.0
        %4401 = vmatprep.subr.mxu0 0.0
        %4402 = vmatpush1.xpose.msra.mxu0 0.0
        %4403 = vmatprep.subr.mxu0 0.0
        %4404 = vmatpush1.xpose.msra.mxu0 0.0
        %4405 = vmatprep.subr.mxu0 0.0
        %4406 = vmatpush1.xpose.msra.mxu0 0.0
        %4407 = vmatprep.subr.mxu0 0.0
        %4408 = vmatpush1.xpose.msra.mxu0 0.0
        %4409 = vmatprep.subr.mxu0 0.0
        %4410 = vmatpush1.xpose.msra.mxu0 0.0
        %4411 = vmatprep.subr.mxu0 0.0
        %v4412 = vand.u32 %v2171, 4294901760
        %v4413 = vsub.f32 %v2171, %v4412
        %v4414 = vand.u32 %v4413, 4294901760
        %v4415 = vsub.f32 %v4413, %v4414
        %v4416 = vand.u32 %v4415, 4294901760
        %4417 = vmatpush1.xpose.msra.mxu0 %v4416
        %4418 = vmatprep.subr.mxu0 0.0
        %v4419 = vand.u32 %v2169, 4294901760
        %v4420 = vsub.f32 %v2169, %v4419
        %v4421 = vand.u32 %v4420, 4294901760
        %v4422 = vsub.f32 %v4420, %v4421
        %v4423 = vand.u32 %v4422, 4294901760
        %4424 = vmatpush1.xpose.msra.mxu0 %v4423
        %4425 = vmatprep.subr.mxu0 0.0
        %4426 = vmatpush2.xpose.msra.mxu0 0.0
        %4427 = vmatprep.subr.mxu0 0.0
        %4428 = vmatpush2.xpose.msra.mxu0 0.0
        %4429 = vmatprep.subr.mxu0 0.0
        %4430 = vmatpush2.xpose.msra.mxu0 0.0
        %4431 = vmatprep.subr.mxu0 0.0
        %4432 = vmatpush2.xpose.msra.mxu0 0.0
        %4433 = vmatprep.subr.mxu0 0.0
        %4434 = vmatpush2.xpose.msra.mxu0 0.0
        %4435 = vmatprep.subr.mxu0 0.0
        %4436 = vmatpush2.xpose.msra.mxu0 0.0
        %4437 = vmatprep.subr.mxu0 0.0
        %4438 = vmatpush2.xpose.msra.mxu0 0.0
        %4439 = vmatprep.subr.mxu0 0.0
        %4440 = vmatpush2.xpose.msra.mxu0 0.0
        %4441 = vmatprep.subr.mxu0 0.0
        %4442 = vmatpush2.xpose.msra.mxu0 0.0
        %4443 = vmatprep.subr.mxu0 0.0
        %4444 = vmatpush2.xpose.msra.mxu0 0.0
        %4445 = vmatprep.subr.mxu0 0.0
        %4446 = vmatpush2.xpose.msra.mxu0 0.0
        %4447 = vmatprep.subr.mxu0 0.0
        %4448 = vmatpush2.xpose.msra.mxu0 0.0
        %4449 = vmatprep.subr.mxu0 0.0
        %4450 = vmatpush2.xpose.msra.mxu0 0.0
        %4451 = vmatprep.subr.mxu0 0.0
        %4452 = vmatpush2.xpose.msra.mxu0 0.0
        %4453 = vmatprep.subr.mxu0 0.0
        %4454 = vmatpush2.xpose.msra.mxu0 0.0
        %4455 = vmatprep.subr.mxu0 0.0
        %4456 = vmatpush2.xpose.msra.mxu0 0.0
        %4457 = vmatprep.mubr.f32.mxu0 0.0
        %v4458 = vand.u32 %v4291, 4294901760
        %4459 = vmatmul.mubr.f32.gmra.mxu0 %v4458
        %v4460 = vpop.f32.mrf.mxu0
        %v4461 = vadd.f32 %v4370, %v4460
        %v4462 = vpop.f32.mrf.mxu0
        %4463 = vmatprep.mubr.f32.mxu0 0.0
        %v4464 = vand.u32 %v4294, 4294901760
        %4465 = vmatmul.mubr.f32.gmra.mxu0 %v4464
        %v4466 = vpop.f32.mrf.mxu0
        %v4467 = vadd.f32 %v4380, %v4466
        %v4468 = vpop.f32.mrf.mxu0
        %4469 = vdwg.mxu0
        %4470 = vmatprep.subr.mxu0 0.0
        %4471 = vmatpush1.xpose.msra.mxu0 0.0
        %4472 = vmatprep.subr.mxu0 0.0
        %4473 = vmatpush1.xpose.msra.mxu0 0.0
        %4474 = vmatprep.subr.mxu0 0.0
        %4475 = vmatpush1.xpose.msra.mxu0 0.0
        %4476 = vmatprep.subr.mxu0 0.0
        %4477 = vmatpush1.xpose.msra.mxu0 0.0
        %4478 = vmatprep.subr.mxu0 0.0
        %4479 = vmatpush1.xpose.msra.mxu0 0.0
        %4480 = vmatprep.subr.mxu0 0.0
        %4481 = vmatpush1.xpose.msra.mxu0 0.0
        %4482 = vmatprep.subr.mxu0 0.0
        %4483 = vmatpush1.xpose.msra.mxu0 0.0
        %4484 = vmatprep.subr.mxu0 0.0
        %4485 = vmatpush1.xpose.msra.mxu0 0.0
        %4486 = vmatprep.subr.mxu0 0.0
        %4487 = vmatpush1.xpose.msra.mxu0 0.0
        %4488 = vmatprep.subr.mxu0 0.0
        %4489 = vmatpush1.xpose.msra.mxu0 0.0
        %4490 = vmatprep.subr.mxu0 0.0
        %4491 = vmatpush1.xpose.msra.mxu0 0.0
        %4492 = vmatprep.subr.mxu0 0.0
        %4493 = vmatpush1.xpose.msra.mxu0 0.0
        %4494 = vmatprep.subr.mxu0 0.0
        %4495 = vmatpush1.xpose.msra.mxu0 0.0
        %4496 = vmatprep.subr.mxu0 0.0
        %4497 = vmatpush1.xpose.msra.mxu0 0.0
        %4498 = vmatprep.subr.mxu0 0.0
        %v4499 = vand.u32 %v2171, 4294901760
        %v4500 = vsub.f32 %v2171, %v4499
        %4501 = vmatpush1.xpose.msra.mxu0 %v4500
        %4502 = vmatprep.subr.mxu0 0.0
        %v4503 = vand.u32 %v2169, 4294901760
        %v4504 = vsub.f32 %v2169, %v4503
        %4505 = vmatpush1.xpose.msra.mxu0 %v4504
        %4506 = vmatprep.subr.mxu0 0.0
        %4507 = vmatpush2.xpose.msra.mxu0 0.0
        %4508 = vmatprep.subr.mxu0 0.0
        %4509 = vmatpush2.xpose.msra.mxu0 0.0
        %4510 = vmatprep.subr.mxu0 0.0
        %4511 = vmatpush2.xpose.msra.mxu0 0.0
        %4512 = vmatprep.subr.mxu0 0.0
        %4513 = vmatpush2.xpose.msra.mxu0 0.0
        %4514 = vmatprep.subr.mxu0 0.0
        %4515 = vmatpush2.xpose.msra.mxu0 0.0
        %4516 = vmatprep.subr.mxu0 0.0
        %4517 = vmatpush2.xpose.msra.mxu0 0.0
        %4518 = vmatprep.subr.mxu0 0.0
        %4519 = vmatpush2.xpose.msra.mxu0 0.0
        %4520 = vmatprep.subr.mxu0 0.0
        %4521 = vmatpush2.xpose.msra.mxu0 0.0
        %4522 = vmatprep.subr.mxu0 0.0
        %4523 = vmatpush2.xpose.msra.mxu0 0.0
        %4524 = vmatprep.subr.mxu0 0.0
        %4525 = vmatpush2.xpose.msra.mxu0 0.0
        %4526 = vmatprep.subr.mxu0 0.0
        %4527 = vmatpush2.xpose.msra.mxu0 0.0
        %4528 = vmatprep.subr.mxu0 0.0
        %4529 = vmatpush2.xpose.msra.mxu0 0.0
        %4530 = vmatprep.subr.mxu0 0.0
        %4531 = vmatpush2.xpose.msra.mxu0 0.0
        %4532 = vmatprep.subr.mxu0 0.0
        %4533 = vmatpush2.xpose.msra.mxu0 0.0
        %4534 = vmatprep.subr.mxu0 0.0
        %4535 = vmatpush2.xpose.msra.mxu0 0.0
        %4536 = vmatprep.subr.mxu0 0.0
        %4537 = vmatpush2.xpose.msra.mxu0 0.0
        %4538 = vmatprep.mubr.f32.mxu0 0.0
        %v4539 = vand.u32 %v4291, 4294901760
        %v4540 = vsub.f32 %v4291, %v4539
        %4541 = vmatmul.mubr.f32.gmra.mxu0 %v4540
        %v4542 = vpop.f32.mrf.mxu0
        %v4543 = vadd.f32 %v4461, %v4542
        %v4544 = vpop.f32.mrf.mxu0
        %4545 = vmatprep.mubr.f32.mxu0 0.0
        %v4546 = vand.u32 %v4294, 4294901760
        %v4547 = vsub.f32 %v4294, %v4546
        %4548 = vmatmul.mubr.f32.gmra.mxu0 %v4547
        %v4549 = vpop.f32.mrf.mxu0
        %v4550 = vadd.f32 %v4467, %v4549
        %v4551 = vpop.f32.mrf.mxu0
        %4552 = vdwg.mxu0
        %4553 = vmatprep.subr.mxu0 0.0
        %4554 = vmatpush1.xpose.msra.mxu0 0.0
        %4555 = vmatprep.subr.mxu0 0.0
        %4556 = vmatpush1.xpose.msra.mxu0 0.0
        %4557 = vmatprep.subr.mxu0 0.0
        %4558 = vmatpush1.xpose.msra.mxu0 0.0
        %4559 = vmatprep.subr.mxu0 0.0
        %4560 = vmatpush1.xpose.msra.mxu0 0.0
        %4561 = vmatprep.subr.mxu0 0.0
        %4562 = vmatpush1.xpose.msra.mxu0 0.0
        %4563 = vmatprep.subr.mxu0 0.0
        %4564 = vmatpush1.xpose.msra.mxu0 0.0
        %4565 = vmatprep.subr.mxu0 0.0
        %4566 = vmatpush1.xpose.msra.mxu0 0.0
        %4567 = vmatprep.subr.mxu0 0.0
        %4568 = vmatpush1.xpose.msra.mxu0 0.0
        %4569 = vmatprep.subr.mxu0 0.0
        %4570 = vmatpush1.xpose.msra.mxu0 0.0
        %4571 = vmatprep.subr.mxu0 0.0
        %4572 = vmatpush1.xpose.msra.mxu0 0.0
        %4573 = vmatprep.subr.mxu0 0.0
        %4574 = vmatpush1.xpose.msra.mxu0 0.0
        %4575 = vmatprep.subr.mxu0 0.0
        %4576 = vmatpush1.xpose.msra.mxu0 0.0
        %4577 = vmatprep.subr.mxu0 0.0
        %4578 = vmatpush1.xpose.msra.mxu0 0.0
        %4579 = vmatprep.subr.mxu0 0.0
        %4580 = vmatpush1.xpose.msra.mxu0 0.0
        %4581 = vmatprep.subr.mxu0 0.0
        %v4582 = vand.u32 %v2171, 4294901760
        %4583 = vmatpush1.xpose.msra.mxu0 %v4582
        %4584 = vmatprep.subr.mxu0 0.0
        %v4585 = vand.u32 %v2169, 4294901760
        %4586 = vmatpush1.xpose.msra.mxu0 %v4585
        %4587 = vmatprep.subr.mxu0 0.0
        %4588 = vmatpush2.xpose.msra.mxu0 0.0
        %4589 = vmatprep.subr.mxu0 0.0
        %4590 = vmatpush2.xpose.msra.mxu0 0.0
        %4591 = vmatprep.subr.mxu0 0.0
        %4592 = vmatpush2.xpose.msra.mxu0 0.0
        %4593 = vmatprep.subr.mxu0 0.0
        %4594 = vmatpush2.xpose.msra.mxu0 0.0
        %4595 = vmatprep.subr.mxu0 0.0
        %4596 = vmatpush2.xpose.msra.mxu0 0.0
        %4597 = vmatprep.subr.mxu0 0.0
        %4598 = vmatpush2.xpose.msra.mxu0 0.0
        %4599 = vmatprep.subr.mxu0 0.0
        %4600 = vmatpush2.xpose.msra.mxu0 0.0
        %4601 = vmatprep.subr.mxu0 0.0
        %4602 = vmatpush2.xpose.msra.mxu0 0.0
        %4603 = vmatprep.subr.mxu0 0.0
        %4604 = vmatpush2.xpose.msra.mxu0 0.0
        %4605 = vmatprep.subr.mxu0 0.0
        %4606 = vmatpush2.xpose.msra.mxu0 0.0
        %4607 = vmatprep.subr.mxu0 0.0
        %4608 = vmatpush2.xpose.msra.mxu0 0.0
        %4609 = vmatprep.subr.mxu0 0.0
        %4610 = vmatpush2.xpose.msra.mxu0 0.0
        %4611 = vmatprep.subr.mxu0 0.0
        %4612 = vmatpush2.xpose.msra.mxu0 0.0
        %4613 = vmatprep.subr.mxu0 0.0
        %4614 = vmatpush2.xpose.msra.mxu0 0.0
        %4615 = vmatprep.subr.mxu0 0.0
        %4616 = vmatpush2.xpose.msra.mxu0 0.0
        %4617 = vmatprep.subr.mxu0 0.0
        %4618 = vmatpush2.xpose.msra.mxu0 0.0
        %4619 = vmatprep.mubr.f32.mxu0 0.0
        %v4620 = vand.u32 %v4291, 4294901760
        %v4621 = vsub.f32 %v4291, %v4620
        %v4622 = vand.u32 %v4621, 4294901760
        %4623 = vmatmul.mubr.f32.gmra.mxu0 %v4622
        %v4624 = vpop.f32.mrf.mxu0
        %v4625 = vadd.f32 %v4543, %v4624
        %v4626 = vpop.f32.mrf.mxu0
        %4627 = vmatprep.mubr.f32.mxu0 0.0
        %v4628 = vand.u32 %v4294, 4294901760
        %v4629 = vsub.f32 %v4294, %v4628
        %v4630 = vand.u32 %v4629, 4294901760
        %4631 = vmatmul.mubr.f32.gmra.mxu0 %v4630
        %v4632 = vpop.f32.mrf.mxu0
        %v4633 = vadd.f32 %v4550, %v4632
        %v4634 = vpop.f32.mrf.mxu0
        %4635 = vdwg.mxu0
        %4636 = vmatprep.subr.mxu0 0.0
        %4637 = vmatpush1.xpose.msra.mxu0 0.0
        %4638 = vmatprep.subr.mxu0 0.0
        %4639 = vmatpush1.xpose.msra.mxu0 0.0
        %4640 = vmatprep.subr.mxu0 0.0
        %4641 = vmatpush1.xpose.msra.mxu0 0.0
        %4642 = vmatprep.subr.mxu0 0.0
        %4643 = vmatpush1.xpose.msra.mxu0 0.0
        %4644 = vmatprep.subr.mxu0 0.0
        %4645 = vmatpush1.xpose.msra.mxu0 0.0
        %4646 = vmatprep.subr.mxu0 0.0
        %4647 = vmatpush1.xpose.msra.mxu0 0.0
        %4648 = vmatprep.subr.mxu0 0.0
        %4649 = vmatpush1.xpose.msra.mxu0 0.0
        %4650 = vmatprep.subr.mxu0 0.0
        %4651 = vmatpush1.xpose.msra.mxu0 0.0
        %4652 = vmatprep.subr.mxu0 0.0
        %4653 = vmatpush1.xpose.msra.mxu0 0.0
        %4654 = vmatprep.subr.mxu0 0.0
        %4655 = vmatpush1.xpose.msra.mxu0 0.0
        %4656 = vmatprep.subr.mxu0 0.0
        %4657 = vmatpush1.xpose.msra.mxu0 0.0
        %4658 = vmatprep.subr.mxu0 0.0
        %4659 = vmatpush1.xpose.msra.mxu0 0.0
        %4660 = vmatprep.subr.mxu0 0.0
        %4661 = vmatpush1.xpose.msra.mxu0 0.0
        %4662 = vmatprep.subr.mxu0 0.0
        %4663 = vmatpush1.xpose.msra.mxu0 0.0
        %4664 = vmatprep.subr.mxu0 0.0
        %v4665 = vand.u32 %v2171, 4294901760
        %v4666 = vsub.f32 %v2171, %v4665
        %v4667 = vand.u32 %v4666, 4294901760
        %4668 = vmatpush1.xpose.msra.mxu0 %v4667
        %4669 = vmatprep.subr.mxu0 0.0
        %v4670 = vand.u32 %v2169, 4294901760
        %v4671 = vsub.f32 %v2169, %v4670
        %v4672 = vand.u32 %v4671, 4294901760
        %4673 = vmatpush1.xpose.msra.mxu0 %v4672
        %4674 = vmatprep.subr.mxu0 0.0
        %4675 = vmatpush2.xpose.msra.mxu0 0.0
        %4676 = vmatprep.subr.mxu0 0.0
        %4677 = vmatpush2.xpose.msra.mxu0 0.0
        %4678 = vmatprep.subr.mxu0 0.0
        %4679 = vmatpush2.xpose.msra.mxu0 0.0
        %4680 = vmatprep.subr.mxu0 0.0
        %4681 = vmatpush2.xpose.msra.mxu0 0.0
        %4682 = vmatprep.subr.mxu0 0.0
        %4683 = vmatpush2.xpose.msra.mxu0 0.0
        %4684 = vmatprep.subr.mxu0 0.0
        %4685 = vmatpush2.xpose.msra.mxu0 0.0
        %4686 = vmatprep.subr.mxu0 0.0
        %4687 = vmatpush2.xpose.msra.mxu0 0.0
        %4688 = vmatprep.subr.mxu0 0.0
        %4689 = vmatpush2.xpose.msra.mxu0 0.0
        %4690 = vmatprep.subr.mxu0 0.0
        %4691 = vmatpush2.xpose.msra.mxu0 0.0
        %4692 = vmatprep.subr.mxu0 0.0
        %4693 = vmatpush2.xpose.msra.mxu0 0.0
        %4694 = vmatprep.subr.mxu0 0.0
        %4695 = vmatpush2.xpose.msra.mxu0 0.0
        %4696 = vmatprep.subr.mxu0 0.0
        %4697 = vmatpush2.xpose.msra.mxu0 0.0
        %4698 = vmatprep.subr.mxu0 0.0
        %4699 = vmatpush2.xpose.msra.mxu0 0.0
        %4700 = vmatprep.subr.mxu0 0.0
        %4701 = vmatpush2.xpose.msra.mxu0 0.0
        %4702 = vmatprep.subr.mxu0 0.0
        %4703 = vmatpush2.xpose.msra.mxu0 0.0
        %4704 = vmatprep.subr.mxu0 0.0
        %4705 = vmatpush2.xpose.msra.mxu0 0.0
        %4706 = vmatprep.mubr.f32.mxu0 0.0
        %v4707 = vand.u32 %v4291, 4294901760
        %4708 = vmatmul.mubr.f32.gmra.mxu0 %v4707
        %v4709 = vpop.f32.mrf.mxu0
        %v4710 = vadd.f32 %v4625, %v4709
        %v4711 = vpop.f32.mrf.mxu0
        %4712 = vmatprep.mubr.f32.mxu0 0.0
        %v4713 = vand.u32 %v4294, 4294901760
        %4714 = vmatmul.mubr.f32.gmra.mxu0 %v4713
        %v4715 = vpop.f32.mrf.mxu0
        %v4716 = vadd.f32 %v4633, %v4715
        %v4717 = vpop.f32.mrf.mxu0
        %4718 = vdwg.mxu0
        %4719 = vmatprep.subr.mxu0 0.0
        %4720 = vmatpush1.xpose.msra.mxu0 0.0
        %4721 = vmatprep.subr.mxu0 0.0
        %4722 = vmatpush1.xpose.msra.mxu0 0.0
        %4723 = vmatprep.subr.mxu0 0.0
        %4724 = vmatpush1.xpose.msra.mxu0 0.0
        %4725 = vmatprep.subr.mxu0 0.0
        %4726 = vmatpush1.xpose.msra.mxu0 0.0
        %4727 = vmatprep.subr.mxu0 0.0
        %4728 = vmatpush1.xpose.msra.mxu0 0.0
        %4729 = vmatprep.subr.mxu0 0.0
        %4730 = vmatpush1.xpose.msra.mxu0 0.0
        %4731 = vmatprep.subr.mxu0 0.0
        %4732 = vmatpush1.xpose.msra.mxu0 0.0
        %4733 = vmatprep.subr.mxu0 0.0
        %4734 = vmatpush1.xpose.msra.mxu0 0.0
        %4735 = vmatprep.subr.mxu0 0.0
        %4736 = vmatpush1.xpose.msra.mxu0 0.0
        %4737 = vmatprep.subr.mxu0 0.0
        %4738 = vmatpush1.xpose.msra.mxu0 0.0
        %4739 = vmatprep.subr.mxu0 0.0
        %4740 = vmatpush1.xpose.msra.mxu0 0.0
        %4741 = vmatprep.subr.mxu0 0.0
        %4742 = vmatpush1.xpose.msra.mxu0 0.0
        %4743 = vmatprep.subr.mxu0 0.0
        %4744 = vmatpush1.xpose.msra.mxu0 0.0
        %4745 = vmatprep.subr.mxu0 0.0
        %4746 = vmatpush1.xpose.msra.mxu0 0.0
        %4747 = vmatprep.subr.mxu0 0.0
        %v4748 = vand.u32 %v2171, 4294901760
        %4749 = vmatpush1.xpose.msra.mxu0 %v4748
        %4750 = vmatprep.subr.mxu0 0.0
        %v4751 = vand.u32 %v2169, 4294901760
        %4752 = vmatpush1.xpose.msra.mxu0 %v4751
        %4753 = vmatprep.subr.mxu0 0.0
        %4754 = vmatpush2.xpose.msra.mxu0 0.0
        %4755 = vmatprep.subr.mxu0 0.0
        %4756 = vmatpush2.xpose.msra.mxu0 0.0
        %4757 = vmatprep.subr.mxu0 0.0
        %4758 = vmatpush2.xpose.msra.mxu0 0.0
        %4759 = vmatprep.subr.mxu0 0.0
        %4760 = vmatpush2.xpose.msra.mxu0 0.0
        %4761 = vmatprep.subr.mxu0 0.0
        %4762 = vmatpush2.xpose.msra.mxu0 0.0
        %4763 = vmatprep.subr.mxu0 0.0
        %4764 = vmatpush2.xpose.msra.mxu0 0.0
        %4765 = vmatprep.subr.mxu0 0.0
        %4766 = vmatpush2.xpose.msra.mxu0 0.0
        %4767 = vmatprep.subr.mxu0 0.0
        %4768 = vmatpush2.xpose.msra.mxu0 0.0
        %4769 = vmatprep.subr.mxu0 0.0
        %4770 = vmatpush2.xpose.msra.mxu0 0.0
        %4771 = vmatprep.subr.mxu0 0.0
        %4772 = vmatpush2.xpose.msra.mxu0 0.0
        %4773 = vmatprep.subr.mxu0 0.0
        %4774 = vmatpush2.xpose.msra.mxu0 0.0
        %4775 = vmatprep.subr.mxu0 0.0
        %4776 = vmatpush2.xpose.msra.mxu0 0.0
        %4777 = vmatprep.subr.mxu0 0.0
        %4778 = vmatpush2.xpose.msra.mxu0 0.0
        %4779 = vmatprep.subr.mxu0 0.0
        %4780 = vmatpush2.xpose.msra.mxu0 0.0
        %4781 = vmatprep.subr.mxu0 0.0
        %4782 = vmatpush2.xpose.msra.mxu0 0.0
        %4783 = vmatprep.subr.mxu0 0.0
        %4784 = vmatpush2.xpose.msra.mxu0 0.0
        %4785 = vmatprep.mubr.f32.mxu0 0.0
        %v4786 = vand.u32 %v4291, 4294901760
        %4787 = vmatmul.mubr.f32.gmra.mxu0 %v4786
        %v4788 = vpop.f32.mrf.mxu0
        %v4789 = vadd.f32 %v4710, %v4788
        %v4790 = vpop.f32.mrf.mxu0
        %4791 = vmatprep.mubr.f32.mxu0 0.0
        %v4792 = vand.u32 %v4294, 4294901760
        %4793 = vmatmul.mubr.f32.gmra.mxu0 %v4792
        %v4794 = vpop.f32.mrf.mxu0
        %v4795 = vadd.f32 %v4716, %v4794
        %v4796 = vpop.f32.mrf.mxu0
        %4797 = vdwg.mxu0
        %v4798 = vmul.f32 %v4789, 0.35355338
        %v4799 = vmul.f32 %v4795, 0.35355338
        %v4800 = vsel %vm2677, %v4798, -inf
        %4801 = vmax.xlane.f32.xlu0 %v4800
        %v4802 = vpop.xlane.xlu0 %4801
        %v4803 = vsel %vm2677, %v4799, -inf
        %4804 = vmax.xlane.f32.xlu0 %v4803
        %v4805 = vpop.xlane.xlu0 %4804
        %v4806 = vsub.f32 %v4798, %v4802
        %v4807 = vsub.f32 %v4799, %v4805
        %v4808 = vmul.f32 %v4806, 1.442695
        %v4809 = vpow.pop %v4808
        %v4810 = vmul.f32 %v4807, 1.442695
        %v4811 = vpow.pop %v4810
        %v4812 = vsel %vm2677, %v4809, 0.0
        %4813 = vadd.xlane.f32.xlu0 %v4812
        %v4814 = vpop.xlane.xlu0 %4813
        %v4815 = vsel %vm2677, %v4811, 0.0
        %4816 = vadd.xlane.f32.xlu0 %v4815
        %v4817 = vpop.xlane.xlu0 %4816
        %v4818 = vrcp.pop %v4814
        %v4819 = vmul.f32 %v4809, %v4818
        %v4820 = vrcp.pop %v4817
        %v4821 = vmul.f32 %v4811, %v4820
        %4823 = vrot.lane.b32.xlu0 %v4287, 64
        %v4824 = vpop.permute.xlu0 %4823
        %v4826 = vmul.f32 %v2146, %v4824
        %v4827 = vmul.f32 %v2147, %v4824
        %4830 = vrot.lane.b32.xlu0 %v4826, 64
        %v4831 = vpop.permute.xlu0 %4830
        %4832 = vrot.lane.b32.xlu0 %v4827, 64
        %v4833 = vpop.permute.xlu0 %4832
        %v4837 = vsel %vm2677, %v4819, 0
        %v4840 = vsel %vm2677, %v4821, 0
        %4842 = vmatprep.subr.mxu0 0.0
        %4843 = vmatpush1.msra.mxu0 0.0
        %4844 = vmatprep.subr.mxu0 0.0
        %4845 = vmatpush1.msra.mxu0 0.0
        %4846 = vmatprep.subr.mxu0 0.0
        %4847 = vmatpush1.msra.mxu0 0.0
        %4848 = vmatprep.subr.mxu0 0.0
        %4849 = vmatpush1.msra.mxu0 0.0
        %4850 = vmatprep.subr.mxu0 0.0
        %4851 = vmatpush1.msra.mxu0 0.0
        %4852 = vmatprep.subr.mxu0 0.0
        %4853 = vmatpush1.msra.mxu0 0.0
        %4854 = vmatprep.subr.mxu0 0.0
        %4855 = vmatpush1.msra.mxu0 0.0
        %4856 = vmatprep.subr.mxu0 0.0
        %4857 = vmatpush1.msra.mxu0 0.0
        %4858 = vmatprep.subr.mxu0 0.0
        %4859 = vmatpush1.msra.mxu0 0.0
        %4860 = vmatprep.subr.mxu0 0.0
        %4861 = vmatpush1.msra.mxu0 0.0
        %4862 = vmatprep.subr.mxu0 0.0
        %4863 = vmatpush1.msra.mxu0 0.0
        %4864 = vmatprep.subr.mxu0 0.0
        %4865 = vmatpush1.msra.mxu0 0.0
        %4866 = vmatprep.subr.mxu0 0.0
        %4867 = vmatpush1.msra.mxu0 0.0
        %4868 = vmatprep.subr.mxu0 0.0
        %4869 = vmatpush1.msra.mxu0 0.0
        %4870 = vmatprep.subr.mxu0 0.0
        %v4871 = vand.u32 %v4833, 4294901760
        %4872 = vmatpush1.msra.mxu0 %v4871
        %4873 = vmatprep.subr.mxu0 0.0
        %v4874 = vand.u32 %v4831, 4294901760
        %4875 = vmatpush1.msra.mxu0 %v4874
        %4876 = vmatprep.subr.mxu0 0.0
        %4877 = vmatpush2.msra.mxu0 0.0
        %4878 = vmatprep.subr.mxu0 0.0
        %4879 = vmatpush2.msra.mxu0 0.0
        %4880 = vmatprep.subr.mxu0 0.0
        %4881 = vmatpush2.msra.mxu0 0.0
        %4882 = vmatprep.subr.mxu0 0.0
        %4883 = vmatpush2.msra.mxu0 0.0
        %4884 = vmatprep.subr.mxu0 0.0
        %4885 = vmatpush2.msra.mxu0 0.0
        %4886 = vmatprep.subr.mxu0 0.0
        %4887 = vmatpush2.msra.mxu0 0.0
        %4888 = vmatprep.subr.mxu0 0.0
        %4889 = vmatpush2.msra.mxu0 0.0
        %4890 = vmatprep.subr.mxu0 0.0
        %4891 = vmatpush2.msra.mxu0 0.0
        %4892 = vmatprep.subr.mxu0 0.0
        %4893 = vmatpush2.msra.mxu0 0.0
        %4894 = vmatprep.subr.mxu0 0.0
        %4895 = vmatpush2.msra.mxu0 0.0
        %4896 = vmatprep.subr.mxu0 0.0
        %4897 = vmatpush2.msra.mxu0 0.0
        %4898 = vmatprep.subr.mxu0 0.0
        %4899 = vmatpush2.msra.mxu0 0.0
        %4900 = vmatprep.subr.mxu0 0.0
        %4901 = vmatpush2.msra.mxu0 0.0
        %4902 = vmatprep.subr.mxu0 0.0
        %4903 = vmatpush2.msra.mxu0 0.0
        %4904 = vmatprep.subr.mxu0 0.0
        %4905 = vmatpush2.msra.mxu0 0.0
        %4906 = vmatprep.subr.mxu0 0.0
        %4907 = vmatpush2.msra.mxu0 0.0
        %4908 = vmatprep.mubr.f32.mxu0 0.0
        %v4909 = vand.u32 %v4837, 4294901760
        %v4910 = vsub.f32 %v4837, %v4909
        %v4911 = vand.u32 %v4910, 4294901760
        %v4912 = vsub.f32 %v4910, %v4911
        %v4913 = vand.u32 %v4912, 4294901760
        %4914 = vmatmul.mubr.f32.gmra.mxu0 %v4913
        %v4915 = vpop.f32.mrf.mxu0
        %v4916 = vadd.f32 0.0, %v4915
        %v4917 = vpop.f32.mrf.mxu0
        %4918 = vmatprep.mubr.f32.mxu0 0.0
        %v4919 = vand.u32 %v4840, 4294901760
        %v4920 = vsub.f32 %v4840, %v4919
        %v4921 = vand.u32 %v4920, 4294901760
        %v4922 = vsub.f32 %v4920, %v4921
        %v4923 = vand.u32 %v4922, 4294901760
        %4924 = vmatmul.mubr.f32.gmra.mxu0 %v4923
        %v4925 = vpop.f32.mrf.mxu0
        %v4926 = vadd.f32 0.0, %v4925
        %v4927 = vpop.f32.mrf.mxu0
        %4928 = vdwg.mxu0
        %4929 = vmatprep.subr.mxu0 0.0
        %4930 = vmatpush1.msra.mxu0 0.0
        %4931 = vmatprep.subr.mxu0 0.0
        %4932 = vmatpush1.msra.mxu0 0.0
        %4933 = vmatprep.subr.mxu0 0.0
        %4934 = vmatpush1.msra.mxu0 0.0
        %4935 = vmatprep.subr.mxu0 0.0
        %4936 = vmatpush1.msra.mxu0 0.0
        %4937 = vmatprep.subr.mxu0 0.0
        %4938 = vmatpush1.msra.mxu0 0.0
        %4939 = vmatprep.subr.mxu0 0.0
        %4940 = vmatpush1.msra.mxu0 0.0
        %4941 = vmatprep.subr.mxu0 0.0
        %4942 = vmatpush1.msra.mxu0 0.0
        %4943 = vmatprep.subr.mxu0 0.0
        %4944 = vmatpush1.msra.mxu0 0.0
        %4945 = vmatprep.subr.mxu0 0.0
        %4946 = vmatpush1.msra.mxu0 0.0
        %4947 = vmatprep.subr.mxu0 0.0
        %4948 = vmatpush1.msra.mxu0 0.0
        %4949 = vmatprep.subr.mxu0 0.0
        %4950 = vmatpush1.msra.mxu0 0.0
        %4951 = vmatprep.subr.mxu0 0.0
        %4952 = vmatpush1.msra.mxu0 0.0
        %4953 = vmatprep.subr.mxu0 0.0
        %4954 = vmatpush1.msra.mxu0 0.0
        %4955 = vmatprep.subr.mxu0 0.0
        %4956 = vmatpush1.msra.mxu0 0.0
        %4957 = vmatprep.subr.mxu0 0.0
        %v4958 = vand.u32 %v4833, 4294901760
        %v4959 = vsub.f32 %v4833, %v4958
        %v4960 = vand.u32 %v4959, 4294901760
        %v4961 = vsub.f32 %v4959, %v4960
        %v4962 = vand.u32 %v4961, 4294901760
        %4963 = vmatpush1.msra.mxu0 %v4962
        %4964 = vmatprep.subr.mxu0 0.0
        %v4965 = vand.u32 %v4831, 4294901760
        %v4966 = vsub.f32 %v4831, %v4965
        %v4967 = vand.u32 %v4966, 4294901760
        %v4968 = vsub.f32 %v4966, %v4967
        %v4969 = vand.u32 %v4968, 4294901760
        %4970 = vmatpush1.msra.mxu0 %v4969
        %4971 = vmatprep.subr.mxu0 0.0
        %4972 = vmatpush2.msra.mxu0 0.0
        %4973 = vmatprep.subr.mxu0 0.0
        %4974 = vmatpush2.msra.mxu0 0.0
        %4975 = vmatprep.subr.mxu0 0.0
        %4976 = vmatpush2.msra.mxu0 0.0
        %4977 = vmatprep.subr.mxu0 0.0
        %4978 = vmatpush2.msra.mxu0 0.0
        %4979 = vmatprep.subr.mxu0 0.0
        %4980 = vmatpush2.msra.mxu0 0.0
        %4981 = vmatprep.subr.mxu0 0.0
        %4982 = vmatpush2.msra.mxu0 0.0
        %4983 = vmatprep.subr.mxu0 0.0
        %4984 = vmatpush2.msra.mxu0 0.0
        %4985 = vmatprep.subr.mxu0 0.0
        %4986 = vmatpush2.msra.mxu0 0.0
        %4987 = vmatprep.subr.mxu0 0.0
        %4988 = vmatpush2.msra.mxu0 0.0
        %4989 = vmatprep.subr.mxu0 0.0
        %4990 = vmatpush2.msra.mxu0 0.0
        %4991 = vmatprep.subr.mxu0 0.0
        %4992 = vmatpush2.msra.mxu0 0.0
        %4993 = vmatprep.subr.mxu0 0.0
        %4994 = vmatpush2.msra.mxu0 0.0
        %4995 = vmatprep.subr.mxu0 0.0
        %4996 = vmatpush2.msra.mxu0 0.0
        %4997 = vmatprep.subr.mxu0 0.0
        %4998 = vmatpush2.msra.mxu0 0.0
        %4999 = vmatprep.subr.mxu0 0.0
        %5000 = vmatpush2.msra.mxu0 0.0
        %5001 = vmatprep.subr.mxu0 0.0
        %5002 = vmatpush2.msra.mxu0 0.0
        %5003 = vmatprep.mubr.f32.mxu0 0.0
        %v5004 = vand.u32 %v4837, 4294901760
        %5005 = vmatmul.mubr.f32.gmra.mxu0 %v5004
        %v5006 = vpop.f32.mrf.mxu0
        %v5007 = vadd.f32 %v4916, %v5006
        %v5008 = vpop.f32.mrf.mxu0
        %5009 = vmatprep.mubr.f32.mxu0 0.0
        %v5010 = vand.u32 %v4840, 4294901760
        %5011 = vmatmul.mubr.f32.gmra.mxu0 %v5010
        %v5012 = vpop.f32.mrf.mxu0
        %v5013 = vadd.f32 %v4926, %v5012
        %v5014 = vpop.f32.mrf.mxu0
        %5015 = vdwg.mxu0
        %5016 = vmatprep.subr.mxu0 0.0
        %5017 = vmatpush1.msra.mxu0 0.0
        %5018 = vmatprep.subr.mxu0 0.0
        %5019 = vmatpush1.msra.mxu0 0.0
        %5020 = vmatprep.subr.mxu0 0.0
        %5021 = vmatpush1.msra.mxu0 0.0
        %5022 = vmatprep.subr.mxu0 0.0
        %5023 = vmatpush1.msra.mxu0 0.0
        %5024 = vmatprep.subr.mxu0 0.0
        %5025 = vmatpush1.msra.mxu0 0.0
        %5026 = vmatprep.subr.mxu0 0.0
        %5027 = vmatpush1.msra.mxu0 0.0
        %5028 = vmatprep.subr.mxu0 0.0
        %5029 = vmatpush1.msra.mxu0 0.0
        %5030 = vmatprep.subr.mxu0 0.0
        %5031 = vmatpush1.msra.mxu0 0.0
        %5032 = vmatprep.subr.mxu0 0.0
        %5033 = vmatpush1.msra.mxu0 0.0
        %5034 = vmatprep.subr.mxu0 0.0
        %5035 = vmatpush1.msra.mxu0 0.0
        %5036 = vmatprep.subr.mxu0 0.0
        %5037 = vmatpush1.msra.mxu0 0.0
        %5038 = vmatprep.subr.mxu0 0.0
        %5039 = vmatpush1.msra.mxu0 0.0
        %5040 = vmatprep.subr.mxu0 0.0
        %5041 = vmatpush1.msra.mxu0 0.0
        %5042 = vmatprep.subr.mxu0 0.0
        %5043 = vmatpush1.msra.mxu0 0.0
        %5044 = vmatprep.subr.mxu0 0.0
        %v5045 = vand.u32 %v4833, 4294901760
        %v5046 = vsub.f32 %v4833, %v5045
        %5047 = vmatpush1.msra.mxu0 %v5046
        %5048 = vmatprep.subr.mxu0 0.0
        %v5049 = vand.u32 %v4831, 4294901760
        %v5050 = vsub.f32 %v4831, %v5049
        %5051 = vmatpush1.msra.mxu0 %v5050
        %5052 = vmatprep.subr.mxu0 0.0
        %5053 = vmatpush2.msra.mxu0 0.0
        %5054 = vmatprep.subr.mxu0 0.0
        %5055 = vmatpush2.msra.mxu0 0.0
        %5056 = vmatprep.subr.mxu0 0.0
        %5057 = vmatpush2.msra.mxu0 0.0
        %5058 = vmatprep.subr.mxu0 0.0
        %5059 = vmatpush2.msra.mxu0 0.0
        %5060 = vmatprep.subr.mxu0 0.0
        %5061 = vmatpush2.msra.mxu0 0.0
        %5062 = vmatprep.subr.mxu0 0.0
        %5063 = vmatpush2.msra.mxu0 0.0
        %5064 = vmatprep.subr.mxu0 0.0
        %5065 = vmatpush2.msra.mxu0 0.0
        %5066 = vmatprep.subr.mxu0 0.0
        %5067 = vmatpush2.msra.mxu0 0.0
        %5068 = vmatprep.subr.mxu0 0.0
        %5069 = vmatpush2.msra.mxu0 0.0
        %5070 = vmatprep.subr.mxu0 0.0
        %5071 = vmatpush2.msra.mxu0 0.0
        %5072 = vmatprep.subr.mxu0 0.0
        %5073 = vmatpush2.msra.mxu0 0.0
        %5074 = vmatprep.subr.mxu0 0.0
        %5075 = vmatpush2.msra.mxu0 0.0
        %5076 = vmatprep.subr.mxu0 0.0
        %5077 = vmatpush2.msra.mxu0 0.0
        %5078 = vmatprep.subr.mxu0 0.0
        %5079 = vmatpush2.msra.mxu0 0.0
        %5080 = vmatprep.subr.mxu0 0.0
        %5081 = vmatpush2.msra.mxu0 0.0
        %5082 = vmatprep.subr.mxu0 0.0
        %5083 = vmatpush2.msra.mxu0 0.0
        %5084 = vmatprep.mubr.f32.mxu0 0.0
        %v5085 = vand.u32 %v4837, 4294901760
        %v5086 = vsub.f32 %v4837, %v5085
        %5087 = vmatmul.mubr.f32.gmra.mxu0 %v5086
        %v5088 = vpop.f32.mrf.mxu0
        %v5089 = vadd.f32 %v5007, %v5088
        %v5090 = vpop.f32.mrf.mxu0
        %5091 = vmatprep.mubr.f32.mxu0 0.0
        %v5092 = vand.u32 %v4840, 4294901760
        %v5093 = vsub.f32 %v4840, %v5092
        %5094 = vmatmul.mubr.f32.gmra.mxu0 %v5093
        %v5095 = vpop.f32.mrf.mxu0
        %v5096 = vadd.f32 %v5013, %v5095
        %v5097 = vpop.f32.mrf.mxu0
        %5098 = vdwg.mxu0
        %5099 = vmatprep.subr.mxu0 0.0
        %5100 = vmatpush1.msra.mxu0 0.0
        %5101 = vmatprep.subr.mxu0 0.0
        %5102 = vmatpush1.msra.mxu0 0.0
        %5103 = vmatprep.subr.mxu0 0.0
        %5104 = vmatpush1.msra.mxu0 0.0
        %5105 = vmatprep.subr.mxu0 0.0
        %5106 = vmatpush1.msra.mxu0 0.0
        %5107 = vmatprep.subr.mxu0 0.0
        %5108 = vmatpush1.msra.mxu0 0.0
        %5109 = vmatprep.subr.mxu0 0.0
        %5110 = vmatpush1.msra.mxu0 0.0
        %5111 = vmatprep.subr.mxu0 0.0
        %5112 = vmatpush1.msra.mxu0 0.0
        %5113 = vmatprep.subr.mxu0 0.0
        %5114 = vmatpush1.msra.mxu0 0.0
        %5115 = vmatprep.subr.mxu0 0.0
        %5116 = vmatpush1.msra.mxu0 0.0
        %5117 = vmatprep.subr.mxu0 0.0
        %5118 = vmatpush1.msra.mxu0 0.0
        %5119 = vmatprep.subr.mxu0 0.0
        %5120 = vmatpush1.msra.mxu0 0.0
        %5121 = vmatprep.subr.mxu0 0.0
        %5122 = vmatpush1.msra.mxu0 0.0
        %5123 = vmatprep.subr.mxu0 0.0
        %5124 = vmatpush1.msra.mxu0 0.0
        %5125 = vmatprep.subr.mxu0 0.0
        %5126 = vmatpush1.msra.mxu0 0.0
        %5127 = vmatprep.subr.mxu0 0.0
        %v5128 = vand.u32 %v4833, 4294901760
        %5129 = vmatpush1.msra.mxu0 %v5128
        %5130 = vmatprep.subr.mxu0 0.0
        %v5131 = vand.u32 %v4831, 4294901760
        %5132 = vmatpush1.msra.mxu0 %v5131
        %5133 = vmatprep.subr.mxu0 0.0
        %5134 = vmatpush2.msra.mxu0 0.0
        %5135 = vmatprep.subr.mxu0 0.0
        %5136 = vmatpush2.msra.mxu0 0.0
        %5137 = vmatprep.subr.mxu0 0.0
        %5138 = vmatpush2.msra.mxu0 0.0
        %5139 = vmatprep.subr.mxu0 0.0
        %5140 = vmatpush2.msra.mxu0 0.0
        %5141 = vmatprep.subr.mxu0 0.0
        %5142 = vmatpush2.msra.mxu0 0.0
        %5143 = vmatprep.subr.mxu0 0.0
        %5144 = vmatpush2.msra.mxu0 0.0
        %5145 = vmatprep.subr.mxu0 0.0
        %5146 = vmatpush2.msra.mxu0 0.0
        %5147 = vmatprep.subr.mxu0 0.0
        %5148 = vmatpush2.msra.mxu0 0.0
        %5149 = vmatprep.subr.mxu0 0.0
        %5150 = vmatpush2.msra.mxu0 0.0
        %5151 = vmatprep.subr.mxu0 0.0
        %5152 = vmatpush2.msra.mxu0 0.0
        %5153 = vmatprep.subr.mxu0 0.0
        %5154 = vmatpush2.msra.mxu0 0.0
        %5155 = vmatprep.subr.mxu0 0.0
        %5156 = vmatpush2.msra.mxu0 0.0
        %5157 = vmatprep.subr.mxu0 0.0
        %5158 = vmatpush2.msra.mxu0 0.0
        %5159 = vmatprep.subr.mxu0 0.0
        %5160 = vmatpush2.msra.mxu0 0.0
        %5161 = vmatprep.subr.mxu0 0.0
        %5162 = vmatpush2.msra.mxu0 0.0
        %5163 = vmatprep.subr.mxu0 0.0
        %5164 = vmatpush2.msra.mxu0 0.0
        %5165 = vmatprep.mubr.f32.mxu0 0.0
        %v5166 = vand.u32 %v4837, 4294901760
        %v5167 = vsub.f32 %v4837, %v5166
        %v5168 = vand.u32 %v5167, 4294901760
        %5169 = vmatmul.mubr.f32.gmra.mxu0 %v5168
        %v5170 = vpop.f32.mrf.mxu0
        %v5171 = vadd.f32 %v5089, %v5170
        %v5172 = vpop.f32.mrf.mxu0
        %5173 = vmatprep.mubr.f32.mxu0 0.0
        %v5174 = vand.u32 %v4840, 4294901760
        %v5175 = vsub.f32 %v4840, %v5174
        %v5176 = vand.u32 %v5175, 4294901760
        %5177 = vmatmul.mubr.f32.gmra.mxu0 %v5176
        %v5178 = vpop.f32.mrf.mxu0
        %v5179 = vadd.f32 %v5096, %v5178
        %v5180 = vpop.f32.mrf.mxu0
        %5181 = vdwg.mxu0
        %5182 = vmatprep.subr.mxu0 0.0
        %5183 = vmatpush1.msra.mxu0 0.0
        %5184 = vmatprep.subr.mxu0 0.0
        %5185 = vmatpush1.msra.mxu0 0.0
        %5186 = vmatprep.subr.mxu0 0.0
        %5187 = vmatpush1.msra.mxu0 0.0
        %5188 = vmatprep.subr.mxu0 0.0
        %5189 = vmatpush1.msra.mxu0 0.0
        %5190 = vmatprep.subr.mxu0 0.0
        %5191 = vmatpush1.msra.mxu0 0.0
        %5192 = vmatprep.subr.mxu0 0.0
        %5193 = vmatpush1.msra.mxu0 0.0
        %5194 = vmatprep.subr.mxu0 0.0
        %5195 = vmatpush1.msra.mxu0 0.0
        %5196 = vmatprep.subr.mxu0 0.0
        %5197 = vmatpush1.msra.mxu0 0.0
        %5198 = vmatprep.subr.mxu0 0.0
        %5199 = vmatpush1.msra.mxu0 0.0
        %5200 = vmatprep.subr.mxu0 0.0
        %5201 = vmatpush1.msra.mxu0 0.0
        %5202 = vmatprep.subr.mxu0 0.0
        %5203 = vmatpush1.msra.mxu0 0.0
        %5204 = vmatprep.subr.mxu0 0.0
        %5205 = vmatpush1.msra.mxu0 0.0
        %5206 = vmatprep.subr.mxu0 0.0
        %5207 = vmatpush1.msra.mxu0 0.0
        %5208 = vmatprep.subr.mxu0 0.0
        %5209 = vmatpush1.msra.mxu0 0.0
        %5210 = vmatprep.subr.mxu0 0.0
        %v5211 = vand.u32 %v4833, 4294901760
        %v5212 = vsub.f32 %v4833, %v5211
        %v5213 = vand.u32 %v5212, 4294901760
        %5214 = vmatpush1.msra.mxu0 %v5213
        %5215 = vmatprep.subr.mxu0 0.0
        %v5216 = vand.u32 %v4831, 4294901760
        %v5217 = vsub.f32 %v4831, %v5216
        %v5218 = vand.u32 %v5217, 4294901760
        %5219 = vmatpush1.msra.mxu0 %v5218
        %5220 = vmatprep.subr.mxu0 0.0
        %5221 = vmatpush2.msra.mxu0 0.0
        %5222 = vmatprep.subr.mxu0 0.0
        %5223 = vmatpush2.msra.mxu0 0.0
        %5224 = vmatprep.subr.mxu0 0.0
        %5225 = vmatpush2.msra.mxu0 0.0
        %5226 = vmatprep.subr.mxu0 0.0
        %5227 = vmatpush2.msra.mxu0 0.0
        %5228 = vmatprep.subr.mxu0 0.0
        %5229 = vmatpush2.msra.mxu0 0.0
        %5230 = vmatprep.subr.mxu0 0.0
        %5231 = vmatpush2.msra.mxu0 0.0
        %5232 = vmatprep.subr.mxu0 0.0
        %5233 = vmatpush2.msra.mxu0 0.0
        %5234 = vmatprep.subr.mxu0 0.0
        %5235 = vmatpush2.msra.mxu0 0.0
        %5236 = vmatprep.subr.mxu0 0.0
        %5237 = vmatpush2.msra.mxu0 0.0
        %5238 = vmatprep.subr.mxu0 0.0
        %5239 = vmatpush2.msra.mxu0 0.0
        %5240 = vmatprep.subr.mxu0 0.0
        %5241 = vmatpush2.msra.mxu0 0.0
        %5242 = vmatprep.subr.mxu0 0.0
        %5243 = vmatpush2.msra.mxu0 0.0
        %5244 = vmatprep.subr.mxu0 0.0
        %5245 = vmatpush2.msra.mxu0 0.0
        %5246 = vmatprep.subr.mxu0 0.0
        %5247 = vmatpush2.msra.mxu0 0.0
        %5248 = vmatprep.subr.mxu0 0.0
        %5249 = vmatpush2.msra.mxu0 0.0
        %5250 = vmatprep.subr.mxu0 0.0
        %5251 = vmatpush2.msra.mxu0 0.0
        %5252 = vmatprep.mubr.f32.mxu0 0.0
        %v5253 = vand.u32 %v4837, 4294901760
        %5254 = vmatmul.mubr.f32.gmra.mxu0 %v5253
        %v5255 = vpop.f32.mrf.mxu0
        %v5256 = vadd.f32 %v5171, %v5255
        %v5257 = vpop.f32.mrf.mxu0
        %5258 = vmatprep.mubr.f32.mxu0 0.0
        %v5259 = vand.u32 %v4840, 4294901760
        %5260 = vmatmul.mubr.f32.gmra.mxu0 %v5259
        %v5261 = vpop.f32.mrf.mxu0
        %v5262 = vadd.f32 %v5179, %v5261
        %v5263 = vpop.f32.mrf.mxu0
        %5264 = vdwg.mxu0
        %5265 = vmatprep.subr.mxu0 0.0
        %5266 = vmatpush1.msra.mxu0 0.0
        %5267 = vmatprep.subr.mxu0 0.0
        %5268 = vmatpush1.msra.mxu0 0.0
        %5269 = vmatprep.subr.mxu0 0.0
        %5270 = vmatpush1.msra.mxu0 0.0
        %5271 = vmatprep.subr.mxu0 0.0
        %5272 = vmatpush1.msra.mxu0 0.0
        %5273 = vmatprep.subr.mxu0 0.0
        %5274 = vmatpush1.msra.mxu0 0.0
        %5275 = vmatprep.subr.mxu0 0.0
        %5276 = vmatpush1.msra.mxu0 0.0
        %5277 = vmatprep.subr.mxu0 0.0
        %5278 = vmatpush1.msra.mxu0 0.0
        %5279 = vmatprep.subr.mxu0 0.0
        %5280 = vmatpush1.msra.mxu0 0.0
        %5281 = vmatprep.subr.mxu0 0.0
        %5282 = vmatpush1.msra.mxu0 0.0
        %5283 = vmatprep.subr.mxu0 0.0
        %5284 = vmatpush1.msra.mxu0 0.0
        %5285 = vmatprep.subr.mxu0 0.0
        %5286 = vmatpush1.msra.mxu0 0.0
        %5287 = vmatprep.subr.mxu0 0.0
        %5288 = vmatpush1.msra.mxu0 0.0
        %5289 = vmatprep.subr.mxu0 0.0
        %5290 = vmatpush1.msra.mxu0 0.0
        %5291 = vmatprep.subr.mxu0 0.0
        %5292 = vmatpush1.msra.mxu0 0.0
        %5293 = vmatprep.subr.mxu0 0.0
        %v5294 = vand.u32 %v4833, 4294901760
        %5295 = vmatpush1.msra.mxu0 %v5294
        %5296 = vmatprep.subr.mxu0 0.0
        %v5297 = vand.u32 %v4831, 4294901760
        %5298 = vmatpush1.msra.mxu0 %v5297
        %5299 = vmatprep.subr.mxu0 0.0
        %5300 = vmatpush2.msra.mxu0 0.0
        %5301 = vmatprep.subr.mxu0 0.0
        %5302 = vmatpush2.msra.mxu0 0.0
        %5303 = vmatprep.subr.mxu0 0.0
        %5304 = vmatpush2.msra.mxu0 0.0
        %5305 = vmatprep.subr.mxu0 0.0
        %5306 = vmatpush2.msra.mxu0 0.0
        %5307 = vmatprep.subr.mxu0 0.0
        %5308 = vmatpush2.msra.mxu0 0.0
        %5309 = vmatprep.subr.mxu0 0.0
        %5310 = vmatpush2.msra.mxu0 0.0
        %5311 = vmatprep.subr.mxu0 0.0
        %5312 = vmatpush2.msra.mxu0 0.0
        %5313 = vmatprep.subr.mxu0 0.0
        %5314 = vmatpush2.msra.mxu0 0.0
        %5315 = vmatprep.subr.mxu0 0.0
        %5316 = vmatpush2.msra.mxu0 0.0
        %5317 = vmatprep.subr.mxu0 0.0
        %5318 = vmatpush2.msra.mxu0 0.0
        %5319 = vmatprep.subr.mxu0 0.0
        %5320 = vmatpush2.msra.mxu0 0.0
        %5321 = vmatprep.subr.mxu0 0.0
        %5322 = vmatpush2.msra.mxu0 0.0
        %5323 = vmatprep.subr.mxu0 0.0
        %5324 = vmatpush2.msra.mxu0 0.0
        %5325 = vmatprep.subr.mxu0 0.0
        %5326 = vmatpush2.msra.mxu0 0.0
        %5327 = vmatprep.subr.mxu0 0.0
        %5328 = vmatpush2.msra.mxu0 0.0
        %5329 = vmatprep.subr.mxu0 0.0
        %5330 = vmatpush2.msra.mxu0 0.0
        %5331 = vmatprep.mubr.f32.mxu0 0.0
        %v5332 = vand.u32 %v4837, 4294901760
        %5333 = vmatmul.mubr.f32.gmra.mxu0 %v5332
        %v5334 = vpop.f32.mrf.mxu0
        %v5335 = vadd.f32 %v5256, %v5334
        %v5336 = vpop.f32.mrf.mxu0
        %5337 = vmatprep.mubr.f32.mxu0 0.0
        %v5338 = vand.u32 %v4840, 4294901760
        %5339 = vmatmul.mubr.f32.gmra.mxu0 %v5338
        %v5340 = vpop.f32.mrf.mxu0
        %v5341 = vadd.f32 %v5262, %v5340
        %v5342 = vpop.f32.mrf.mxu0
        %5343 = vdwg.mxu0
        %v5344 = vadd.f32 %v4274, %v5335
        %v5345 = vadd.f32 %v4280, %v5341
        %vm5346 = vcmp.ge.s32.totalorder %v2149, 24
        %vm5347 = vcmp.lt.s32.totalorder %v2149, 32
        %vm5348 = vmand %vm5346, %vm5347
        %v5349 = vsel %vm5348, 1, 0
        %v5350 = vcvt.s32.f32 %v5349
        %v5351 = vmul.f32 %v2126, %v5350
        %v5352 = vmul.f32 %v2127, %v5350
        %v5354 = vsel %vm1418, %v5351, 0
        %v5357 = vsel %vm1418, %v5352, 0
        %5359 = vmatprep.subr.mxu0 0.0
        %5360 = vmatpush1.xpose.msra.mxu0 0.0
        %5361 = vmatprep.subr.mxu0 0.0
        %5362 = vmatpush1.xpose.msra.mxu0 0.0
        %5363 = vmatprep.subr.mxu0 0.0
        %5364 = vmatpush1.xpose.msra.mxu0 0.0
        %5365 = vmatprep.subr.mxu0 0.0
        %5366 = vmatpush1.xpose.msra.mxu0 0.0
        %5367 = vmatprep.subr.mxu0 0.0
        %5368 = vmatpush1.xpose.msra.mxu0 0.0
        %5369 = vmatprep.subr.mxu0 0.0
        %5370 = vmatpush1.xpose.msra.mxu0 0.0
        %5371 = vmatprep.subr.mxu0 0.0
        %5372 = vmatpush1.xpose.msra.mxu0 0.0
        %5373 = vmatprep.subr.mxu0 0.0
        %5374 = vmatpush1.xpose.msra.mxu0 0.0
        %5375 = vmatprep.subr.mxu0 0.0
        %5376 = vmatpush1.xpose.msra.mxu0 0.0
        %5377 = vmatprep.subr.mxu0 0.0
        %5378 = vmatpush1.xpose.msra.mxu0 0.0
        %5379 = vmatprep.subr.mxu0 0.0
        %5380 = vmatpush1.xpose.msra.mxu0 0.0
        %5381 = vmatprep.subr.mxu0 0.0
        %5382 = vmatpush1.xpose.msra.mxu0 0.0
        %5383 = vmatprep.subr.mxu0 0.0
        %5384 = vmatpush1.xpose.msra.mxu0 0.0
        %5385 = vmatprep.subr.mxu0 0.0
        %5386 = vmatpush1.xpose.msra.mxu0 0.0
        %5387 = vmatprep.subr.mxu0 0.0
        %v5388 = vand.u32 %v2171, 4294901760
        %5389 = vmatpush1.xpose.msra.mxu0 %v5388
        %5390 = vmatprep.subr.mxu0 0.0
        %v5391 = vand.u32 %v2169, 4294901760
        %5392 = vmatpush1.xpose.msra.mxu0 %v5391
        %5393 = vmatprep.subr.mxu0 0.0
        %5394 = vmatpush2.xpose.msra.mxu0 0.0
        %5395 = vmatprep.subr.mxu0 0.0
        %5396 = vmatpush2.xpose.msra.mxu0 0.0
        %5397 = vmatprep.subr.mxu0 0.0
        %5398 = vmatpush2.xpose.msra.mxu0 0.0
        %5399 = vmatprep.subr.mxu0 0.0
        %5400 = vmatpush2.xpose.msra.mxu0 0.0
        %5401 = vmatprep.subr.mxu0 0.0
        %5402 = vmatpush2.xpose.msra.mxu0 0.0
        %5403 = vmatprep.subr.mxu0 0.0
        %5404 = vmatpush2.xpose.msra.mxu0 0.0
        %5405 = vmatprep.subr.mxu0 0.0
        %5406 = vmatpush2.xpose.msra.mxu0 0.0
        %5407 = vmatprep.subr.mxu0 0.0
        %5408 = vmatpush2.xpose.msra.mxu0 0.0
        %5409 = vmatprep.subr.mxu0 0.0
        %5410 = vmatpush2.xpose.msra.mxu0 0.0
        %5411 = vmatprep.subr.mxu0 0.0
        %5412 = vmatpush2.xpose.msra.mxu0 0.0
        %5413 = vmatprep.subr.mxu0 0.0
        %5414 = vmatpush2.xpose.msra.mxu0 0.0
        %5415 = vmatprep.subr.mxu0 0.0
        %5416 = vmatpush2.xpose.msra.mxu0 0.0
        %5417 = vmatprep.subr.mxu0 0.0
        %5418 = vmatpush2.xpose.msra.mxu0 0.0
        %5419 = vmatprep.subr.mxu0 0.0
        %5420 = vmatpush2.xpose.msra.mxu0 0.0
        %5421 = vmatprep.subr.mxu0 0.0
        %5422 = vmatpush2.xpose.msra.mxu0 0.0
        %5423 = vmatprep.subr.mxu0 0.0
        %5424 = vmatpush2.xpose.msra.mxu0 0.0
        %5425 = vmatprep.mubr.f32.mxu0 0.0
        %v5426 = vand.u32 %v5354, 4294901760
        %v5427 = vsub.f32 %v5354, %v5426
        %v5428 = vand.u32 %v5427, 4294901760
        %v5429 = vsub.f32 %v5427, %v5428
        %v5430 = vand.u32 %v5429, 4294901760
        %5431 = vmatmul.mubr.f32.gmra.mxu0 %v5430
        %v5432 = vpop.f32.mrf.mxu0
        %v5433 = vadd.f32 0.0, %v5432
        %v5434 = vpop.f32.mrf.mxu0
        %5435 = vmatprep.mubr.f32.mxu0 0.0
        %v5436 = vand.u32 %v5357, 4294901760
        %v5437 = vsub.f32 %v5357, %v5436
        %v5438 = vand.u32 %v5437, 4294901760
        %v5439 = vsub.f32 %v5437, %v5438
        %v5440 = vand.u32 %v5439, 4294901760
        %5441 = vmatmul.mubr.f32.gmra.mxu0 %v5440
        %v5442 = vpop.f32.mrf.mxu0
        %v5443 = vadd.f32 0.0, %v5442
        %v5444 = vpop.f32.mrf.mxu0
        %5445 = vdwg.mxu0
        %5446 = vmatprep.subr.mxu0 0.0
        %5447 = vmatpush1.xpose.msra.mxu0 0.0
        %5448 = vmatprep.subr.mxu0 0.0
        %5449 = vmatpush1.xpose.msra.mxu0 0.0
        %5450 = vmatprep.subr.mxu0 0.0
        %5451 = vmatpush1.xpose.msra.mxu0 0.0
        %5452 = vmatprep.subr.mxu0 0.0
        %5453 = vmatpush1.xpose.msra.mxu0 0.0
        %5454 = vmatprep.subr.mxu0 0.0
        %5455 = vmatpush1.xpose.msra.mxu0 0.0
        %5456 = vmatprep.subr.mxu0 0.0
        %5457 = vmatpush1.xpose.msra.mxu0 0.0
        %5458 = vmatprep.subr.mxu0 0.0
        %5459 = vmatpush1.xpose.msra.mxu0 0.0
        %5460 = vmatprep.subr.mxu0 0.0
        %5461 = vmatpush1.xpose.msra.mxu0 0.0
        %5462 = vmatprep.subr.mxu0 0.0
        %5463 = vmatpush1.xpose.msra.mxu0 0.0
        %5464 = vmatprep.subr.mxu0 0.0
        %5465 = vmatpush1.xpose.msra.mxu0 0.0
        %5466 = vmatprep.subr.mxu0 0.0
        %5467 = vmatpush1.xpose.msra.mxu0 0.0
        %5468 = vmatprep.subr.mxu0 0.0
        %5469 = vmatpush1.xpose.msra.mxu0 0.0
        %5470 = vmatprep.subr.mxu0 0.0
        %5471 = vmatpush1.xpose.msra.mxu0 0.0
        %5472 = vmatprep.subr.mxu0 0.0
        %5473 = vmatpush1.xpose.msra.mxu0 0.0
        %5474 = vmatprep.subr.mxu0 0.0
        %v5475 = vand.u32 %v2171, 4294901760
        %v5476 = vsub.f32 %v2171, %v5475
        %v5477 = vand.u32 %v5476, 4294901760
        %v5478 = vsub.f32 %v5476, %v5477
        %v5479 = vand.u32 %v5478, 4294901760
        %5480 = vmatpush1.xpose.msra.mxu0 %v5479
        %5481 = vmatprep.subr.mxu0 0.0
        %v5482 = vand.u32 %v2169, 4294901760
        %v5483 = vsub.f32 %v2169, %v5482
        %v5484 = vand.u32 %v5483, 4294901760
        %v5485 = vsub.f32 %v5483, %v5484
        %v5486 = vand.u32 %v5485, 4294901760
        %5487 = vmatpush1.xpose.msra.mxu0 %v5486
        %5488 = vmatprep.subr.mxu0 0.0
        %5489 = vmatpush2.xpose.msra.mxu0 0.0
        %5490 = vmatprep.subr.mxu0 0.0
        %5491 = vmatpush2.xpose.msra.mxu0 0.0
        %5492 = vmatprep.subr.mxu0 0.0
        %5493 = vmatpush2.xpose.msra.mxu0 0.0
        %5494 = vmatprep.subr.mxu0 0.0
        %5495 = vmatpush2.xpose.msra.mxu0 0.0
        %5496 = vmatprep.subr.mxu0 0.0
        %5497 = vmatpush2.xpose.msra.mxu0 0.0
        %5498 = vmatprep.subr.mxu0 0.0
        %5499 = vmatpush2.xpose.msra.mxu0 0.0
        %5500 = vmatprep.subr.mxu0 0.0
        %5501 = vmatpush2.xpose.msra.mxu0 0.0
        %5502 = vmatprep.subr.mxu0 0.0
        %5503 = vmatpush2.xpose.msra.mxu0 0.0
        %5504 = vmatprep.subr.mxu0 0.0
        %5505 = vmatpush2.xpose.msra.mxu0 0.0
        %5506 = vmatprep.subr.mxu0 0.0
        %5507 = vmatpush2.xpose.msra.mxu0 0.0
        %5508 = vmatprep.subr.mxu0 0.0
        %5509 = vmatpush2.xpose.msra.mxu0 0.0
        %5510 = vmatprep.subr.mxu0 0.0
        %5511 = vmatpush2.xpose.msra.mxu0 0.0
        %5512 = vmatprep.subr.mxu0 0.0
        %5513 = vmatpush2.xpose.msra.mxu0 0.0
        %5514 = vmatprep.subr.mxu0 0.0
        %5515 = vmatpush2.xpose.msra.mxu0 0.0
        %5516 = vmatprep.subr.mxu0 0.0
        %5517 = vmatpush2.xpose.msra.mxu0 0.0
        %5518 = vmatprep.subr.mxu0 0.0
        %5519 = vmatpush2.xpose.msra.mxu0 0.0
        %5520 = vmatprep.mubr.f32.mxu0 0.0
        %v5521 = vand.u32 %v5354, 4294901760
        %5522 = vmatmul.mubr.f32.gmra.mxu0 %v5521
        %v5523 = vpop.f32.mrf.mxu0
        %v5524 = vadd.f32 %v5433, %v5523
        %v5525 = vpop.f32.mrf.mxu0
        %5526 = vmatprep.mubr.f32.mxu0 0.0
        %v5527 = vand.u32 %v5357, 4294901760
        %5528 = vmatmul.mubr.f32.gmra.mxu0 %v5527
        %v5529 = vpop.f32.mrf.mxu0
        %v5530 = vadd.f32 %v5443, %v5529
        %v5531 = vpop.f32.mrf.mxu0
        %5532 = vdwg.mxu0
        %5533 = vmatprep.subr.mxu0 0.0
        %5534 = vmatpush1.xpose.msra.mxu0 0.0
        %5535 = vmatprep.subr.mxu0 0.0
        %5536 = vmatpush1.xpose.msra.mxu0 0.0
        %5537 = vmatprep.subr.mxu0 0.0
        %5538 = vmatpush1.xpose.msra.mxu0 0.0
        %5539 = vmatprep.subr.mxu0 0.0
        %5540 = vmatpush1.xpose.msra.mxu0 0.0
        %5541 = vmatprep.subr.mxu0 0.0
        %5542 = vmatpush1.xpose.msra.mxu0 0.0
        %5543 = vmatprep.subr.mxu0 0.0
        %5544 = vmatpush1.xpose.msra.mxu0 0.0
        %5545 = vmatprep.subr.mxu0 0.0
        %5546 = vmatpush1.xpose.msra.mxu0 0.0
        %5547 = vmatprep.subr.mxu0 0.0
        %5548 = vmatpush1.xpose.msra.mxu0 0.0
        %5549 = vmatprep.subr.mxu0 0.0
        %5550 = vmatpush1.xpose.msra.mxu0 0.0
        %5551 = vmatprep.subr.mxu0 0.0
        %5552 = vmatpush1.xpose.msra.mxu0 0.0
        %5553 = vmatprep.subr.mxu0 0.0
        %5554 = vmatpush1.xpose.msra.mxu0 0.0
        %5555 = vmatprep.subr.mxu0 0.0
        %5556 = vmatpush1.xpose.msra.mxu0 0.0
        %5557 = vmatprep.subr.mxu0 0.0
        %5558 = vmatpush1.xpose.msra.mxu0 0.0
        %5559 = vmatprep.subr.mxu0 0.0
        %5560 = vmatpush1.xpose.msra.mxu0 0.0
        %5561 = vmatprep.subr.mxu0 0.0
        %v5562 = vand.u32 %v2171, 4294901760
        %v5563 = vsub.f32 %v2171, %v5562
        %5564 = vmatpush1.xpose.msra.mxu0 %v5563
        %5565 = vmatprep.subr.mxu0 0.0
        %v5566 = vand.u32 %v2169, 4294901760
        %v5567 = vsub.f32 %v2169, %v5566
        %5568 = vmatpush1.xpose.msra.mxu0 %v5567
        %5569 = vmatprep.subr.mxu0 0.0
        %5570 = vmatpush2.xpose.msra.mxu0 0.0
        %5571 = vmatprep.subr.mxu0 0.0
        %5572 = vmatpush2.xpose.msra.mxu0 0.0
        %5573 = vmatprep.subr.mxu0 0.0
        %5574 = vmatpush2.xpose.msra.mxu0 0.0
        %5575 = vmatprep.subr.mxu0 0.0
        %5576 = vmatpush2.xpose.msra.mxu0 0.0
        %5577 = vmatprep.subr.mxu0 0.0
        %5578 = vmatpush2.xpose.msra.mxu0 0.0
        %5579 = vmatprep.subr.mxu0 0.0
        %5580 = vmatpush2.xpose.msra.mxu0 0.0
        %5581 = vmatprep.subr.mxu0 0.0
        %5582 = vmatpush2.xpose.msra.mxu0 0.0
        %5583 = vmatprep.subr.mxu0 0.0
        %5584 = vmatpush2.xpose.msra.mxu0 0.0
        %5585 = vmatprep.subr.mxu0 0.0
        %5586 = vmatpush2.xpose.msra.mxu0 0.0
        %5587 = vmatprep.subr.mxu0 0.0
        %5588 = vmatpush2.xpose.msra.mxu0 0.0
        %5589 = vmatprep.subr.mxu0 0.0
        %5590 = vmatpush2.xpose.msra.mxu0 0.0
        %5591 = vmatprep.subr.mxu0 0.0
        %5592 = vmatpush2.xpose.msra.mxu0 0.0
        %5593 = vmatprep.subr.mxu0 0.0
        %5594 = vmatpush2.xpose.msra.mxu0 0.0
        %5595 = vmatprep.subr.mxu0 0.0
        %5596 = vmatpush2.xpose.msra.mxu0 0.0
        %5597 = vmatprep.subr.mxu0 0.0
        %5598 = vmatpush2.xpose.msra.mxu0 0.0
        %5599 = vmatprep.subr.mxu0 0.0
        %5600 = vmatpush2.xpose.msra.mxu0 0.0
        %5601 = vmatprep.mubr.f32.mxu0 0.0
        %v5602 = vand.u32 %v5354, 4294901760
        %v5603 = vsub.f32 %v5354, %v5602
        %5604 = vmatmul.mubr.f32.gmra.mxu0 %v5603
        %v5605 = vpop.f32.mrf.mxu0
        %v5606 = vadd.f32 %v5524, %v5605
        %v5607 = vpop.f32.mrf.mxu0
        %5608 = vmatprep.mubr.f32.mxu0 0.0
        %v5609 = vand.u32 %v5357, 4294901760
        %v5610 = vsub.f32 %v5357, %v5609
        %5611 = vmatmul.mubr.f32.gmra.mxu0 %v5610
        %v5612 = vpop.f32.mrf.mxu0
        %v5613 = vadd.f32 %v5530, %v5612
        %v5614 = vpop.f32.mrf.mxu0
        %5615 = vdwg.mxu0
        %5616 = vmatprep.subr.mxu0 0.0
        %5617 = vmatpush1.xpose.msra.mxu0 0.0
        %5618 = vmatprep.subr.mxu0 0.0
        %5619 = vmatpush1.xpose.msra.mxu0 0.0
        %5620 = vmatprep.subr.mxu0 0.0
        %5621 = vmatpush1.xpose.msra.mxu0 0.0
        %5622 = vmatprep.subr.mxu0 0.0
        %5623 = vmatpush1.xpose.msra.mxu0 0.0
        %5624 = vmatprep.subr.mxu0 0.0
        %5625 = vmatpush1.xpose.msra.mxu0 0.0
        %5626 = vmatprep.subr.mxu0 0.0
        %5627 = vmatpush1.xpose.msra.mxu0 0.0
        %5628 = vmatprep.subr.mxu0 0.0
        %5629 = vmatpush1.xpose.msra.mxu0 0.0
        %5630 = vmatprep.subr.mxu0 0.0
        %5631 = vmatpush1.xpose.msra.mxu0 0.0
        %5632 = vmatprep.subr.mxu0 0.0
        %5633 = vmatpush1.xpose.msra.mxu0 0.0
        %5634 = vmatprep.subr.mxu0 0.0
        %5635 = vmatpush1.xpose.msra.mxu0 0.0
        %5636 = vmatprep.subr.mxu0 0.0
        %5637 = vmatpush1.xpose.msra.mxu0 0.0
        %5638 = vmatprep.subr.mxu0 0.0
        %5639 = vmatpush1.xpose.msra.mxu0 0.0
        %5640 = vmatprep.subr.mxu0 0.0
        %5641 = vmatpush1.xpose.msra.mxu0 0.0
        %5642 = vmatprep.subr.mxu0 0.0
        %5643 = vmatpush1.xpose.msra.mxu0 0.0
        %5644 = vmatprep.subr.mxu0 0.0
        %v5645 = vand.u32 %v2171, 4294901760
        %5646 = vmatpush1.xpose.msra.mxu0 %v5645
        %5647 = vmatprep.subr.mxu0 0.0
        %v5648 = vand.u32 %v2169, 4294901760
        %5649 = vmatpush1.xpose.msra.mxu0 %v5648
        %5650 = vmatprep.subr.mxu0 0.0
        %5651 = vmatpush2.xpose.msra.mxu0 0.0
        %5652 = vmatprep.subr.mxu0 0.0
        %5653 = vmatpush2.xpose.msra.mxu0 0.0
        %5654 = vmatprep.subr.mxu0 0.0
        %5655 = vmatpush2.xpose.msra.mxu0 0.0
        %5656 = vmatprep.subr.mxu0 0.0
        %5657 = vmatpush2.xpose.msra.mxu0 0.0
        %5658 = vmatprep.subr.mxu0 0.0
        %5659 = vmatpush2.xpose.msra.mxu0 0.0
        %5660 = vmatprep.subr.mxu0 0.0
        %5661 = vmatpush2.xpose.msra.mxu0 0.0
        %5662 = vmatprep.subr.mxu0 0.0
        %5663 = vmatpush2.xpose.msra.mxu0 0.0
        %5664 = vmatprep.subr.mxu0 0.0
        %5665 = vmatpush2.xpose.msra.mxu0 0.0
        %5666 = vmatprep.subr.mxu0 0.0
        %5667 = vmatpush2.xpose.msra.mxu0 0.0
        %5668 = vmatprep.subr.mxu0 0.0
        %5669 = vmatpush2.xpose.msra.mxu0 0.0
        %5670 = vmatprep.subr.mxu0 0.0
        %5671 = vmatpush2.xpose.msra.mxu0 0.0
        %5672 = vmatprep.subr.mxu0 0.0
        %5673 = vmatpush2.xpose.msra.mxu0 0.0
        %5674 = vmatprep.subr.mxu0 0.0
        %5675 = vmatpush2.xpose.msra.mxu0 0.0
        %5676 = vmatprep.subr.mxu0 0.0
        %5677 = vmatpush2.xpose.msra.mxu0 0.0
        %5678 = vmatprep.subr.mxu0 0.0
        %5679 = vmatpush2.xpose.msra.mxu0 0.0
        %5680 = vmatprep.subr.mxu0 0.0
        %5681 = vmatpush2.xpose.msra.mxu0 0.0
        %5682 = vmatprep.mubr.f32.mxu0 0.0
        %v5683 = vand.u32 %v5354, 4294901760
        %v5684 = vsub.f32 %v5354, %v5683
        %v5685 = vand.u32 %v5684, 4294901760
        %5686 = vmatmul.mubr.f32.gmra.mxu0 %v5685
        %v5687 = vpop.f32.mrf.mxu0
        %v5688 = vadd.f32 %v5606, %v5687
        %v5689 = vpop.f32.mrf.mxu0
        %5690 = vmatprep.mubr.f32.mxu0 0.0
        %v5691 = vand.u32 %v5357, 4294901760
        %v5692 = vsub.f32 %v5357, %v5691
        %v5693 = vand.u32 %v5692, 4294901760
        %5694 = vmatmul.mubr.f32.gmra.mxu0 %v5693
        %v5695 = vpop.f32.mrf.mxu0
        %v5696 = vadd.f32 %v5613, %v5695
        %v5697 = vpop.f32.mrf.mxu0
        %5698 = vdwg.mxu0
        %5699 = vmatprep.subr.mxu0 0.0
        %5700 = vmatpush1.xpose.msra.mxu0 0.0
        %5701 = vmatprep.subr.mxu0 0.0
        %5702 = vmatpush1.xpose.msra.mxu0 0.0
        %5703 = vmatprep.subr.mxu0 0.0
        %5704 = vmatpush1.xpose.msra.mxu0 0.0
        %5705 = vmatprep.subr.mxu0 0.0
        %5706 = vmatpush1.xpose.msra.mxu0 0.0
        %5707 = vmatprep.subr.mxu0 0.0
        %5708 = vmatpush1.xpose.msra.mxu0 0.0
        %5709 = vmatprep.subr.mxu0 0.0
        %5710 = vmatpush1.xpose.msra.mxu0 0.0
        %5711 = vmatprep.subr.mxu0 0.0
        %5712 = vmatpush1.xpose.msra.mxu0 0.0
        %5713 = vmatprep.subr.mxu0 0.0
        %5714 = vmatpush1.xpose.msra.mxu0 0.0
        %5715 = vmatprep.subr.mxu0 0.0
        %5716 = vmatpush1.xpose.msra.mxu0 0.0
        %5717 = vmatprep.subr.mxu0 0.0
        %5718 = vmatpush1.xpose.msra.mxu0 0.0
        %5719 = vmatprep.subr.mxu0 0.0
        %5720 = vmatpush1.xpose.msra.mxu0 0.0
        %5721 = vmatprep.subr.mxu0 0.0
        %5722 = vmatpush1.xpose.msra.mxu0 0.0
        %5723 = vmatprep.subr.mxu0 0.0
        %5724 = vmatpush1.xpose.msra.mxu0 0.0
        %5725 = vmatprep.subr.mxu0 0.0
        %5726 = vmatpush1.xpose.msra.mxu0 0.0
        %5727 = vmatprep.subr.mxu0 0.0
        %v5728 = vand.u32 %v2171, 4294901760
        %v5729 = vsub.f32 %v2171, %v5728
        %v5730 = vand.u32 %v5729, 4294901760
        %5731 = vmatpush1.xpose.msra.mxu0 %v5730
        %5732 = vmatprep.subr.mxu0 0.0
        %v5733 = vand.u32 %v2169, 4294901760
        %v5734 = vsub.f32 %v2169, %v5733
        %v5735 = vand.u32 %v5734, 4294901760
        %5736 = vmatpush1.xpose.msra.mxu0 %v5735
        %5737 = vmatprep.subr.mxu0 0.0
        %5738 = vmatpush2.xpose.msra.mxu0 0.0
        %5739 = vmatprep.subr.mxu0 0.0
        %5740 = vmatpush2.xpose.msra.mxu0 0.0
        %5741 = vmatprep.subr.mxu0 0.0
        %5742 = vmatpush2.xpose.msra.mxu0 0.0
        %5743 = vmatprep.subr.mxu0 0.0
        %5744 = vmatpush2.xpose.msra.mxu0 0.0
        %5745 = vmatprep.subr.mxu0 0.0
        %5746 = vmatpush2.xpose.msra.mxu0 0.0
        %5747 = vmatprep.subr.mxu0 0.0
        %5748 = vmatpush2.xpose.msra.mxu0 0.0
        %5749 = vmatprep.subr.mxu0 0.0
        %5750 = vmatpush2.xpose.msra.mxu0 0.0
        %5751 = vmatprep.subr.mxu0 0.0
        %5752 = vmatpush2.xpose.msra.mxu0 0.0
        %5753 = vmatprep.subr.mxu0 0.0
        %5754 = vmatpush2.xpose.msra.mxu0 0.0
        %5755 = vmatprep.subr.mxu0 0.0
        %5756 = vmatpush2.xpose.msra.mxu0 0.0
        %5757 = vmatprep.subr.mxu0 0.0
        %5758 = vmatpush2.xpose.msra.mxu0 0.0
        %5759 = vmatprep.subr.mxu0 0.0
        %5760 = vmatpush2.xpose.msra.mxu0 0.0
        %5761 = vmatprep.subr.mxu0 0.0
        %5762 = vmatpush2.xpose.msra.mxu0 0.0
        %5763 = vmatprep.subr.mxu0 0.0
        %5764 = vmatpush2.xpose.msra.mxu0 0.0
        %5765 = vmatprep.subr.mxu0 0.0
        %5766 = vmatpush2.xpose.msra.mxu0 0.0
        %5767 = vmatprep.subr.mxu0 0.0
        %5768 = vmatpush2.xpose.msra.mxu0 0.0
        %5769 = vmatprep.mubr.f32.mxu0 0.0
        %v5770 = vand.u32 %v5354, 4294901760
        %5771 = vmatmul.mubr.f32.gmra.mxu0 %v5770
        %v5772 = vpop.f32.mrf.mxu0
        %v5773 = vadd.f32 %v5688, %v5772
        %v5774 = vpop.f32.mrf.mxu0
        %5775 = vmatprep.mubr.f32.mxu0 0.0
        %v5776 = vand.u32 %v5357, 4294901760
        %5777 = vmatmul.mubr.f32.gmra.mxu0 %v5776
        %v5778 = vpop.f32.mrf.mxu0
        %v5779 = vadd.f32 %v5696, %v5778
        %v5780 = vpop.f32.mrf.mxu0
        %5781 = vdwg.mxu0
        %5782 = vmatprep.subr.mxu0 0.0
        %5783 = vmatpush1.xpose.msra.mxu0 0.0
        %5784 = vmatprep.subr.mxu0 0.0
        %5785 = vmatpush1.xpose.msra.mxu0 0.0
        %5786 = vmatprep.subr.mxu0 0.0
        %5787 = vmatpush1.xpose.msra.mxu0 0.0
        %5788 = vmatprep.subr.mxu0 0.0
        %5789 = vmatpush1.xpose.msra.mxu0 0.0
        %5790 = vmatprep.subr.mxu0 0.0
        %5791 = vmatpush1.xpose.msra.mxu0 0.0
        %5792 = vmatprep.subr.mxu0 0.0
        %5793 = vmatpush1.xpose.msra.mxu0 0.0
        %5794 = vmatprep.subr.mxu0 0.0
        %5795 = vmatpush1.xpose.msra.mxu0 0.0
        %5796 = vmatprep.subr.mxu0 0.0
        %5797 = vmatpush1.xpose.msra.mxu0 0.0
        %5798 = vmatprep.subr.mxu0 0.0
        %5799 = vmatpush1.xpose.msra.mxu0 0.0
        %5800 = vmatprep.subr.mxu0 0.0
        %5801 = vmatpush1.xpose.msra.mxu0 0.0
        %5802 = vmatprep.subr.mxu0 0.0
        %5803 = vmatpush1.xpose.msra.mxu0 0.0
        %5804 = vmatprep.subr.mxu0 0.0
        %5805 = vmatpush1.xpose.msra.mxu0 0.0
        %5806 = vmatprep.subr.mxu0 0.0
        %5807 = vmatpush1.xpose.msra.mxu0 0.0
        %5808 = vmatprep.subr.mxu0 0.0
        %5809 = vmatpush1.xpose.msra.mxu0 0.0
        %5810 = vmatprep.subr.mxu0 0.0
        %v5811 = vand.u32 %v2171, 4294901760
        %5812 = vmatpush1.xpose.msra.mxu0 %v5811
        %5813 = vmatprep.subr.mxu0 0.0
        %v5814 = vand.u32 %v2169, 4294901760
        %5815 = vmatpush1.xpose.msra.mxu0 %v5814
        %5816 = vmatprep.subr.mxu0 0.0
        %5817 = vmatpush2.xpose.msra.mxu0 0.0
        %5818 = vmatprep.subr.mxu0 0.0
        %5819 = vmatpush2.xpose.msra.mxu0 0.0
        %5820 = vmatprep.subr.mxu0 0.0
        %5821 = vmatpush2.xpose.msra.mxu0 0.0
        %5822 = vmatprep.subr.mxu0 0.0
        %5823 = vmatpush2.xpose.msra.mxu0 0.0
        %5824 = vmatprep.subr.mxu0 0.0
        %5825 = vmatpush2.xpose.msra.mxu0 0.0
        %5826 = vmatprep.subr.mxu0 0.0
        %5827 = vmatpush2.xpose.msra.mxu0 0.0
        %5828 = vmatprep.subr.mxu0 0.0
        %5829 = vmatpush2.xpose.msra.mxu0 0.0
        %5830 = vmatprep.subr.mxu0 0.0
        %5831 = vmatpush2.xpose.msra.mxu0 0.0
        %5832 = vmatprep.subr.mxu0 0.0
        %5833 = vmatpush2.xpose.msra.mxu0 0.0
        %5834 = vmatprep.subr.mxu0 0.0
        %5835 = vmatpush2.xpose.msra.mxu0 0.0
        %5836 = vmatprep.subr.mxu0 0.0
        %5837 = vmatpush2.xpose.msra.mxu0 0.0
        %5838 = vmatprep.subr.mxu0 0.0
        %5839 = vmatpush2.xpose.msra.mxu0 0.0
        %5840 = vmatprep.subr.mxu0 0.0
        %5841 = vmatpush2.xpose.msra.mxu0 0.0
        %5842 = vmatprep.subr.mxu0 0.0
        %5843 = vmatpush2.xpose.msra.mxu0 0.0
        %5844 = vmatprep.subr.mxu0 0.0
        %5845 = vmatpush2.xpose.msra.mxu0 0.0
        %5846 = vmatprep.subr.mxu0 0.0
        %5847 = vmatpush2.xpose.msra.mxu0 0.0
        %5848 = vmatprep.mubr.f32.mxu0 0.0
        %v5849 = vand.u32 %v5354, 4294901760
        %5850 = vmatmul.mubr.f32.gmra.mxu0 %v5849
        %v5851 = vpop.f32.mrf.mxu0
        %v5852 = vadd.f32 %v5773, %v5851
        %v5853 = vpop.f32.mrf.mxu0
        %5854 = vmatprep.mubr.f32.mxu0 0.0
        %v5855 = vand.u32 %v5357, 4294901760
        %5856 = vmatmul.mubr.f32.gmra.mxu0 %v5855
        %v5857 = vpop.f32.mrf.mxu0
        %v5858 = vadd.f32 %v5779, %v5857
        %v5859 = vpop.f32.mrf.mxu0
        %5860 = vdwg.mxu0
        %v5861 = vmul.f32 %v5852, 0.35355338
        %v5862 = vmul.f32 %v5858, 0.35355338
        %v5863 = vsel %vm2677, %v5861, -inf
        %5864 = vmax.xlane.f32.xlu0 %v5863
        %v5865 = vpop.xlane.xlu0 %5864
        %v5866 = vsel %vm2677, %v5862, -inf
        %5867 = vmax.xlane.f32.xlu0 %v5866
        %v5868 = vpop.xlane.xlu0 %5867
        %v5869 = vsub.f32 %v5861, %v5865
        %v5870 = vsub.f32 %v5862, %v5868
        %v5871 = vmul.f32 %v5869, 1.442695
        %v5872 = vpow.pop %v5871
        %v5873 = vmul.f32 %v5870, 1.442695
        %v5874 = vpow.pop %v5873
        %v5875 = vsel %vm2677, %v5872, 0.0
        %5876 = vadd.xlane.f32.xlu0 %v5875
        %v5877 = vpop.xlane.xlu0 %5876
        %v5878 = vsel %vm2677, %v5874, 0.0
        %5879 = vadd.xlane.f32.xlu0 %v5878
        %v5880 = vpop.xlane.xlu0 %5879
        %v5881 = vrcp.pop %v5877
        %v5882 = vmul.f32 %v5872, %v5881
        %v5883 = vrcp.pop %v5880
        %v5884 = vmul.f32 %v5874, %v5883
        %5886 = vrot.lane.b32.xlu0 %v5350, 64
        %v5887 = vpop.permute.xlu0 %5886
        %v5889 = vmul.f32 %v2146, %v5887
        %v5890 = vmul.f32 %v2147, %v5887
        %5893 = vrot.lane.b32.xlu0 %v5889, 64
        %v5894 = vpop.permute.xlu0 %5893
        %5895 = vrot.lane.b32.xlu0 %v5890, 64
        %v5896 = vpop.permute.xlu0 %5895
        %v5900 = vsel %vm2677, %v5882, 0
        %v5903 = vsel %vm2677, %v5884, 0
        %5905 = vmatprep.subr.mxu0 0.0
        %5906 = vmatpush1.msra.mxu0 0.0
        %5907 = vmatprep.subr.mxu0 0.0
        %5908 = vmatpush1.msra.mxu0 0.0
        %5909 = vmatprep.subr.mxu0 0.0
        %5910 = vmatpush1.msra.mxu0 0.0
        %5911 = vmatprep.subr.mxu0 0.0
        %5912 = vmatpush1.msra.mxu0 0.0
        %5913 = vmatprep.subr.mxu0 0.0
        %5914 = vmatpush1.msra.mxu0 0.0
        %5915 = vmatprep.subr.mxu0 0.0
        %5916 = vmatpush1.msra.mxu0 0.0
        %5917 = vmatprep.subr.mxu0 0.0
        %5918 = vmatpush1.msra.mxu0 0.0
        %5919 = vmatprep.subr.mxu0 0.0
        %5920 = vmatpush1.msra.mxu0 0.0
        %5921 = vmatprep.subr.mxu0 0.0
        %5922 = vmatpush1.msra.mxu0 0.0
        %5923 = vmatprep.subr.mxu0 0.0
        %5924 = vmatpush1.msra.mxu0 0.0
        %5925 = vmatprep.subr.mxu0 0.0
        %5926 = vmatpush1.msra.mxu0 0.0
        %5927 = vmatprep.subr.mxu0 0.0
        %5928 = vmatpush1.msra.mxu0 0.0
        %5929 = vmatprep.subr.mxu0 0.0
        %5930 = vmatpush1.msra.mxu0 0.0
        %5931 = vmatprep.subr.mxu0 0.0
        %5932 = vmatpush1.msra.mxu0 0.0
        %5933 = vmatprep.subr.mxu0 0.0
        %v5934 = vand.u32 %v5896, 4294901760
        %5935 = vmatpush1.msra.mxu0 %v5934
        %5936 = vmatprep.subr.mxu0 0.0
        %v5937 = vand.u32 %v5894, 4294901760
        %5938 = vmatpush1.msra.mxu0 %v5937
        %5939 = vmatprep.subr.mxu0 0.0
        %5940 = vmatpush2.msra.mxu0 0.0
        %5941 = vmatprep.subr.mxu0 0.0
        %5942 = vmatpush2.msra.mxu0 0.0
        %5943 = vmatprep.subr.mxu0 0.0
        %5944 = vmatpush2.msra.mxu0 0.0
        %5945 = vmatprep.subr.mxu0 0.0
        %5946 = vmatpush2.msra.mxu0 0.0
        %5947 = vmatprep.subr.mxu0 0.0
        %5948 = vmatpush2.msra.mxu0 0.0
        %5949 = vmatprep.subr.mxu0 0.0
        %5950 = vmatpush2.msra.mxu0 0.0
        %5951 = vmatprep.subr.mxu0 0.0
        %5952 = vmatpush2.msra.mxu0 0.0
        %5953 = vmatprep.subr.mxu0 0.0
        %5954 = vmatpush2.msra.mxu0 0.0
        %5955 = vmatprep.subr.mxu0 0.0
        %5956 = vmatpush2.msra.mxu0 0.0
        %5957 = vmatprep.subr.mxu0 0.0
        %5958 = vmatpush2.msra.mxu0 0.0
        %5959 = vmatprep.subr.mxu0 0.0
        %5960 = vmatpush2.msra.mxu0 0.0
        %5961 = vmatprep.subr.mxu0 0.0
        %5962 = vmatpush2.msra.mxu0 0.0
        %5963 = vmatprep.subr.mxu0 0.0
        %5964 = vmatpush2.msra.mxu0 0.0
        %5965 = vmatprep.subr.mxu0 0.0
        %5966 = vmatpush2.msra.mxu0 0.0
        %5967 = vmatprep.subr.mxu0 0.0
        %5968 = vmatpush2.msra.mxu0 0.0
        %5969 = vmatprep.subr.mxu0 0.0
        %5970 = vmatpush2.msra.mxu0 0.0
        %5971 = vmatprep.mubr.f32.mxu0 0.0
        %v5972 = vand.u32 %v5900, 4294901760
        %v5973 = vsub.f32 %v5900, %v5972
        %v5974 = vand.u32 %v5973, 4294901760
        %v5975 = vsub.f32 %v5973, %v5974
        %v5976 = vand.u32 %v5975, 4294901760
        %5977 = vmatmul.mubr.f32.gmra.mxu0 %v5976
        %v5978 = vpop.f32.mrf.mxu0
        %v5979 = vadd.f32 0.0, %v5978
        %v5980 = vpop.f32.mrf.mxu0
        %5981 = vmatprep.mubr.f32.mxu0 0.0
        %v5982 = vand.u32 %v5903, 4294901760
        %v5983 = vsub.f32 %v5903, %v5982
        %v5984 = vand.u32 %v5983, 4294901760
        %v5985 = vsub.f32 %v5983, %v5984
        %v5986 = vand.u32 %v5985, 4294901760
        %5987 = vmatmul.mubr.f32.gmra.mxu0 %v5986
        %v5988 = vpop.f32.mrf.mxu0
        %v5989 = vadd.f32 0.0, %v5988
        %v5990 = vpop.f32.mrf.mxu0
        %5991 = vdwg.mxu0
        %5992 = vmatprep.subr.mxu0 0.0
        %5993 = vmatpush1.msra.mxu0 0.0
        %5994 = vmatprep.subr.mxu0 0.0
        %5995 = vmatpush1.msra.mxu0 0.0
        %5996 = vmatprep.subr.mxu0 0.0
        %5997 = vmatpush1.msra.mxu0 0.0
        %5998 = vmatprep.subr.mxu0 0.0
        %5999 = vmatpush1.msra.mxu0 0.0
        %6000 = vmatprep.subr.mxu0 0.0
        %6001 = vmatpush1.msra.mxu0 0.0
        %6002 = vmatprep.subr.mxu0 0.0
        %6003 = vmatpush1.msra.mxu0 0.0
        %6004 = vmatprep.subr.mxu0 0.0
        %6005 = vmatpush1.msra.mxu0 0.0
        %6006 = vmatprep.subr.mxu0 0.0
        %6007 = vmatpush1.msra.mxu0 0.0
        %6008 = vmatprep.subr.mxu0 0.0
        %6009 = vmatpush1.msra.mxu0 0.0
        %6010 = vmatprep.subr.mxu0 0.0
        %6011 = vmatpush1.msra.mxu0 0.0
        %6012 = vmatprep.subr.mxu0 0.0
        %6013 = vmatpush1.msra.mxu0 0.0
        %6014 = vmatprep.subr.mxu0 0.0
        %6015 = vmatpush1.msra.mxu0 0.0
        %6016 = vmatprep.subr.mxu0 0.0
        %6017 = vmatpush1.msra.mxu0 0.0
        %6018 = vmatprep.subr.mxu0 0.0
        %6019 = vmatpush1.msra.mxu0 0.0
        %6020 = vmatprep.subr.mxu0 0.0
        %v6021 = vand.u32 %v5896, 4294901760
        %v6022 = vsub.f32 %v5896, %v6021
        %v6023 = vand.u32 %v6022, 4294901760
        %v6024 = vsub.f32 %v6022, %v6023
        %v6025 = vand.u32 %v6024, 4294901760
        %6026 = vmatpush1.msra.mxu0 %v6025
        %6027 = vmatprep.subr.mxu0 0.0
        %v6028 = vand.u32 %v5894, 4294901760
        %v6029 = vsub.f32 %v5894, %v6028
        %v6030 = vand.u32 %v6029, 4294901760
        %v6031 = vsub.f32 %v6029, %v6030
        %v6032 = vand.u32 %v6031, 4294901760
        %6033 = vmatpush1.msra.mxu0 %v6032
        %6034 = vmatprep.subr.mxu0 0.0
        %6035 = vmatpush2.msra.mxu0 0.0
        %6036 = vmatprep.subr.mxu0 0.0
        %6037 = vmatpush2.msra.mxu0 0.0
        %6038 = vmatprep.subr.mxu0 0.0
        %6039 = vmatpush2.msra.mxu0 0.0
        %6040 = vmatprep.subr.mxu0 0.0
        %6041 = vmatpush2.msra.mxu0 0.0
        %6042 = vmatprep.subr.mxu0 0.0
        %6043 = vmatpush2.msra.mxu0 0.0
        %6044 = vmatprep.subr.mxu0 0.0
        %6045 = vmatpush2.msra.mxu0 0.0
        %6046 = vmatprep.subr.mxu0 0.0
        %6047 = vmatpush2.msra.mxu0 0.0
        %6048 = vmatprep.subr.mxu0 0.0
        %6049 = vmatpush2.msra.mxu0 0.0
        %6050 = vmatprep.subr.mxu0 0.0
        %6051 = vmatpush2.msra.mxu0 0.0
        %6052 = vmatprep.subr.mxu0 0.0
        %6053 = vmatpush2.msra.mxu0 0.0
        %6054 = vmatprep.subr.mxu0 0.0
        %6055 = vmatpush2.msra.mxu0 0.0
        %6056 = vmatprep.subr.mxu0 0.0
        %6057 = vmatpush2.msra.mxu0 0.0
        %6058 = vmatprep.subr.mxu0 0.0
        %6059 = vmatpush2.msra.mxu0 0.0
        %6060 = vmatprep.subr.mxu0 0.0
        %6061 = vmatpush2.msra.mxu0 0.0
        %6062 = vmatprep.subr.mxu0 0.0
        %6063 = vmatpush2.msra.mxu0 0.0
        %6064 = vmatprep.subr.mxu0 0.0
        %6065 = vmatpush2.msra.mxu0 0.0
        %6066 = vmatprep.mubr.f32.mxu0 0.0
        %v6067 = vand.u32 %v5900, 4294901760
        %6068 = vmatmul.mubr.f32.gmra.mxu0 %v6067
        %v6069 = vpop.f32.mrf.mxu0
        %v6070 = vadd.f32 %v5979, %v6069
        %v6071 = vpop.f32.mrf.mxu0
        %6072 = vmatprep.mubr.f32.mxu0 0.0
        %v6073 = vand.u32 %v5903, 4294901760
        %6074 = vmatmul.mubr.f32.gmra.mxu0 %v6073
        %v6075 = vpop.f32.mrf.mxu0
        %v6076 = vadd.f32 %v5989, %v6075
        %v6077 = vpop.f32.mrf.mxu0
        %6078 = vdwg.mxu0
        %6079 = vmatprep.subr.mxu0 0.0
        %6080 = vmatpush1.msra.mxu0 0.0
        %6081 = vmatprep.subr.mxu0 0.0
        %6082 = vmatpush1.msra.mxu0 0.0
        %6083 = vmatprep.subr.mxu0 0.0
        %6084 = vmatpush1.msra.mxu0 0.0
        %6085 = vmatprep.subr.mxu0 0.0
        %6086 = vmatpush1.msra.mxu0 0.0
        %6087 = vmatprep.subr.mxu0 0.0
        %6088 = vmatpush1.msra.mxu0 0.0
        %6089 = vmatprep.subr.mxu0 0.0
        %6090 = vmatpush1.msra.mxu0 0.0
        %6091 = vmatprep.subr.mxu0 0.0
        %6092 = vmatpush1.msra.mxu0 0.0
        %6093 = vmatprep.subr.mxu0 0.0
        %6094 = vmatpush1.msra.mxu0 0.0
        %6095 = vmatprep.subr.mxu0 0.0
        %6096 = vmatpush1.msra.mxu0 0.0
        %6097 = vmatprep.subr.mxu0 0.0
        %6098 = vmatpush1.msra.mxu0 0.0
        %6099 = vmatprep.subr.mxu0 0.0
        %6100 = vmatpush1.msra.mxu0 0.0
        %6101 = vmatprep.subr.mxu0 0.0
        %6102 = vmatpush1.msra.mxu0 0.0
        %6103 = vmatprep.subr.mxu0 0.0
        %6104 = vmatpush1.msra.mxu0 0.0
        %6105 = vmatprep.subr.mxu0 0.0
        %6106 = vmatpush1.msra.mxu0 0.0
        %6107 = vmatprep.subr.mxu0 0.0
        %v6108 = vand.u32 %v5896, 4294901760
        %v6109 = vsub.f32 %v5896, %v6108
        %6110 = vmatpush1.msra.mxu0 %v6109
        %6111 = vmatprep.subr.mxu0 0.0
        %v6112 = vand.u32 %v5894, 4294901760
        %v6113 = vsub.f32 %v5894, %v6112
        %6114 = vmatpush1.msra.mxu0 %v6113
        %6115 = vmatprep.subr.mxu0 0.0
        %6116 = vmatpush2.msra.mxu0 0.0
        %6117 = vmatprep.subr.mxu0 0.0
        %6118 = vmatpush2.msra.mxu0 0.0
        %6119 = vmatprep.subr.mxu0 0.0
        %6120 = vmatpush2.msra.mxu0 0.0
        %6121 = vmatprep.subr.mxu0 0.0
        %6122 = vmatpush2.msra.mxu0 0.0
        %6123 = vmatprep.subr.mxu0 0.0
        %6124 = vmatpush2.msra.mxu0 0.0
        %6125 = vmatprep.subr.mxu0 0.0
        %6126 = vmatpush2.msra.mxu0 0.0
        %6127 = vmatprep.subr.mxu0 0.0
        %6128 = vmatpush2.msra.mxu0 0.0
        %6129 = vmatprep.subr.mxu0 0.0
        %6130 = vmatpush2.msra.mxu0 0.0
        %6131 = vmatprep.subr.mxu0 0.0
        %6132 = vmatpush2.msra.mxu0 0.0
        %6133 = vmatprep.subr.mxu0 0.0
        %6134 = vmatpush2.msra.mxu0 0.0
        %6135 = vmatprep.subr.mxu0 0.0
        %6136 = vmatpush2.msra.mxu0 0.0
        %6137 = vmatprep.subr.mxu0 0.0
        %6138 = vmatpush2.msra.mxu0 0.0
        %6139 = vmatprep.subr.mxu0 0.0
        %6140 = vmatpush2.msra.mxu0 0.0
        %6141 = vmatprep.subr.mxu0 0.0
        %6142 = vmatpush2.msra.mxu0 0.0
        %6143 = vmatprep.subr.mxu0 0.0
        %6144 = vmatpush2.msra.mxu0 0.0
        %6145 = vmatprep.subr.mxu0 0.0
        %6146 = vmatpush2.msra.mxu0 0.0
        %6147 = vmatprep.mubr.f32.mxu0 0.0
        %v6148 = vand.u32 %v5900, 4294901760
        %v6149 = vsub.f32 %v5900, %v6148
        %6150 = vmatmul.mubr.f32.gmra.mxu0 %v6149
        %v6151 = vpop.f32.mrf.mxu0
        %v6152 = vadd.f32 %v6070, %v6151
        %v6153 = vpop.f32.mrf.mxu0
        %6154 = vmatprep.mubr.f32.mxu0 0.0
        %v6155 = vand.u32 %v5903, 4294901760
        %v6156 = vsub.f32 %v5903, %v6155
        %6157 = vmatmul.mubr.f32.gmra.mxu0 %v6156
        %v6158 = vpop.f32.mrf.mxu0
        %v6159 = vadd.f32 %v6076, %v6158
        %v6160 = vpop.f32.mrf.mxu0
        %6161 = vdwg.mxu0
        %6162 = vmatprep.subr.mxu0 0.0
        %6163 = vmatpush1.msra.mxu0 0.0
        %6164 = vmatprep.subr.mxu0 0.0
        %6165 = vmatpush1.msra.mxu0 0.0
        %6166 = vmatprep.subr.mxu0 0.0
        %6167 = vmatpush1.msra.mxu0 0.0
        %6168 = vmatprep.subr.mxu0 0.0
        %6169 = vmatpush1.msra.mxu0 0.0
        %6170 = vmatprep.subr.mxu0 0.0
        %6171 = vmatpush1.msra.mxu0 0.0
        %6172 = vmatprep.subr.mxu0 0.0
        %6173 = vmatpush1.msra.mxu0 0.0
        %6174 = vmatprep.subr.mxu0 0.0
        %6175 = vmatpush1.msra.mxu0 0.0
        %6176 = vmatprep.subr.mxu0 0.0
        %6177 = vmatpush1.msra.mxu0 0.0
        %6178 = vmatprep.subr.mxu0 0.0
        %6179 = vmatpush1.msra.mxu0 0.0
        %6180 = vmatprep.subr.mxu0 0.0
        %6181 = vmatpush1.msra.mxu0 0.0
        %6182 = vmatprep.subr.mxu0 0.0
        %6183 = vmatpush1.msra.mxu0 0.0
        %6184 = vmatprep.subr.mxu0 0.0
        %6185 = vmatpush1.msra.mxu0 0.0
        %6186 = vmatprep.subr.mxu0 0.0
        %6187 = vmatpush1.msra.mxu0 0.0
        %6188 = vmatprep.subr.mxu0 0.0
        %6189 = vmatpush1.msra.mxu0 0.0
        %6190 = vmatprep.subr.mxu0 0.0
        %v6191 = vand.u32 %v5896, 4294901760
        %6192 = vmatpush1.msra.mxu0 %v6191
        %6193 = vmatprep.subr.mxu0 0.0
        %v6194 = vand.u32 %v5894, 4294901760
        %6195 = vmatpush1.msra.mxu0 %v6194
        %6196 = vmatprep.subr.mxu0 0.0
        %6197 = vmatpush2.msra.mxu0 0.0
        %6198 = vmatprep.subr.mxu0 0.0
        %6199 = vmatpush2.msra.mxu0 0.0
        %6200 = vmatprep.subr.mxu0 0.0
        %6201 = vmatpush2.msra.mxu0 0.0
        %6202 = vmatprep.subr.mxu0 0.0
        %6203 = vmatpush2.msra.mxu0 0.0
        %6204 = vmatprep.subr.mxu0 0.0
        %6205 = vmatpush2.msra.mxu0 0.0
        %6206 = vmatprep.subr.mxu0 0.0
        %6207 = vmatpush2.msra.mxu0 0.0
        %6208 = vmatprep.subr.mxu0 0.0
        %6209 = vmatpush2.msra.mxu0 0.0
        %6210 = vmatprep.subr.mxu0 0.0
        %6211 = vmatpush2.msra.mxu0 0.0
        %6212 = vmatprep.subr.mxu0 0.0
        %6213 = vmatpush2.msra.mxu0 0.0
        %6214 = vmatprep.subr.mxu0 0.0
        %6215 = vmatpush2.msra.mxu0 0.0
        %6216 = vmatprep.subr.mxu0 0.0
        %6217 = vmatpush2.msra.mxu0 0.0
        %6218 = vmatprep.subr.mxu0 0.0
        %6219 = vmatpush2.msra.mxu0 0.0
        %6220 = vmatprep.subr.mxu0 0.0
        %6221 = vmatpush2.msra.mxu0 0.0
        %6222 = vmatprep.subr.mxu0 0.0
        %6223 = vmatpush2.msra.mxu0 0.0
        %6224 = vmatprep.subr.mxu0 0.0
        %6225 = vmatpush2.msra.mxu0 0.0
        %6226 = vmatprep.subr.mxu0 0.0
        %6227 = vmatpush2.msra.mxu0 0.0
        %6228 = vmatprep.mubr.f32.mxu0 0.0
        %v6229 = vand.u32 %v5900, 4294901760
        %v6230 = vsub.f32 %v5900, %v6229
        %v6231 = vand.u32 %v6230, 4294901760
        %6232 = vmatmul.mubr.f32.gmra.mxu0 %v6231
        %v6233 = vpop.f32.mrf.mxu0
        %v6234 = vadd.f32 %v6152, %v6233
        %v6235 = vpop.f32.mrf.mxu0
        %6236 = vmatprep.mubr.f32.mxu0 0.0
        %v6237 = vand.u32 %v5903, 4294901760
        %v6238 = vsub.f32 %v5903, %v6237
        %v6239 = vand.u32 %v6238, 4294901760
        %6240 = vmatmul.mubr.f32.gmra.mxu0 %v6239
        %v6241 = vpop.f32.mrf.mxu0
        %v6242 = vadd.f32 %v6159, %v6241
        %v6243 = vpop.f32.mrf.mxu0
        %6244 = vdwg.mxu0
        %6245 = vmatprep.subr.mxu0 0.0
        %6246 = vmatpush1.msra.mxu0 0.0
        %6247 = vmatprep.subr.mxu0 0.0
        %6248 = vmatpush1.msra.mxu0 0.0
        %6249 = vmatprep.subr.mxu0 0.0
        %6250 = vmatpush1.msra.mxu0 0.0
        %6251 = vmatprep.subr.mxu0 0.0
        %6252 = vmatpush1.msra.mxu0 0.0
        %6253 = vmatprep.subr.mxu0 0.0
        %6254 = vmatpush1.msra.mxu0 0.0
        %6255 = vmatprep.subr.mxu0 0.0
        %6256 = vmatpush1.msra.mxu0 0.0
        %6257 = vmatprep.subr.mxu0 0.0
        %6258 = vmatpush1.msra.mxu0 0.0
        %6259 = vmatprep.subr.mxu0 0.0
        %6260 = vmatpush1.msra.mxu0 0.0
        %6261 = vmatprep.subr.mxu0 0.0
        %6262 = vmatpush1.msra.mxu0 0.0
        %6263 = vmatprep.subr.mxu0 0.0
        %6264 = vmatpush1.msra.mxu0 0.0
        %6265 = vmatprep.subr.mxu0 0.0
        %6266 = vmatpush1.msra.mxu0 0.0
        %6267 = vmatprep.subr.mxu0 0.0
        %6268 = vmatpush1.msra.mxu0 0.0
        %6269 = vmatprep.subr.mxu0 0.0
        %6270 = vmatpush1.msra.mxu0 0.0
        %6271 = vmatprep.subr.mxu0 0.0
        %6272 = vmatpush1.msra.mxu0 0.0
        %6273 = vmatprep.subr.mxu0 0.0
        %v6274 = vand.u32 %v5896, 4294901760
        %v6275 = vsub.f32 %v5896, %v6274
        %v6276 = vand.u32 %v6275, 4294901760
        %6277 = vmatpush1.msra.mxu0 %v6276
        %6278 = vmatprep.subr.mxu0 0.0
        %v6279 = vand.u32 %v5894, 4294901760
        %v6280 = vsub.f32 %v5894, %v6279
        %v6281 = vand.u32 %v6280, 4294901760
        %6282 = vmatpush1.msra.mxu0 %v6281
        %6283 = vmatprep.subr.mxu0 0.0
        %6284 = vmatpush2.msra.mxu0 0.0
        %6285 = vmatprep.subr.mxu0 0.0
        %6286 = vmatpush2.msra.mxu0 0.0
        %6287 = vmatprep.subr.mxu0 0.0
        %6288 = vmatpush2.msra.mxu0 0.0
        %6289 = vmatprep.subr.mxu0 0.0
        %6290 = vmatpush2.msra.mxu0 0.0
        %6291 = vmatprep.subr.mxu0 0.0
        %6292 = vmatpush2.msra.mxu0 0.0
        %6293 = vmatprep.subr.mxu0 0.0
        %6294 = vmatpush2.msra.mxu0 0.0
        %6295 = vmatprep.subr.mxu0 0.0
        %6296 = vmatpush2.msra.mxu0 0.0
        %6297 = vmatprep.subr.mxu0 0.0
        %6298 = vmatpush2.msra.mxu0 0.0
        %6299 = vmatprep.subr.mxu0 0.0
        %6300 = vmatpush2.msra.mxu0 0.0
        %6301 = vmatprep.subr.mxu0 0.0
        %6302 = vmatpush2.msra.mxu0 0.0
        %6303 = vmatprep.subr.mxu0 0.0
        %6304 = vmatpush2.msra.mxu0 0.0
        %6305 = vmatprep.subr.mxu0 0.0
        %6306 = vmatpush2.msra.mxu0 0.0
        %6307 = vmatprep.subr.mxu0 0.0
        %6308 = vmatpush2.msra.mxu0 0.0
        %6309 = vmatprep.subr.mxu0 0.0
        %6310 = vmatpush2.msra.mxu0 0.0
        %6311 = vmatprep.subr.mxu0 0.0
        %6312 = vmatpush2.msra.mxu0 0.0
        %6313 = vmatprep.subr.mxu0 0.0
        %6314 = vmatpush2.msra.mxu0 0.0
        %6315 = vmatprep.mubr.f32.mxu0 0.0
        %v6316 = vand.u32 %v5900, 4294901760
        %6317 = vmatmul.mubr.f32.gmra.mxu0 %v6316
        %v6318 = vpop.f32.mrf.mxu0
        %v6319 = vadd.f32 %v6234, %v6318
        %v6320 = vpop.f32.mrf.mxu0
        %6321 = vmatprep.mubr.f32.mxu0 0.0
        %v6322 = vand.u32 %v5903, 4294901760
        %6323 = vmatmul.mubr.f32.gmra.mxu0 %v6322
        %v6324 = vpop.f32.mrf.mxu0
        %v6325 = vadd.f32 %v6242, %v6324
        %v6326 = vpop.f32.mrf.mxu0
        %6327 = vdwg.mxu0
        %6328 = vmatprep.subr.mxu0 0.0
        %6329 = vmatpush1.msra.mxu0 0.0
        %6330 = vmatprep.subr.mxu0 0.0
        %6331 = vmatpush1.msra.mxu0 0.0
        %6332 = vmatprep.subr.mxu0 0.0
        %6333 = vmatpush1.msra.mxu0 0.0
        %6334 = vmatprep.subr.mxu0 0.0
        %6335 = vmatpush1.msra.mxu0 0.0
        %6336 = vmatprep.subr.mxu0 0.0
        %6337 = vmatpush1.msra.mxu0 0.0
        %6338 = vmatprep.subr.mxu0 0.0
        %6339 = vmatpush1.msra.mxu0 0.0
        %6340 = vmatprep.subr.mxu0 0.0
        %6341 = vmatpush1.msra.mxu0 0.0
        %6342 = vmatprep.subr.mxu0 0.0
        %6343 = vmatpush1.msra.mxu0 0.0
        %6344 = vmatprep.subr.mxu0 0.0
        %6345 = vmatpush1.msra.mxu0 0.0
        %6346 = vmatprep.subr.mxu0 0.0
        %6347 = vmatpush1.msra.mxu0 0.0
        %6348 = vmatprep.subr.mxu0 0.0
        %6349 = vmatpush1.msra.mxu0 0.0
        %6350 = vmatprep.subr.mxu0 0.0
        %6351 = vmatpush1.msra.mxu0 0.0
        %6352 = vmatprep.subr.mxu0 0.0
        %6353 = vmatpush1.msra.mxu0 0.0
        %6354 = vmatprep.subr.mxu0 0.0
        %6355 = vmatpush1.msra.mxu0 0.0
        %6356 = vmatprep.subr.mxu0 0.0
        %v6357 = vand.u32 %v5896, 4294901760
        %6358 = vmatpush1.msra.mxu0 %v6357
        %6359 = vmatprep.subr.mxu0 0.0
        %v6360 = vand.u32 %v5894, 4294901760
        %6361 = vmatpush1.msra.mxu0 %v6360
        %6362 = vmatprep.subr.mxu0 0.0
        %6363 = vmatpush2.msra.mxu0 0.0
        %6364 = vmatprep.subr.mxu0 0.0
        %6365 = vmatpush2.msra.mxu0 0.0
        %6366 = vmatprep.subr.mxu0 0.0
        %6367 = vmatpush2.msra.mxu0 0.0
        %6368 = vmatprep.subr.mxu0 0.0
        %6369 = vmatpush2.msra.mxu0 0.0
        %6370 = vmatprep.subr.mxu0 0.0
        %6371 = vmatpush2.msra.mxu0 0.0
        %6372 = vmatprep.subr.mxu0 0.0
        %6373 = vmatpush2.msra.mxu0 0.0
        %6374 = vmatprep.subr.mxu0 0.0
        %6375 = vmatpush2.msra.mxu0 0.0
        %6376 = vmatprep.subr.mxu0 0.0
        %6377 = vmatpush2.msra.mxu0 0.0
        %6378 = vmatprep.subr.mxu0 0.0
        %6379 = vmatpush2.msra.mxu0 0.0
        %6380 = vmatprep.subr.mxu0 0.0
        %6381 = vmatpush2.msra.mxu0 0.0
        %6382 = vmatprep.subr.mxu0 0.0
        %6383 = vmatpush2.msra.mxu0 0.0
        %6384 = vmatprep.subr.mxu0 0.0
        %6385 = vmatpush2.msra.mxu0 0.0
        %6386 = vmatprep.subr.mxu0 0.0
        %6387 = vmatpush2.msra.mxu0 0.0
        %6388 = vmatprep.subr.mxu0 0.0
        %6389 = vmatpush2.msra.mxu0 0.0
        %6390 = vmatprep.subr.mxu0 0.0
        %6391 = vmatpush2.msra.mxu0 0.0
        %6392 = vmatprep.subr.mxu0 0.0
        %6393 = vmatpush2.msra.mxu0 0.0
        %6394 = vmatprep.mubr.f32.mxu0 0.0
        %v6395 = vand.u32 %v5900, 4294901760
        %6396 = vmatmul.mubr.f32.gmra.mxu0 %v6395
        %v6397 = vpop.f32.mrf.mxu0
        %v6398 = vadd.f32 %v6319, %v6397
        %v6399 = vpop.f32.mrf.mxu0
        %6400 = vmatprep.mubr.f32.mxu0 0.0
        %v6401 = vand.u32 %v5903, 4294901760
        %6402 = vmatmul.mubr.f32.gmra.mxu0 %v6401
        %v6403 = vpop.f32.mrf.mxu0
        %v6404 = vadd.f32 %v6325, %v6403
        %v6405 = vpop.f32.mrf.mxu0
        %6406 = vdwg.mxu0
        %v6407 = vadd.f32 %v5344, %v6398
        %v6408 = vadd.f32 %v5345, %v6404
        %v6409 = vlaneseq
        %v6410 = vshrl.u32 %v6409, 7
        %v6411 = vsub.s32 0, %v6410
        %v6412 = vrot.slane %v226, %v6411
        %v6414 = vsel %vm1418, %v6407, 0
        %v6417 = vsel %vm1418, %v6408, 0
        %v6420 = vsel %vm1418, %v210, 0
        %v6423 = vsel %vm1418, %v211, 0
        %v6426 = vsel %vm1418, %v212, 0
        %v6429 = vsel %vm1418, %v213, 0
        %6431 = vmatprep.subr.mxu0 0.0
        %6432 = vmatpush1.xpose.msra.mxu0 0.0
        %6433 = vmatprep.subr.mxu0 0.0
        %6434 = vmatpush1.xpose.msra.mxu0 0.0
        %6435 = vmatprep.subr.mxu0 0.0
        %6436 = vmatpush1.xpose.msra.mxu0 0.0
        %6437 = vmatprep.subr.mxu0 0.0
        %6438 = vmatpush1.xpose.msra.mxu0 0.0
        %6439 = vmatprep.subr.mxu0 0.0
        %6440 = vmatpush1.xpose.msra.mxu0 0.0
        %6441 = vmatprep.subr.mxu0 0.0
        %6442 = vmatpush1.xpose.msra.mxu0 0.0
        %6443 = vmatprep.subr.mxu0 0.0
        %6444 = vmatpush1.xpose.msra.mxu0 0.0
        %6445 = vmatprep.subr.mxu0 0.0
        %6446 = vmatpush1.xpose.msra.mxu0 0.0
        %6447 = vmatprep.subr.mxu0 0.0
        %6448 = vmatpush1.xpose.msra.mxu0 0.0
        %6449 = vmatprep.subr.mxu0 0.0
        %6450 = vmatpush1.xpose.msra.mxu0 0.0
        %6451 = vmatprep.subr.mxu0 0.0
        %6452 = vmatpush1.xpose.msra.mxu0 0.0
        %6453 = vmatprep.subr.mxu0 0.0
        %6454 = vmatpush1.xpose.msra.mxu0 0.0
        %6455 = vmatprep.subr.mxu0 0.0
        %v6456 = vand.u32 %v6429, 4294901760
        %6457 = vmatpush1.xpose.msra.mxu0 %v6456
        %6458 = vmatprep.subr.mxu0 0.0
        %v6459 = vand.u32 %v6426, 4294901760
        %6460 = vmatpush1.xpose.msra.mxu0 %v6459
        %6461 = vmatprep.subr.mxu0 0.0
        %v6462 = vand.u32 %v6423, 4294901760
        %6463 = vmatpush1.xpose.msra.mxu0 %v6462
        %6464 = vmatprep.subr.mxu0 0.0
        %v6465 = vand.u32 %v6420, 4294901760
        %6466 = vmatpush1.xpose.msra.mxu0 %v6465
        %6467 = vmatprep.subr.mxu0 0.0
        %6468 = vmatpush2.xpose.msra.mxu0 0.0
        %6469 = vmatprep.subr.mxu0 0.0
        %6470 = vmatpush2.xpose.msra.mxu0 0.0
        %6471 = vmatprep.subr.mxu0 0.0
        %6472 = vmatpush2.xpose.msra.mxu0 0.0
        %6473 = vmatprep.subr.mxu0 0.0
        %6474 = vmatpush2.xpose.msra.mxu0 0.0
        %6475 = vmatprep.subr.mxu0 0.0
        %6476 = vmatpush2.xpose.msra.mxu0 0.0
        %6477 = vmatprep.subr.mxu0 0.0
        %6478 = vmatpush2.xpose.msra.mxu0 0.0
        %6479 = vmatprep.subr.mxu0 0.0
        %6480 = vmatpush2.xpose.msra.mxu0 0.0
        %6481 = vmatprep.subr.mxu0 0.0
        %6482 = vmatpush2.xpose.msra.mxu0 0.0
        %6483 = vmatprep.subr.mxu0 0.0
        %6484 = vmatpush2.xpose.msra.mxu0 0.0
        %6485 = vmatprep.subr.mxu0 0.0
        %6486 = vmatpush2.xpose.msra.mxu0 0.0
        %6487 = vmatprep.subr.mxu0 0.0
        %6488 = vmatpush2.xpose.msra.mxu0 0.0
        %6489 = vmatprep.subr.mxu0 0.0
        %6490 = vmatpush2.xpose.msra.mxu0 0.0
        %6491 = vmatprep.subr.mxu0 0.0
        %6492 = vmatpush2.xpose.msra.mxu0 0.0
        %6493 = vmatprep.subr.mxu0 0.0
        %6494 = vmatpush2.xpose.msra.mxu0 0.0
        %6495 = vmatprep.subr.mxu0 0.0
        %6496 = vmatpush2.xpose.msra.mxu0 0.0
        %6497 = vmatprep.subr.mxu0 0.0
        %6498 = vmatpush2.xpose.msra.mxu0 0.0
        %6499 = vmatprep.mubr.f32.mxu0 0.0
        %v6500 = vand.u32 %v6414, 4294901760
        %v6501 = vsub.f32 %v6414, %v6500
        %v6502 = vand.u32 %v6501, 4294901760
        %v6503 = vsub.f32 %v6501, %v6502
        %v6504 = vand.u32 %v6503, 4294901760
        %6505 = vmatmul.mubr.f32.gmra.mxu0 %v6504
        %v6506 = vpop.f32.mrf.mxu0
        %v6507 = vadd.f32 %v6412, %v6506
        %v6508 = vpop.f32.mrf.mxu0
        %6509 = vmatprep.mubr.f32.mxu0 0.0
        %v6510 = vand.u32 %v6417, 4294901760
        %v6511 = vsub.f32 %v6417, %v6510
        %v6512 = vand.u32 %v6511, 4294901760
        %v6513 = vsub.f32 %v6511, %v6512
        %v6514 = vand.u32 %v6513, 4294901760
        %6515 = vmatmul.mubr.f32.gmra.mxu0 %v6514
        %v6516 = vpop.f32.mrf.mxu0
        %v6517 = vadd.f32 %v6412, %v6516
        %v6518 = vpop.f32.mrf.mxu0
        %6519 = vdwg.mxu0
        %6520 = vmatprep.subr.mxu0 0.0
        %6521 = vmatpush1.xpose.msra.mxu0 0.0
        %6522 = vmatprep.subr.mxu0 0.0
        %6523 = vmatpush1.xpose.msra.mxu0 0.0
        %6524 = vmatprep.subr.mxu0 0.0
        %6525 = vmatpush1.xpose.msra.mxu0 0.0
        %6526 = vmatprep.subr.mxu0 0.0
        %6527 = vmatpush1.xpose.msra.mxu0 0.0
        %6528 = vmatprep.subr.mxu0 0.0
        %6529 = vmatpush1.xpose.msra.mxu0 0.0
        %6530 = vmatprep.subr.mxu0 0.0
        %6531 = vmatpush1.xpose.msra.mxu0 0.0
        %6532 = vmatprep.subr.mxu0 0.0
        %6533 = vmatpush1.xpose.msra.mxu0 0.0
        %6534 = vmatprep.subr.mxu0 0.0
        %6535 = vmatpush1.xpose.msra.mxu0 0.0
        %6536 = vmatprep.subr.mxu0 0.0
        %6537 = vmatpush1.xpose.msra.mxu0 0.0
        %6538 = vmatprep.subr.mxu0 0.0
        %6539 = vmatpush1.xpose.msra.mxu0 0.0
        %6540 = vmatprep.subr.mxu0 0.0
        %6541 = vmatpush1.xpose.msra.mxu0 0.0
        %6542 = vmatprep.subr.mxu0 0.0
        %6543 = vmatpush1.xpose.msra.mxu0 0.0
        %6544 = vmatprep.subr.mxu0 0.0
        %v6545 = vand.u32 %v6429, 4294901760
        %v6546 = vsub.f32 %v6429, %v6545
        %v6547 = vand.u32 %v6546, 4294901760
        %v6548 = vsub.f32 %v6546, %v6547
        %v6549 = vand.u32 %v6548, 4294901760
        %6550 = vmatpush1.xpose.msra.mxu0 %v6549
        %6551 = vmatprep.subr.mxu0 0.0
        %v6552 = vand.u32 %v6426, 4294901760
        %v6553 = vsub.f32 %v6426, %v6552
        %v6554 = vand.u32 %v6553, 4294901760
        %v6555 = vsub.f32 %v6553, %v6554
        %v6556 = vand.u32 %v6555, 4294901760
        %6557 = vmatpush1.xpose.msra.mxu0 %v6556
        %6558 = vmatprep.subr.mxu0 0.0
        %v6559 = vand.u32 %v6423, 4294901760
        %v6560 = vsub.f32 %v6423, %v6559
        %v6561 = vand.u32 %v6560, 4294901760
        %v6562 = vsub.f32 %v6560, %v6561
        %v6563 = vand.u32 %v6562, 4294901760
        %6564 = vmatpush1.xpose.msra.mxu0 %v6563
        %6565 = vmatprep.subr.mxu0 0.0
        %v6566 = vand.u32 %v6420, 4294901760
        %v6567 = vsub.f32 %v6420, %v6566
        %v6568 = vand.u32 %v6567, 4294901760
        %v6569 = vsub.f32 %v6567, %v6568
        %v6570 = vand.u32 %v6569, 4294901760
        %6571 = vmatpush1.xpose.msra.mxu0 %v6570
        %6572 = vmatprep.subr.mxu0 0.0
        %6573 = vmatpush2.xpose.msra.mxu0 0.0
        %6574 = vmatprep.subr.mxu0 0.0
        %6575 = vmatpush2.xpose.msra.mxu0 0.0
        %6576 = vmatprep.subr.mxu0 0.0
        %6577 = vmatpush2.xpose.msra.mxu0 0.0
        %6578 = vmatprep.subr.mxu0 0.0
        %6579 = vmatpush2.xpose.msra.mxu0 0.0
        %6580 = vmatprep.subr.mxu0 0.0
        %6581 = vmatpush2.xpose.msra.mxu0 0.0
        %6582 = vmatprep.subr.mxu0 0.0
        %6583 = vmatpush2.xpose.msra.mxu0 0.0
        %6584 = vmatprep.subr.mxu0 0.0
        %6585 = vmatpush2.xpose.msra.mxu0 0.0
        %6586 = vmatprep.subr.mxu0 0.0
        %6587 = vmatpush2.xpose.msra.mxu0 0.0
        %6588 = vmatprep.subr.mxu0 0.0
        %6589 = vmatpush2.xpose.msra.mxu0 0.0
        %6590 = vmatprep.subr.mxu0 0.0
        %6591 = vmatpush2.xpose.msra.mxu0 0.0
        %6592 = vmatprep.subr.mxu0 0.0
        %6593 = vmatpush2.xpose.msra.mxu0 0.0
        %6594 = vmatprep.subr.mxu0 0.0
        %6595 = vmatpush2.xpose.msra.mxu0 0.0
        %6596 = vmatprep.subr.mxu0 0.0
        %6597 = vmatpush2.xpose.msra.mxu0 0.0
        %6598 = vmatprep.subr.mxu0 0.0
        %6599 = vmatpush2.xpose.msra.mxu0 0.0
        %6600 = vmatprep.subr.mxu0 0.0
        %6601 = vmatpush2.xpose.msra.mxu0 0.0
        %6602 = vmatprep.subr.mxu0 0.0
        %6603 = vmatpush2.xpose.msra.mxu0 0.0
        %6604 = vmatprep.mubr.f32.mxu0 0.0
        %v6605 = vand.u32 %v6414, 4294901760
        %6606 = vmatmul.mubr.f32.gmra.mxu0 %v6605
        %v6607 = vpop.f32.mrf.mxu0
        %v6608 = vadd.f32 %v6507, %v6607
        %v6609 = vpop.f32.mrf.mxu0
        %6610 = vmatprep.mubr.f32.mxu0 0.0
        %v6611 = vand.u32 %v6417, 4294901760
        %6612 = vmatmul.mubr.f32.gmra.mxu0 %v6611
        %v6613 = vpop.f32.mrf.mxu0
        %v6614 = vadd.f32 %v6517, %v6613
        %v6615 = vpop.f32.mrf.mxu0
        %6616 = vdwg.mxu0
        %6617 = vmatprep.subr.mxu0 0.0
        %6618 = vmatpush1.xpose.msra.mxu0 0.0
        %6619 = vmatprep.subr.mxu0 0.0
        %6620 = vmatpush1.xpose.msra.mxu0 0.0
        %6621 = vmatprep.subr.mxu0 0.0
        %6622 = vmatpush1.xpose.msra.mxu0 0.0
        %6623 = vmatprep.subr.mxu0 0.0
        %6624 = vmatpush1.xpose.msra.mxu0 0.0
        %6625 = vmatprep.subr.mxu0 0.0
        %6626 = vmatpush1.xpose.msra.mxu0 0.0
        %6627 = vmatprep.subr.mxu0 0.0
        %6628 = vmatpush1.xpose.msra.mxu0 0.0
        %6629 = vmatprep.subr.mxu0 0.0
        %6630 = vmatpush1.xpose.msra.mxu0 0.0
        %6631 = vmatprep.subr.mxu0 0.0
        %6632 = vmatpush1.xpose.msra.mxu0 0.0
        %6633 = vmatprep.subr.mxu0 0.0
        %6634 = vmatpush1.xpose.msra.mxu0 0.0
        %6635 = vmatprep.subr.mxu0 0.0
        %6636 = vmatpush1.xpose.msra.mxu0 0.0
        %6637 = vmatprep.subr.mxu0 0.0
        %6638 = vmatpush1.xpose.msra.mxu0 0.0
        %6639 = vmatprep.subr.mxu0 0.0
        %6640 = vmatpush1.xpose.msra.mxu0 0.0
        %6641 = vmatprep.subr.mxu0 0.0
        %v6642 = vand.u32 %v6429, 4294901760
        %v6643 = vsub.f32 %v6429, %v6642
        %6644 = vmatpush1.xpose.msra.mxu0 %v6643
        %6645 = vmatprep.subr.mxu0 0.0
        %v6646 = vand.u32 %v6426, 4294901760
        %v6647 = vsub.f32 %v6426, %v6646
        %6648 = vmatpush1.xpose.msra.mxu0 %v6647
        %6649 = vmatprep.subr.mxu0 0.0
        %v6650 = vand.u32 %v6423, 4294901760
        %v6651 = vsub.f32 %v6423, %v6650
        %6652 = vmatpush1.xpose.msra.mxu0 %v6651
        %6653 = vmatprep.subr.mxu0 0.0
        %v6654 = vand.u32 %v6420, 4294901760
        %v6655 = vsub.f32 %v6420, %v6654
        %6656 = vmatpush1.xpose.msra.mxu0 %v6655
        %6657 = vmatprep.subr.mxu0 0.0
        %6658 = vmatpush2.xpose.msra.mxu0 0.0
        %6659 = vmatprep.subr.mxu0 0.0
        %6660 = vmatpush2.xpose.msra.mxu0 0.0
        %6661 = vmatprep.subr.mxu0 0.0
        %6662 = vmatpush2.xpose.msra.mxu0 0.0
        %6663 = vmatprep.subr.mxu0 0.0
        %6664 = vmatpush2.xpose.msra.mxu0 0.0
        %6665 = vmatprep.subr.mxu0 0.0
        %6666 = vmatpush2.xpose.msra.mxu0 0.0
        %6667 = vmatprep.subr.mxu0 0.0
        %6668 = vmatpush2.xpose.msra.mxu0 0.0
        %6669 = vmatprep.subr.mxu0 0.0
        %6670 = vmatpush2.xpose.msra.mxu0 0.0
        %6671 = vmatprep.subr.mxu0 0.0
        %6672 = vmatpush2.xpose.msra.mxu0 0.0
        %6673 = vmatprep.subr.mxu0 0.0
        %6674 = vmatpush2.xpose.msra.mxu0 0.0
        %6675 = vmatprep.subr.mxu0 0.0
        %6676 = vmatpush2.xpose.msra.mxu0 0.0
        %6677 = vmatprep.subr.mxu0 0.0
        %6678 = vmatpush2.xpose.msra.mxu0 0.0
        %6679 = vmatprep.subr.mxu0 0.0
        %6680 = vmatpush2.xpose.msra.mxu0 0.0
        %6681 = vmatprep.subr.mxu0 0.0
        %6682 = vmatpush2.xpose.msra.mxu0 0.0
        %6683 = vmatprep.subr.mxu0 0.0
        %6684 = vmatpush2.xpose.msra.mxu0 0.0
        %6685 = vmatprep.subr.mxu0 0.0
        %6686 = vmatpush2.xpose.msra.mxu0 0.0
        %6687 = vmatprep.subr.mxu0 0.0
        %6688 = vmatpush2.xpose.msra.mxu0 0.0
        %6689 = vmatprep.mubr.f32.mxu0 0.0
        %v6690 = vand.u32 %v6414, 4294901760
        %v6691 = vsub.f32 %v6414, %v6690
        %6692 = vmatmul.mubr.f32.gmra.mxu0 %v6691
        %v6693 = vpop.f32.mrf.mxu0
        %v6694 = vadd.f32 %v6608, %v6693
        %v6695 = vpop.f32.mrf.mxu0
        %6696 = vmatprep.mubr.f32.mxu0 0.0
        %v6697 = vand.u32 %v6417, 4294901760
        %v6698 = vsub.f32 %v6417, %v6697
        %6699 = vmatmul.mubr.f32.gmra.mxu0 %v6698
        %v6700 = vpop.f32.mrf.mxu0
        %v6701 = vadd.f32 %v6614, %v6700
        %v6702 = vpop.f32.mrf.mxu0
        %6703 = vdwg.mxu0
        %6704 = vmatprep.subr.mxu0 0.0
        %6705 = vmatpush1.xpose.msra.mxu0 0.0
        %6706 = vmatprep.subr.mxu0 0.0
        %6707 = vmatpush1.xpose.msra.mxu0 0.0
        %6708 = vmatprep.subr.mxu0 0.0
        %6709 = vmatpush1.xpose.msra.mxu0 0.0
        %6710 = vmatprep.subr.mxu0 0.0
        %6711 = vmatpush1.xpose.msra.mxu0 0.0
        %6712 = vmatprep.subr.mxu0 0.0
        %6713 = vmatpush1.xpose.msra.mxu0 0.0
        %6714 = vmatprep.subr.mxu0 0.0
        %6715 = vmatpush1.xpose.msra.mxu0 0.0
        %6716 = vmatprep.subr.mxu0 0.0
        %6717 = vmatpush1.xpose.msra.mxu0 0.0
        %6718 = vmatprep.subr.mxu0 0.0
        %6719 = vmatpush1.xpose.msra.mxu0 0.0
        %6720 = vmatprep.subr.mxu0 0.0
        %6721 = vmatpush1.xpose.msra.mxu0 0.0
        %6722 = vmatprep.subr.mxu0 0.0
        %6723 = vmatpush1.xpose.msra.mxu0 0.0
        %6724 = vmatprep.subr.mxu0 0.0
        %6725 = vmatpush1.xpose.msra.mxu0 0.0
        %6726 = vmatprep.subr.mxu0 0.0
        %6727 = vmatpush1.xpose.msra.mxu0 0.0
        %6728 = vmatprep.subr.mxu0 0.0
        %v6729 = vand.u32 %v6429, 4294901760
        %6730 = vmatpush1.xpose.msra.mxu0 %v6729
        %6731 = vmatprep.subr.mxu0 0.0
        %v6732 = vand.u32 %v6426, 4294901760
        %6733 = vmatpush1.xpose.msra.mxu0 %v6732
        %6734 = vmatprep.subr.mxu0 0.0
        %v6735 = vand.u32 %v6423, 4294901760
        %6736 = vmatpush1.xpose.msra.mxu0 %v6735
        %6737 = vmatprep.subr.mxu0 0.0
        %v6738 = vand.u32 %v6420, 4294901760
        %6739 = vmatpush1.xpose.msra.mxu0 %v6738
        %6740 = vmatprep.subr.mxu0 0.0
        %6741 = vmatpush2.xpose.msra.mxu0 0.0
        %6742 = vmatprep.subr.mxu0 0.0
        %6743 = vmatpush2.xpose.msra.mxu0 0.0
        %6744 = vmatprep.subr.mxu0 0.0
        %6745 = vmatpush2.xpose.msra.mxu0 0.0
        %6746 = vmatprep.subr.mxu0 0.0
        %6747 = vmatpush2.xpose.msra.mxu0 0.0
        %6748 = vmatprep.subr.mxu0 0.0
        %6749 = vmatpush2.xpose.msra.mxu0 0.0
        %6750 = vmatprep.subr.mxu0 0.0
        %6751 = vmatpush2.xpose.msra.mxu0 0.0
        %6752 = vmatprep.subr.mxu0 0.0
        %6753 = vmatpush2.xpose.msra.mxu0 0.0
        %6754 = vmatprep.subr.mxu0 0.0
        %6755 = vmatpush2.xpose.msra.mxu0 0.0
        %6756 = vmatprep.subr.mxu0 0.0
        %6757 = vmatpush2.xpose.msra.mxu0 0.0
        %6758 = vmatprep.subr.mxu0 0.0
        %6759 = vmatpush2.xpose.msra.mxu0 0.0
        %6760 = vmatprep.subr.mxu0 0.0
        %6761 = vmatpush2.xpose.msra.mxu0 0.0
        %6762 = vmatprep.subr.mxu0 0.0
        %6763 = vmatpush2.xpose.msra.mxu0 0.0
        %6764 = vmatprep.subr.mxu0 0.0
        %6765 = vmatpush2.xpose.msra.mxu0 0.0
        %6766 = vmatprep.subr.mxu0 0.0
        %6767 = vmatpush2.xpose.msra.mxu0 0.0
        %6768 = vmatprep.subr.mxu0 0.0
        %6769 = vmatpush2.xpose.msra.mxu0 0.0
        %6770 = vmatprep.subr.mxu0 0.0
        %6771 = vmatpush2.xpose.msra.mxu0 0.0
        %6772 = vmatprep.mubr.f32.mxu0 0.0
        %v6773 = vand.u32 %v6414, 4294901760
        %v6774 = vsub.f32 %v6414, %v6773
        %v6775 = vand.u32 %v6774, 4294901760
        %6776 = vmatmul.mubr.f32.gmra.mxu0 %v6775
        %v6777 = vpop.f32.mrf.mxu0
        %v6778 = vadd.f32 %v6694, %v6777
        %v6779 = vpop.f32.mrf.mxu0
        %6780 = vmatprep.mubr.f32.mxu0 0.0
        %v6781 = vand.u32 %v6417, 4294901760
        %v6782 = vsub.f32 %v6417, %v6781
        %v6783 = vand.u32 %v6782, 4294901760
        %6784 = vmatmul.mubr.f32.gmra.mxu0 %v6783
        %v6785 = vpop.f32.mrf.mxu0
        %v6786 = vadd.f32 %v6701, %v6785
        %v6787 = vpop.f32.mrf.mxu0
        %6788 = vdwg.mxu0
        %6789 = vmatprep.subr.mxu0 0.0
        %6790 = vmatpush1.xpose.msra.mxu0 0.0
        %6791 = vmatprep.subr.mxu0 0.0
        %6792 = vmatpush1.xpose.msra.mxu0 0.0
        %6793 = vmatprep.subr.mxu0 0.0
        %6794 = vmatpush1.xpose.msra.mxu0 0.0
        %6795 = vmatprep.subr.mxu0 0.0
        %6796 = vmatpush1.xpose.msra.mxu0 0.0
        %6797 = vmatprep.subr.mxu0 0.0
        %6798 = vmatpush1.xpose.msra.mxu0 0.0
        %6799 = vmatprep.subr.mxu0 0.0
        %6800 = vmatpush1.xpose.msra.mxu0 0.0
        %6801 = vmatprep.subr.mxu0 0.0
        %6802 = vmatpush1.xpose.msra.mxu0 0.0
        %6803 = vmatprep.subr.mxu0 0.0
        %6804 = vmatpush1.xpose.msra.mxu0 0.0
        %6805 = vmatprep.subr.mxu0 0.0
        %6806 = vmatpush1.xpose.msra.mxu0 0.0
        %6807 = vmatprep.subr.mxu0 0.0
        %6808 = vmatpush1.xpose.msra.mxu0 0.0
        %6809 = vmatprep.subr.mxu0 0.0
        %6810 = vmatpush1.xpose.msra.mxu0 0.0
        %6811 = vmatprep.subr.mxu0 0.0
        %6812 = vmatpush1.xpose.msra.mxu0 0.0
        %6813 = vmatprep.subr.mxu0 0.0
        %v6814 = vand.u32 %v6429, 4294901760
        %v6815 = vsub.f32 %v6429, %v6814
        %v6816 = vand.u32 %v6815, 4294901760
        %6817 = vmatpush1.xpose.msra.mxu0 %v6816
        %6818 = vmatprep.subr.mxu0 0.0
        %v6819 = vand.u32 %v6426, 4294901760
        %v6820 = vsub.f32 %v6426, %v6819
        %v6821 = vand.u32 %v6820, 4294901760
        %6822 = vmatpush1.xpose.msra.mxu0 %v6821
        %6823 = vmatprep.subr.mxu0 0.0
        %v6824 = vand.u32 %v6423, 4294901760
        %v6825 = vsub.f32 %v6423, %v6824
        %v6826 = vand.u32 %v6825, 4294901760
        %6827 = vmatpush1.xpose.msra.mxu0 %v6826
        %6828 = vmatprep.subr.mxu0 0.0
        %v6829 = vand.u32 %v6420, 4294901760
        %v6830 = vsub.f32 %v6420, %v6829
        %v6831 = vand.u32 %v6830, 4294901760
        %6832 = vmatpush1.xpose.msra.mxu0 %v6831
        %6833 = vmatprep.subr.mxu0 0.0
        %6834 = vmatpush2.xpose.msra.mxu0 0.0
        %6835 = vmatprep.subr.mxu0 0.0
        %6836 = vmatpush2.xpose.msra.mxu0 0.0
        %6837 = vmatprep.subr.mxu0 0.0
        %6838 = vmatpush2.xpose.msra.mxu0 0.0
        %6839 = vmatprep.subr.mxu0 0.0
        %6840 = vmatpush2.xpose.msra.mxu0 0.0
        %6841 = vmatprep.subr.mxu0 0.0
        %6842 = vmatpush2.xpose.msra.mxu0 0.0
        %6843 = vmatprep.subr.mxu0 0.0
        %6844 = vmatpush2.xpose.msra.mxu0 0.0
        %6845 = vmatprep.subr.mxu0 0.0
        %6846 = vmatpush2.xpose.msra.mxu0 0.0
        %6847 = vmatprep.subr.mxu0 0.0
        %6848 = vmatpush2.xpose.msra.mxu0 0.0
        %6849 = vmatprep.subr.mxu0 0.0
        %6850 = vmatpush2.xpose.msra.mxu0 0.0
        %6851 = vmatprep.subr.mxu0 0.0
        %6852 = vmatpush2.xpose.msra.mxu0 0.0
        %6853 = vmatprep.subr.mxu0 0.0
        %6854 = vmatpush2.xpose.msra.mxu0 0.0
        %6855 = vmatprep.subr.mxu0 0.0
        %6856 = vmatpush2.xpose.msra.mxu0 0.0
        %6857 = vmatprep.subr.mxu0 0.0
        %6858 = vmatpush2.xpose.msra.mxu0 0.0
        %6859 = vmatprep.subr.mxu0 0.0
        %6860 = vmatpush2.xpose.msra.mxu0 0.0
        %6861 = vmatprep.subr.mxu0 0.0
        %6862 = vmatpush2.xpose.msra.mxu0 0.0
        %6863 = vmatprep.subr.mxu0 0.0
        %6864 = vmatpush2.xpose.msra.mxu0 0.0
        %6865 = vmatprep.mubr.f32.mxu0 0.0
        %v6866 = vand.u32 %v6414, 4294901760
        %6867 = vmatmul.mubr.f32.gmra.mxu0 %v6866
        %v6868 = vpop.f32.mrf.mxu0
        %v6869 = vadd.f32 %v6778, %v6868
        %v6870 = vpop.f32.mrf.mxu0
        %6871 = vmatprep.mubr.f32.mxu0 0.0
        %v6872 = vand.u32 %v6417, 4294901760
        %6873 = vmatmul.mubr.f32.gmra.mxu0 %v6872
        %v6874 = vpop.f32.mrf.mxu0
        %v6875 = vadd.f32 %v6786, %v6874
        %v6876 = vpop.f32.mrf.mxu0
        %6877 = vdwg.mxu0
        %6878 = vmatprep.subr.mxu0 0.0
        %6879 = vmatpush1.xpose.msra.mxu0 0.0
        %6880 = vmatprep.subr.mxu0 0.0
        %6881 = vmatpush1.xpose.msra.mxu0 0.0
        %6882 = vmatprep.subr.mxu0 0.0
        %6883 = vmatpush1.xpose.msra.mxu0 0.0
        %6884 = vmatprep.subr.mxu0 0.0
        %6885 = vmatpush1.xpose.msra.mxu0 0.0
        %6886 = vmatprep.subr.mxu0 0.0
        %6887 = vmatpush1.xpose.msra.mxu0 0.0
        %6888 = vmatprep.subr.mxu0 0.0
        %6889 = vmatpush1.xpose.msra.mxu0 0.0
        %6890 = vmatprep.subr.mxu0 0.0
        %6891 = vmatpush1.xpose.msra.mxu0 0.0
        %6892 = vmatprep.subr.mxu0 0.0
        %6893 = vmatpush1.xpose.msra.mxu0 0.0
        %6894 = vmatprep.subr.mxu0 0.0
        %6895 = vmatpush1.xpose.msra.mxu0 0.0
        %6896 = vmatprep.subr.mxu0 0.0
        %6897 = vmatpush1.xpose.msra.mxu0 0.0
        %6898 = vmatprep.subr.mxu0 0.0
        %6899 = vmatpush1.xpose.msra.mxu0 0.0
        %6900 = vmatprep.subr.mxu0 0.0
        %6901 = vmatpush1.xpose.msra.mxu0 0.0
        %6902 = vmatprep.subr.mxu0 0.0
        %v6903 = vand.u32 %v6429, 4294901760
        %6904 = vmatpush1.xpose.msra.mxu0 %v6903
        %6905 = vmatprep.subr.mxu0 0.0
        %v6906 = vand.u32 %v6426, 4294901760
        %6907 = vmatpush1.xpose.msra.mxu0 %v6906
        %6908 = vmatprep.subr.mxu0 0.0
        %v6909 = vand.u32 %v6423, 4294901760
        %6910 = vmatpush1.xpose.msra.mxu0 %v6909
        %6911 = vmatprep.subr.mxu0 0.0
        %v6912 = vand.u32 %v6420, 4294901760
        %6913 = vmatpush1.xpose.msra.mxu0 %v6912
        %6914 = vmatprep.subr.mxu0 0.0
        %6915 = vmatpush2.xpose.msra.mxu0 0.0
        %6916 = vmatprep.subr.mxu0 0.0
        %6917 = vmatpush2.xpose.msra.mxu0 0.0
        %6918 = vmatprep.subr.mxu0 0.0
        %6919 = vmatpush2.xpose.msra.mxu0 0.0
        %6920 = vmatprep.subr.mxu0 0.0
        %6921 = vmatpush2.xpose.msra.mxu0 0.0
        %6922 = vmatprep.subr.mxu0 0.0
        %6923 = vmatpush2.xpose.msra.mxu0 0.0
        %6924 = vmatprep.subr.mxu0 0.0
        %6925 = vmatpush2.xpose.msra.mxu0 0.0
        %6926 = vmatprep.subr.mxu0 0.0
        %6927 = vmatpush2.xpose.msra.mxu0 0.0
        %6928 = vmatprep.subr.mxu0 0.0
        %6929 = vmatpush2.xpose.msra.mxu0 0.0
        %6930 = vmatprep.subr.mxu0 0.0
        %6931 = vmatpush2.xpose.msra.mxu0 0.0
        %6932 = vmatprep.subr.mxu0 0.0
        %6933 = vmatpush2.xpose.msra.mxu0 0.0
        %6934 = vmatprep.subr.mxu0 0.0
        %6935 = vmatpush2.xpose.msra.mxu0 0.0
        %6936 = vmatprep.subr.mxu0 0.0
        %6937 = vmatpush2.xpose.msra.mxu0 0.0
        %6938 = vmatprep.subr.mxu0 0.0
        %6939 = vmatpush2.xpose.msra.mxu0 0.0
        %6940 = vmatprep.subr.mxu0 0.0
        %6941 = vmatpush2.xpose.msra.mxu0 0.0
        %6942 = vmatprep.subr.mxu0 0.0
        %6943 = vmatpush2.xpose.msra.mxu0 0.0
        %6944 = vmatprep.subr.mxu0 0.0
        %6945 = vmatpush2.xpose.msra.mxu0 0.0
        %6946 = vmatprep.mubr.f32.mxu0 0.0
        %v6947 = vand.u32 %v6414, 4294901760
        %6948 = vmatmul.mubr.f32.gmra.mxu0 %v6947
        %v6949 = vpop.f32.mrf.mxu0
        %v6950 = vadd.f32 %v6869, %v6949
        %v6951 = vpop.f32.mrf.mxu0
        %6952 = vmatprep.mubr.f32.mxu0 0.0
        %v6953 = vand.u32 %v6417, 4294901760
        %6954 = vmatmul.mubr.f32.gmra.mxu0 %v6953
        %v6955 = vpop.f32.mrf.mxu0
        %v6956 = vadd.f32 %v6875, %v6955
        %v6957 = vpop.f32.mrf.mxu0
        %6958 = vdwg.mxu0
        %v6959 = vadd.f32 %v1446, %v6950
        %v6960 = vadd.f32 %v1447, %v6956
        %v6961 = vsel %vm1418, %v6959, 0.0
        %6962 = vadd.xlane.f32.xlu0 %v6961
        %v6963 = vpop.xlane.xlu0 %6962
        %v6964 = vsel %vm1418, %v6960, 0.0
        %6965 = vadd.xlane.f32.xlu0 %v6964
        %v6966 = vpop.xlane.xlu0 %6965
        %v6967 = vrcp.pop 32.0
        %v6968 = vmul.f32 %v6963, %v6967
        %v6969 = vmul.f32 %v6966, %v6967
        %v6970 = vsub.f32 %v6959, %v6968
        %v6971 = vsub.f32 %v6960, %v6969
        %v6972 = vmul.f32 %v6970, %v6970
        %v6973 = vmul.f32 %v6971, %v6971
        %v6974 = vsel %vm1418, %v6972, 0.0
        %6975 = vadd.xlane.f32.xlu0 %v6974
        %v6976 = vpop.xlane.xlu0 %6975
        %v6977 = vsel %vm1418, %v6973, 0.0
        %6978 = vadd.xlane.f32.xlu0 %v6977
        %v6979 = vpop.xlane.xlu0 %6978
        %v6980 = vmul.f32 %v6976, %v6967
        %v6981 = vmul.f32 %v6979, %v6967
        %v6982 = vadd.f32 %v6980, 1e-05
        %v6983 = vadd.f32 %v6981, 1e-05
        %v6984 = vrsqrt.pop %v6982
        %v6985 = vrsqrt.pop %v6983
        %v6986 = vmul.f32 %v6970, %v6984
        %v6987 = vmul.f32 %v6971, %v6985
        %v6988 = vlaneseq
        %v6989 = vshrl.u32 %v6988, 7
        %v6990 = vsub.s32 0, %v6989
        %v6991 = vrot.slane %v227, %v6990
        %v6992 = vmul.f32 %v6986, %v6991
        %v6993 = vmul.f32 %v6987, %v6991
        %v6994 = vlaneseq
        %v6995 = vshrl.u32 %v6994, 7
        %v6996 = vsub.s32 0, %v6995
        %v6997 = vrot.slane %v228, %v6996
        %v6998 = vadd.f32 %v6992, %v6997
        %v6999 = vadd.f32 %v6993, %v6997
        %v7000 = vlaneseq
        %v7001 = vshrl.u32 %v7000, 7
        %v7002 = vsub.s32 0, %v7001
        %v7003 = vrot.slane %v241, %v7002
        %v7005 = vsel %vm1418, %v6998, 0
        %v7008 = vsel %vm1418, %v6999, 0
        %v7011 = vsel %vm1418, %v214, 0
        %v7014 = vsel %vm1418, %v215, 0
        %v7017 = vsel %vm1418, %v216, 0
        %v7020 = vsel %vm1418, %v217, 0
        %v7023 = vsel %vm1418, %v218, 0
        %v7026 = vsel %vm1418, %v219, 0
        %v7029 = vsel %vm1418, %v220, 0
        %v7032 = vsel %vm1418, %v221, 0
        %7034 = vmatprep.subr.mxu0 0.0
        %7035 = vmatpush1.xpose.msra.mxu0 0.0
        %7036 = vmatprep.subr.mxu0 0.0
        %7037 = vmatpush1.xpose.msra.mxu0 0.0
        %7038 = vmatprep.subr.mxu0 0.0
        %7039 = vmatpush1.xpose.msra.mxu0 0.0
        %7040 = vmatprep.subr.mxu0 0.0
        %7041 = vmatpush1.xpose.msra.mxu0 0.0
        %7042 = vmatprep.subr.mxu0 0.0
        %7043 = vmatpush1.xpose.msra.mxu0 0.0
        %7044 = vmatprep.subr.mxu0 0.0
        %7045 = vmatpush1.xpose.msra.mxu0 0.0
        %7046 = vmatprep.subr.mxu0 0.0
        %7047 = vmatpush1.xpose.msra.mxu0 0.0
        %7048 = vmatprep.subr.mxu0 0.0
        %7049 = vmatpush1.xpose.msra.mxu0 0.0
        %7050 = vmatprep.subr.mxu0 0.0
        %v7051 = vand.u32 %v7032, 4294901760
        %7052 = vmatpush1.xpose.msra.mxu0 %v7051
        %7053 = vmatprep.subr.mxu0 0.0
        %v7054 = vand.u32 %v7029, 4294901760
        %7055 = vmatpush1.xpose.msra.mxu0 %v7054
        %7056 = vmatprep.subr.mxu0 0.0
        %v7057 = vand.u32 %v7026, 4294901760
        %7058 = vmatpush1.xpose.msra.mxu0 %v7057
        %7059 = vmatprep.subr.mxu0 0.0
        %v7060 = vand.u32 %v7023, 4294901760
        %7061 = vmatpush1.xpose.msra.mxu0 %v7060
        %7062 = vmatprep.subr.mxu0 0.0
        %v7063 = vand.u32 %v7020, 4294901760
        %7064 = vmatpush1.xpose.msra.mxu0 %v7063
        %7065 = vmatprep.subr.mxu0 0.0
        %v7066 = vand.u32 %v7017, 4294901760
        %7067 = vmatpush1.xpose.msra.mxu0 %v7066
        %7068 = vmatprep.subr.mxu0 0.0
        %v7069 = vand.u32 %v7014, 4294901760
        %7070 = vmatpush1.xpose.msra.mxu0 %v7069
        %7071 = vmatprep.subr.mxu0 0.0
        %v7072 = vand.u32 %v7011, 4294901760
        %7073 = vmatpush1.xpose.msra.mxu0 %v7072
        %7074 = vmatprep.subr.mxu0 0.0
        %7075 = vmatpush2.xpose.msra.mxu0 0.0
        %7076 = vmatprep.subr.mxu0 0.0
        %7077 = vmatpush2.xpose.msra.mxu0 0.0
        %7078 = vmatprep.subr.mxu0 0.0
        %7079 = vmatpush2.xpose.msra.mxu0 0.0
        %7080 = vmatprep.subr.mxu0 0.0
        %7081 = vmatpush2.xpose.msra.mxu0 0.0
        %7082 = vmatprep.subr.mxu0 0.0
        %7083 = vmatpush2.xpose.msra.mxu0 0.0
        %7084 = vmatprep.subr.mxu0 0.0
        %7085 = vmatpush2.xpose.msra.mxu0 0.0
        %7086 = vmatprep.subr.mxu0 0.0
        %7087 = vmatpush2.xpose.msra.mxu0 0.0
        %7088 = vmatprep.subr.mxu0 0.0
        %7089 = vmatpush2.xpose.msra.mxu0 0.0
        %7090 = vmatprep.subr.mxu0 0.0
        %7091 = vmatpush2.xpose.msra.mxu0 0.0
        %7092 = vmatprep.subr.mxu0 0.0
        %7093 = vmatpush2.xpose.msra.mxu0 0.0
        %7094 = vmatprep.subr.mxu0 0.0
        %7095 = vmatpush2.xpose.msra.mxu0 0.0
        %7096 = vmatprep.subr.mxu0 0.0
        %7097 = vmatpush2.xpose.msra.mxu0 0.0
        %7098 = vmatprep.subr.mxu0 0.0
        %7099 = vmatpush2.xpose.msra.mxu0 0.0
        %7100 = vmatprep.subr.mxu0 0.0
        %7101 = vmatpush2.xpose.msra.mxu0 0.0
        %7102 = vmatprep.subr.mxu0 0.0
        %7103 = vmatpush2.xpose.msra.mxu0 0.0
        %7104 = vmatprep.subr.mxu0 0.0
        %7105 = vmatpush2.xpose.msra.mxu0 0.0
        %7106 = vmatprep.mubr.f32.mxu0 0.0
        %v7107 = vand.u32 %v7005, 4294901760
        %v7108 = vsub.f32 %v7005, %v7107
        %v7109 = vand.u32 %v7108, 4294901760
        %v7110 = vsub.f32 %v7108, %v7109
        %v7111 = vand.u32 %v7110, 4294901760
        %7112 = vmatmul.mubr.f32.gmra.mxu0 %v7111
        %v7113 = vpop.f32.mrf.mxu0
        %v7114 = vadd.f32 %v7003, %v7113
        %v7115 = vpop.f32.mrf.mxu0
        %7116 = vmatprep.mubr.f32.mxu0 0.0
        %v7117 = vand.u32 %v7008, 4294901760
        %v7118 = vsub.f32 %v7008, %v7117
        %v7119 = vand.u32 %v7118, 4294901760
        %v7120 = vsub.f32 %v7118, %v7119
        %v7121 = vand.u32 %v7120, 4294901760
        %7122 = vmatmul.mubr.f32.gmra.mxu0 %v7121
        %v7123 = vpop.f32.mrf.mxu0
        %v7124 = vadd.f32 %v7003, %v7123
        %v7125 = vpop.f32.mrf.mxu0
        %7126 = vdwg.mxu0
        %7127 = vmatprep.subr.mxu0 0.0
        %7128 = vmatpush1.xpose.msra.mxu0 0.0
        %7129 = vmatprep.subr.mxu0 0.0
        %7130 = vmatpush1.xpose.msra.mxu0 0.0
        %7131 = vmatprep.subr.mxu0 0.0
        %7132 = vmatpush1.xpose.msra.mxu0 0.0
        %7133 = vmatprep.subr.mxu0 0.0
        %7134 = vmatpush1.xpose.msra.mxu0 0.0
        %7135 = vmatprep.subr.mxu0 0.0
        %7136 = vmatpush1.xpose.msra.mxu0 0.0
        %7137 = vmatprep.subr.mxu0 0.0
        %7138 = vmatpush1.xpose.msra.mxu0 0.0
        %7139 = vmatprep.subr.mxu0 0.0
        %7140 = vmatpush1.xpose.msra.mxu0 0.0
        %7141 = vmatprep.subr.mxu0 0.0
        %7142 = vmatpush1.xpose.msra.mxu0 0.0
        %7143 = vmatprep.subr.mxu0 0.0
        %v7144 = vand.u32 %v7032, 4294901760
        %v7145 = vsub.f32 %v7032, %v7144
        %v7146 = vand.u32 %v7145, 4294901760
        %v7147 = vsub.f32 %v7145, %v7146
        %v7148 = vand.u32 %v7147, 4294901760
        %7149 = vmatpush1.xpose.msra.mxu0 %v7148
        %7150 = vmatprep.subr.mxu0 0.0
        %v7151 = vand.u32 %v7029, 4294901760
        %v7152 = vsub.f32 %v7029, %v7151
        %v7153 = vand.u32 %v7152, 4294901760
        %v7154 = vsub.f32 %v7152, %v7153
        %v7155 = vand.u32 %v7154, 4294901760
        %7156 = vmatpush1.xpose.msra.mxu0 %v7155
        %7157 = vmatprep.subr.mxu0 0.0
        %v7158 = vand.u32 %v7026, 4294901760
        %v7159 = vsub.f32 %v7026, %v7158
        %v7160 = vand.u32 %v7159, 4294901760
        %v7161 = vsub.f32 %v7159, %v7160
        %v7162 = vand.u32 %v7161, 4294901760
        %7163 = vmatpush1.xpose.msra.mxu0 %v7162
        %7164 = vmatprep.subr.mxu0 0.0
        %v7165 = vand.u32 %v7023, 4294901760
        %v7166 = vsub.f32 %v7023, %v7165
        %v7167 = vand.u32 %v7166, 4294901760
        %v7168 = vsub.f32 %v7166, %v7167
        %v7169 = vand.u32 %v7168, 4294901760
        %7170 = vmatpush1.xpose.msra.mxu0 %v7169
        %7171 = vmatprep.subr.mxu0 0.0
        %v7172 = vand.u32 %v7020, 4294901760
        %v7173 = vsub.f32 %v7020, %v7172
        %v7174 = vand.u32 %v7173, 4294901760
        %v7175 = vsub.f32 %v7173, %v7174
        %v7176 = vand.u32 %v7175, 4294901760
        %7177 = vmatpush1.xpose.msra.mxu0 %v7176
        %7178 = vmatprep.subr.mxu0 0.0
        %v7179 = vand.u32 %v7017, 4294901760
        %v7180 = vsub.f32 %v7017, %v7179
        %v7181 = vand.u32 %v7180, 4294901760
        %v7182 = vsub.f32 %v7180, %v7181
        %v7183 = vand.u32 %v7182, 4294901760
        %7184 = vmatpush1.xpose.msra.mxu0 %v7183
        %7185 = vmatprep.subr.mxu0 0.0
        %v7186 = vand.u32 %v7014, 4294901760
        %v7187 = vsub.f32 %v7014, %v7186
        %v7188 = vand.u32 %v7187, 4294901760
        %v7189 = vsub.f32 %v7187, %v7188
        %v7190 = vand.u32 %v7189, 4294901760
        %7191 = vmatpush1.xpose.msra.mxu0 %v7190
        %7192 = vmatprep.subr.mxu0 0.0
        %v7193 = vand.u32 %v7011, 4294901760
        %v7194 = vsub.f32 %v7011, %v7193
        %v7195 = vand.u32 %v7194, 4294901760
        %v7196 = vsub.f32 %v7194, %v7195
        %v7197 = vand.u32 %v7196, 4294901760
        %7198 = vmatpush1.xpose.msra.mxu0 %v7197
        %7199 = vmatprep.subr.mxu0 0.0
        %7200 = vmatpush2.xpose.msra.mxu0 0.0
        %7201 = vmatprep.subr.mxu0 0.0
        %7202 = vmatpush2.xpose.msra.mxu0 0.0
        %7203 = vmatprep.subr.mxu0 0.0
        %7204 = vmatpush2.xpose.msra.mxu0 0.0
        %7205 = vmatprep.subr.mxu0 0.0
        %7206 = vmatpush2.xpose.msra.mxu0 0.0
        %7207 = vmatprep.subr.mxu0 0.0
        %7208 = vmatpush2.xpose.msra.mxu0 0.0
        %7209 = vmatprep.subr.mxu0 0.0
        %7210 = vmatpush2.xpose.msra.mxu0 0.0
        %7211 = vmatprep.subr.mxu0 0.0
        %7212 = vmatpush2.xpose.msra.mxu0 0.0
        %7213 = vmatprep.subr.mxu0 0.0
        %7214 = vmatpush2.xpose.msra.mxu0 0.0
        %7215 = vmatprep.subr.mxu0 0.0
        %7216 = vmatpush2.xpose.msra.mxu0 0.0
        %7217 = vmatprep.subr.mxu0 0.0
        %7218 = vmatpush2.xpose.msra.mxu0 0.0
        %7219 = vmatprep.subr.mxu0 0.0
        %7220 = vmatpush2.xpose.msra.mxu0 0.0
        %7221 = vmatprep.subr.mxu0 0.0
        %7222 = vmatpush2.xpose.msra.mxu0 0.0
        %7223 = vmatprep.subr.mxu0 0.0
        %7224 = vmatpush2.xpose.msra.mxu0 0.0
        %7225 = vmatprep.subr.mxu0 0.0
        %7226 = vmatpush2.xpose.msra.mxu0 0.0
        %7227 = vmatprep.subr.mxu0 0.0
        %7228 = vmatpush2.xpose.msra.mxu0 0.0
        %7229 = vmatprep.subr.mxu0 0.0
        %7230 = vmatpush2.xpose.msra.mxu0 0.0
        %7231 = vmatprep.mubr.f32.mxu0 0.0
        %v7232 = vand.u32 %v7005, 4294901760
        %7233 = vmatmul.mubr.f32.gmra.mxu0 %v7232
        %v7234 = vpop.f32.mrf.mxu0
        %v7235 = vadd.f32 %v7114, %v7234
        %v7236 = vpop.f32.mrf.mxu0
        %7237 = vmatprep.mubr.f32.mxu0 0.0
        %v7238 = vand.u32 %v7008, 4294901760
        %7239 = vmatmul.mubr.f32.gmra.mxu0 %v7238
        %v7240 = vpop.f32.mrf.mxu0
        %v7241 = vadd.f32 %v7124, %v7240
        %v7242 = vpop.f32.mrf.mxu0
        %7243 = vdwg.mxu0
        %7244 = vmatprep.subr.mxu0 0.0
        %7245 = vmatpush1.xpose.msra.mxu0 0.0
        %7246 = vmatprep.subr.mxu0 0.0
        %7247 = vmatpush1.xpose.msra.mxu0 0.0
        %7248 = vmatprep.subr.mxu0 0.0
        %7249 = vmatpush1.xpose.msra.mxu0 0.0
        %7250 = vmatprep.subr.mxu0 0.0
        %7251 = vmatpush1.xpose.msra.mxu0 0.0
        %7252 = vmatprep.subr.mxu0 0.0
        %7253 = vmatpush1.xpose.msra.mxu0 0.0
        %7254 = vmatprep.subr.mxu0 0.0
        %7255 = vmatpush1.xpose.msra.mxu0 0.0
        %7256 = vmatprep.subr.mxu0 0.0
        %7257 = vmatpush1.xpose.msra.mxu0 0.0
        %7258 = vmatprep.subr.mxu0 0.0
        %7259 = vmatpush1.xpose.msra.mxu0 0.0
        %7260 = vmatprep.subr.mxu0 0.0
        %v7261 = vand.u32 %v7032, 4294901760
        %v7262 = vsub.f32 %v7032, %v7261
        %7263 = vmatpush1.xpose.msra.mxu0 %v7262
        %7264 = vmatprep.subr.mxu0 0.0
        %v7265 = vand.u32 %v7029, 4294901760
        %v7266 = vsub.f32 %v7029, %v7265
        %7267 = vmatpush1.xpose.msra.mxu0 %v7266
        %7268 = vmatprep.subr.mxu0 0.0
        %v7269 = vand.u32 %v7026, 4294901760
        %v7270 = vsub.f32 %v7026, %v7269
        %7271 = vmatpush1.xpose.msra.mxu0 %v7270
        %7272 = vmatprep.subr.mxu0 0.0
        %v7273 = vand.u32 %v7023, 4294901760
        %v7274 = vsub.f32 %v7023, %v7273
        %7275 = vmatpush1.xpose.msra.mxu0 %v7274
        %7276 = vmatprep.subr.mxu0 0.0
        %v7277 = vand.u32 %v7020, 4294901760
        %v7278 = vsub.f32 %v7020, %v7277
        %7279 = vmatpush1.xpose.msra.mxu0 %v7278
        %7280 = vmatprep.subr.mxu0 0.0
        %v7281 = vand.u32 %v7017, 4294901760
        %v7282 = vsub.f32 %v7017, %v7281
        %7283 = vmatpush1.xpose.msra.mxu0 %v7282
        %7284 = vmatprep.subr.mxu0 0.0
        %v7285 = vand.u32 %v7014, 4294901760
        %v7286 = vsub.f32 %v7014, %v7285
        %7287 = vmatpush1.xpose.msra.mxu0 %v7286
        %7288 = vmatprep.subr.mxu0 0.0
        %v7289 = vand.u32 %v7011, 4294901760
        %v7290 = vsub.f32 %v7011, %v7289
        %7291 = vmatpush1.xpose.msra.mxu0 %v7290
        %7292 = vmatprep.subr.mxu0 0.0
        %7293 = vmatpush2.xpose.msra.mxu0 0.0
        %7294 = vmatprep.subr.mxu0 0.0
        %7295 = vmatpush2.xpose.msra.mxu0 0.0
        %7296 = vmatprep.subr.mxu0 0.0
        %7297 = vmatpush2.xpose.msra.mxu0 0.0
        %7298 = vmatprep.subr.mxu0 0.0
        %7299 = vmatpush2.xpose.msra.mxu0 0.0
        %7300 = vmatprep.subr.mxu0 0.0
        %7301 = vmatpush2.xpose.msra.mxu0 0.0
        %7302 = vmatprep.subr.mxu0 0.0
        %7303 = vmatpush2.xpose.msra.mxu0 0.0
        %7304 = vmatprep.subr.mxu0 0.0
        %7305 = vmatpush2.xpose.msra.mxu0 0.0
        %7306 = vmatprep.subr.mxu0 0.0
        %7307 = vmatpush2.xpose.msra.mxu0 0.0
        %7308 = vmatprep.subr.mxu0 0.0
        %7309 = vmatpush2.xpose.msra.mxu0 0.0
        %7310 = vmatprep.subr.mxu0 0.0
        %7311 = vmatpush2.xpose.msra.mxu0 0.0
        %7312 = vmatprep.subr.mxu0 0.0
        %7313 = vmatpush2.xpose.msra.mxu0 0.0
        %7314 = vmatprep.subr.mxu0 0.0
        %7315 = vmatpush2.xpose.msra.mxu0 0.0
        %7316 = vmatprep.subr.mxu0 0.0
        %7317 = vmatpush2.xpose.msra.mxu0 0.0
        %7318 = vmatprep.subr.mxu0 0.0
        %7319 = vmatpush2.xpose.msra.mxu0 0.0
        %7320 = vmatprep.subr.mxu0 0.0
        %7321 = vmatpush2.xpose.msra.mxu0 0.0
        %7322 = vmatprep.subr.mxu0 0.0
        %7323 = vmatpush2.xpose.msra.mxu0 0.0
        %7324 = vmatprep.mubr.f32.mxu0 0.0
        %v7325 = vand.u32 %v7005, 4294901760
        %v7326 = vsub.f32 %v7005, %v7325
        %7327 = vmatmul.mubr.f32.gmra.mxu0 %v7326
        %v7328 = vpop.f32.mrf.mxu0
        %v7329 = vadd.f32 %v7235, %v7328
        %v7330 = vpop.f32.mrf.mxu0
        %7331 = vmatprep.mubr.f32.mxu0 0.0
        %v7332 = vand.u32 %v7008, 4294901760
        %v7333 = vsub.f32 %v7008, %v7332
        %7334 = vmatmul.mubr.f32.gmra.mxu0 %v7333
        %v7335 = vpop.f32.mrf.mxu0
        %v7336 = vadd.f32 %v7241, %v7335
        %v7337 = vpop.f32.mrf.mxu0
        %7338 = vdwg.mxu0
        %7339 = vmatprep.subr.mxu0 0.0
        %7340 = vmatpush1.xpose.msra.mxu0 0.0
        %7341 = vmatprep.subr.mxu0 0.0
        %7342 = vmatpush1.xpose.msra.mxu0 0.0
        %7343 = vmatprep.subr.mxu0 0.0
        %7344 = vmatpush1.xpose.msra.mxu0 0.0
        %7345 = vmatprep.subr.mxu0 0.0
        %7346 = vmatpush1.xpose.msra.mxu0 0.0
        %7347 = vmatprep.subr.mxu0 0.0
        %7348 = vmatpush1.xpose.msra.mxu0 0.0
        %7349 = vmatprep.subr.mxu0 0.0
        %7350 = vmatpush1.xpose.msra.mxu0 0.0
        %7351 = vmatprep.subr.mxu0 0.0
        %7352 = vmatpush1.xpose.msra.mxu0 0.0
        %7353 = vmatprep.subr.mxu0 0.0
        %7354 = vmatpush1.xpose.msra.mxu0 0.0
        %7355 = vmatprep.subr.mxu0 0.0
        %v7356 = vand.u32 %v7032, 4294901760
        %7357 = vmatpush1.xpose.msra.mxu0 %v7356
        %7358 = vmatprep.subr.mxu0 0.0
        %v7359 = vand.u32 %v7029, 4294901760
        %7360 = vmatpush1.xpose.msra.mxu0 %v7359
        %7361 = vmatprep.subr.mxu0 0.0
        %v7362 = vand.u32 %v7026, 4294901760
        %7363 = vmatpush1.xpose.msra.mxu0 %v7362
        %7364 = vmatprep.subr.mxu0 0.0
        %v7365 = vand.u32 %v7023, 4294901760
        %7366 = vmatpush1.xpose.msra.mxu0 %v7365
        %7367 = vmatprep.subr.mxu0 0.0
        %v7368 = vand.u32 %v7020, 4294901760
        %7369 = vmatpush1.xpose.msra.mxu0 %v7368
        %7370 = vmatprep.subr.mxu0 0.0
        %v7371 = vand.u32 %v7017, 4294901760
        %7372 = vmatpush1.xpose.msra.mxu0 %v7371
        %7373 = vmatprep.subr.mxu0 0.0
        %v7374 = vand.u32 %v7014, 4294901760
        %7375 = vmatpush1.xpose.msra.mxu0 %v7374
        %7376 = vmatprep.subr.mxu0 0.0
        %v7377 = vand.u32 %v7011, 4294901760
        %7378 = vmatpush1.xpose.msra.mxu0 %v7377
        %7379 = vmatprep.subr.mxu0 0.0
        %7380 = vmatpush2.xpose.msra.mxu0 0.0
        %7381 = vmatprep.subr.mxu0 0.0
        %7382 = vmatpush2.xpose.msra.mxu0 0.0
        %7383 = vmatprep.subr.mxu0 0.0
        %7384 = vmatpush2.xpose.msra.mxu0 0.0
        %7385 = vmatprep.subr.mxu0 0.0
        %7386 = vmatpush2.xpose.msra.mxu0 0.0
        %7387 = vmatprep.subr.mxu0 0.0
        %7388 = vmatpush2.xpose.msra.mxu0 0.0
        %7389 = vmatprep.subr.mxu0 0.0
        %7390 = vmatpush2.xpose.msra.mxu0 0.0
        %7391 = vmatprep.subr.mxu0 0.0
        %7392 = vmatpush2.xpose.msra.mxu0 0.0
        %7393 = vmatprep.subr.mxu0 0.0
        %7394 = vmatpush2.xpose.msra.mxu0 0.0
        %7395 = vmatprep.subr.mxu0 0.0
        %7396 = vmatpush2.xpose.msra.mxu0 0.0
        %7397 = vmatprep.subr.mxu0 0.0
        %7398 = vmatpush2.xpose.msra.mxu0 0.0
        %7399 = vmatprep.subr.mxu0 0.0
        %7400 = vmatpush2.xpose.msra.mxu0 0.0
        %7401 = vmatprep.subr.mxu0 0.0
        %7402 = vmatpush2.xpose.msra.mxu0 0.0
        %7403 = vmatprep.subr.mxu0 0.0
        %7404 = vmatpush2.xpose.msra.mxu0 0.0
        %7405 = vmatprep.subr.mxu0 0.0
        %7406 = vmatpush2.xpose.msra.mxu0 0.0
        %7407 = vmatprep.subr.mxu0 0.0
        %7408 = vmatpush2.xpose.msra.mxu0 0.0
        %7409 = vmatprep.subr.mxu0 0.0
        %7410 = vmatpush2.xpose.msra.mxu0 0.0
        %7411 = vmatprep.mubr.f32.mxu0 0.0
        %v7412 = vand.u32 %v7005, 4294901760
        %v7413 = vsub.f32 %v7005, %v7412
        %v7414 = vand.u32 %v7413, 4294901760
        %7415 = vmatmul.mubr.f32.gmra.mxu0 %v7414
        %v7416 = vpop.f32.mrf.mxu0
        %v7417 = vadd.f32 %v7329, %v7416
        %v7418 = vpop.f32.mrf.mxu0
        %7419 = vmatprep.mubr.f32.mxu0 0.0
        %v7420 = vand.u32 %v7008, 4294901760
        %v7421 = vsub.f32 %v7008, %v7420
        %v7422 = vand.u32 %v7421, 4294901760
        %7423 = vmatmul.mubr.f32.gmra.mxu0 %v7422
        %v7424 = vpop.f32.mrf.mxu0
        %v7425 = vadd.f32 %v7336, %v7424
        %v7426 = vpop.f32.mrf.mxu0
        %7427 = vdwg.mxu0
        %7428 = vmatprep.subr.mxu0 0.0
        %7429 = vmatpush1.xpose.msra.mxu0 0.0
        %7430 = vmatprep.subr.mxu0 0.0
        %7431 = vmatpush1.xpose.msra.mxu0 0.0
        %7432 = vmatprep.subr.mxu0 0.0
        %7433 = vmatpush1.xpose.msra.mxu0 0.0
        %7434 = vmatprep.subr.mxu0 0.0
        %7435 = vmatpush1.xpose.msra.mxu0 0.0
        %7436 = vmatprep.subr.mxu0 0.0
        %7437 = vmatpush1.xpose.msra.mxu0 0.0
        %7438 = vmatprep.subr.mxu0 0.0
        %7439 = vmatpush1.xpose.msra.mxu0 0.0
        %7440 = vmatprep.subr.mxu0 0.0
        %7441 = vmatpush1.xpose.msra.mxu0 0.0
        %7442 = vmatprep.subr.mxu0 0.0
        %7443 = vmatpush1.xpose.msra.mxu0 0.0
        %7444 = vmatprep.subr.mxu0 0.0
        %v7445 = vand.u32 %v7032, 4294901760
        %v7446 = vsub.f32 %v7032, %v7445
        %v7447 = vand.u32 %v7446, 4294901760
        %7448 = vmatpush1.xpose.msra.mxu0 %v7447
        %7449 = vmatprep.subr.mxu0 0.0
        %v7450 = vand.u32 %v7029, 4294901760
        %v7451 = vsub.f32 %v7029, %v7450
        %v7452 = vand.u32 %v7451, 4294901760
        %7453 = vmatpush1.xpose.msra.mxu0 %v7452
        %7454 = vmatprep.subr.mxu0 0.0
        %v7455 = vand.u32 %v7026, 4294901760
        %v7456 = vsub.f32 %v7026, %v7455
        %v7457 = vand.u32 %v7456, 4294901760
        %7458 = vmatpush1.xpose.msra.mxu0 %v7457
        %7459 = vmatprep.subr.mxu0 0.0
        %v7460 = vand.u32 %v7023, 4294901760
        %v7461 = vsub.f32 %v7023, %v7460
        %v7462 = vand.u32 %v7461, 4294901760
        %7463 = vmatpush1.xpose.msra.mxu0 %v7462
        %7464 = vmatprep.subr.mxu0 0.0
        %v7465 = vand.u32 %v7020, 4294901760
        %v7466 = vsub.f32 %v7020, %v7465
        %v7467 = vand.u32 %v7466, 4294901760
        %7468 = vmatpush1.xpose.msra.mxu0 %v7467
        %7469 = vmatprep.subr.mxu0 0.0
        %v7470 = vand.u32 %v7017, 4294901760
        %v7471 = vsub.f32 %v7017, %v7470
        %v7472 = vand.u32 %v7471, 4294901760
        %7473 = vmatpush1.xpose.msra.mxu0 %v7472
        %7474 = vmatprep.subr.mxu0 0.0
        %v7475 = vand.u32 %v7014, 4294901760
        %v7476 = vsub.f32 %v7014, %v7475
        %v7477 = vand.u32 %v7476, 4294901760
        %7478 = vmatpush1.xpose.msra.mxu0 %v7477
        %7479 = vmatprep.subr.mxu0 0.0
        %v7480 = vand.u32 %v7011, 4294901760
        %v7481 = vsub.f32 %v7011, %v7480
        %v7482 = vand.u32 %v7481, 4294901760
        %7483 = vmatpush1.xpose.msra.mxu0 %v7482
        %7484 = vmatprep.subr.mxu0 0.0
        %7485 = vmatpush2.xpose.msra.mxu0 0.0
        %7486 = vmatprep.subr.mxu0 0.0
        %7487 = vmatpush2.xpose.msra.mxu0 0.0
        %7488 = vmatprep.subr.mxu0 0.0
        %7489 = vmatpush2.xpose.msra.mxu0 0.0
        %7490 = vmatprep.subr.mxu0 0.0
        %7491 = vmatpush2.xpose.msra.mxu0 0.0
        %7492 = vmatprep.subr.mxu0 0.0
        %7493 = vmatpush2.xpose.msra.mxu0 0.0
        %7494 = vmatprep.subr.mxu0 0.0
        %7495 = vmatpush2.xpose.msra.mxu0 0.0
        %7496 = vmatprep.subr.mxu0 0.0
        %7497 = vmatpush2.xpose.msra.mxu0 0.0
        %7498 = vmatprep.subr.mxu0 0.0
        %7499 = vmatpush2.xpose.msra.mxu0 0.0
        %7500 = vmatprep.subr.mxu0 0.0
        %7501 = vmatpush2.xpose.msra.mxu0 0.0
        %7502 = vmatprep.subr.mxu0 0.0
        %7503 = vmatpush2.xpose.msra.mxu0 0.0
        %7504 = vmatprep.subr.mxu0 0.0
        %7505 = vmatpush2.xpose.msra.mxu0 0.0
        %7506 = vmatprep.subr.mxu0 0.0
        %7507 = vmatpush2.xpose.msra.mxu0 0.0
        %7508 = vmatprep.subr.mxu0 0.0
        %7509 = vmatpush2.xpose.msra.mxu0 0.0
        %7510 = vmatprep.subr.mxu0 0.0
        %7511 = vmatpush2.xpose.msra.mxu0 0.0
        %7512 = vmatprep.subr.mxu0 0.0
        %7513 = vmatpush2.xpose.msra.mxu0 0.0
        %7514 = vmatprep.subr.mxu0 0.0
        %7515 = vmatpush2.xpose.msra.mxu0 0.0
        %7516 = vmatprep.mubr.f32.mxu0 0.0
        %v7517 = vand.u32 %v7005, 4294901760
        %7518 = vmatmul.mubr.f32.gmra.mxu0 %v7517
        %v7519 = vpop.f32.mrf.mxu0
        %v7520 = vadd.f32 %v7417, %v7519
        %v7521 = vpop.f32.mrf.mxu0
        %7522 = vmatprep.mubr.f32.mxu0 0.0
        %v7523 = vand.u32 %v7008, 4294901760
        %7524 = vmatmul.mubr.f32.gmra.mxu0 %v7523
        %v7525 = vpop.f32.mrf.mxu0
        %v7526 = vadd.f32 %v7425, %v7525
        %v7527 = vpop.f32.mrf.mxu0
        %7528 = vdwg.mxu0
        %7529 = vmatprep.subr.mxu0 0.0
        %7530 = vmatpush1.xpose.msra.mxu0 0.0
        %7531 = vmatprep.subr.mxu0 0.0
        %7532 = vmatpush1.xpose.msra.mxu0 0.0
        %7533 = vmatprep.subr.mxu0 0.0
        %7534 = vmatpush1.xpose.msra.mxu0 0.0
        %7535 = vmatprep.subr.mxu0 0.0
        %7536 = vmatpush1.xpose.msra.mxu0 0.0
        %7537 = vmatprep.subr.mxu0 0.0
        %7538 = vmatpush1.xpose.msra.mxu0 0.0
        %7539 = vmatprep.subr.mxu0 0.0
        %7540 = vmatpush1.xpose.msra.mxu0 0.0
        %7541 = vmatprep.subr.mxu0 0.0
        %7542 = vmatpush1.xpose.msra.mxu0 0.0
        %7543 = vmatprep.subr.mxu0 0.0
        %7544 = vmatpush1.xpose.msra.mxu0 0.0
        %7545 = vmatprep.subr.mxu0 0.0
        %v7546 = vand.u32 %v7032, 4294901760
        %7547 = vmatpush1.xpose.msra.mxu0 %v7546
        %7548 = vmatprep.subr.mxu0 0.0
        %v7549 = vand.u32 %v7029, 4294901760
        %7550 = vmatpush1.xpose.msra.mxu0 %v7549
        %7551 = vmatprep.subr.mxu0 0.0
        %v7552 = vand.u32 %v7026, 4294901760
        %7553 = vmatpush1.xpose.msra.mxu0 %v7552
        %7554 = vmatprep.subr.mxu0 0.0
        %v7555 = vand.u32 %v7023, 4294901760
        %7556 = vmatpush1.xpose.msra.mxu0 %v7555
        %7557 = vmatprep.subr.mxu0 0.0
        %v7558 = vand.u32 %v7020, 4294901760
        %7559 = vmatpush1.xpose.msra.mxu0 %v7558
        %7560 = vmatprep.subr.mxu0 0.0
        %v7561 = vand.u32 %v7017, 4294901760
        %7562 = vmatpush1.xpose.msra.mxu0 %v7561
        %7563 = vmatprep.subr.mxu0 0.0
        %v7564 = vand.u32 %v7014, 4294901760
        %7565 = vmatpush1.xpose.msra.mxu0 %v7564
        %7566 = vmatprep.subr.mxu0 0.0
        %v7567 = vand.u32 %v7011, 4294901760
        %7568 = vmatpush1.xpose.msra.mxu0 %v7567
        %7569 = vmatprep.subr.mxu0 0.0
        %7570 = vmatpush2.xpose.msra.mxu0 0.0
        %7571 = vmatprep.subr.mxu0 0.0
        %7572 = vmatpush2.xpose.msra.mxu0 0.0
        %7573 = vmatprep.subr.mxu0 0.0
        %7574 = vmatpush2.xpose.msra.mxu0 0.0
        %7575 = vmatprep.subr.mxu0 0.0
        %7576 = vmatpush2.xpose.msra.mxu0 0.0
        %7577 = vmatprep.subr.mxu0 0.0
        %7578 = vmatpush2.xpose.msra.mxu0 0.0
        %7579 = vmatprep.subr.mxu0 0.0
        %7580 = vmatpush2.xpose.msra.mxu0 0.0
        %7581 = vmatprep.subr.mxu0 0.0
        %7582 = vmatpush2.xpose.msra.mxu0 0.0
        %7583 = vmatprep.subr.mxu0 0.0
        %7584 = vmatpush2.xpose.msra.mxu0 0.0
        %7585 = vmatprep.subr.mxu0 0.0
        %7586 = vmatpush2.xpose.msra.mxu0 0.0
        %7587 = vmatprep.subr.mxu0 0.0
        %7588 = vmatpush2.xpose.msra.mxu0 0.0
        %7589 = vmatprep.subr.mxu0 0.0
        %7590 = vmatpush2.xpose.msra.mxu0 0.0
        %7591 = vmatprep.subr.mxu0 0.0
        %7592 = vmatpush2.xpose.msra.mxu0 0.0
        %7593 = vmatprep.subr.mxu0 0.0
        %7594 = vmatpush2.xpose.msra.mxu0 0.0
        %7595 = vmatprep.subr.mxu0 0.0
        %7596 = vmatpush2.xpose.msra.mxu0 0.0
        %7597 = vmatprep.subr.mxu0 0.0
        %7598 = vmatpush2.xpose.msra.mxu0 0.0
        %7599 = vmatprep.subr.mxu0 0.0
        %7600 = vmatpush2.xpose.msra.mxu0 0.0
        %7601 = vmatprep.mubr.f32.mxu0 0.0
        %v7602 = vand.u32 %v7005, 4294901760
        %7603 = vmatmul.mubr.f32.gmra.mxu0 %v7602
        %v7604 = vpop.f32.mrf.mxu0
        %v7605 = vadd.f32 %v7520, %v7604
        %v7606 = vpop.f32.mrf.mxu0
        %7607 = vmatprep.mubr.f32.mxu0 0.0
        %v7608 = vand.u32 %v7008, 4294901760
        %7609 = vmatmul.mubr.f32.gmra.mxu0 %v7608
        %v7610 = vpop.f32.mrf.mxu0
        %v7611 = vadd.f32 %v7526, %v7610
        %v7612 = vpop.f32.mrf.mxu0
        %7613 = vdwg.mxu0
        %v7614 = vmax.f32 %v7605, 0.0
        %v7615 = vmax.f32 %v7611, 0.0
        %v7616 = vlaneseq
        %v7617 = vshrl.u32 %v7616, 7
        %v7618 = vsub.s32 0, %v7617
        %v7619 = vrot.slane %v229, %v7618
        %v7621 = vsel %vm871, %v7614, 0
        %v7624 = vsel %vm871, %v7615, 0
        %v7627 = vsel %vm871, %v236, 0
        %v7630 = vsel %vm871, %v237, 0
        %v7633 = vsel %vm871, %v238, 0
        %v7636 = vsel %vm871, %v239, 0
        %7638 = vmatprep.subr.mxu0 0.0
        %7639 = vmatpush1.xpose.msra.mxu0 0.0
        %7640 = vmatprep.subr.mxu0 0.0
        %7641 = vmatpush1.xpose.msra.mxu0 0.0
        %7642 = vmatprep.subr.mxu0 0.0
        %7643 = vmatpush1.xpose.msra.mxu0 0.0
        %7644 = vmatprep.subr.mxu0 0.0
        %7645 = vmatpush1.xpose.msra.mxu0 0.0
        %7646 = vmatprep.subr.mxu0 0.0
        %7647 = vmatpush1.xpose.msra.mxu0 0.0
        %7648 = vmatprep.subr.mxu0 0.0
        %7649 = vmatpush1.xpose.msra.mxu0 0.0
        %7650 = vmatprep.subr.mxu0 0.0
        %7651 = vmatpush1.xpose.msra.mxu0 0.0
        %7652 = vmatprep.subr.mxu0 0.0
        %7653 = vmatpush1.xpose.msra.mxu0 0.0
        %7654 = vmatprep.subr.mxu0 0.0
        %7655 = vmatpush1.xpose.msra.mxu0 0.0
        %7656 = vmatprep.subr.mxu0 0.0
        %7657 = vmatpush1.xpose.msra.mxu0 0.0
        %7658 = vmatprep.subr.mxu0 0.0
        %7659 = vmatpush1.xpose.msra.mxu0 0.0
        %7660 = vmatprep.subr.mxu0 0.0
        %7661 = vmatpush1.xpose.msra.mxu0 0.0
        %7662 = vmatprep.subr.mxu0 0.0
        %v7663 = vand.u32 %v7636, 4294901760
        %7664 = vmatpush1.xpose.msra.mxu0 %v7663
        %7665 = vmatprep.subr.mxu0 0.0
        %v7666 = vand.u32 %v7633, 4294901760
        %7667 = vmatpush1.xpose.msra.mxu0 %v7666
        %7668 = vmatprep.subr.mxu0 0.0
        %v7669 = vand.u32 %v7630, 4294901760
        %7670 = vmatpush1.xpose.msra.mxu0 %v7669
        %7671 = vmatprep.subr.mxu0 0.0
        %v7672 = vand.u32 %v7627, 4294901760
        %7673 = vmatpush1.xpose.msra.mxu0 %v7672
        %7674 = vmatprep.subr.mxu0 0.0
        %7675 = vmatpush2.xpose.msra.mxu0 0.0
        %7676 = vmatprep.subr.mxu0 0.0
        %7677 = vmatpush2.xpose.msra.mxu0 0.0
        %7678 = vmatprep.subr.mxu0 0.0
        %7679 = vmatpush2.xpose.msra.mxu0 0.0
        %7680 = vmatprep.subr.mxu0 0.0
        %7681 = vmatpush2.xpose.msra.mxu0 0.0
        %7682 = vmatprep.subr.mxu0 0.0
        %7683 = vmatpush2.xpose.msra.mxu0 0.0
        %7684 = vmatprep.subr.mxu0 0.0
        %7685 = vmatpush2.xpose.msra.mxu0 0.0
        %7686 = vmatprep.subr.mxu0 0.0
        %7687 = vmatpush2.xpose.msra.mxu0 0.0
        %7688 = vmatprep.subr.mxu0 0.0
        %7689 = vmatpush2.xpose.msra.mxu0 0.0
        %7690 = vmatprep.subr.mxu0 0.0
        %7691 = vmatpush2.xpose.msra.mxu0 0.0
        %7692 = vmatprep.subr.mxu0 0.0
        %7693 = vmatpush2.xpose.msra.mxu0 0.0
        %7694 = vmatprep.subr.mxu0 0.0
        %7695 = vmatpush2.xpose.msra.mxu0 0.0
        %7696 = vmatprep.subr.mxu0 0.0
        %7697 = vmatpush2.xpose.msra.mxu0 0.0
        %7698 = vmatprep.subr.mxu0 0.0
        %7699 = vmatpush2.xpose.msra.mxu0 0.0
        %7700 = vmatprep.subr.mxu0 0.0
        %7701 = vmatpush2.xpose.msra.mxu0 0.0
        %7702 = vmatprep.subr.mxu0 0.0
        %7703 = vmatpush2.xpose.msra.mxu0 0.0
        %7704 = vmatprep.subr.mxu0 0.0
        %7705 = vmatpush2.xpose.msra.mxu0 0.0
        %7706 = vmatprep.mubr.f32.mxu0 0.0
        %v7707 = vand.u32 %v7621, 4294901760
        %v7708 = vsub.f32 %v7621, %v7707
        %v7709 = vand.u32 %v7708, 4294901760
        %v7710 = vsub.f32 %v7708, %v7709
        %v7711 = vand.u32 %v7710, 4294901760
        %7712 = vmatmul.mubr.f32.gmra.mxu0 %v7711
        %v7713 = vpop.f32.mrf.mxu0
        %v7714 = vadd.f32 %v7619, %v7713
        %v7715 = vpop.f32.mrf.mxu0
        %7716 = vmatprep.mubr.f32.mxu0 0.0
        %v7717 = vand.u32 %v7624, 4294901760
        %v7718 = vsub.f32 %v7624, %v7717
        %v7719 = vand.u32 %v7718, 4294901760
        %v7720 = vsub.f32 %v7718, %v7719
        %v7721 = vand.u32 %v7720, 4294901760
        %7722 = vmatmul.mubr.f32.gmra.mxu0 %v7721
        %v7723 = vpop.f32.mrf.mxu0
        %v7724 = vadd.f32 %v7619, %v7723
        %v7725 = vpop.f32.mrf.mxu0
        %7726 = vdwg.mxu0
        %7727 = vmatprep.subr.mxu0 0.0
        %7728 = vmatpush1.xpose.msra.mxu0 0.0
        %7729 = vmatprep.subr.mxu0 0.0
        %7730 = vmatpush1.xpose.msra.mxu0 0.0
        %7731 = vmatprep.subr.mxu0 0.0
        %7732 = vmatpush1.xpose.msra.mxu0 0.0
        %7733 = vmatprep.subr.mxu0 0.0
        %7734 = vmatpush1.xpose.msra.mxu0 0.0
        %7735 = vmatprep.subr.mxu0 0.0
        %7736 = vmatpush1.xpose.msra.mxu0 0.0
        %7737 = vmatprep.subr.mxu0 0.0
        %7738 = vmatpush1.xpose.msra.mxu0 0.0
        %7739 = vmatprep.subr.mxu0 0.0
        %7740 = vmatpush1.xpose.msra.mxu0 0.0
        %7741 = vmatprep.subr.mxu0 0.0
        %7742 = vmatpush1.xpose.msra.mxu0 0.0
        %7743 = vmatprep.subr.mxu0 0.0
        %7744 = vmatpush1.xpose.msra.mxu0 0.0
        %7745 = vmatprep.subr.mxu0 0.0
        %7746 = vmatpush1.xpose.msra.mxu0 0.0
        %7747 = vmatprep.subr.mxu0 0.0
        %7748 = vmatpush1.xpose.msra.mxu0 0.0
        %7749 = vmatprep.subr.mxu0 0.0
        %7750 = vmatpush1.xpose.msra.mxu0 0.0
        %7751 = vmatprep.subr.mxu0 0.0
        %v7752 = vand.u32 %v7636, 4294901760
        %v7753 = vsub.f32 %v7636, %v7752
        %v7754 = vand.u32 %v7753, 4294901760
        %v7755 = vsub.f32 %v7753, %v7754
        %v7756 = vand.u32 %v7755, 4294901760
        %7757 = vmatpush1.xpose.msra.mxu0 %v7756
        %7758 = vmatprep.subr.mxu0 0.0
        %v7759 = vand.u32 %v7633, 4294901760
        %v7760 = vsub.f32 %v7633, %v7759
        %v7761 = vand.u32 %v7760, 4294901760
        %v7762 = vsub.f32 %v7760, %v7761
        %v7763 = vand.u32 %v7762, 4294901760
        %7764 = vmatpush1.xpose.msra.mxu0 %v7763
        %7765 = vmatprep.subr.mxu0 0.0
        %v7766 = vand.u32 %v7630, 4294901760
        %v7767 = vsub.f32 %v7630, %v7766
        %v7768 = vand.u32 %v7767, 4294901760
        %v7769 = vsub.f32 %v7767, %v7768
        %v7770 = vand.u32 %v7769, 4294901760
        %7771 = vmatpush1.xpose.msra.mxu0 %v7770
        %7772 = vmatprep.subr.mxu0 0.0
        %v7773 = vand.u32 %v7627, 4294901760
        %v7774 = vsub.f32 %v7627, %v7773
        %v7775 = vand.u32 %v7774, 4294901760
        %v7776 = vsub.f32 %v7774, %v7775
        %v7777 = vand.u32 %v7776, 4294901760
        %7778 = vmatpush1.xpose.msra.mxu0 %v7777
        %7779 = vmatprep.subr.mxu0 0.0
        %7780 = vmatpush2.xpose.msra.mxu0 0.0
        %7781 = vmatprep.subr.mxu0 0.0
        %7782 = vmatpush2.xpose.msra.mxu0 0.0
        %7783 = vmatprep.subr.mxu0 0.0
        %7784 = vmatpush2.xpose.msra.mxu0 0.0
        %7785 = vmatprep.subr.mxu0 0.0
        %7786 = vmatpush2.xpose.msra.mxu0 0.0
        %7787 = vmatprep.subr.mxu0 0.0
        %7788 = vmatpush2.xpose.msra.mxu0 0.0
        %7789 = vmatprep.subr.mxu0 0.0
        %7790 = vmatpush2.xpose.msra.mxu0 0.0
        %7791 = vmatprep.subr.mxu0 0.0
        %7792 = vmatpush2.xpose.msra.mxu0 0.0
        %7793 = vmatprep.subr.mxu0 0.0
        %7794 = vmatpush2.xpose.msra.mxu0 0.0
        %7795 = vmatprep.subr.mxu0 0.0
        %7796 = vmatpush2.xpose.msra.mxu0 0.0
        %7797 = vmatprep.subr.mxu0 0.0
        %7798 = vmatpush2.xpose.msra.mxu0 0.0
        %7799 = vmatprep.subr.mxu0 0.0
        %7800 = vmatpush2.xpose.msra.mxu0 0.0
        %7801 = vmatprep.subr.mxu0 0.0
        %7802 = vmatpush2.xpose.msra.mxu0 0.0
        %7803 = vmatprep.subr.mxu0 0.0
        %7804 = vmatpush2.xpose.msra.mxu0 0.0
        %7805 = vmatprep.subr.mxu0 0.0
        %7806 = vmatpush2.xpose.msra.mxu0 0.0
        %7807 = vmatprep.subr.mxu0 0.0
        %7808 = vmatpush2.xpose.msra.mxu0 0.0
        %7809 = vmatprep.subr.mxu0 0.0
        %7810 = vmatpush2.xpose.msra.mxu0 0.0
        %7811 = vmatprep.mubr.f32.mxu0 0.0
        %v7812 = vand.u32 %v7621, 4294901760
        %7813 = vmatmul.mubr.f32.gmra.mxu0 %v7812
        %v7814 = vpop.f32.mrf.mxu0
        %v7815 = vadd.f32 %v7714, %v7814
        %v7816 = vpop.f32.mrf.mxu0
        %7817 = vmatprep.mubr.f32.mxu0 0.0
        %v7818 = vand.u32 %v7624, 4294901760
        %7819 = vmatmul.mubr.f32.gmra.mxu0 %v7818
        %v7820 = vpop.f32.mrf.mxu0
        %v7821 = vadd.f32 %v7724, %v7820
        %v7822 = vpop.f32.mrf.mxu0
        %7823 = vdwg.mxu0
        %7824 = vmatprep.subr.mxu0 0.0
        %7825 = vmatpush1.xpose.msra.mxu0 0.0
        %7826 = vmatprep.subr.mxu0 0.0
        %7827 = vmatpush1.xpose.msra.mxu0 0.0
        %7828 = vmatprep.subr.mxu0 0.0
        %7829 = vmatpush1.xpose.msra.mxu0 0.0
        %7830 = vmatprep.subr.mxu0 0.0
        %7831 = vmatpush1.xpose.msra.mxu0 0.0
        %7832 = vmatprep.subr.mxu0 0.0
        %7833 = vmatpush1.xpose.msra.mxu0 0.0
        %7834 = vmatprep.subr.mxu0 0.0
        %7835 = vmatpush1.xpose.msra.mxu0 0.0
        %7836 = vmatprep.subr.mxu0 0.0
        %7837 = vmatpush1.xpose.msra.mxu0 0.0
        %7838 = vmatprep.subr.mxu0 0.0
        %7839 = vmatpush1.xpose.msra.mxu0 0.0
        %7840 = vmatprep.subr.mxu0 0.0
        %7841 = vmatpush1.xpose.msra.mxu0 0.0
        %7842 = vmatprep.subr.mxu0 0.0
        %7843 = vmatpush1.xpose.msra.mxu0 0.0
        %7844 = vmatprep.subr.mxu0 0.0
        %7845 = vmatpush1.xpose.msra.mxu0 0.0
        %7846 = vmatprep.subr.mxu0 0.0
        %7847 = vmatpush1.xpose.msra.mxu0 0.0
        %7848 = vmatprep.subr.mxu0 0.0
        %v7849 = vand.u32 %v7636, 4294901760
        %v7850 = vsub.f32 %v7636, %v7849
        %7851 = vmatpush1.xpose.msra.mxu0 %v7850
        %7852 = vmatprep.subr.mxu0 0.0
        %v7853 = vand.u32 %v7633, 4294901760
        %v7854 = vsub.f32 %v7633, %v7853
        %7855 = vmatpush1.xpose.msra.mxu0 %v7854
        %7856 = vmatprep.subr.mxu0 0.0
        %v7857 = vand.u32 %v7630, 4294901760
        %v7858 = vsub.f32 %v7630, %v7857
        %7859 = vmatpush1.xpose.msra.mxu0 %v7858
        %7860 = vmatprep.subr.mxu0 0.0
        %v7861 = vand.u32 %v7627, 4294901760
        %v7862 = vsub.f32 %v7627, %v7861
        %7863 = vmatpush1.xpose.msra.mxu0 %v7862
        %7864 = vmatprep.subr.mxu0 0.0
        %7865 = vmatpush2.xpose.msra.mxu0 0.0
        %7866 = vmatprep.subr.mxu0 0.0
        %7867 = vmatpush2.xpose.msra.mxu0 0.0
        %7868 = vmatprep.subr.mxu0 0.0
        %7869 = vmatpush2.xpose.msra.mxu0 0.0
        %7870 = vmatprep.subr.mxu0 0.0
        %7871 = vmatpush2.xpose.msra.mxu0 0.0
        %7872 = vmatprep.subr.mxu0 0.0
        %7873 = vmatpush2.xpose.msra.mxu0 0.0
        %7874 = vmatprep.subr.mxu0 0.0
        %7875 = vmatpush2.xpose.msra.mxu0 0.0
        %7876 = vmatprep.subr.mxu0 0.0
        %7877 = vmatpush2.xpose.msra.mxu0 0.0
        %7878 = vmatprep.subr.mxu0 0.0
        %7879 = vmatpush2.xpose.msra.mxu0 0.0
        %7880 = vmatprep.subr.mxu0 0.0
        %7881 = vmatpush2.xpose.msra.mxu0 0.0
        %7882 = vmatprep.subr.mxu0 0.0
        %7883 = vmatpush2.xpose.msra.mxu0 0.0
        %7884 = vmatprep.subr.mxu0 0.0
        %7885 = vmatpush2.xpose.msra.mxu0 0.0
        %7886 = vmatprep.subr.mxu0 0.0
        %7887 = vmatpush2.xpose.msra.mxu0 0.0
        %7888 = vmatprep.subr.mxu0 0.0
        %7889 = vmatpush2.xpose.msra.mxu0 0.0
        %7890 = vmatprep.subr.mxu0 0.0
        %7891 = vmatpush2.xpose.msra.mxu0 0.0
        %7892 = vmatprep.subr.mxu0 0.0
        %7893 = vmatpush2.xpose.msra.mxu0 0.0
        %7894 = vmatprep.subr.mxu0 0.0
        %7895 = vmatpush2.xpose.msra.mxu0 0.0
        %7896 = vmatprep.mubr.f32.mxu0 0.0
        %v7897 = vand.u32 %v7621, 4294901760
        %v7898 = vsub.f32 %v7621, %v7897
        %7899 = vmatmul.mubr.f32.gmra.mxu0 %v7898
        %v7900 = vpop.f32.mrf.mxu0
        %v7901 = vadd.f32 %v7815, %v7900
        %v7902 = vpop.f32.mrf.mxu0
        %7903 = vmatprep.mubr.f32.mxu0 0.0
        %v7904 = vand.u32 %v7624, 4294901760
        %v7905 = vsub.f32 %v7624, %v7904
        %7906 = vmatmul.mubr.f32.gmra.mxu0 %v7905
        %v7907 = vpop.f32.mrf.mxu0
        %v7908 = vadd.f32 %v7821, %v7907
        %v7909 = vpop.f32.mrf.mxu0
        %7910 = vdwg.mxu0
        %7911 = vmatprep.subr.mxu0 0.0
        %7912 = vmatpush1.xpose.msra.mxu0 0.0
        %7913 = vmatprep.subr.mxu0 0.0
        %7914 = vmatpush1.xpose.msra.mxu0 0.0
        %7915 = vmatprep.subr.mxu0 0.0
        %7916 = vmatpush1.xpose.msra.mxu0 0.0
        %7917 = vmatprep.subr.mxu0 0.0
        %7918 = vmatpush1.xpose.msra.mxu0 0.0
        %7919 = vmatprep.subr.mxu0 0.0
        %7920 = vmatpush1.xpose.msra.mxu0 0.0
        %7921 = vmatprep.subr.mxu0 0.0
        %7922 = vmatpush1.xpose.msra.mxu0 0.0
        %7923 = vmatprep.subr.mxu0 0.0
        %7924 = vmatpush1.xpose.msra.mxu0 0.0
        %7925 = vmatprep.subr.mxu0 0.0
        %7926 = vmatpush1.xpose.msra.mxu0 0.0
        %7927 = vmatprep.subr.mxu0 0.0
        %7928 = vmatpush1.xpose.msra.mxu0 0.0
        %7929 = vmatprep.subr.mxu0 0.0
        %7930 = vmatpush1.xpose.msra.mxu0 0.0
        %7931 = vmatprep.subr.mxu0 0.0
        %7932 = vmatpush1.xpose.msra.mxu0 0.0
        %7933 = vmatprep.subr.mxu0 0.0
        %7934 = vmatpush1.xpose.msra.mxu0 0.0
        %7935 = vmatprep.subr.mxu0 0.0
        %v7936 = vand.u32 %v7636, 4294901760
        %7937 = vmatpush1.xpose.msra.mxu0 %v7936
        %7938 = vmatprep.subr.mxu0 0.0
        %v7939 = vand.u32 %v7633, 4294901760
        %7940 = vmatpush1.xpose.msra.mxu0 %v7939
        %7941 = vmatprep.subr.mxu0 0.0
        %v7942 = vand.u32 %v7630, 4294901760
        %7943 = vmatpush1.xpose.msra.mxu0 %v7942
        %7944 = vmatprep.subr.mxu0 0.0
        %v7945 = vand.u32 %v7627, 4294901760
        %7946 = vmatpush1.xpose.msra.mxu0 %v7945
        %7947 = vmatprep.subr.mxu0 0.0
        %7948 = vmatpush2.xpose.msra.mxu0 0.0
        %7949 = vmatprep.subr.mxu0 0.0
        %7950 = vmatpush2.xpose.msra.mxu0 0.0
        %7951 = vmatprep.subr.mxu0 0.0
        %7952 = vmatpush2.xpose.msra.mxu0 0.0
        %7953 = vmatprep.subr.mxu0 0.0
        %7954 = vmatpush2.xpose.msra.mxu0 0.0
        %7955 = vmatprep.subr.mxu0 0.0
        %7956 = vmatpush2.xpose.msra.mxu0 0.0
        %7957 = vmatprep.subr.mxu0 0.0
        %7958 = vmatpush2.xpose.msra.mxu0 0.0
        %7959 = vmatprep.subr.mxu0 0.0
        %7960 = vmatpush2.xpose.msra.mxu0 0.0
        %7961 = vmatprep.subr.mxu0 0.0
        %7962 = vmatpush2.xpose.msra.mxu0 0.0
        %7963 = vmatprep.subr.mxu0 0.0
        %7964 = vmatpush2.xpose.msra.mxu0 0.0
        %7965 = vmatprep.subr.mxu0 0.0
        %7966 = vmatpush2.xpose.msra.mxu0 0.0
        %7967 = vmatprep.subr.mxu0 0.0
        %7968 = vmatpush2.xpose.msra.mxu0 0.0
        %7969 = vmatprep.subr.mxu0 0.0
        %7970 = vmatpush2.xpose.msra.mxu0 0.0
        %7971 = vmatprep.subr.mxu0 0.0
        %7972 = vmatpush2.xpose.msra.mxu0 0.0
        %7973 = vmatprep.subr.mxu0 0.0
        %7974 = vmatpush2.xpose.msra.mxu0 0.0
        %7975 = vmatprep.subr.mxu0 0.0
        %7976 = vmatpush2.xpose.msra.mxu0 0.0
        %7977 = vmatprep.subr.mxu0 0.0
        %7978 = vmatpush2.xpose.msra.mxu0 0.0
        %7979 = vmatprep.mubr.f32.mxu0 0.0
        %v7980 = vand.u32 %v7621, 4294901760
        %v7981 = vsub.f32 %v7621, %v7980
        %v7982 = vand.u32 %v7981, 4294901760
        %7983 = vmatmul.mubr.f32.gmra.mxu0 %v7982
        %v7984 = vpop.f32.mrf.mxu0
        %v7985 = vadd.f32 %v7901, %v7984
        %v7986 = vpop.f32.mrf.mxu0
        %7987 = vmatprep.mubr.f32.mxu0 0.0
        %v7988 = vand.u32 %v7624, 4294901760
        %v7989 = vsub.f32 %v7624, %v7988
        %v7990 = vand.u32 %v7989, 4294901760
        %7991 = vmatmul.mubr.f32.gmra.mxu0 %v7990
        %v7992 = vpop.f32.mrf.mxu0
        %v7993 = vadd.f32 %v7908, %v7992
        %v7994 = vpop.f32.mrf.mxu0
        %7995 = vdwg.mxu0
        %7996 = vmatprep.subr.mxu0 0.0
        %7997 = vmatpush1.xpose.msra.mxu0 0.0
        %7998 = vmatprep.subr.mxu0 0.0
        %7999 = vmatpush1.xpose.msra.mxu0 0.0
        %8000 = vmatprep.subr.mxu0 0.0
        %8001 = vmatpush1.xpose.msra.mxu0 0.0
        %8002 = vmatprep.subr.mxu0 0.0
        %8003 = vmatpush1.xpose.msra.mxu0 0.0
        %8004 = vmatprep.subr.mxu0 0.0
        %8005 = vmatpush1.xpose.msra.mxu0 0.0
        %8006 = vmatprep.subr.mxu0 0.0
        %8007 = vmatpush1.xpose.msra.mxu0 0.0
        %8008 = vmatprep.subr.mxu0 0.0
        %8009 = vmatpush1.xpose.msra.mxu0 0.0
        %8010 = vmatprep.subr.mxu0 0.0
        %8011 = vmatpush1.xpose.msra.mxu0 0.0
        %8012 = vmatprep.subr.mxu0 0.0
        %8013 = vmatpush1.xpose.msra.mxu0 0.0
        %8014 = vmatprep.subr.mxu0 0.0
        %8015 = vmatpush1.xpose.msra.mxu0 0.0
        %8016 = vmatprep.subr.mxu0 0.0
        %8017 = vmatpush1.xpose.msra.mxu0 0.0
        %8018 = vmatprep.subr.mxu0 0.0
        %8019 = vmatpush1.xpose.msra.mxu0 0.0
        %8020 = vmatprep.subr.mxu0 0.0
        %v8021 = vand.u32 %v7636, 4294901760
        %v8022 = vsub.f32 %v7636, %v8021
        %v8023 = vand.u32 %v8022, 4294901760
        %8024 = vmatpush1.xpose.msra.mxu0 %v8023
        %8025 = vmatprep.subr.mxu0 0.0
        %v8026 = vand.u32 %v7633, 4294901760
        %v8027 = vsub.f32 %v7633, %v8026
        %v8028 = vand.u32 %v8027, 4294901760
        %8029 = vmatpush1.xpose.msra.mxu0 %v8028
        %8030 = vmatprep.subr.mxu0 0.0
        %v8031 = vand.u32 %v7630, 4294901760
        %v8032 = vsub.f32 %v7630, %v8031
        %v8033 = vand.u32 %v8032, 4294901760
        %8034 = vmatpush1.xpose.msra.mxu0 %v8033
        %8035 = vmatprep.subr.mxu0 0.0
        %v8036 = vand.u32 %v7627, 4294901760
        %v8037 = vsub.f32 %v7627, %v8036
        %v8038 = vand.u32 %v8037, 4294901760
        %8039 = vmatpush1.xpose.msra.mxu0 %v8038
        %8040 = vmatprep.subr.mxu0 0.0
        %8041 = vmatpush2.xpose.msra.mxu0 0.0
        %8042 = vmatprep.subr.mxu0 0.0
        %8043 = vmatpush2.xpose.msra.mxu0 0.0
        %8044 = vmatprep.subr.mxu0 0.0
        %8045 = vmatpush2.xpose.msra.mxu0 0.0
        %8046 = vmatprep.subr.mxu0 0.0
        %8047 = vmatpush2.xpose.msra.mxu0 0.0
        %8048 = vmatprep.subr.mxu0 0.0
        %8049 = vmatpush2.xpose.msra.mxu0 0.0
        %8050 = vmatprep.subr.mxu0 0.0
        %8051 = vmatpush2.xpose.msra.mxu0 0.0
        %8052 = vmatprep.subr.mxu0 0.0
        %8053 = vmatpush2.xpose.msra.mxu0 0.0
        %8054 = vmatprep.subr.mxu0 0.0
        %8055 = vmatpush2.xpose.msra.mxu0 0.0
        %8056 = vmatprep.subr.mxu0 0.0
        %8057 = vmatpush2.xpose.msra.mxu0 0.0
        %8058 = vmatprep.subr.mxu0 0.0
        %8059 = vmatpush2.xpose.msra.mxu0 0.0
        %8060 = vmatprep.subr.mxu0 0.0
        %8061 = vmatpush2.xpose.msra.mxu0 0.0
        %8062 = vmatprep.subr.mxu0 0.0
        %8063 = vmatpush2.xpose.msra.mxu0 0.0
        %8064 = vmatprep.subr.mxu0 0.0
        %8065 = vmatpush2.xpose.msra.mxu0 0.0
        %8066 = vmatprep.subr.mxu0 0.0
        %8067 = vmatpush2.xpose.msra.mxu0 0.0
        %8068 = vmatprep.subr.mxu0 0.0
        %8069 = vmatpush2.xpose.msra.mxu0 0.0
        %8070 = vmatprep.subr.mxu0 0.0
        %8071 = vmatpush2.xpose.msra.mxu0 0.0
        %8072 = vmatprep.mubr.f32.mxu0 0.0
        %v8073 = vand.u32 %v7621, 4294901760
        %8074 = vmatmul.mubr.f32.gmra.mxu0 %v8073
        %v8075 = vpop.f32.mrf.mxu0
        %v8076 = vadd.f32 %v7985, %v8075
        %v8077 = vpop.f32.mrf.mxu0
        %8078 = vmatprep.mubr.f32.mxu0 0.0
        %v8079 = vand.u32 %v7624, 4294901760
        %8080 = vmatmul.mubr.f32.gmra.mxu0 %v8079
        %v8081 = vpop.f32.mrf.mxu0
        %v8082 = vadd.f32 %v7993, %v8081
        %v8083 = vpop.f32.mrf.mxu0
        %8084 = vdwg.mxu0
        %8085 = vmatprep.subr.mxu0 0.0
        %8086 = vmatpush1.xpose.msra.mxu0 0.0
        %8087 = vmatprep.subr.mxu0 0.0
        %8088 = vmatpush1.xpose.msra.mxu0 0.0
        %8089 = vmatprep.subr.mxu0 0.0
        %8090 = vmatpush1.xpose.msra.mxu0 0.0
        %8091 = vmatprep.subr.mxu0 0.0
        %8092 = vmatpush1.xpose.msra.mxu0 0.0
        %8093 = vmatprep.subr.mxu0 0.0
        %8094 = vmatpush1.xpose.msra.mxu0 0.0
        %8095 = vmatprep.subr.mxu0 0.0
        %8096 = vmatpush1.xpose.msra.mxu0 0.0
        %8097 = vmatprep.subr.mxu0 0.0
        %8098 = vmatpush1.xpose.msra.mxu0 0.0
        %8099 = vmatprep.subr.mxu0 0.0
        %8100 = vmatpush1.xpose.msra.mxu0 0.0
        %8101 = vmatprep.subr.mxu0 0.0
        %8102 = vmatpush1.xpose.msra.mxu0 0.0
        %8103 = vmatprep.subr.mxu0 0.0
        %8104 = vmatpush1.xpose.msra.mxu0 0.0
        %8105 = vmatprep.subr.mxu0 0.0
        %8106 = vmatpush1.xpose.msra.mxu0 0.0
        %8107 = vmatprep.subr.mxu0 0.0
        %8108 = vmatpush1.xpose.msra.mxu0 0.0
        %8109 = vmatprep.subr.mxu0 0.0
        %v8110 = vand.u32 %v7636, 4294901760
        %8111 = vmatpush1.xpose.msra.mxu0 %v8110
        %8112 = vmatprep.subr.mxu0 0.0
        %v8113 = vand.u32 %v7633, 4294901760
        %8114 = vmatpush1.xpose.msra.mxu0 %v8113
        %8115 = vmatprep.subr.mxu0 0.0
        %v8116 = vand.u32 %v7630, 4294901760
        %8117 = vmatpush1.xpose.msra.mxu0 %v8116
        %8118 = vmatprep.subr.mxu0 0.0
        %v8119 = vand.u32 %v7627, 4294901760
        %8120 = vmatpush1.xpose.msra.mxu0 %v8119
        %8121 = vmatprep.subr.mxu0 0.0
        %8122 = vmatpush2.xpose.msra.mxu0 0.0
        %8123 = vmatprep.subr.mxu0 0.0
        %8124 = vmatpush2.xpose.msra.mxu0 0.0
        %8125 = vmatprep.subr.mxu0 0.0
        %8126 = vmatpush2.xpose.msra.mxu0 0.0
        %8127 = vmatprep.subr.mxu0 0.0
        %8128 = vmatpush2.xpose.msra.mxu0 0.0
        %8129 = vmatprep.subr.mxu0 0.0
        %8130 = vmatpush2.xpose.msra.mxu0 0.0
        %8131 = vmatprep.subr.mxu0 0.0
        %8132 = vmatpush2.xpose.msra.mxu0 0.0
        %8133 = vmatprep.subr.mxu0 0.0
        %8134 = vmatpush2.xpose.msra.mxu0 0.0
        %8135 = vmatprep.subr.mxu0 0.0
        %8136 = vmatpush2.xpose.msra.mxu0 0.0
        %8137 = vmatprep.subr.mxu0 0.0
        %8138 = vmatpush2.xpose.msra.mxu0 0.0
        %8139 = vmatprep.subr.mxu0 0.0
        %8140 = vmatpush2.xpose.msra.mxu0 0.0
        %8141 = vmatprep.subr.mxu0 0.0
        %8142 = vmatpush2.xpose.msra.mxu0 0.0
        %8143 = vmatprep.subr.mxu0 0.0
        %8144 = vmatpush2.xpose.msra.mxu0 0.0
        %8145 = vmatprep.subr.mxu0 0.0
        %8146 = vmatpush2.xpose.msra.mxu0 0.0
        %8147 = vmatprep.subr.mxu0 0.0
        %8148 = vmatpush2.xpose.msra.mxu0 0.0
        %8149 = vmatprep.subr.mxu0 0.0
        %8150 = vmatpush2.xpose.msra.mxu0 0.0
        %8151 = vmatprep.subr.mxu0 0.0
        %8152 = vmatpush2.xpose.msra.mxu0 0.0
        %8153 = vmatprep.mubr.f32.mxu0 0.0
        %v8154 = vand.u32 %v7621, 4294901760
        %8155 = vmatmul.mubr.f32.gmra.mxu0 %v8154
        %v8156 = vpop.f32.mrf.mxu0
        %v8157 = vadd.f32 %v8076, %v8156
        %v8158 = vpop.f32.mrf.mxu0
        %8159 = vmatprep.mubr.f32.mxu0 0.0
        %v8160 = vand.u32 %v7624, 4294901760
        %8161 = vmatmul.mubr.f32.gmra.mxu0 %v8160
        %v8162 = vpop.f32.mrf.mxu0
        %v8163 = vadd.f32 %v8082, %v8162
        %v8164 = vpop.f32.mrf.mxu0
        %8165 = vdwg.mxu0
        %v8166 = vadd.f32 %v6998, %v8157
        %v8167 = vadd.f32 %v6999, %v8163
        %v8168 = vsel %vm1418, %v8166, 0.0
        %8169 = vadd.xlane.f32.xlu0 %v8168
        %v8170 = vpop.xlane.xlu0 %8169
        %v8171 = vsel %vm1418, %v8167, 0.0
        %8172 = vadd.xlane.f32.xlu0 %v8171
        %v8173 = vpop.xlane.xlu0 %8172
        %v8174 = vmul.f32 %v8170, %v6967
        %v8175 = vmul.f32 %v8173, %v6967
        %v8176 = vsub.f32 %v8166, %v8174
        %v8177 = vsub.f32 %v8167, %v8175
        %v8178 = vmul.f32 %v8176, %v8176
        %v8179 = vmul.f32 %v8177, %v8177
        %v8180 = vsel %vm1418, %v8178, 0.0
        %8181 = vadd.xlane.f32.xlu0 %v8180
        %v8182 = vpop.xlane.xlu0 %8181
        %v8183 = vsel %vm1418, %v8179, 0.0
        %8184 = vadd.xlane.f32.xlu0 %v8183
        %v8185 = vpop.xlane.xlu0 %8184
        %v8186 = vmul.f32 %v8182, %v6967
        %v8187 = vmul.f32 %v8185, %v6967
        %v8188 = vadd.f32 %v8186, 1e-05
        %v8189 = vadd.f32 %v8187, 1e-05
        %v8190 = vrsqrt.pop %v8188
        %v8191 = vrsqrt.pop %v8189
        %v8192 = vmul.f32 %v8176, %v8190
        %v8193 = vmul.f32 %v8177, %v8191
        %v8194 = vlaneseq
        %v8195 = vshrl.u32 %v8194, 7
        %v8196 = vsub.s32 0, %v8195
        %v8197 = vrot.slane %v230, %v8196
        %v8198 = vmul.f32 %v8192, %v8197
        %v8199 = vmul.f32 %v8193, %v8197
        %v8200 = vlaneseq
        %v8201 = vshrl.u32 %v8200, 7
        %v8202 = vsub.s32 0, %v8201
        %v8203 = vrot.slane %v231, %v8202
        %v8204 = vadd.f32 %v8198, %v8203
        %v8205 = vadd.f32 %v8199, %v8203
        %8206 = vst.msk [vmem:[%s190] sm:$0xff] %vm1418, %v8204
        %8207 = vst.msk [vmem:[%s190 + $0x8] sm:$0xff] %vm1418, %v8205
        %s8208 = sand.u32 %s115, 1
        %s8209 = scalar_lea.sflag [#allocation3], %s8208
        %s8210 = sand.u32 %s115, 1
        %s8211 = smul.addr %s8210, 16
        %s8212 = scalar_lea.vmem [#allocation2], %s8211
        // Predicated region
        $region37: #{tpu_custom_call.1} parent=35 // pred_check
          %p8213 = pneg %p125
        $region38: #{tpu_custom_call.1} parent=35 // pred_check_branch
          %8215 = sbr.rel (%p8213) target = $region40
        $region39: #{tpu_custom_call.1} parent=35 // pred_region
          %s8217 = ssub.s32 256, 256
          %8218 = vsyncadd %s8209, %s8217
          %s8219 = smul.addr %s18, 2
          %s8220 = smul.addr %s8219, 128
          %s8221 = scalar_lea.hbm %s4, %s8220
          %s8222 = sshll.u32 %s8212, 4
          %s8223 = int_to_ptr.vmem [resolvable:$true] %s8222
          %8228 = dma.vmem_to_hbm [thread:$0]  %s8223, 256, %s8221, %s8209, 128, 128, 8
        $region40: #{tpu_custom_call.1} parent=35 // pred_fallthru
          _
      $region36: #{tpu_custom_call.1} parent=5 // pred_fallthru
        _
      %p8229 = scmp.le.s32.totalorder 2, %s13
      // Predicated region
      $region41: #{tpu_custom_call.1} parent=5 // pred_check
        %p8230 = pneg %p8229
      $region42: #{tpu_custom_call.1} parent=5 // pred_check_branch
        %8232 = sbr.rel (%p8230) target = $region44
      $region43: #{tpu_custom_call.1} parent=5 // pred_region
        %s8233 = ssub.s32 %s13, 2
        // Predicated region
        $region45: #{tpu_custom_call.1} parent=43 // pred_check
          %p8234 = pneg %p131
        $region46: #{tpu_custom_call.1} parent=43 // pred_check_branch
          %8236 = sbr.rel (%p8234) target = $region48
        $region47: #{tpu_custom_call.1} parent=43 // pred_region
          %s8237 = sand.u32 %s116, 1
          %s8238 = scalar_lea.sflag [#allocation3], %s8237
          %s8239 = sand.u32 %s116, 1
          %s8240 = smul.addr %s8239, 16
          %s8241 = scalar_lea.vmem [#allocation2], %s8240
          %8242 = dma.done %s8238, 256
        $region48: #{tpu_custom_call.1} parent=43 // pred_fallthru
          _
      $region44: #{tpu_custom_call.1} parent=5 // pred_fallthru
        _
    $region6: #{tpu_custom_call.1} parent=1 // loop_footer
      %s17 = sadd.s32 1, %s13
    $region7: #{tpu_custom_call.1} parent=1 // loop_footer_branch
      %12 = sbr.rel target = $region3
    $region8: #{tpu_custom_call.1} parent=1 // loop_exit
      _
    %8243 = vsyncpa [#allocation3], 1
    %s8244 = scalar_lea.sflag [#allocation3], 1
    %8245 = vsyncpa %s8244, 1

</llo_original>
